<compile_context>
chip_gen: v7x
topology: tpu7x:2x2x1
jax: 0.10.0
libtpu: 0.0.40
codegen_flags: <defaults>
</compile_context>

<pallas_src>
import functools

import jax
import jax.numpy as jnp
import numpy as np
from jax.experimental import pallas as pl
from jax.experimental.pallas import tpu as pltpu

NEG = -1e30  # additive mask for invalid time positions


def _round_up(n, m):
    return ((n + m - 1) // m) * m


# ----------------------------------------------------------------------------
# Fused kernel: one batch tile = 6 channels x all conv branches
#               (+bias+ReLU+time-max) + 3-layer MLP
# ----------------------------------------------------------------------------
def wcnn_fused_kernel(x_ref, wc_ref, bc_ref, tmask_ref,
                      w1_ref, b1_ref, w2_ref, b2_ref, w3_ref, b3_ref,
                      o_ref, *, n_chan, b_tile, lp, nkp, max_ks):
    # x_ref    : (b_tile, 6, lp, wd)   f32 activations (lp % 8 == 0)
    # wc_ref   : (6, wd, max_ks*nkp)   bf16, dt-major packed conv weights
    # bc_ref   : (1, 6*nkp)            f32 conv biases (channel-major blocks)
    # tmask_ref: (lp, nkp)             f32 additive mask (0 valid / -1e30 invalid)
    # w1/w2/w3, b1/b2/b3               zero-padded, permuted MLP params
    # o_ref    : (b_tile, cls_pad)     lane-dense logits (real classes first)
    tmask = tmask_ref[...]
    feats = []
    for c in range(n_chan):
        # (b_tile, lp, wd) -> (b_tile*lp, wd): free sublane merge (lp % 8 == 0);
        # cast to bf16 so the MXU runs at bf16 rate (accumulation stays f32).
        xc = x_ref[:, c, :, :].reshape(b_tile * lp, -1).astype(jnp.bfloat16)
        # ONE MXU matmul per channel; every (dt, branch) weight slice is a
        # lane-dense column block of width nkp (dt-major packing).
        p = jnp.dot(xc, wc_ref[c], preferred_element_type=jnp.float32)

        # Shift-add over the kernel taps.  dt-block d holds the REVERSED tap
        # w[ks-1-d], so rolling block d down by d rows (pltpu.roll == np.roll,
        # XLU slot, vreg-aligned) lines every tap up on output row s, which then
        # holds the Conv2d output at t = s - (ks-1).  Wrapped / partial rows are
        # excluded by tmask before the max.
        acc = p[:, 0:nkp]
        for d in range(1, max_ks):
            acc = acc + pltpu.roll(p[:, d * nkp:(d + 1) * nkp], shift=d, axis=0)

        # Masked time-max: one reduction over the aligned time axis per channel.
        acc = acc.reshape(b_tile, lp, nkp) + tmask            # broadcast over batch
        feats.append(jnp.max(acc, axis=1))                    # (b_tile, nkp)

    # Lane-aligned concat (each piece is a whole number of 128-lane vregs).
    feat = jnp.concatenate(feats, axis=1)                     # (b_tile, 6*nkp)
    # relu(x + b) is monotone, so bias + ReLU commute with the time-max above.
    feat = jnp.maximum(feat + bc_ref[...], 0.0)
    # Dropout == identity (eval-mode forward).
    # TODO(synk): training-mode dropout mask not implemented.

    h1 = jnp.maximum(
        jnp.dot(feat.astype(jnp.bfloat16), w1_ref[...],
                preferred_element_type=jnp.float32) + b1_ref[...], 0.0)
    h2 = jnp.maximum(
        jnp.dot(h1.astype(jnp.bfloat16), w2_ref[...],
                preferred_element_type=jnp.float32) + b2_ref[...], 0.0)
    o_ref[...] = (
        jnp.dot(h2.astype(jnp.bfloat16), w3_ref[...],
                preferred_element_type=jnp.float32) + b3_ref[...])


# ----------------------------------------------------------------------------
# Forward wrapper (single pallas_call, grid over batch tiles)
# ----------------------------------------------------------------------------
def wcnn_forward(x, params, *, kernel_sizes, kernel_nums, wd, num_class,
                 b_tile=8):
    wc, bc, w1, b1, w2, b2, w3, b3 = params
    B, C, H, W = x.shape
    assert C == 6, "WCNN expects 6 word channels"
    assert (H * W) % wd == 0, "H*W must be divisible by the reshape width"
    L = (H * W) // wd
    max_ks = max(kernel_sizes)
    assert L >= max_ks, "sequence too short for largest conv kernel"

    nk = sum(kernel_nums)
    nkp = _round_up(nk, 128)
    ncols = max_ks * nkp
    lp = _round_up(L, 8)
    cls_pad = w3.shape[1]

    b_tile = max(1, min(b_tile, B))
    bp = _round_up(B, b_tile)

    # (B,6,H,W) -> (B,6,L,wd): the hard-coded reshape from the PyTorch forward.
    # No transpose, no 100->128 lane pad; only ragged L / B trigger a small pad.
    xr = x.reshape(B, 6, L, wd)
    if lp != L or bp != B:
        xr = jnp.pad(xr, ((0, bp - B), (0, 0), (0, lp - L), (0, 0)))

    # Additive time mask: branch i (columns off..off+K) is valid for rows
    # s in [ks_i-1, L-1] (exactly T_i = L-ks_i+1 positions); padded columns stay 0.
    tmask = np.zeros((lp, nkp), np.float32)
    off = 0
    for ks, K in zip(kernel_sizes, kernel_nums):
        invalid = np.ones((lp,), bool)
        invalid[ks - 1:L] = False
        tmask[invalid, off:off + K] = NEG
        off += K

    grid = (bp // b_tile,)
    flops = int(grid[0] * 6 * 2 * (b_tile * lp) * wd * ncols
                + 2 * bp * (w1.shape[0] * w1.shape[1]
                            + w2.shape[0] * w2.shape[1]
                            + w3.shape[0] * w3.shape[1]))
    bytes_accessed = int(xr.size * 4
                         + (wc.size + w1.size + w2.size + w3.size) * 2
                         + (bc.size + b1.size + b2.size + b3.size
                            + tmask.size) * 4
                         + bp * cls_pad * 4)

    kernel = functools.partial(
        wcnn_fused_kernel, n_chan=6, b_tile=b_tile, lp=lp, nkp=nkp,
        max_ks=max_ks)

    logits_padded = pl.pallas_call(
        kernel,
        grid=grid,
        in_specs=[
            pl.BlockSpec((b_tile, 6, lp, wd), lambda i: (i, 0, 0, 0)),
            pl.BlockSpec(wc.shape, lambda i: (0, 0, 0)),   # resident weights
            pl.BlockSpec(bc.shape, lambda i: (0, 0)),
            pl.BlockSpec((lp, nkp), lambda i: (0, 0)),
            pl.BlockSpec(w1.shape, lambda i: (0, 0)),
            pl.BlockSpec(b1.shape, lambda i: (0, 0)),
            pl.BlockSpec(w2.shape, lambda i: (0, 0)),
            pl.BlockSpec(b2.shape, lambda i: (0, 0)),
            pl.BlockSpec(w3.shape, lambda i: (0, 0)),
            pl.BlockSpec(b3.shape, lambda i: (0, 0)),
        ],
        out_specs=pl.BlockSpec((b_tile, cls_pad), lambda i: (i, 0)),
        out_shape=jax.ShapeDtypeStruct((bp, cls_pad), jnp.float32),
        compiler_params=pltpu.CompilerParams(
            dimension_semantics=("parallel",),
            vmem_limit_bytes=64 * 1024 * 1024),
        cost_estimate=pl.CostEstimate(
            flops=flops, transcendentals=0, bytes_accessed=bytes_accessed),
    )(xr, wc, bc, jnp.asarray(tmask), w1, b1, w2, b2, w3, b3)

    return logits_padded[:B, :num_class]


# ----------------------------------------------------------------------------
# Parameter construction (pre-packed / pre-padded for the fused kernel)
# ----------------------------------------------------------------------------
def init_params(key, *, kernel_sizes, kernel_nums, wd, num_fc1, num_fc2,
                num_class, n_chan=6):
    nk = sum(kernel_nums)
    nkp = _round_up(nk, 128)
    max_ks = max(kernel_sizes)
    ncols = max_ks * nkp
    fc1p = _round_up(num_fc1, 128)
    fc2p = _round_up(num_fc2, 128)
    clsp = _round_up(num_class, 128)
    fdim = n_chan * nk

    keys = iter(jax.random.split(key, n_chan * len(kernel_sizes) * 2 + 6))

    def normal(k, shape):
        return np.asarray(0.05 * jax.random.normal(k, shape, jnp.float32))

    # Conv params.  PyTorch Conv2d weight (K, 1, ks, wd) corresponds to
    # w[dt, :, k] below (verify the transpose when loading a real checkpoint);
    # dt-block d of the packed matrix holds the REVERSED tap w[ks-1-d], zero
    # padded per block to a lane-dense width nkp.
    wc = np.zeros((n_chan, wd, ncols), np.float32)
    bc = np.zeros((1, n_chan * nkp), np.float32)
    for c in range(n_chan):
        off = 0
        for ks, K in zip(kernel_sizes, kernel_nums):
            w = normal(next(keys), (ks, wd, K))
            b = normal(next(keys), (K,))
            for d in range(ks):
                wc[c, :, d * nkp + off:d * nkp + off + K] = w[ks - 1 - d]
            bc[0, c * nkp + off:c * nkp + off + K] = b
            off += K

    # MLP params, zero padded to lane multiples.  fc1's input rows are laid out
    # to match the kernel's feature slab: channel-major blocks of width nkp with
    # the real nk features first in each block (== torch.cat((x1..x6),1) order).
    w1_log = normal(next(keys), (fdim, num_fc1))
    b1_log = normal(next(keys), (num_fc1,))
    w2_log = normal(next(keys), (num_fc1, num_fc2))
    b2_log = normal(next(keys), (num_fc2,))
    w3_log = normal(next(keys), (num_fc2, num_class))
    b3_log = normal(next(keys), (num_class,))

    w1 = np.zeros((n_chan * nkp, fc1p), np.float32)
    for c in range(n_chan):
        w1[c * nkp:c * nkp + nk, :num_fc1] = w1_log[c * nk:(c + 1) * nk]
    b1 = np.zeros((1, fc1p), np.float32)
    b1[0, :num_fc1] = b1_log
    w2 = np.zeros((fc1p, fc2p), np.float32)
    w2[:num_fc1, :num_fc2] = w2_log
    b2 = np.zeros((1, fc2p), np.float32)
    b2[0, :num_fc2] = b2_log
    w3 = np.zeros((fc2p, clsp), np.float32)
    w3[:num_fc2, :num_class] = w3_log
    b3 = np.zeros((1, clsp), np.float32)
    b3[0, :num_class] = b3_log

    bf = jnp.bfloat16
    return (jnp.asarray(wc, bf), jnp.asarray(bc, jnp.float32),
            jnp.asarray(w1, bf), jnp.asarray(b1, jnp.float32),
            jnp.asarray(w2, bf), jnp.asarray(b2, jnp.float32),
            jnp.asarray(w3, bf), jnp.asarray(b3, jnp.float32))


if __name__ == "__main__":
    # Small config consistent with the module's forward: the hard-coded reshape
    # width (100) must equal num_token for squeeze(3) to be valid.  H=24, W=100
    # gives L=24 (multiple of 8) so the wrapper does no padding at all; B=16
    # with B_TILE=8 exercises the batch grid (2 pipelined / megacore-parallel
    # steps).  Other sizes are shrunk for a quick synthetic run.
    KERNEL_SIZES = (3, 7)
    KERNEL_NUMS = (32, 32)
    NUM_FC1, NUM_FC2, NUM_CLASS = 64, 32, 5
    WD = 100                       # num_token / reshape width
    B, H, W = 16, 24, 100          # per-channel (H*W)//100 -> L = 24
    B_TILE = 8

    key = jax.random.PRNGKey(0)
    k_x, k_p = jax.random.split(key)
    x = jax.random.normal(k_x, (B, 6, H, W), jnp.float32)
    params = init_params(
        k_p, kernel_sizes=KERNEL_SIZES, kernel_nums=KERNEL_NUMS, wd=WD,
        num_fc1=NUM_FC1, num_fc2=NUM_FC2, num_class=NUM_CLASS)

    fwd = jax.jit(functools.partial(
        wcnn_forward, kernel_sizes=KERNEL_SIZES, kernel_nums=KERNEL_NUMS,
        wd=WD, num_class=NUM_CLASS, b_tile=B_TILE))
    out = fwd(x, params)
    jax.block_until_ready(out)
    assert out.shape == (B, NUM_CLASS), out.shape
    assert bool(jnp.all(jnp.isfinite(out)))
    print("KERNEL_OK")
</pallas_src>

<mosaic_0001>
module attributes {stable_mosaic.version = 11 : i64} {
  func.func @wcnn_fused_kernel(%arg0: i32, %arg1: memref<8x6x24x100xf32, #tpu.memory_space<vmem>>, %arg2: memref<6x100x896xbf16, #tpu.memory_space<vmem>>, %arg3: memref<1x768xf32, #tpu.memory_space<vmem>>, %arg4: memref<24x128xf32, #tpu.memory_space<vmem>>, %arg5: memref<768x128xbf16, #tpu.memory_space<vmem>>, %arg6: memref<1x128xf32, #tpu.memory_space<vmem>>, %arg7: memref<128x128xbf16, #tpu.memory_space<vmem>>, %arg8: memref<1x128xf32, #tpu.memory_space<vmem>>, %arg9: memref<128x128xbf16, #tpu.memory_space<vmem>>, %arg10: memref<1x128xf32, #tpu.memory_space<vmem>>, %arg11: memref<8x128xf32, #tpu.memory_space<vmem>>) attributes {dimension_semantics = [#tpu.dimension_semantics<parallel>], iteration_bounds = array<i64: 2>, scalar_prefetch = 0 : i64, scratch_operands = 0 : i64, tpu.core_type = #tpu.core_type<tc>, window_params = [{transform_indices = @transform_0, window_bounds = array<i64: 8, 6, 24, 100>}, {pipeline_mode = #tpu.pipeline_mode<synchronous>, transform_indices = @transform_1, window_bounds = array<i64: 6, 100, 896>}, {pipeline_mode = #tpu.pipeline_mode<synchronous>, transform_indices = @transform_2, window_bounds = array<i64: 1, 768>}, {pipeline_mode = #tpu.pipeline_mode<synchronous>, transform_indices = @transform_3, window_bounds = array<i64: 24, 128>}, {pipeline_mode = #tpu.pipeline_mode<synchronous>, transform_indices = @transform_4, window_bounds = array<i64: 768, 128>}, {pipeline_mode = #tpu.pipeline_mode<synchronous>, transform_indices = @transform_5, window_bounds = array<i64: 1, 128>}, {pipeline_mode = #tpu.pipeline_mode<synchronous>, transform_indices = @transform_6, window_bounds = array<i64: 128, 128>}, {pipeline_mode = #tpu.pipeline_mode<synchronous>, transform_indices = @transform_7, window_bounds = array<i64: 1, 128>}, {pipeline_mode = #tpu.pipeline_mode<synchronous>, transform_indices = @transform_8, window_bounds = array<i64: 128, 128>}, {pipeline_mode = #tpu.pipeline_mode<synchronous>, transform_indices = @transform_9, window_bounds = array<i64: 1, 128>}, {transform_indices = @transform_10, window_bounds = array<i64: 8, 128>}]} {
    %c0 = arith.constant 0 : index
    %c0_0 = arith.constant 0 : index
    %0 = vector.load %arg4[%c0, %c0_0] : memref<24x128xf32, #tpu.memory_space<vmem>>, vector<24x128xf32>
    %c0_1 = arith.constant 0 : index
    %c0_2 = arith.constant 0 : index
    %c0_3 = arith.constant 0 : index
    %c0_4 = arith.constant 0 : index
    %1 = vector.load %arg1[%c0_1, %c0_2, %c0_3, %c0_4] : memref<8x6x24x100xf32, #tpu.memory_space<vmem>>, vector<8x1x24x100xf32>
    %2 = vector.shape_cast %1 : vector<8x1x24x100xf32> to vector<8x24x100xf32>
    %3 = vector.shape_cast %2 : vector<8x24x100xf32> to vector<192x100xf32>
    %4 = arith.truncf %3 : vector<192x100xf32> to vector<192x100xbf16>
    %c0_5 = arith.constant 0 : index
    %c0_6 = arith.constant 0 : index
    %c0_7 = arith.constant 0 : index
    %5 = vector.load %arg2[%c0_5, %c0_6, %c0_7] : memref<6x100x896xbf16, #tpu.memory_space<vmem>>, vector<1x100x896xbf16>
    %6 = vector.shape_cast %5 : vector<1x100x896xbf16> to vector<100x896xbf16>
    %cst = arith.constant dense<0.000000e+00> : vector<192x896xf32>
    %7 = tpu.matmul %4, %6, %cst {dimension_numbers = #tpu.dot_dimension_numbers<[1], [0], [0], [1], [0, 0, 1, 1], [], []>} : vector<192x100xbf16>, vector<100x896xbf16>, vector<192x896xf32> -> vector<192x896xf32>
    %8 = vector.extract_strided_slice %7 {offsets = [0, 0], sizes = [192, 128], strides = [1, 1]} : vector<192x896xf32> to vector<192x128xf32>
    %9 = vector.extract_strided_slice %7 {offsets = [0, 128], sizes = [192, 128], strides = [1, 1]} : vector<192x896xf32> to vector<192x128xf32>
    %c1_i32 = arith.constant 1 : i32
    %10 = tpu.dynamic_rotate %9 by %c1_i32 dim 0 : vector<192x128xf32>, i32 -> vector<192x128xf32>
    %11 = arith.addf %8, %10 : vector<192x128xf32>
    %12 = vector.extract_strided_slice %7 {offsets = [0, 256], sizes = [192, 128], strides = [1, 1]} : vector<192x896xf32> to vector<192x128xf32>
    %c2_i32 = arith.constant 2 : i32
    %13 = tpu.dynamic_rotate %12 by %c2_i32 dim 0 : vector<192x128xf32>, i32 -> vector<192x128xf32>
    %14 = arith.addf %11, %13 : vector<192x128xf32>
    %15 = vector.extract_strided_slice %7 {offsets = [0, 384], sizes = [192, 128], strides = [1, 1]} : vector<192x896xf32> to vector<192x128xf32>
    %c3_i32 = arith.constant 3 : i32
    %16 = tpu.dynamic_rotate %15 by %c3_i32 dim 0 : vector<192x128xf32>, i32 -> vector<192x128xf32>
    %17 = arith.addf %14, %16 : vector<192x128xf32>
    %18 = vector.extract_strided_slice %7 {offsets = [0, 512], sizes = [192, 128], strides = [1, 1]} : vector<192x896xf32> to vector<192x128xf32>
    %c4_i32 = arith.constant 4 : i32
    %19 = tpu.dynamic_rotate %18 by %c4_i32 dim 0 : vector<192x128xf32>, i32 -> vector<192x128xf32>
    %20 = arith.addf %17, %19 : vector<192x128xf32>
    %21 = vector.extract_strided_slice %7 {offsets = [0, 640], sizes = [192, 128], strides = [1, 1]} : vector<192x896xf32> to vector<192x128xf32>
    %c5_i32 = arith.constant 5 : i32
    %22 = tpu.dynamic_rotate %21 by %c5_i32 dim 0 : vector<192x128xf32>, i32 -> vector<192x128xf32>
    %23 = arith.addf %20, %22 : vector<192x128xf32>
    %24 = vector.extract_strided_slice %7 {offsets = [0, 768], sizes = [192, 128], strides = [1, 1]} : vector<192x896xf32> to vector<192x128xf32>
    %c6_i32 = arith.constant 6 : i32
    %25 = tpu.dynamic_rotate %24 by %c6_i32 dim 0 : vector<192x128xf32>, i32 -> vector<192x128xf32>
    %26 = arith.addf %23, %25 : vector<192x128xf32>
    %27 = vector.shape_cast %26 : vector<192x128xf32> to vector<8x24x128xf32>
    %28 = vector.shape_cast %0 : vector<24x128xf32> to vector<1x24x128xf32>
    %29 = vector.broadcast %28 : vector<1x24x128xf32> to vector<8x24x128xf32>
    %30 = arith.addf %27, %29 : vector<8x24x128xf32>
    %cst_8 = arith.constant dense<0xFF800000> : vector<8x128xf32>
    %31 = vector.multi_reduction <maximumf>, %30, %cst_8 [1] : vector<8x24x128xf32> to vector<8x128xf32>
    %c0_9 = arith.constant 0 : index
    %c1 = arith.constant 1 : index
    %c0_10 = arith.constant 0 : index
    %c0_11 = arith.constant 0 : index
    %32 = vector.load %arg1[%c0_9, %c1, %c0_10, %c0_11] : memref<8x6x24x100xf32, #tpu.memory_space<vmem>>, vector<8x1x24x100xf32>
    %33 = vector.shape_cast %32 : vector<8x1x24x100xf32> to vector<8x24x100xf32>
    %34 = vector.shape_cast %33 : vector<8x24x100xf32> to vector<192x100xf32>
    %35 = arith.truncf %34 : vector<192x100xf32> to vector<192x100xbf16>
    %c1_12 = arith.constant 1 : index
    %c0_13 = arith.constant 0 : index
    %c0_14 = arith.constant 0 : index
    %36 = vector.load %arg2[%c1_12, %c0_13, %c0_14] : memref<6x100x896xbf16, #tpu.memory_space<vmem>>, vector<1x100x896xbf16>
    %37 = vector.shape_cast %36 : vector<1x100x896xbf16> to vector<100x896xbf16>
    %cst_15 = arith.constant dense<0.000000e+00> : vector<192x896xf32>
    %38 = tpu.matmul %35, %37, %cst_15 {dimension_numbers = #tpu.dot_dimension_numbers<[1], [0], [0], [1], [0, 0, 1, 1], [], []>} : vector<192x100xbf16>, vector<100x896xbf16>, vector<192x896xf32> -> vector<192x896xf32>
    %39 = vector.extract_strided_slice %38 {offsets = [0, 0], sizes = [192, 128], strides = [1, 1]} : vector<192x896xf32> to vector<192x128xf32>
    %40 = vector.extract_strided_slice %38 {offsets = [0, 128], sizes = [192, 128], strides = [1, 1]} : vector<192x896xf32> to vector<192x128xf32>
    %c1_i32_16 = arith.constant 1 : i32
    %41 = tpu.dynamic_rotate %40 by %c1_i32_16 dim 0 : vector<192x128xf32>, i32 -> vector<192x128xf32>
    %42 = arith.addf %39, %41 : vector<192x128xf32>
    %43 = vector.extract_strided_slice %38 {offsets = [0, 256], sizes = [192, 128], strides = [1, 1]} : vector<192x896xf32> to vector<192x128xf32>
    %c2_i32_17 = arith.constant 2 : i32
    %44 = tpu.dynamic_rotate %43 by %c2_i32_17 dim 0 : vector<192x128xf32>, i32 -> vector<192x128xf32>
    %45 = arith.addf %42, %44 : vector<192x128xf32>
    %46 = vector.extract_strided_slice %38 {offsets = [0, 384], sizes = [192, 128], strides = [1, 1]} : vector<192x896xf32> to vector<192x128xf32>
    %c3_i32_18 = arith.constant 3 : i32
    %47 = tpu.dynamic_rotate %46 by %c3_i32_18 dim 0 : vector<192x128xf32>, i32 -> vector<192x128xf32>
    %48 = arith.addf %45, %47 : vector<192x128xf32>
    %49 = vector.extract_strided_slice %38 {offsets = [0, 512], sizes = [192, 128], strides = [1, 1]} : vector<192x896xf32> to vector<192x128xf32>
    %c4_i32_19 = arith.constant 4 : i32
    %50 = tpu.dynamic_rotate %49 by %c4_i32_19 dim 0 : vector<192x128xf32>, i32 -> vector<192x128xf32>
    %51 = arith.addf %48, %50 : vector<192x128xf32>
    %52 = vector.extract_strided_slice %38 {offsets = [0, 640], sizes = [192, 128], strides = [1, 1]} : vector<192x896xf32> to vector<192x128xf32>
    %c5_i32_20 = arith.constant 5 : i32
    %53 = tpu.dynamic_rotate %52 by %c5_i32_20 dim 0 : vector<192x128xf32>, i32 -> vector<192x128xf32>
    %54 = arith.addf %51, %53 : vector<192x128xf32>
    %55 = vector.extract_strided_slice %38 {offsets = [0, 768], sizes = [192, 128], strides = [1, 1]} : vector<192x896xf32> to vector<192x128xf32>
    %c6_i32_21 = arith.constant 6 : i32
    %56 = tpu.dynamic_rotate %55 by %c6_i32_21 dim 0 : vector<192x128xf32>, i32 -> vector<192x128xf32>
    %57 = arith.addf %54, %56 : vector<192x128xf32>
    %58 = vector.shape_cast %57 : vector<192x128xf32> to vector<8x24x128xf32>
    %59 = vector.shape_cast %0 : vector<24x128xf32> to vector<1x24x128xf32>
    %60 = vector.broadcast %59 : vector<1x24x128xf32> to vector<8x24x128xf32>
    %61 = arith.addf %58, %60 : vector<8x24x128xf32>
    %cst_22 = arith.constant dense<0xFF800000> : vector<8x128xf32>
    %62 = vector.multi_reduction <maximumf>, %61, %cst_22 [1] : vector<8x24x128xf32> to vector<8x128xf32>
    %c0_23 = arith.constant 0 : index
    %c2 = arith.constant 2 : index
    %c0_24 = arith.constant 0 : index
    %c0_25 = arith.constant 0 : index
    %63 = vector.load %arg1[%c0_23, %c2, %c0_24, %c0_25] : memref<8x6x24x100xf32, #tpu.memory_space<vmem>>, vector<8x1x24x100xf32>
    %64 = vector.shape_cast %63 : vector<8x1x24x100xf32> to vector<8x24x100xf32>
    %65 = vector.shape_cast %64 : vector<8x24x100xf32> to vector<192x100xf32>
    %66 = arith.truncf %65 : vector<192x100xf32> to vector<192x100xbf16>
    %c2_26 = arith.constant 2 : index
    %c0_27 = arith.constant 0 : index
    %c0_28 = arith.constant 0 : index
    %67 = vector.load %arg2[%c2_26, %c0_27, %c0_28] : memref<6x100x896xbf16, #tpu.memory_space<vmem>>, vector<1x100x896xbf16>
    %68 = vector.shape_cast %67 : vector<1x100x896xbf16> to vector<100x896xbf16>
    %cst_29 = arith.constant dense<0.000000e+00> : vector<192x896xf32>
    %69 = tpu.matmul %66, %68, %cst_29 {dimension_numbers = #tpu.dot_dimension_numbers<[1], [0], [0], [1], [0, 0, 1, 1], [], []>} : vector<192x100xbf16>, vector<100x896xbf16>, vector<192x896xf32> -> vector<192x896xf32>
    %70 = vector.extract_strided_slice %69 {offsets = [0, 0], sizes = [192, 128], strides = [1, 1]} : vector<192x896xf32> to vector<192x128xf32>
    %71 = vector.extract_strided_slice %69 {offsets = [0, 128], sizes = [192, 128], strides = [1, 1]} : vector<192x896xf32> to vector<192x128xf32>
    %c1_i32_30 = arith.constant 1 : i32
    %72 = tpu.dynamic_rotate %71 by %c1_i32_30 dim 0 : vector<192x128xf32>, i32 -> vector<192x128xf32>
    %73 = arith.addf %70, %72 : vector<192x128xf32>
    %74 = vector.extract_strided_slice %69 {offsets = [0, 256], sizes = [192, 128], strides = [1, 1]} : vector<192x896xf32> to vector<192x128xf32>
    %c2_i32_31 = arith.constant 2 : i32
    %75 = tpu.dynamic_rotate %74 by %c2_i32_31 dim 0 : vector<192x128xf32>, i32 -> vector<192x128xf32>
    %76 = arith.addf %73, %75 : vector<192x128xf32>
    %77 = vector.extract_strided_slice %69 {offsets = [0, 384], sizes = [192, 128], strides = [1, 1]} : vector<192x896xf32> to vector<192x128xf32>
    %c3_i32_32 = arith.constant 3 : i32
    %78 = tpu.dynamic_rotate %77 by %c3_i32_32 dim 0 : vector<192x128xf32>, i32 -> vector<192x128xf32>
    %79 = arith.addf %76, %78 : vector<192x128xf32>
    %80 = vector.extract_strided_slice %69 {offsets = [0, 512], sizes = [192, 128], strides = [1, 1]} : vector<192x896xf32> to vector<192x128xf32>
    %c4_i32_33 = arith.constant 4 : i32
    %81 = tpu.dynamic_rotate %80 by %c4_i32_33 dim 0 : vector<192x128xf32>, i32 -> vector<192x128xf32>
    %82 = arith.addf %79, %81 : vector<192x128xf32>
    %83 = vector.extract_strided_slice %69 {offsets = [0, 640], sizes = [192, 128], strides = [1, 1]} : vector<192x896xf32> to vector<192x128xf32>
    %c5_i32_34 = arith.constant 5 : i32
    %84 = tpu.dynamic_rotate %83 by %c5_i32_34 dim 0 : vector<192x128xf32>, i32 -> vector<192x128xf32>
    %85 = arith.addf %82, %84 : vector<192x128xf32>
    %86 = vector.extract_strided_slice %69 {offsets = [0, 768], sizes = [192, 128], strides = [1, 1]} : vector<192x896xf32> to vector<192x128xf32>
    %c6_i32_35 = arith.constant 6 : i32
    %87 = tpu.dynamic_rotate %86 by %c6_i32_35 dim 0 : vector<192x128xf32>, i32 -> vector<192x128xf32>
    %88 = arith.addf %85, %87 : vector<192x128xf32>
    %89 = vector.shape_cast %88 : vector<192x128xf32> to vector<8x24x128xf32>
    %90 = vector.shape_cast %0 : vector<24x128xf32> to vector<1x24x128xf32>
    %91 = vector.broadcast %90 : vector<1x24x128xf32> to vector<8x24x128xf32>
    %92 = arith.addf %89, %91 : vector<8x24x128xf32>
    %cst_36 = arith.constant dense<0xFF800000> : vector<8x128xf32>
    %93 = vector.multi_reduction <maximumf>, %92, %cst_36 [1] : vector<8x24x128xf32> to vector<8x128xf32>
    %c0_37 = arith.constant 0 : index
    %c3 = arith.constant 3 : index
    %c0_38 = arith.constant 0 : index
    %c0_39 = arith.constant 0 : index
    %94 = vector.load %arg1[%c0_37, %c3, %c0_38, %c0_39] : memref<8x6x24x100xf32, #tpu.memory_space<vmem>>, vector<8x1x24x100xf32>
    %95 = vector.shape_cast %94 : vector<8x1x24x100xf32> to vector<8x24x100xf32>
    %96 = vector.shape_cast %95 : vector<8x24x100xf32> to vector<192x100xf32>
    %97 = arith.truncf %96 : vector<192x100xf32> to vector<192x100xbf16>
    %c3_40 = arith.constant 3 : index
    %c0_41 = arith.constant 0 : index
    %c0_42 = arith.constant 0 : index
    %98 = vector.load %arg2[%c3_40, %c0_41, %c0_42] : memref<6x100x896xbf16, #tpu.memory_space<vmem>>, vector<1x100x896xbf16>
    %99 = vector.shape_cast %98 : vector<1x100x896xbf16> to vector<100x896xbf16>
    %cst_43 = arith.constant dense<0.000000e+00> : vector<192x896xf32>
    %100 = tpu.matmul %97, %99, %cst_43 {dimension_numbers = #tpu.dot_dimension_numbers<[1], [0], [0], [1], [0, 0, 1, 1], [], []>} : vector<192x100xbf16>, vector<100x896xbf16>, vector<192x896xf32> -> vector<192x896xf32>
    %101 = vector.extract_strided_slice %100 {offsets = [0, 0], sizes = [192, 128], strides = [1, 1]} : vector<192x896xf32> to vector<192x128xf32>
    %102 = vector.extract_strided_slice %100 {offsets = [0, 128], sizes = [192, 128], strides = [1, 1]} : vector<192x896xf32> to vector<192x128xf32>
    %c1_i32_44 = arith.constant 1 : i32
    %103 = tpu.dynamic_rotate %102 by %c1_i32_44 dim 0 : vector<192x128xf32>, i32 -> vector<192x128xf32>
    %104 = arith.addf %101, %103 : vector<192x128xf32>
    %105 = vector.extract_strided_slice %100 {offsets = [0, 256], sizes = [192, 128], strides = [1, 1]} : vector<192x896xf32> to vector<192x128xf32>
    %c2_i32_45 = arith.constant 2 : i32
    %106 = tpu.dynamic_rotate %105 by %c2_i32_45 dim 0 : vector<192x128xf32>, i32 -> vector<192x128xf32>
    %107 = arith.addf %104, %106 : vector<192x128xf32>
    %108 = vector.extract_strided_slice %100 {offsets = [0, 384], sizes = [192, 128], strides = [1, 1]} : vector<192x896xf32> to vector<192x128xf32>
    %c3_i32_46 = arith.constant 3 : i32
    %109 = tpu.dynamic_rotate %108 by %c3_i32_46 dim 0 : vector<192x128xf32>, i32 -> vector<192x128xf32>
    %110 = arith.addf %107, %109 : vector<192x128xf32>
    %111 = vector.extract_strided_slice %100 {offsets = [0, 512], sizes = [192, 128], strides = [1, 1]} : vector<192x896xf32> to vector<192x128xf32>
    %c4_i32_47 = arith.constant 4 : i32
    %112 = tpu.dynamic_rotate %111 by %c4_i32_47 dim 0 : vector<192x128xf32>, i32 -> vector<192x128xf32>
    %113 = arith.addf %110, %112 : vector<192x128xf32>
    %114 = vector.extract_strided_slice %100 {offsets = [0, 640], sizes = [192, 128], strides = [1, 1]} : vector<192x896xf32> to vector<192x128xf32>
    %c5_i32_48 = arith.constant 5 : i32
    %115 = tpu.dynamic_rotate %114 by %c5_i32_48 dim 0 : vector<192x128xf32>, i32 -> vector<192x128xf32>
    %116 = arith.addf %113, %115 : vector<192x128xf32>
    %117 = vector.extract_strided_slice %100 {offsets = [0, 768], sizes = [192, 128], strides = [1, 1]} : vector<192x896xf32> to vector<192x128xf32>
    %c6_i32_49 = arith.constant 6 : i32
    %118 = tpu.dynamic_rotate %117 by %c6_i32_49 dim 0 : vector<192x128xf32>, i32 -> vector<192x128xf32>
    %119 = arith.addf %116, %118 : vector<192x128xf32>
    %120 = vector.shape_cast %119 : vector<192x128xf32> to vector<8x24x128xf32>
    %121 = vector.shape_cast %0 : vector<24x128xf32> to vector<1x24x128xf32>
    %122 = vector.broadcast %121 : vector<1x24x128xf32> to vector<8x24x128xf32>
    %123 = arith.addf %120, %122 : vector<8x24x128xf32>
    %cst_50 = arith.constant dense<0xFF800000> : vector<8x128xf32>
    %124 = vector.multi_reduction <maximumf>, %123, %cst_50 [1] : vector<8x24x128xf32> to vector<8x128xf32>
    %c0_51 = arith.constant 0 : index
    %c4 = arith.constant 4 : index
    %c0_52 = arith.constant 0 : index
    %c0_53 = arith.constant 0 : index
    %125 = vector.load %arg1[%c0_51, %c4, %c0_52, %c0_53] : memref<8x6x24x100xf32, #tpu.memory_space<vmem>>, vector<8x1x24x100xf32>
    %126 = vector.shape_cast %125 : vector<8x1x24x100xf32> to vector<8x24x100xf32>
    %127 = vector.shape_cast %126 : vector<8x24x100xf32> to vector<192x100xf32>
    %128 = arith.truncf %127 : vector<192x100xf32> to vector<192x100xbf16>
    %c4_54 = arith.constant 4 : index
    %c0_55 = arith.constant 0 : index
    %c0_56 = arith.constant 0 : index
    %129 = vector.load %arg2[%c4_54, %c0_55, %c0_56] : memref<6x100x896xbf16, #tpu.memory_space<vmem>>, vector<1x100x896xbf16>
    %130 = vector.shape_cast %129 : vector<1x100x896xbf16> to vector<100x896xbf16>
    %cst_57 = arith.constant dense<0.000000e+00> : vector<192x896xf32>
    %131 = tpu.matmul %128, %130, %cst_57 {dimension_numbers = #tpu.dot_dimension_numbers<[1], [0], [0], [1], [0, 0, 1, 1], [], []>} : vector<192x100xbf16>, vector<100x896xbf16>, vector<192x896xf32> -> vector<192x896xf32>
    %132 = vector.extract_strided_slice %131 {offsets = [0, 0], sizes = [192, 128], strides = [1, 1]} : vector<192x896xf32> to vector<192x128xf32>
    %133 = vector.extract_strided_slice %131 {offsets = [0, 128], sizes = [192, 128], strides = [1, 1]} : vector<192x896xf32> to vector<192x128xf32>
    %c1_i32_58 = arith.constant 1 : i32
    %134 = tpu.dynamic_rotate %133 by %c1_i32_58 dim 0 : vector<192x128xf32>, i32 -> vector<192x128xf32>
    %135 = arith.addf %132, %134 : vector<192x128xf32>
    %136 = vector.extract_strided_slice %131 {offsets = [0, 256], sizes = [192, 128], strides = [1, 1]} : vector<192x896xf32> to vector<192x128xf32>
    %c2_i32_59 = arith.constant 2 : i32
    %137 = tpu.dynamic_rotate %136 by %c2_i32_59 dim 0 : vector<192x128xf32>, i32 -> vector<192x128xf32>
    %138 = arith.addf %135, %137 : vector<192x128xf32>
    %139 = vector.extract_strided_slice %131 {offsets = [0, 384], sizes = [192, 128], strides = [1, 1]} : vector<192x896xf32> to vector<192x128xf32>
    %c3_i32_60 = arith.constant 3 : i32
    %140 = tpu.dynamic_rotate %139 by %c3_i32_60 dim 0 : vector<192x128xf32>, i32 -> vector<192x128xf32>
    %141 = arith.addf %138, %140 : vector<192x128xf32>
    %142 = vector.extract_strided_slice %131 {offsets = [0, 512], sizes = [192, 128], strides = [1, 1]} : vector<192x896xf32> to vector<192x128xf32>
    %c4_i32_61 = arith.constant 4 : i32
    %143 = tpu.dynamic_rotate %142 by %c4_i32_61 dim 0 : vector<192x128xf32>, i32 -> vector<192x128xf32>
    %144 = arith.addf %141, %143 : vector<192x128xf32>
    %145 = vector.extract_strided_slice %131 {offsets = [0, 640], sizes = [192, 128], strides = [1, 1]} : vector<192x896xf32> to vector<192x128xf32>
    %c5_i32_62 = arith.constant 5 : i32
    %146 = tpu.dynamic_rotate %145 by %c5_i32_62 dim 0 : vector<192x128xf32>, i32 -> vector<192x128xf32>
    %147 = arith.addf %144, %146 : vector<192x128xf32>
    %148 = vector.extract_strided_slice %131 {offsets = [0, 768], sizes = [192, 128], strides = [1, 1]} : vector<192x896xf32> to vector<192x128xf32>
    %c6_i32_63 = arith.constant 6 : i32
    %149 = tpu.dynamic_rotate %148 by %c6_i32_63 dim 0 : vector<192x128xf32>, i32 -> vector<192x128xf32>
    %150 = arith.addf %147, %149 : vector<192x128xf32>
    %151 = vector.shape_cast %150 : vector<192x128xf32> to vector<8x24x128xf32>
    %152 = vector.shape_cast %0 : vector<24x128xf32> to vector<1x24x128xf32>
    %153 = vector.broadcast %152 : vector<1x24x128xf32> to vector<8x24x128xf32>
    %154 = arith.addf %151, %153 : vector<8x24x128xf32>
    %cst_64 = arith.constant dense<0xFF800000> : vector<8x128xf32>
    %155 = vector.multi_reduction <maximumf>, %154, %cst_64 [1] : vector<8x24x128xf32> to vector<8x128xf32>
    %c0_65 = arith.constant 0 : index
    %c5 = arith.constant 5 : index
    %c0_66 = arith.constant 0 : index
    %c0_67 = arith.constant 0 : index
    %156 = vector.load %arg1[%c0_65, %c5, %c0_66, %c0_67] : memref<8x6x24x100xf32, #tpu.memory_space<vmem>>, vector<8x1x24x100xf32>
    %157 = vector.shape_cast %156 : vector<8x1x24x100xf32> to vector<8x24x100xf32>
    %158 = vector.shape_cast %157 : vector<8x24x100xf32> to vector<192x100xf32>
    %159 = arith.truncf %158 : vector<192x100xf32> to vector<192x100xbf16>
    %c5_68 = arith.constant 5 : index
    %c0_69 = arith.constant 0 : index
    %c0_70 = arith.constant 0 : index
    %160 = vector.load %arg2[%c5_68, %c0_69, %c0_70] : memref<6x100x896xbf16, #tpu.memory_space<vmem>>, vector<1x100x896xbf16>
    %161 = vector.shape_cast %160 : vector<1x100x896xbf16> to vector<100x896xbf16>
    %cst_71 = arith.constant dense<0.000000e+00> : vector<192x896xf32>
    %162 = tpu.matmul %159, %161, %cst_71 {dimension_numbers = #tpu.dot_dimension_numbers<[1], [0], [0], [1], [0, 0, 1, 1], [], []>} : vector<192x100xbf16>, vector<100x896xbf16>, vector<192x896xf32> -> vector<192x896xf32>
    %163 = vector.extract_strided_slice %162 {offsets = [0, 0], sizes = [192, 128], strides = [1, 1]} : vector<192x896xf32> to vector<192x128xf32>
    %164 = vector.extract_strided_slice %162 {offsets = [0, 128], sizes = [192, 128], strides = [1, 1]} : vector<192x896xf32> to vector<192x128xf32>
    %c1_i32_72 = arith.constant 1 : i32
    %165 = tpu.dynamic_rotate %164 by %c1_i32_72 dim 0 : vector<192x128xf32>, i32 -> vector<192x128xf32>
    %166 = arith.addf %163, %165 : vector<192x128xf32>
    %167 = vector.extract_strided_slice %162 {offsets = [0, 256], sizes = [192, 128], strides = [1, 1]} : vector<192x896xf32> to vector<192x128xf32>
    %c2_i32_73 = arith.constant 2 : i32
    %168 = tpu.dynamic_rotate %167 by %c2_i32_73 dim 0 : vector<192x128xf32>, i32 -> vector<192x128xf32>
    %169 = arith.addf %166, %168 : vector<192x128xf32>
    %170 = vector.extract_strided_slice %162 {offsets = [0, 384], sizes = [192, 128], strides = [1, 1]} : vector<192x896xf32> to vector<192x128xf32>
    %c3_i32_74 = arith.constant 3 : i32
    %171 = tpu.dynamic_rotate %170 by %c3_i32_74 dim 0 : vector<192x128xf32>, i32 -> vector<192x128xf32>
    %172 = arith.addf %169, %171 : vector<192x128xf32>
    %173 = vector.extract_strided_slice %162 {offsets = [0, 512], sizes = [192, 128], strides = [1, 1]} : vector<192x896xf32> to vector<192x128xf32>
    %c4_i32_75 = arith.constant 4 : i32
    %174 = tpu.dynamic_rotate %173 by %c4_i32_75 dim 0 : vector<192x128xf32>, i32 -> vector<192x128xf32>
    %175 = arith.addf %172, %174 : vector<192x128xf32>
    %176 = vector.extract_strided_slice %162 {offsets = [0, 640], sizes = [192, 128], strides = [1, 1]} : vector<192x896xf32> to vector<192x128xf32>
    %c5_i32_76 = arith.constant 5 : i32
    %177 = tpu.dynamic_rotate %176 by %c5_i32_76 dim 0 : vector<192x128xf32>, i32 -> vector<192x128xf32>
    %178 = arith.addf %175, %177 : vector<192x128xf32>
    %179 = vector.extract_strided_slice %162 {offsets = [0, 768], sizes = [192, 128], strides = [1, 1]} : vector<192x896xf32> to vector<192x128xf32>
    %c6_i32_77 = arith.constant 6 : i32
    %180 = tpu.dynamic_rotate %179 by %c6_i32_77 dim 0 : vector<192x128xf32>, i32 -> vector<192x128xf32>
    %181 = arith.addf %178, %180 : vector<192x128xf32>
    %182 = vector.shape_cast %181 : vector<192x128xf32> to vector<8x24x128xf32>
    %183 = vector.shape_cast %0 : vector<24x128xf32> to vector<1x24x128xf32>
    %184 = vector.broadcast %183 : vector<1x24x128xf32> to vector<8x24x128xf32>
    %185 = arith.addf %182, %184 : vector<8x24x128xf32>
    %cst_78 = arith.constant dense<0xFF800000> : vector<8x128xf32>
    %186 = vector.multi_reduction <maximumf>, %185, %cst_78 [1] : vector<8x24x128xf32> to vector<8x128xf32>
    %187 = tpu.concatenate %31, %62, %93, %124, %155, %186 in 1 : vector<8x128xf32>, vector<8x128xf32>, vector<8x128xf32>, vector<8x128xf32>, vector<8x128xf32>, vector<8x128xf32> -> vector<8x768xf32>
    %c0_79 = arith.constant 0 : index
    %c0_80 = arith.constant 0 : index
    %188 = vector.load %arg3[%c0_79, %c0_80] : memref<1x768xf32, #tpu.memory_space<vmem>>, vector<1x768xf32>
    %189 = vector.broadcast %188 : vector<1x768xf32> to vector<8x768xf32>
    %190 = arith.addf %187, %189 : vector<8x768xf32>
    %cst_81 = arith.constant 0.000000e+00 : f32
    %191 = vector.broadcast %cst_81 : f32 to vector<8x768xf32>
    %192 = arith.maximumf %190, %191 : vector<8x768xf32>
    %193 = arith.truncf %192 : vector<8x768xf32> to vector<8x768xbf16>
    %c0_82 = arith.constant 0 : index
    %c0_83 = arith.constant 0 : index
    %194 = vector.load %arg5[%c0_82, %c0_83] : memref<768x128xbf16, #tpu.memory_space<vmem>>, vector<768x128xbf16>
    %cst_84 = arith.constant dense<0.000000e+00> : vector<8x128xf32>
    %195 = tpu.matmul %193, %194, %cst_84 {dimension_numbers = #tpu.dot_dimension_numbers<[1], [0], [0], [1], [0, 0, 1, 1], [], []>} : vector<8x768xbf16>, vector<768x128xbf16>, vector<8x128xf32> -> vector<8x128xf32>
    %c0_85 = arith.constant 0 : index
    %c0_86 = arith.constant 0 : index
    %196 = vector.load %arg6[%c0_85, %c0_86] : memref<1x128xf32, #tpu.memory_space<vmem>>, vector<1x128xf32>
    %197 = vector.broadcast %196 : vector<1x128xf32> to vector<8x128xf32>
    %198 = arith.addf %195, %197 : vector<8x128xf32>
    %cst_87 = arith.constant 0.000000e+00 : f32
    %199 = vector.broadcast %cst_87 : f32 to vector<8x128xf32>
    %200 = arith.maximumf %198, %199 : vector<8x128xf32>
    %201 = arith.truncf %200 : vector<8x128xf32> to vector<8x128xbf16>
    %c0_88 = arith.constant 0 : index
    %c0_89 = arith.constant 0 : index
    %202 = vector.load %arg7[%c0_88, %c0_89] : memref<128x128xbf16, #tpu.memory_space<vmem>>, vector<128x128xbf16>
    %cst_90 = arith.constant dense<0.000000e+00> : vector<8x128xf32>
    %203 = tpu.matmul %201, %202, %cst_90 {dimension_numbers = #tpu.dot_dimension_numbers<[1], [0], [0], [1], [0, 0, 1, 1], [], []>} : vector<8x128xbf16>, vector<128x128xbf16>, vector<8x128xf32> -> vector<8x128xf32>
    %c0_91 = arith.constant 0 : index
    %c0_92 = arith.constant 0 : index
    %204 = vector.load %arg8[%c0_91, %c0_92] : memref<1x128xf32, #tpu.memory_space<vmem>>, vector<1x128xf32>
    %205 = vector.broadcast %204 : vector<1x128xf32> to vector<8x128xf32>
    %206 = arith.addf %203, %205 : vector<8x128xf32>
    %cst_93 = arith.constant 0.000000e+00 : f32
    %207 = vector.broadcast %cst_93 : f32 to vector<8x128xf32>
    %208 = arith.maximumf %206, %207 : vector<8x128xf32>
    %209 = arith.truncf %208 : vector<8x128xf32> to vector<8x128xbf16>
    %c0_94 = arith.constant 0 : index
    %c0_95 = arith.constant 0 : index
    %210 = vector.load %arg9[%c0_94, %c0_95] : memref<128x128xbf16, #tpu.memory_space<vmem>>, vector<128x128xbf16>
    %cst_96 = arith.constant dense<0.000000e+00> : vector<8x128xf32>
    %211 = tpu.matmul %209, %210, %cst_96 {dimension_numbers = #tpu.dot_dimension_numbers<[1], [0], [0], [1], [0, 0, 1, 1], [], []>} : vector<8x128xbf16>, vector<128x128xbf16>, vector<8x128xf32> -> vector<8x128xf32>
    %c0_97 = arith.constant 0 : index
    %c0_98 = arith.constant 0 : index
    %212 = vector.load %arg10[%c0_97, %c0_98] : memref<1x128xf32, #tpu.memory_space<vmem>>, vector<1x128xf32>
    %213 = vector.broadcast %212 : vector<1x128xf32> to vector<8x128xf32>
    %214 = arith.addf %211, %213 : vector<8x128xf32>
    %c0_99 = arith.constant 0 : index
    %c0_100 = arith.constant 0 : index
    %215 = vector.load %arg11[%c0_99, %c0_100] : memref<8x128xf32, #tpu.memory_space<vmem>>, vector<8x128xf32>
    tpu.vector_store %arg11[%c0_99, %c0_100], %214 {strides = array<i32>} : memref<8x128xf32, #tpu.memory_space<vmem>>, vector<8x128xf32>,
    return
  }
  func.func @transform_0(%arg0: i32) -> (i32, i32, i32, i32) {
    %c0_i32 = arith.constant 0 : i32
    %c0_i32_0 = arith.constant 0 : i32
    %c0_i32_1 = arith.constant 0 : i32
    %c0_i32_2 = arith.constant 0 : i32
    return %arg0, %c0_i32, %c0_i32_0, %c0_i32_1 : i32, i32, i32, i32
  }
  func.func @transform_1(%arg0: i32) -> (i32, i32, i32) {
    %c0_i32 = arith.constant 0 : i32
    %c0_i32_0 = arith.constant 0 : i32
    %c0_i32_1 = arith.constant 0 : i32
    %c0_i32_2 = arith.constant 0 : i32
    return %c0_i32, %c0_i32_0, %c0_i32_1 : i32, i32, i32
  }
  func.func @transform_2(%arg0: i32) -> (i32, i32) {
    %c0_i32 = arith.constant 0 : i32
    %c0_i32_0 = arith.constant 0 : i32
    %c0_i32_1 = arith.constant 0 : i32
    return %c0_i32, %c0_i32_0 : i32, i32
  }
  func.func @transform_3(%arg0: i32) -> (i32, i32) {
    %c0_i32 = arith.constant 0 : i32
    %c0_i32_0 = arith.constant 0 : i32
    %c0_i32_1 = arith.constant 0 : i32
    return %c0_i32, %c0_i32_0 : i32, i32
  }
  func.func @transform_4(%arg0: i32) -> (i32, i32) {
    %c0_i32 = arith.constant 0 : i32
    %c0_i32_0 = arith.constant 0 : i32
    %c0_i32_1 = arith.constant 0 : i32
    return %c0_i32, %c0_i32_0 : i32, i32
  }
  func.func @transform_5(%arg0: i32) -> (i32, i32) {
    %c0_i32 = arith.constant 0 : i32
    %c0_i32_0 = arith.constant 0 : i32
    %c0_i32_1 = arith.constant 0 : i32
    return %c0_i32, %c0_i32_0 : i32, i32
  }
  func.func @transform_6(%arg0: i32) -> (i32, i32) {
    %c0_i32 = arith.constant 0 : i32
    %c0_i32_0 = arith.constant 0 : i32
    %c0_i32_1 = arith.constant 0 : i32
    return %c0_i32, %c0_i32_0 : i32, i32
  }
  func.func @transform_7(%arg0: i32) -> (i32, i32) {
    %c0_i32 = arith.constant 0 : i32
    %c0_i32_0 = arith.constant 0 : i32
    %c0_i32_1 = arith.constant 0 : i32
    return %c0_i32, %c0_i32_0 : i32, i32
  }
  func.func @transform_8(%arg0: i32) -> (i32, i32) {
    %c0_i32 = arith.constant 0 : i32
    %c0_i32_0 = arith.constant 0 : i32
    %c0_i32_1 = arith.constant 0 : i32
    return %c0_i32, %c0_i32_0 : i32, i32
  }
  func.func @transform_9(%arg0: i32) -> (i32, i32) {
    %c0_i32 = arith.constant 0 : i32
    %c0_i32_0 = arith.constant 0 : i32
    %c0_i32_1 = arith.constant 0 : i32
    return %c0_i32, %c0_i32_0 : i32, i32
  }
  func.func @transform_10(%arg0: i32) -> (i32, i32) {
    %c0_i32 = arith.constant 0 : i32
    %c0_i32_0 = arith.constant 0 : i32
    return %arg0, %c0_i32 : i32, i32
  }
}

</mosaic_0001>

<llo_original>
// kernel: wcnn_forward.1
$region0: #{wcnn_forward.1}
  #allocation0 [shape = 'u32[]', space=smem, size = 0x4, offset = 0x4, fixed_abs, tag = 'smem constant byte address 0x4 - core index']
  #allocation1 [shape = 'u32[144,128]{1,0:T(1,128)}', space=vmem, size = 0x12000, scoped, tag = 'internal scratch']
  %s0 = inlined_call_operand.hbm [shape: f32[16,6,24,100], index: 0, kind: input, shape index: {}]
  %s1 = inlined_call_operand.hbm [shape: bf16[6,100,896], index: 1, kind: input, shape index: {}]
  %s2 = inlined_call_operand.hbm [shape: f32[1,768], index: 2, kind: input, shape index: {}]
  %s3 = inlined_call_operand.hbm [shape: f32[24,128], index: 3, kind: input, shape index: {}]
  %s4 = inlined_call_operand.hbm [shape: bf16[768,128], index: 4, kind: input, shape index: {}]
  %s5 = inlined_call_operand.hbm [shape: f32[1,128], index: 5, kind: input, shape index: {}]
  %s6 = inlined_call_operand.hbm [shape: bf16[128,128], index: 6, kind: input, shape index: {}]
  %s7 = inlined_call_operand.hbm [shape: f32[1,128], index: 7, kind: input, shape index: {}]
  %s8 = inlined_call_operand.hbm [shape: bf16[128,128], index: 8, kind: input, shape index: {}]
  %s9 = inlined_call_operand.hbm [shape: f32[1,128], index: 9, kind: input, shape index: {}]
  %s10 = inlined_call_operand.hbm [shape: f32[16,128], index: 10, kind: output, shape index: {}]
  %s11 = sld [smem:[#allocation0]]
  $region113: #{wcnn_forward.1} parent=0
    _
  %s13 = ssub.s32 1, %s11
  %s14 = scalar_select 0, %s13, %s11
  $region1: #{wcnn_forward.1} parent=0
    #allocation2 [shape = 'u8[1179648]{0}', space=vmem, size = 0x120000, scoped, tag = 'input window, operand 0']
    #allocation3 [shape = 's32[2]{0}', space=sflag, size = 0x8, scoped, tag = 'scoped memory for wcnn_forward.1']
    #allocation4 [shape = 's32[2]{0}', space=sflag, size = 0x8, scoped, tag = 'scoped memory for wcnn_forward.1']
    #allocation5 [shape = 'u8[1118208]{0}', space=vmem, size = 0x111000, scoped, tag = 'input window, operand 1, single buffered']
    #allocation6 [shape = 's32[1]{0}', space=sflag, size = 0x4, scoped, tag = 'scoped memory for wcnn_forward.1']
    #allocation7 [shape = 'u8[3072]{0}', space=vmem, size = 0xc00, scoped, tag = 'input window, operand 2, single buffered']
    #allocation8 [shape = 'u8[12288]{0}', space=vmem, size = 0x3000, scoped, tag = 'input window, operand 3, single buffered']
    #allocation9 [shape = 's32[1]{0}', space=sflag, size = 0x4, scoped, tag = 'scoped memory for wcnn_forward.1']
    #allocation10 [shape = 'u8[196608]{0}', space=vmem, size = 0x30000, scoped, tag = 'input window, operand 4, single buffered']
    #allocation11 [shape = 'u8[512]{0}', space=vmem, size = 0x400, scoped, tag = 'input window, operand 5, single buffered']
    #allocation12 [shape = 's32[1]{0}', space=sflag, size = 0x4, scoped, tag = 'scoped memory for wcnn_forward.1']
    #allocation13 [shape = 'u8[32768]{0}', space=vmem, size = 0x8000, scoped, tag = 'input window, operand 6, single buffered']
    #allocation14 [shape = 'u8[512]{0}', space=vmem, size = 0x400, scoped, tag = 'input window, operand 7, single buffered']
    #allocation15 [shape = 's32[1]{0}', space=sflag, size = 0x4, scoped, tag = 'scoped memory for wcnn_forward.1']
    #allocation16 [shape = 'u8[32768]{0}', space=vmem, size = 0x8000, scoped, tag = 'input window, operand 8, single buffered']
    #allocation17 [shape = 'u8[512]{0}', space=vmem, size = 0x400, scoped, tag = 'input window, operand 9, single buffered']
    #allocation18 [shape = 's32[1]{0}', space=sflag, size = 0x4, scoped, tag = 'scoped memory for wcnn_forward.1']
    #allocation19 [shape = 'u8[8192]{0}', space=vmem, size = 0x2000, scoped, tag = 'output window, operand 0']
    %15 = vsyncpa [#allocation3], 0
    %s16 = scalar_lea.sflag [#allocation3], 1
    %17 = vsyncpa %s16, 0
    %18 = vsyncpa [#allocation6], 0
    %19 = vsyncpa [#allocation9], 0
    %20 = vsyncpa [#allocation12], 0
    %21 = vsyncpa [#allocation15], 0
    %22 = vsyncpa [#allocation18], 0
    %23 = vsyncpa [#allocation4], 0
    %s24 = scalar_lea.sflag [#allocation4], 1
    %25 = vsyncpa %s24, 0
    loop: start=0, step=1, limit=4
    $region2: #{wcnn_forward.1} parent=1 // loop_pre_header
      _
    $region3: #{wcnn_forward.1} parent=1 // loop_header
      %s27 = sphi 0, %s31
      %p28 = scmp.ge.s32.totalorder %s27, 4
      %s37 = sphi 0, %s39
      %s40 = sphi 0, %s37
      %s41 = sphi 0, %s40
      %s57 = sphi 0, %s41
      %s61 = sphi 0, %s61
      %s63 = sphi 0, %s61
      %s64 = sphi 0, %s63
      %s78 = sphi 0, %s64
      %s82 = sphi 0, %s82
      %s84 = sphi 0, %s82
      %s85 = sphi 0, %s84
      %s99 = sphi 0, %s85
      %s103 = sphi 0, %s103
      %s105 = sphi 0, %s103
      %s106 = sphi 0, %s105
      %s120 = sphi 0, %s106
      %s124 = sphi 0, %s124
      %s126 = sphi 0, %s124
      %s127 = sphi 0, %s126
      %s141 = sphi 0, %s127
      %s145 = sphi 0, %s145
      %s147 = sphi 0, %s145
      %s148 = sphi 0, %s147
      %s162 = sphi 0, %s148
      %s166 = sphi 0, %s166
      %s168 = sphi 0, %s166
      %s169 = sphi 0, %s168
      %s183 = sphi 0, %s169
      %s187 = sphi 0, %s187
      %s189 = sphi 0, %s187
      %s190 = sphi 0, %s189
      %s204 = sphi 0, %s190
      %s208 = sphi 0, %s208
      %s210 = sphi 0, %s208
      %s211 = sphi 0, %s210
      %s225 = sphi 0, %s211
      %s229 = sphi 0, %s229
      %s231 = sphi 0, %s229
      %s232 = sphi 0, %s231
      %s246 = sphi 0, %s232
      %s252 = sphi 0, %s254
      %s255 = sphi 0, %s252
      %s256 = sphi 0, %s255
      %s272 = sphi 0, %s256
    $region4: #{wcnn_forward.1} parent=1 // loop_header_branch
      %30 = sbr.rel (%p28) target = $region8
    $region5: #{wcnn_forward.1} parent=1 // loop_body
      %s32 = ssub.s32 %s27, 1
      %s33 = ssub.s32 %s27, 2
      %s34 = sadd.s32 %s27, 1
      %s35 = ssub.s32 %s27, %s34
      %p36 = scmp.eq.s32.totalorder %s35, 0
      %s38 = sadd.s32 %s37, 1
      %s39 = scalar_select %p36, %s37, %s38
      %p42 = pneg %p36
      %p43 = scmp.eq.s32.totalorder %s27, 1
      %p44 = por %p42, %p43
      %p45 = scmp.ne.s32.totalorder %s37, %s40
      %p46 = scmp.eq.s32.totalorder %s27, 0
      %p47 = por %p45, %p46
      %p48 = scmp.ne.s32.totalorder %s37, %s40
      %p49 = scmp.eq.s32.totalorder %s32, 1
      %p50 = por %p48, %p49
      %p51 = scmp.ne.s32.totalorder %s40, %s41
      %p52 = scmp.eq.s32.totalorder %s32, 0
      %p53 = por %p51, %p52
      %p54 = scmp.ne.s32.totalorder %s40, %s41
      %p55 = scmp.eq.s32.totalorder %s33, 1
      %p56 = por %p54, %p55
      %p58 = scmp.ne.s32.totalorder %s41, %s57
      %p59 = scmp.eq.s32.totalorder %s33, 0
      %p60 = por %p58, %p59
      %s62 = sadd.s32 %s61, 1
      %p65 = scmp.eq.s32.totalorder %s27, 1
      %p66 = scmp.ne.s32.totalorder %s61, %s63
      %p67 = scmp.eq.s32.totalorder %s27, 0
      %p68 = por %p66, %p67
      %p69 = scmp.ne.s32.totalorder %s61, %s63
      %p70 = scmp.eq.s32.totalorder %s32, 1
      %p71 = por %p69, %p70
      %p72 = scmp.ne.s32.totalorder %s63, %s64
      %p73 = scmp.eq.s32.totalorder %s32, 0
      %p74 = por %p72, %p73
      %p75 = scmp.ne.s32.totalorder %s63, %s64
      %p76 = scmp.eq.s32.totalorder %s33, 1
      %p77 = por %p75, %p76
      %p79 = scmp.ne.s32.totalorder %s64, %s78
      %p80 = scmp.eq.s32.totalorder %s33, 0
      %p81 = por %p79, %p80
      %s83 = sadd.s32 %s82, 1
      %p86 = scmp.eq.s32.totalorder %s27, 1
      %p87 = scmp.ne.s32.totalorder %s82, %s84
      %p88 = scmp.eq.s32.totalorder %s27, 0
      %p89 = por %p87, %p88
      %p90 = scmp.ne.s32.totalorder %s82, %s84
      %p91 = scmp.eq.s32.totalorder %s32, 1
      %p92 = por %p90, %p91
      %p93 = scmp.ne.s32.totalorder %s84, %s85
      %p94 = scmp.eq.s32.totalorder %s32, 0
      %p95 = por %p93, %p94
      %p96 = scmp.ne.s32.totalorder %s84, %s85
      %p97 = scmp.eq.s32.totalorder %s33, 1
      %p98 = por %p96, %p97
      %p100 = scmp.ne.s32.totalorder %s85, %s99
      %p101 = scmp.eq.s32.totalorder %s33, 0
      %p102 = por %p100, %p101
      %s104 = sadd.s32 %s103, 1
      %p107 = scmp.eq.s32.totalorder %s27, 1
      %p108 = scmp.ne.s32.totalorder %s103, %s105
      %p109 = scmp.eq.s32.totalorder %s27, 0
      %p110 = por %p108, %p109
      %p111 = scmp.ne.s32.totalorder %s103, %s105
      %p112 = scmp.eq.s32.totalorder %s32, 1
      %p113 = por %p111, %p112
      %p114 = scmp.ne.s32.totalorder %s105, %s106
      %p115 = scmp.eq.s32.totalorder %s32, 0
      %p116 = por %p114, %p115
      %p117 = scmp.ne.s32.totalorder %s105, %s106
      %p118 = scmp.eq.s32.totalorder %s33, 1
      %p119 = por %p117, %p118
      %p121 = scmp.ne.s32.totalorder %s106, %s120
      %p122 = scmp.eq.s32.totalorder %s33, 0
      %p123 = por %p121, %p122
      %s125 = sadd.s32 %s124, 1
      %p128 = scmp.eq.s32.totalorder %s27, 1
      %p129 = scmp.ne.s32.totalorder %s124, %s126
      %p130 = scmp.eq.s32.totalorder %s27, 0
      %p131 = por %p129, %p130
      %p132 = scmp.ne.s32.totalorder %s124, %s126
      %p133 = scmp.eq.s32.totalorder %s32, 1
      %p134 = por %p132, %p133
      %p135 = scmp.ne.s32.totalorder %s126, %s127
      %p136 = scmp.eq.s32.totalorder %s32, 0
      %p137 = por %p135, %p136
      %p138 = scmp.ne.s32.totalorder %s126, %s127
      %p139 = scmp.eq.s32.totalorder %s33, 1
      %p140 = por %p138, %p139
      %p142 = scmp.ne.s32.totalorder %s127, %s141
      %p143 = scmp.eq.s32.totalorder %s33, 0
      %p144 = por %p142, %p143
      %s146 = sadd.s32 %s145, 1
      %p149 = scmp.eq.s32.totalorder %s27, 1
      %p150 = scmp.ne.s32.totalorder %s145, %s147
      %p151 = scmp.eq.s32.totalorder %s27, 0
      %p152 = por %p150, %p151
      %p153 = scmp.ne.s32.totalorder %s145, %s147
      %p154 = scmp.eq.s32.totalorder %s32, 1
      %p155 = por %p153, %p154
      %p156 = scmp.ne.s32.totalorder %s147, %s148
      %p157 = scmp.eq.s32.totalorder %s32, 0
      %p158 = por %p156, %p157
      %p159 = scmp.ne.s32.totalorder %s147, %s148
      %p160 = scmp.eq.s32.totalorder %s33, 1
      %p161 = por %p159, %p160
      %p163 = scmp.ne.s32.totalorder %s148, %s162
      %p164 = scmp.eq.s32.totalorder %s33, 0
      %p165 = por %p163, %p164
      %s167 = sadd.s32 %s166, 1
      %p170 = scmp.eq.s32.totalorder %s27, 1
      %p171 = scmp.ne.s32.totalorder %s166, %s168
      %p172 = scmp.eq.s32.totalorder %s27, 0
      %p173 = por %p171, %p172
      %p174 = scmp.ne.s32.totalorder %s166, %s168
      %p175 = scmp.eq.s32.totalorder %s32, 1
      %p176 = por %p174, %p175
      %p177 = scmp.ne.s32.totalorder %s168, %s169
      %p178 = scmp.eq.s32.totalorder %s32, 0
      %p179 = por %p177, %p178
      %p180 = scmp.ne.s32.totalorder %s168, %s169
      %p181 = scmp.eq.s32.totalorder %s33, 1
      %p182 = por %p180, %p181
      %p184 = scmp.ne.s32.totalorder %s169, %s183
      %p185 = scmp.eq.s32.totalorder %s33, 0
      %p186 = por %p184, %p185
      %s188 = sadd.s32 %s187, 1
      %p191 = scmp.eq.s32.totalorder %s27, 1
      %p192 = scmp.ne.s32.totalorder %s187, %s189
      %p193 = scmp.eq.s32.totalorder %s27, 0
      %p194 = por %p192, %p193
      %p195 = scmp.ne.s32.totalorder %s187, %s189
      %p196 = scmp.eq.s32.totalorder %s32, 1
      %p197 = por %p195, %p196
      %p198 = scmp.ne.s32.totalorder %s189, %s190
      %p199 = scmp.eq.s32.totalorder %s32, 0
      %p200 = por %p198, %p199
      %p201 = scmp.ne.s32.totalorder %s189, %s190
      %p202 = scmp.eq.s32.totalorder %s33, 1
      %p203 = por %p201, %p202
      %p205 = scmp.ne.s32.totalorder %s190, %s204
      %p206 = scmp.eq.s32.totalorder %s33, 0
      %p207 = por %p205, %p206
      %s209 = sadd.s32 %s208, 1
      %p212 = scmp.eq.s32.totalorder %s27, 1
      %p213 = scmp.ne.s32.totalorder %s208, %s210
      %p214 = scmp.eq.s32.totalorder %s27, 0
      %p215 = por %p213, %p214
      %p216 = scmp.ne.s32.totalorder %s208, %s210
      %p217 = scmp.eq.s32.totalorder %s32, 1
      %p218 = por %p216, %p217
      %p219 = scmp.ne.s32.totalorder %s210, %s211
      %p220 = scmp.eq.s32.totalorder %s32, 0
      %p221 = por %p219, %p220
      %p222 = scmp.ne.s32.totalorder %s210, %s211
      %p223 = scmp.eq.s32.totalorder %s33, 1
      %p224 = por %p222, %p223
      %p226 = scmp.ne.s32.totalorder %s211, %s225
      %p227 = scmp.eq.s32.totalorder %s33, 0
      %p228 = por %p226, %p227
      %s230 = sadd.s32 %s229, 1
      %p233 = scmp.eq.s32.totalorder %s27, 1
      %p234 = scmp.ne.s32.totalorder %s229, %s231
      %p235 = scmp.eq.s32.totalorder %s27, 0
      %p236 = por %p234, %p235
      %p237 = scmp.ne.s32.totalorder %s229, %s231
      %p238 = scmp.eq.s32.totalorder %s32, 1
      %p239 = por %p237, %p238
      %p240 = scmp.ne.s32.totalorder %s231, %s232
      %p241 = scmp.eq.s32.totalorder %s32, 0
      %p242 = por %p240, %p241
      %p243 = scmp.ne.s32.totalorder %s231, %s232
      %p244 = scmp.eq.s32.totalorder %s33, 1
      %p245 = por %p243, %p244
      %p247 = scmp.ne.s32.totalorder %s232, %s246
      %p248 = scmp.eq.s32.totalorder %s33, 0
      %p249 = por %p247, %p248
      %s250 = ssub.s32 %s27, %s34
      %p251 = scmp.eq.s32.totalorder %s250, 0
      %s253 = sadd.s32 %s252, 1
      %s254 = scalar_select %p251, %s252, %s253
      %p257 = pneg %p251
      %p258 = scmp.eq.s32.totalorder %s27, 1
      %p259 = por %p257, %p258
      %p260 = scmp.ne.s32.totalorder %s252, %s255
      %p261 = scmp.eq.s32.totalorder %s27, 0
      %p262 = por %p260, %p261
      %p263 = scmp.ne.s32.totalorder %s252, %s255
      %p264 = scmp.eq.s32.totalorder %s32, 1
      %p265 = por %p263, %p264
      %p266 = scmp.ne.s32.totalorder %s255, %s256
      %p267 = scmp.eq.s32.totalorder %s32, 0
      %p268 = por %p266, %p267
      %p269 = scmp.ne.s32.totalorder %s255, %s256
      %p270 = scmp.eq.s32.totalorder %s33, 1
      %p271 = por %p269, %p270
      %p273 = scmp.ne.s32.totalorder %s256, %s272
      %p274 = scmp.eq.s32.totalorder %s33, 0
      %p275 = por %p273, %p274
      %p276 = scmp.le.s32.totalorder 1, %s27
      %p277 = scmp.lt.s32.totalorder %s27, 3
      %p278 = pnand %p276, %p277
      %p279 = pneg %p278
      // Predicated region
      $region9: #{wcnn_forward.1} parent=5 // pred_check
        _
      $region10: #{wcnn_forward.1} parent=5 // pred_check_branch
        %281 = sbr.rel (%p278) target = $region12
      $region11: #{wcnn_forward.1} parent=5 // pred_region
        %s282 = ssub.s32 %s27, 1
        // Predicated region
        $region13: #{wcnn_forward.1} parent=11 // pred_check
          %p283 = pneg %p74
        $region14: #{wcnn_forward.1} parent=11 // pred_check_branch
          %285 = sbr.rel (%p283) target = $region16
        $region15: #{wcnn_forward.1} parent=11 // pred_region
          %s287 = ssub.s32 34944, 34944
          %288 = vsyncadd [#allocation6], %s287
          %s289 = sshll.u32 [#allocation5], 4
          %s290 = int_to_ptr.vmem [resolvable:$true] %s289
          %295 = dma.hbm_to_vmem [thread:$0]  %s1, 34944, %s290, [#allocation6], 448, 448, 28
        $region16: #{wcnn_forward.1} parent=11 // pred_fallthru
          _
        // Predicated region
        $region17: #{wcnn_forward.1} parent=11 // pred_check
          %p296 = pneg %p95
        $region18: #{wcnn_forward.1} parent=11 // pred_check_branch
          %298 = sbr.rel (%p296) target = $region20
        $region19: #{wcnn_forward.1} parent=11 // pred_region
          %s300 = ssub.s32 96, 96
          %301 = vsyncadd [#allocation6], %s300
          %s303 = sshll.u32 [#allocation7], 4
          %s304 = int_to_ptr.vmem [resolvable:$true] %s303
          %306 = dma.hbm_to_vmem [thread:$0]  %s2, 96, %s304, [#allocation6]
        $region20: #{wcnn_forward.1} parent=11 // pred_fallthru
          _
        // Predicated region
        $region21: #{wcnn_forward.1} parent=11 // pred_check
          %p307 = pneg %p116
        $region22: #{wcnn_forward.1} parent=11 // pred_check_branch
          %309 = sbr.rel (%p307) target = $region24
        $region23: #{wcnn_forward.1} parent=11 // pred_region
          %s311 = ssub.s32 384, 384
          %312 = vsyncadd [#allocation9], %s311
          %s313 = sshll.u32 [#allocation8], 4
          %s314 = int_to_ptr.vmem [resolvable:$true] %s313
          %319 = dma.hbm_to_vmem [thread:$0]  %s3, 384, %s314, [#allocation9], 128, 128, 8
        $region24: #{wcnn_forward.1} parent=11 // pred_fallthru
          _
        // Predicated region
        $region25: #{wcnn_forward.1} parent=11 // pred_check
          %p320 = pneg %p137
        $region26: #{wcnn_forward.1} parent=11 // pred_check_branch
          %322 = sbr.rel (%p320) target = $region28
        $region27: #{wcnn_forward.1} parent=11 // pred_region
          %s324 = ssub.s32 6144, 6144
          %325 = vsyncadd [#allocation9], %s324
          %s326 = sshll.u32 [#allocation10], 4
          %s327 = int_to_ptr.vmem [resolvable:$true] %s326
          %332 = dma.hbm_to_vmem [thread:$0]  %s4, 6144, %s327, [#allocation9], 64, 64, 4
        $region28: #{wcnn_forward.1} parent=11 // pred_fallthru
          _
        // Predicated region
        $region29: #{wcnn_forward.1} parent=11 // pred_check
          %p333 = pneg %p158
        $region30: #{wcnn_forward.1} parent=11 // pred_check_branch
          %335 = sbr.rel (%p333) target = $region32
        $region31: #{wcnn_forward.1} parent=11 // pred_region
          %s337 = ssub.s32 16, 16
          %338 = vsyncadd [#allocation12], %s337
          %s340 = sshll.u32 [#allocation11], 4
          %s341 = int_to_ptr.vmem [resolvable:$true] %s340
          %343 = dma.hbm_to_vmem [thread:$0]  %s5, 16, %s341, [#allocation12]
        $region32: #{wcnn_forward.1} parent=11 // pred_fallthru
          _
        // Predicated region
        $region33: #{wcnn_forward.1} parent=11 // pred_check
          %p344 = pneg %p179
        $region34: #{wcnn_forward.1} parent=11 // pred_check_branch
          %346 = sbr.rel (%p344) target = $region36
        $region35: #{wcnn_forward.1} parent=11 // pred_region
          %s348 = ssub.s32 1024, 1024
          %349 = vsyncadd [#allocation12], %s348
          %s350 = sshll.u32 [#allocation13], 4
          %s351 = int_to_ptr.vmem [resolvable:$true] %s350
          %356 = dma.hbm_to_vmem [thread:$0]  %s6, 1024, %s351, [#allocation12], 64, 64, 4
        $region36: #{wcnn_forward.1} parent=11 // pred_fallthru
          _
        // Predicated region
        $region37: #{wcnn_forward.1} parent=11 // pred_check
          %p357 = pneg %p200
        $region38: #{wcnn_forward.1} parent=11 // pred_check_branch
          %359 = sbr.rel (%p357) target = $region40
        $region39: #{wcnn_forward.1} parent=11 // pred_region
          %s361 = ssub.s32 16, 16
          %362 = vsyncadd [#allocation15], %s361
          %s364 = sshll.u32 [#allocation14], 4
          %s365 = int_to_ptr.vmem [resolvable:$true] %s364
          %367 = dma.hbm_to_vmem [thread:$0]  %s7, 16, %s365, [#allocation15]
        $region40: #{wcnn_forward.1} parent=11 // pred_fallthru
          _
        // Predicated region
        $region41: #{wcnn_forward.1} parent=11 // pred_check
          %p368 = pneg %p221
        $region42: #{wcnn_forward.1} parent=11 // pred_check_branch
          %370 = sbr.rel (%p368) target = $region44
        $region43: #{wcnn_forward.1} parent=11 // pred_region
          %s372 = ssub.s32 1024, 1024
          %373 = vsyncadd [#allocation15], %s372
          %s374 = sshll.u32 [#allocation16], 4
          %s375 = int_to_ptr.vmem [resolvable:$true] %s374
          %380 = dma.hbm_to_vmem [thread:$0]  %s8, 1024, %s375, [#allocation15], 64, 64, 4
        $region44: #{wcnn_forward.1} parent=11 // pred_fallthru
          _
        // Predicated region
        $region45: #{wcnn_forward.1} parent=11 // pred_check
          %p381 = pneg %p242
        $region46: #{wcnn_forward.1} parent=11 // pred_check_branch
          %383 = sbr.rel (%p381) target = $region48
        $region47: #{wcnn_forward.1} parent=11 // pred_region
          %s385 = ssub.s32 16, 16
          %386 = vsyncadd [#allocation18], %s385
          %s388 = sshll.u32 [#allocation17], 4
          %s389 = int_to_ptr.vmem [resolvable:$true] %s388
          %391 = dma.hbm_to_vmem [thread:$0]  %s9, 16, %s389, [#allocation18]
        $region48: #{wcnn_forward.1} parent=11 // pred_fallthru
          _
      $region12: #{wcnn_forward.1} parent=5 // pred_fallthru
        _
      %p392 = scmp.lt.s32.totalorder %s27, 2
      // Predicated region
      $region49: #{wcnn_forward.1} parent=5 // pred_check
        %p393 = pneg %p392
      $region50: #{wcnn_forward.1} parent=5 // pred_check_branch
        %395 = sbr.rel (%p393) target = $region52
      $region51: #{wcnn_forward.1} parent=5 // pred_region
        // Predicated region
        $region53: #{wcnn_forward.1} parent=51 // pred_check
          %p396 = pneg %p47
        $region54: #{wcnn_forward.1} parent=51 // pred_check_branch
          %398 = sbr.rel (%p396) target = $region56
        $region55: #{wcnn_forward.1} parent=51 // pred_region
          %s399 = sand.u32 %s37, 1
          %s400 = scalar_lea.sflag [#allocation3], %s399
          %s401 = sand.u32 %s37, 1
          %s402 = smul.addr %s401, 1152
          %s403 = scalar_lea.vmem [#allocation2], %s402
          %s404 = smul.u32 8, %s27
          %s406 = ssub.s32 18432, 18432
          %407 = vsyncadd %s400, %s406
          %s408 = smul.addr %s404, 18
          %s409 = smul.addr %s408, 128
          %s410 = scalar_lea.hbm %s0, %s409
          %s411 = sshll.u32 %s403, 4
          %s412 = int_to_ptr.vmem [resolvable:$true] %s411
          %417 = dma.hbm_to_vmem [thread:$0]  %s410, 18432, %s412, %s400, 128, 128, 8
        $region56: #{wcnn_forward.1} parent=51 // pred_fallthru
          _
      $region52: #{wcnn_forward.1} parent=5 // pred_fallthru
        _
      %p418 = scmp.le.s32.totalorder 1, %s27
      %p419 = scmp.lt.s32.totalorder %s27, 3
      %p420 = pnand %p418, %p419
      %p421 = pneg %p420
      // Predicated region
      $region57: #{wcnn_forward.1} parent=5 // pred_check
        _
      $region58: #{wcnn_forward.1} parent=5 // pred_check_branch
        %423 = sbr.rel (%p420) target = $region60
      $region59: #{wcnn_forward.1} parent=5 // pred_region
        %s424 = ssub.s32 %s27, 1
        %s425 = sand.u32 %s40, 1
        %s426 = scalar_lea.sflag [#allocation3], %s425
        %s427 = sand.u32 %s40, 1
        %s428 = smul.addr %s427, 1152
        %s429 = scalar_lea.vmem [#allocation2], %s428
        // Predicated region
        $region61: #{wcnn_forward.1} parent=59 // pred_check
          %p430 = pneg %p53
        $region62: #{wcnn_forward.1} parent=59 // pred_check_branch
          %432 = sbr.rel (%p430) target = $region64
        $region63: #{wcnn_forward.1} parent=59 // pred_region
          %433 = dma.done %s426, 18432
        $region64: #{wcnn_forward.1} parent=59 // pred_fallthru
          _
        // Predicated region
        $region65: #{wcnn_forward.1} parent=59 // pred_check
          %p434 = pneg %p74
        $region66: #{wcnn_forward.1} parent=59 // pred_check_branch
          %436 = sbr.rel (%p434) target = $region68
        $region67: #{wcnn_forward.1} parent=59 // pred_region
          %437 = dma.done [#allocation6], 34944
        $region68: #{wcnn_forward.1} parent=59 // pred_fallthru
          _
        // Predicated region
        $region69: #{wcnn_forward.1} parent=59 // pred_check
          %p438 = pneg %p95
        $region70: #{wcnn_forward.1} parent=59 // pred_check_branch
          %440 = sbr.rel (%p438) target = $region72
        $region71: #{wcnn_forward.1} parent=59 // pred_region
          %441 = dma.done [#allocation6], 96
        $region72: #{wcnn_forward.1} parent=59 // pred_fallthru
          _
        // Predicated region
        $region73: #{wcnn_forward.1} parent=59 // pred_check
          %p442 = pneg %p116
        $region74: #{wcnn_forward.1} parent=59 // pred_check_branch
          %444 = sbr.rel (%p442) target = $region76
        $region75: #{wcnn_forward.1} parent=59 // pred_region
          %445 = dma.done [#allocation9], 384
        $region76: #{wcnn_forward.1} parent=59 // pred_fallthru
          _
        // Predicated region
        $region77: #{wcnn_forward.1} parent=59 // pred_check
          %p446 = pneg %p137
        $region78: #{wcnn_forward.1} parent=59 // pred_check_branch
          %448 = sbr.rel (%p446) target = $region80
        $region79: #{wcnn_forward.1} parent=59 // pred_region
          %449 = dma.done [#allocation9], 6144
        $region80: #{wcnn_forward.1} parent=59 // pred_fallthru
          _
        // Predicated region
        $region81: #{wcnn_forward.1} parent=59 // pred_check
          %p450 = pneg %p158
        $region82: #{wcnn_forward.1} parent=59 // pred_check_branch
          %452 = sbr.rel (%p450) target = $region84
        $region83: #{wcnn_forward.1} parent=59 // pred_region
          %453 = dma.done [#allocation12], 16
        $region84: #{wcnn_forward.1} parent=59 // pred_fallthru
          _
        // Predicated region
        $region85: #{wcnn_forward.1} parent=59 // pred_check
          %p454 = pneg %p179
        $region86: #{wcnn_forward.1} parent=59 // pred_check_branch
          %456 = sbr.rel (%p454) target = $region88
        $region87: #{wcnn_forward.1} parent=59 // pred_region
          %457 = dma.done [#allocation12], 1024
        $region88: #{wcnn_forward.1} parent=59 // pred_fallthru
          _
        // Predicated region
        $region89: #{wcnn_forward.1} parent=59 // pred_check
          %p458 = pneg %p200
        $region90: #{wcnn_forward.1} parent=59 // pred_check_branch
          %460 = sbr.rel (%p458) target = $region92
        $region91: #{wcnn_forward.1} parent=59 // pred_region
          %461 = dma.done [#allocation15], 16
        $region92: #{wcnn_forward.1} parent=59 // pred_fallthru
          _
        // Predicated region
        $region93: #{wcnn_forward.1} parent=59 // pred_check
          %p462 = pneg %p221
        $region94: #{wcnn_forward.1} parent=59 // pred_check_branch
          %464 = sbr.rel (%p462) target = $region96
        $region95: #{wcnn_forward.1} parent=59 // pred_region
          %465 = dma.done [#allocation15], 1024
        $region96: #{wcnn_forward.1} parent=59 // pred_fallthru
          _
        // Predicated region
        $region97: #{wcnn_forward.1} parent=59 // pred_check
          %p466 = pneg %p242
        $region98: #{wcnn_forward.1} parent=59 // pred_check_branch
          %468 = sbr.rel (%p466) target = $region100
        $region99: #{wcnn_forward.1} parent=59 // pred_region
          %469 = dma.done [#allocation18], 16
        $region100: #{wcnn_forward.1} parent=59 // pred_fallthru
          _
        %s470 = sand.u32 %s40, 1
        %s471 = scalar_lea.sflag [#allocation3], %s470
        %s472 = sand.u32 %s40, 1
        %s473 = smul.addr %s472, 1152
        %s474 = scalar_lea.vmem [#allocation2], %s473
        %p475 = pneg %p53
        %p476 = pneg %p50
        %p477 = pneg %p74
        %p478 = pneg %p71
        %p479 = pneg %p95
        %p480 = pneg %p92
        %p481 = pneg %p116
        %p482 = pneg %p113
        %p483 = pneg %p137
        %p484 = pneg %p134
        %p485 = pneg %p158
        %p486 = pneg %p155
        %p487 = pneg %p179
        %p488 = pneg %p176
        %p489 = pneg %p200
        %p490 = pneg %p197
        %p491 = pneg %p221
        %p492 = pneg %p218
        %p493 = pneg %p242
        %p494 = pneg %p239
        %p495 = pneg %p268
        %p496 = pneg %p265
        %s497 = sand.u32 %s255, 1
        %s498 = scalar_lea.sflag [#allocation4], %s497
        %s499 = sand.u32 %s255, 1
        %s500 = smul.addr %s499, 8
        %s501 = scalar_lea.vmem [#allocation19], %s500
        %s502 = smul.u32 8, %s32
        %v504 = vld [vmem:[#allocation8] sm:$0xff]
        %v505 = vld [vmem:[#allocation8 + $0x8] sm:$0xff]
        %v506 = vld [vmem:[#allocation8 + $0x10] sm:$0xff]
        %v507 = vld [vmem:[%s429] sm:$0xff]
        %v508 = vld [vmem:[%s429 + $0x8] sm:$0xff]
        %v509 = vld [vmem:[%s429 + $0x10] sm:$0xff]
        %v510 = vld [vmem:[%s429 + $0x90] sm:$0xff]
        %v511 = vld [vmem:[%s429 + $0x98] sm:$0xff]
        %v512 = vld [vmem:[%s429 + $0xa0] sm:$0xff]
        %v513 = vld [vmem:[%s429 + $0x120] sm:$0xff]
        %v514 = vld [vmem:[%s429 + $0x128] sm:$0xff]
        %v515 = vld [vmem:[%s429 + $0x130] sm:$0xff]
        %v516 = vld [vmem:[%s429 + $0x1b0] sm:$0xff]
        %v517 = vld [vmem:[%s429 + $0x1b8] sm:$0xff]
        %v518 = vld [vmem:[%s429 + $0x1c0] sm:$0xff]
        %v519 = vld [vmem:[%s429 + $0x240] sm:$0xff]
        %v520 = vld [vmem:[%s429 + $0x248] sm:$0xff]
        %v521 = vld [vmem:[%s429 + $0x250] sm:$0xff]
        %v522 = vld [vmem:[%s429 + $0x2d0] sm:$0xff]
        %v523 = vld [vmem:[%s429 + $0x2d8] sm:$0xff]
        %v524 = vld [vmem:[%s429 + $0x2e0] sm:$0xff]
        %v525 = vld [vmem:[%s429 + $0x360] sm:$0xff]
        %v526 = vld [vmem:[%s429 + $0x368] sm:$0xff]
        %v527 = vld [vmem:[%s429 + $0x370] sm:$0xff]
        %v528 = vld [vmem:[%s429 + $0x3f0] sm:$0xff]
        %v529 = vld [vmem:[%s429 + $0x3f8] sm:$0xff]
        %v530 = vld [vmem:[%s429 + $0x400] sm:$0xff]
        %v531 = vpack.c.bf16 %v508, %v507
        %v532 = vpack.c.bf16 %v510, %v509
        %v533 = vpack.c.bf16 %v512, %v511
        %v534 = vpack.c.bf16 %v514, %v513
        %v535 = vpack.c.bf16 %v516, %v515
        %v536 = vpack.c.bf16 %v518, %v517
        %v537 = vpack.c.bf16 %v520, %v519
        %v538 = vpack.c.bf16 %v522, %v521
        %v539 = vpack.c.bf16 %v524, %v523
        %v540 = vpack.c.bf16 %v526, %v525
        %v541 = vpack.c.bf16 %v528, %v527
        %v542 = vpack.c.bf16 %v530, %v529
        %v543 = vld [vmem:[#allocation5] sm:$0xff]
        %v544 = vld [vmem:[#allocation5 + $0x8] sm:$0xff]
        %v545 = vld [vmem:[#allocation5 + $0x10] sm:$0xff]
        %v546 = vld [vmem:[#allocation5 + $0x18] sm:$0xf]
        %v547 = vld [vmem:[#allocation5 + $0x1c] sm:$0xff]
        %v548 = vld [vmem:[#allocation5 + $0x24] sm:$0xff]
        %v549 = vld [vmem:[#allocation5 + $0x2c] sm:$0xff]
        %v550 = vld [vmem:[#allocation5 + $0x34] sm:$0xf]
        %v551 = vld [vmem:[#allocation5 + $0x38] sm:$0xff]
        %v552 = vld [vmem:[#allocation5 + $0x40] sm:$0xff]
        %v553 = vld [vmem:[#allocation5 + $0x48] sm:$0xff]
        %v554 = vld [vmem:[#allocation5 + $0x50] sm:$0xf]
        %v555 = vld [vmem:[#allocation5 + $0x54] sm:$0xff]
        %v556 = vld [vmem:[#allocation5 + $0x5c] sm:$0xff]
        %v557 = vld [vmem:[#allocation5 + $0x64] sm:$0xff]
        %v558 = vld [vmem:[#allocation5 + $0x6c] sm:$0xf]
        %v559 = vld [vmem:[#allocation5 + $0x70] sm:$0xff]
        %v560 = vld [vmem:[#allocation5 + $0x78] sm:$0xff]
        %v561 = vld [vmem:[#allocation5 + $0x80] sm:$0xff]
        %v562 = vld [vmem:[#allocation5 + $0x88] sm:$0xf]
        %v563 = vld [vmem:[#allocation5 + $0x8c] sm:$0xff]
        %v564 = vld [vmem:[#allocation5 + $0x94] sm:$0xff]
        %v565 = vld [vmem:[#allocation5 + $0x9c] sm:$0xff]
        %v566 = vld [vmem:[#allocation5 + $0xa4] sm:$0xf]
        %v567 = vld [vmem:[#allocation5 + $0xa8] sm:$0xff]
        %v568 = vld [vmem:[#allocation5 + $0xb0] sm:$0xff]
        %v569 = vld [vmem:[#allocation5 + $0xb8] sm:$0xff]
        %v570 = vld [vmem:[#allocation5 + $0xc0] sm:$0xf]
        %v571 = vld [vmem:[#allocation5 + $0xc4] sm:$0xff]
        %v572 = vld [vmem:[#allocation5 + $0xcc] sm:$0xff]
        %v573 = vld [vmem:[#allocation5 + $0xd4] sm:$0xff]
        %v574 = vld [vmem:[#allocation5 + $0xdc] sm:$0xf]
        %v575 = vld [vmem:[#allocation5 + $0xe0] sm:$0xff]
        %v576 = vld [vmem:[#allocation5 + $0xe8] sm:$0xff]
        %v577 = vld [vmem:[#allocation5 + $0xf0] sm:$0xff]
        %v578 = vld [vmem:[#allocation5 + $0xf8] sm:$0xf]
        %v579 = vld [vmem:[#allocation5 + $0xfc] sm:$0xff]
        %v580 = vld [vmem:[#allocation5 + $0x104] sm:$0xff]
        %v581 = vld [vmem:[#allocation5 + $0x10c] sm:$0xff]
        %v582 = vld [vmem:[#allocation5 + $0x114] sm:$0xf]
        %v583 = vld [vmem:[#allocation5 + $0x118] sm:$0xff]
        %v584 = vld [vmem:[#allocation5 + $0x120] sm:$0xff]
        %v585 = vld [vmem:[#allocation5 + $0x128] sm:$0xff]
        %v586 = vld [vmem:[#allocation5 + $0x130] sm:$0xf]
        %v587 = vld [vmem:[#allocation5 + $0x134] sm:$0xff]
        %v588 = vld [vmem:[#allocation5 + $0x13c] sm:$0xff]
        %v589 = vld [vmem:[#allocation5 + $0x144] sm:$0xff]
        %v590 = vld [vmem:[#allocation5 + $0x14c] sm:$0xf]
        %v591 = vld [vmem:[#allocation5 + $0x150] sm:$0x33]
        %v592 = vld [vmem:[#allocation5 + $0x158] sm:$0x33]
        %v593 = vld [vmem:[#allocation5 + $0x160] sm:$0x33]
        %v594 = vld [vmem:[#allocation5 + $0x168] sm:$0x3]
        %v647 = vunpack.c.l.b16 %v543
        %v648 = vunpack.c.h.b16 %v543
        %v649 = vunpack.c.l.b16 %v544
        %v650 = vunpack.c.h.b16 %v544
        %v651 = vunpack.c.l.b16 %v545
        %v652 = vunpack.c.h.b16 %v545
        %v653 = vunpack.c.l.b16 %v546
        %v654 = vunpack.c.l.b16 %v547
        %v655 = vunpack.c.h.b16 %v547
        %v656 = vunpack.c.l.b16 %v548
        %v657 = vunpack.c.h.b16 %v548
        %v658 = vunpack.c.l.b16 %v549
        %v659 = vunpack.c.h.b16 %v549
        %v660 = vunpack.c.l.b16 %v550
        %v661 = vunpack.c.l.b16 %v551
        %v662 = vunpack.c.h.b16 %v551
        %v663 = vunpack.c.l.b16 %v552
        %v664 = vunpack.c.h.b16 %v552
        %v665 = vunpack.c.l.b16 %v553
        %v666 = vunpack.c.h.b16 %v553
        %v667 = vunpack.c.l.b16 %v554
        %v668 = vunpack.c.l.b16 %v555
        %v669 = vunpack.c.h.b16 %v555
        %v670 = vunpack.c.l.b16 %v556
        %v671 = vunpack.c.h.b16 %v556
        %v672 = vunpack.c.l.b16 %v557
        %v673 = vunpack.c.h.b16 %v557
        %v674 = vunpack.c.l.b16 %v558
        %v675 = vunpack.c.l.b16 %v559
        %v676 = vunpack.c.h.b16 %v559
        %v677 = vunpack.c.l.b16 %v560
        %v678 = vunpack.c.h.b16 %v560
        %v679 = vunpack.c.l.b16 %v561
        %v680 = vunpack.c.h.b16 %v561
        %v681 = vunpack.c.l.b16 %v562
        %v682 = vunpack.c.l.b16 %v563
        %v683 = vunpack.c.h.b16 %v563
        %v684 = vunpack.c.l.b16 %v564
        %v685 = vunpack.c.h.b16 %v564
        %v686 = vunpack.c.l.b16 %v565
        %v687 = vunpack.c.h.b16 %v565
        %v688 = vunpack.c.l.b16 %v566
        %v689 = vunpack.c.l.b16 %v567
        %v690 = vunpack.c.h.b16 %v567
        %v691 = vunpack.c.l.b16 %v568
        %v692 = vunpack.c.h.b16 %v568
        %v693 = vunpack.c.l.b16 %v569
        %v694 = vunpack.c.h.b16 %v569
        %v695 = vunpack.c.l.b16 %v570
        %v696 = vunpack.c.l.b16 %v571
        %v697 = vunpack.c.h.b16 %v571
        %v698 = vunpack.c.l.b16 %v572
        %v699 = vunpack.c.h.b16 %v572
        %v700 = vunpack.c.l.b16 %v573
        %v701 = vunpack.c.h.b16 %v573
        %v702 = vunpack.c.l.b16 %v574
        %v703 = vunpack.c.l.b16 %v575
        %v704 = vunpack.c.h.b16 %v575
        %v705 = vunpack.c.l.b16 %v576
        %v706 = vunpack.c.h.b16 %v576
        %v707 = vunpack.c.l.b16 %v577
        %v708 = vunpack.c.h.b16 %v577
        %v709 = vunpack.c.l.b16 %v578
        %v710 = vunpack.c.l.b16 %v579
        %v711 = vunpack.c.h.b16 %v579
        %v712 = vunpack.c.l.b16 %v580
        %v713 = vunpack.c.h.b16 %v580
        %v714 = vunpack.c.l.b16 %v581
        %v715 = vunpack.c.h.b16 %v581
        %v716 = vunpack.c.l.b16 %v582
        %v717 = vunpack.c.l.b16 %v583
        %v718 = vunpack.c.h.b16 %v583
        %v719 = vunpack.c.l.b16 %v584
        %v720 = vunpack.c.h.b16 %v584
        %v721 = vunpack.c.l.b16 %v585
        %v722 = vunpack.c.h.b16 %v585
        %v723 = vunpack.c.l.b16 %v586
        %v724 = vunpack.c.l.b16 %v587
        %v725 = vunpack.c.h.b16 %v587
        %v726 = vunpack.c.l.b16 %v588
        %v727 = vunpack.c.h.b16 %v588
        %v728 = vunpack.c.l.b16 %v589
        %v729 = vunpack.c.h.b16 %v589
        %v730 = vunpack.c.l.b16 %v590
        %v731 = vunpack.c.l.b16 %v591
        %v732 = vunpack.c.h.b16 %v591
        %v733 = vunpack.c.l.b16 %v592
        %v734 = vunpack.c.h.b16 %v592
        %v735 = vunpack.c.l.b16 %v593
        %v736 = vunpack.c.h.b16 %v593
        %v737 = vunpack.c.l.b16 %v594
        %v738 = vpack.c.b16 %v654, %v647
        %v739 = vpack.c.b16 %v655, %v648
        %v740 = vpack.c.b16 %v656, %v649
        %v741 = vpack.c.b16 %v657, %v650
        %v742 = vpack.c.b16 %v658, %v651
        %v743 = vpack.c.b16 %v659, %v652
        %v744 = vpack.c.b16 %v660, %v653
        %v745 = vpack.c.b16 %v668, %v661
        %v746 = vpack.c.b16 %v669, %v662
        %v747 = vpack.c.b16 %v670, %v663
        %v748 = vpack.c.b16 %v671, %v664
        %v749 = vpack.c.b16 %v672, %v665
        %v750 = vpack.c.b16 %v673, %v666
        %v751 = vpack.c.b16 %v674, %v667
        %v752 = vpack.c.b16 %v682, %v675
        %v753 = vpack.c.b16 %v683, %v676
        %v754 = vpack.c.b16 %v684, %v677
        %v755 = vpack.c.b16 %v685, %v678
        %v756 = vpack.c.b16 %v686, %v679
        %v757 = vpack.c.b16 %v687, %v680
        %v758 = vpack.c.b16 %v688, %v681
        %v759 = vpack.c.b16 %v696, %v689
        %v760 = vpack.c.b16 %v697, %v690
        %v761 = vpack.c.b16 %v698, %v691
        %v762 = vpack.c.b16 %v699, %v692
        %v763 = vpack.c.b16 %v700, %v693
        %v764 = vpack.c.b16 %v701, %v694
        %v765 = vpack.c.b16 %v702, %v695
        %v766 = vpack.c.b16 %v710, %v703
        %v767 = vpack.c.b16 %v711, %v704
        %v768 = vpack.c.b16 %v712, %v705
        %v769 = vpack.c.b16 %v713, %v706
        %v770 = vpack.c.b16 %v714, %v707
        %v771 = vpack.c.b16 %v715, %v708
        %v772 = vpack.c.b16 %v716, %v709
        %v773 = vpack.c.b16 %v724, %v717
        %v774 = vpack.c.b16 %v725, %v718
        %v775 = vpack.c.b16 %v726, %v719
        %v776 = vpack.c.b16 %v727, %v720
        %v777 = vpack.c.b16 %v728, %v721
        %v778 = vpack.c.b16 %v729, %v722
        %v779 = vpack.c.b16 %v730, %v723
        %v780 = vpack.c.b16 %v731, %v731
        %v781 = vpack.c.b16 %v732, %v732
        %v782 = vpack.c.b16 %v733, %v733
        %v783 = vpack.c.b16 %v734, %v734
        %v784 = vpack.c.b16 %v735, %v735
        %v785 = vpack.c.b16 %v736, %v736
        %v786 = vpack.c.b16 %v737, %v737
        %vm829 = vcmask 818176
        %v831 = vsel %vm829, %v531, 0
        %v834 = vsel %vm829, %v532, 0
        %v837 = vsel %vm829, %v533, 0
        %v840 = vsel %vm829, %v534, 0
        %v843 = vsel %vm829, %v535, 0
        %v846 = vsel %vm829, %v536, 0
        %v849 = vsel %vm829, %v537, 0
        %v852 = vsel %vm829, %v538, 0
        %v855 = vsel %vm829, %v539, 0
        %v858 = vsel %vm829, %v540, 0
        %v861 = vsel %vm829, %v541, 0
        %v864 = vsel %vm829, %v542, 0
        %vm866 = vcmask 1041408
        %v868 = vsel %vm866, %v780, 0
        %v871 = vsel %vm866, %v781, 0
        %v874 = vsel %vm866, %v782, 0
        %v877 = vsel %vm866, %v783, 0
        %v880 = vsel %vm866, %v784, 0
        %v883 = vsel %vm866, %v785, 0
        %v886 = vsel %vm866, %v786, 0
        %888 = vmatprep.subr.bf16.mxu0 %v739
        %889 = vmatpush1.bf16.msra.mxu0 %v738
        %890 = vmatprep.subr.bf16.mxu0 %v746
        %891 = vmatpush1.bf16.msra.mxu0 %v745
        %892 = vmatprep.subr.bf16.mxu0 %v753
        %893 = vmatpush1.bf16.msra.mxu0 %v752
        %894 = vmatprep.subr.bf16.mxu0 %v760
        %895 = vmatpush1.bf16.msra.mxu0 %v759
        %896 = vmatprep.subr.bf16.mxu0 %v767
        %897 = vmatpush1.bf16.msra.mxu0 %v766
        %898 = vmatprep.subr.bf16.mxu0 %v774
        %899 = vmatpush1.bf16.msra.mxu0 %v773
        %900 = vmatprep.subr.bf16.mxu0 %v871
        %901 = vmatpush1.bf16.msra.mxu0 %v868
        %902 = vmatprep.subr.bf16.mxu0 0
        %903 = vmatpush1.bf16.msra.mxu0 0
        %904 = vmatprep.subr.bf16.mxu0 0
        %905 = vmatpush1.bf16.msra.mxu0 0
        %906 = vmatprep.subr.bf16.mxu0 0
        %907 = vmatpush1.bf16.msra.mxu0 0
        %908 = vmatprep.subr.bf16.mxu0 0
        %909 = vmatpush1.bf16.msra.mxu0 0
        %910 = vmatprep.subr.bf16.mxu0 0
        %911 = vmatpush1.bf16.msra.mxu0 0
        %912 = vmatprep.subr.bf16.mxu0 0
        %913 = vmatpush1.bf16.msra.mxu0 0
        %914 = vmatprep.subr.bf16.mxu0 0
        %915 = vmatpush1.bf16.msra.mxu0 0
        %916 = vmatprep.subr.bf16.mxu0 0
        %917 = vmatpush1.bf16.msra.mxu0 0
        %918 = vmatprep.subr.bf16.mxu0 0
        %919 = vmatpush1.bf16.msra.mxu0 0
        %920 = vmatprep.mubr.bf16.mxu0 0
        %921 = vmatmul.mubr.bf16.gmra.mrb[0].mxu0 %v831
        %v922 = vpop.f32.mrb[0].mxu0
        %v923 = vadd.f32 0.0, %v922
        %v924 = vpop.f32.mrb[0].mxu0
        %v925 = vadd.f32 0.0, %v924
        %v926 = vpop.f32.mrb[0].mxu0
        %v927 = vadd.f32 0.0, %v926
        %v928 = vpop.f32.mrb[0].mxu0
        %v929 = vadd.f32 0.0, %v928
        %930 = vmatprep.mubr.bf16.mxu0 0
        %931 = vmatmul.mubr.bf16.gmra.mrb[0].mxu0 %v834
        %v932 = vpop.f32.mrb[0].mxu0
        %v933 = vadd.f32 0.0, %v932
        %v934 = vpop.f32.mrb[0].mxu0
        %v935 = vadd.f32 0.0, %v934
        %v936 = vpop.f32.mrb[0].mxu0
        %v937 = vadd.f32 0.0, %v936
        %v938 = vpop.f32.mrb[0].mxu0
        %v939 = vadd.f32 0.0, %v938
        %940 = vmatprep.mubr.bf16.mxu0 0
        %941 = vmatmul.mubr.bf16.gmra.mrb[0].mxu0 %v837
        %v942 = vpop.f32.mrb[0].mxu0
        %v943 = vadd.f32 0.0, %v942
        %v944 = vpop.f32.mrb[0].mxu0
        %v945 = vadd.f32 0.0, %v944
        %v946 = vpop.f32.mrb[0].mxu0
        %v947 = vadd.f32 0.0, %v946
        %v948 = vpop.f32.mrb[0].mxu0
        %v949 = vadd.f32 0.0, %v948
        %950 = vmatprep.mubr.bf16.mxu0 0
        %951 = vmatmul.mubr.bf16.gmra.mrb[0].mxu0 %v840
        %v952 = vpop.f32.mrb[0].mxu0
        %v953 = vadd.f32 0.0, %v952
        %v954 = vpop.f32.mrb[0].mxu0
        %v955 = vadd.f32 0.0, %v954
        %v956 = vpop.f32.mrb[0].mxu0
        %v957 = vadd.f32 0.0, %v956
        %v958 = vpop.f32.mrb[0].mxu0
        %v959 = vadd.f32 0.0, %v958
        %960 = vmatprep.mubr.bf16.mxu0 0
        %961 = vmatmul.mubr.bf16.gmra.mrb[0].mxu0 %v843
        %v962 = vpop.f32.mrb[0].mxu0
        %v963 = vadd.f32 0.0, %v962
        %v964 = vpop.f32.mrb[0].mxu0
        %v965 = vadd.f32 0.0, %v964
        %v966 = vpop.f32.mrb[0].mxu0
        %v967 = vadd.f32 0.0, %v966
        %v968 = vpop.f32.mrb[0].mxu0
        %v969 = vadd.f32 0.0, %v968
        %970 = vmatprep.mubr.bf16.mxu0 0
        %971 = vmatmul.mubr.bf16.gmra.mrb[0].mxu0 %v846
        %v972 = vpop.f32.mrb[0].mxu0
        %v973 = vadd.f32 0.0, %v972
        %v974 = vpop.f32.mrb[0].mxu0
        %v975 = vadd.f32 0.0, %v974
        %v976 = vpop.f32.mrb[0].mxu0
        %v977 = vadd.f32 0.0, %v976
        %v978 = vpop.f32.mrb[0].mxu0
        %v979 = vadd.f32 0.0, %v978
        %980 = vmatprep.mubr.bf16.mxu0 0
        %981 = vmatmul.mubr.bf16.gmra.mrb[0].mxu0 %v849
        %v982 = vpop.f32.mrb[0].mxu0
        %v983 = vadd.f32 0.0, %v982
        %v984 = vpop.f32.mrb[0].mxu0
        %v985 = vadd.f32 0.0, %v984
        %v986 = vpop.f32.mrb[0].mxu0
        %v987 = vadd.f32 0.0, %v986
        %v988 = vpop.f32.mrb[0].mxu0
        %v989 = vadd.f32 0.0, %v988
        %990 = vmatprep.mubr.bf16.mxu0 0
        %991 = vmatmul.mubr.bf16.gmra.mrb[0].mxu0 %v852
        %v992 = vpop.f32.mrb[0].mxu0
        %v993 = vadd.f32 0.0, %v992
        %v994 = vpop.f32.mrb[0].mxu0
        %v995 = vadd.f32 0.0, %v994
        %v996 = vpop.f32.mrb[0].mxu0
        %v997 = vadd.f32 0.0, %v996
        %v998 = vpop.f32.mrb[0].mxu0
        %v999 = vadd.f32 0.0, %v998
        %1000 = vmatprep.mubr.bf16.mxu0 0
        %1001 = vmatmul.mubr.bf16.gmra.mrb[0].mxu0 %v855
        %v1002 = vpop.f32.mrb[0].mxu0
        %v1003 = vadd.f32 0.0, %v1002
        %v1004 = vpop.f32.mrb[0].mxu0
        %v1005 = vadd.f32 0.0, %v1004
        %v1006 = vpop.f32.mrb[0].mxu0
        %v1007 = vadd.f32 0.0, %v1006
        %v1008 = vpop.f32.mrb[0].mxu0
        %v1009 = vadd.f32 0.0, %v1008
        %1010 = vmatprep.mubr.bf16.mxu0 0
        %1011 = vmatmul.mubr.bf16.gmra.mrb[0].mxu0 %v858
        %v1012 = vpop.f32.mrb[0].mxu0
        %v1013 = vadd.f32 0.0, %v1012
        %v1014 = vpop.f32.mrb[0].mxu0
        %v1015 = vadd.f32 0.0, %v1014
        %v1016 = vpop.f32.mrb[0].mxu0
        %v1017 = vadd.f32 0.0, %v1016
        %v1018 = vpop.f32.mrb[0].mxu0
        %v1019 = vadd.f32 0.0, %v1018
        %1020 = vmatprep.mubr.bf16.mxu0 0
        %1021 = vmatmul.mubr.bf16.gmra.mrb[0].mxu0 %v861
        %v1022 = vpop.f32.mrb[0].mxu0
        %v1023 = vadd.f32 0.0, %v1022
        %v1024 = vpop.f32.mrb[0].mxu0
        %v1025 = vadd.f32 0.0, %v1024
        %v1026 = vpop.f32.mrb[0].mxu0
        %v1027 = vadd.f32 0.0, %v1026
        %v1028 = vpop.f32.mrb[0].mxu0
        %v1029 = vadd.f32 0.0, %v1028
        %1030 = vmatprep.mubr.bf16.mxu0 0
        %1031 = vmatmul.mubr.bf16.gmra.mrb[0].mxu0 %v864
        %v1032 = vpop.f32.mrb[0].mxu0
        %v1033 = vadd.f32 0.0, %v1032
        %v1034 = vpop.f32.mrb[0].mxu0
        %v1035 = vadd.f32 0.0, %v1034
        %v1036 = vpop.f32.mrb[0].mxu0
        %v1037 = vadd.f32 0.0, %v1036
        %v1038 = vpop.f32.mrb[0].mxu0
        %v1039 = vadd.f32 0.0, %v1038
        %1040 = vdwg.mxu0
        %1041 = vmatprep.subr.bf16.mxu0 %v741
        %1042 = vmatpush1.bf16.msra.mxu0 %v740
        %1043 = vmatprep.subr.bf16.mxu0 %v748
        %1044 = vmatpush1.bf16.msra.mxu0 %v747
        %1045 = vmatprep.subr.bf16.mxu0 %v755
        %1046 = vmatpush1.bf16.msra.mxu0 %v754
        %1047 = vmatprep.subr.bf16.mxu0 %v762
        %1048 = vmatpush1.bf16.msra.mxu0 %v761
        %1049 = vmatprep.subr.bf16.mxu0 %v769
        %1050 = vmatpush1.bf16.msra.mxu0 %v768
        %1051 = vmatprep.subr.bf16.mxu0 %v776
        %1052 = vmatpush1.bf16.msra.mxu0 %v775
        %1053 = vmatprep.subr.bf16.mxu0 %v877
        %1054 = vmatpush1.bf16.msra.mxu0 %v874
        %1055 = vmatprep.subr.bf16.mxu0 0
        %1056 = vmatpush1.bf16.msra.mxu0 0
        %1057 = vmatprep.subr.bf16.mxu0 0
        %1058 = vmatpush1.bf16.msra.mxu0 0
        %1059 = vmatprep.subr.bf16.mxu0 0
        %1060 = vmatpush1.bf16.msra.mxu0 0
        %1061 = vmatprep.subr.bf16.mxu0 0
        %1062 = vmatpush1.bf16.msra.mxu0 0
        %1063 = vmatprep.subr.bf16.mxu0 0
        %1064 = vmatpush1.bf16.msra.mxu0 0
        %1065 = vmatprep.subr.bf16.mxu0 0
        %1066 = vmatpush1.bf16.msra.mxu0 0
        %1067 = vmatprep.subr.bf16.mxu0 0
        %1068 = vmatpush1.bf16.msra.mxu0 0
        %1069 = vmatprep.subr.bf16.mxu0 0
        %1070 = vmatpush1.bf16.msra.mxu0 0
        %1071 = vmatprep.subr.bf16.mxu0 0
        %1072 = vmatpush1.bf16.msra.mxu0 0
        %1073 = vmatprep.mubr.bf16.mxu0 0
        %1074 = vmatmul.mubr.bf16.gmra.mrb[0].mxu0 %v831
        %v1075 = vpop.f32.mrb[0].mxu0
        %v1076 = vadd.f32 0.0, %v1075
        %v1077 = vpop.f32.mrb[0].mxu0
        %v1078 = vadd.f32 0.0, %v1077
        %v1079 = vpop.f32.mrb[0].mxu0
        %v1080 = vadd.f32 0.0, %v1079
        %v1081 = vpop.f32.mrb[0].mxu0
        %v1082 = vadd.f32 0.0, %v1081
        %1083 = vmatprep.mubr.bf16.mxu0 0
        %1084 = vmatmul.mubr.bf16.gmra.mrb[0].mxu0 %v834
        %v1085 = vpop.f32.mrb[0].mxu0
        %v1086 = vadd.f32 0.0, %v1085
        %v1087 = vpop.f32.mrb[0].mxu0
        %v1088 = vadd.f32 0.0, %v1087
        %v1089 = vpop.f32.mrb[0].mxu0
        %v1090 = vadd.f32 0.0, %v1089
        %v1091 = vpop.f32.mrb[0].mxu0
        %v1092 = vadd.f32 0.0, %v1091
        %1093 = vmatprep.mubr.bf16.mxu0 0
        %1094 = vmatmul.mubr.bf16.gmra.mrb[0].mxu0 %v837
        %v1095 = vpop.f32.mrb[0].mxu0
        %v1096 = vadd.f32 0.0, %v1095
        %v1097 = vpop.f32.mrb[0].mxu0
        %v1098 = vadd.f32 0.0, %v1097
        %v1099 = vpop.f32.mrb[0].mxu0
        %v1100 = vadd.f32 0.0, %v1099
        %v1101 = vpop.f32.mrb[0].mxu0
        %v1102 = vadd.f32 0.0, %v1101
        %1103 = vmatprep.mubr.bf16.mxu0 0
        %1104 = vmatmul.mubr.bf16.gmra.mrb[0].mxu0 %v840
        %v1105 = vpop.f32.mrb[0].mxu0
        %v1106 = vadd.f32 0.0, %v1105
        %v1107 = vpop.f32.mrb[0].mxu0
        %v1108 = vadd.f32 0.0, %v1107
        %v1109 = vpop.f32.mrb[0].mxu0
        %v1110 = vadd.f32 0.0, %v1109
        %v1111 = vpop.f32.mrb[0].mxu0
        %v1112 = vadd.f32 0.0, %v1111
        %1113 = vmatprep.mubr.bf16.mxu0 0
        %1114 = vmatmul.mubr.bf16.gmra.mrb[0].mxu0 %v843
        %v1115 = vpop.f32.mrb[0].mxu0
        %v1116 = vadd.f32 0.0, %v1115
        %v1117 = vpop.f32.mrb[0].mxu0
        %v1118 = vadd.f32 0.0, %v1117
        %v1119 = vpop.f32.mrb[0].mxu0
        %v1120 = vadd.f32 0.0, %v1119
        %v1121 = vpop.f32.mrb[0].mxu0
        %v1122 = vadd.f32 0.0, %v1121
        %1123 = vmatprep.mubr.bf16.mxu0 0
        %1124 = vmatmul.mubr.bf16.gmra.mrb[0].mxu0 %v846
        %v1125 = vpop.f32.mrb[0].mxu0
        %v1126 = vadd.f32 0.0, %v1125
        %v1127 = vpop.f32.mrb[0].mxu0
        %v1128 = vadd.f32 0.0, %v1127
        %v1129 = vpop.f32.mrb[0].mxu0
        %v1130 = vadd.f32 0.0, %v1129
        %v1131 = vpop.f32.mrb[0].mxu0
        %v1132 = vadd.f32 0.0, %v1131
        %1133 = vmatprep.mubr.bf16.mxu0 0
        %1134 = vmatmul.mubr.bf16.gmra.mrb[0].mxu0 %v849
        %v1135 = vpop.f32.mrb[0].mxu0
        %v1136 = vadd.f32 0.0, %v1135
        %v1137 = vpop.f32.mrb[0].mxu0
        %v1138 = vadd.f32 0.0, %v1137
        %v1139 = vpop.f32.mrb[0].mxu0
        %v1140 = vadd.f32 0.0, %v1139
        %v1141 = vpop.f32.mrb[0].mxu0
        %v1142 = vadd.f32 0.0, %v1141
        %1143 = vmatprep.mubr.bf16.mxu0 0
        %1144 = vmatmul.mubr.bf16.gmra.mrb[0].mxu0 %v852
        %v1145 = vpop.f32.mrb[0].mxu0
        %v1146 = vadd.f32 0.0, %v1145
        %v1147 = vpop.f32.mrb[0].mxu0
        %v1148 = vadd.f32 0.0, %v1147
        %v1149 = vpop.f32.mrb[0].mxu0
        %v1150 = vadd.f32 0.0, %v1149
        %v1151 = vpop.f32.mrb[0].mxu0
        %v1152 = vadd.f32 0.0, %v1151
        %1153 = vmatprep.mubr.bf16.mxu0 0
        %1154 = vmatmul.mubr.bf16.gmra.mrb[0].mxu0 %v855
        %v1155 = vpop.f32.mrb[0].mxu0
        %v1156 = vadd.f32 0.0, %v1155
        %v1157 = vpop.f32.mrb[0].mxu0
        %v1158 = vadd.f32 0.0, %v1157
        %v1159 = vpop.f32.mrb[0].mxu0
        %v1160 = vadd.f32 0.0, %v1159
        %v1161 = vpop.f32.mrb[0].mxu0
        %v1162 = vadd.f32 0.0, %v1161
        %1163 = vmatprep.mubr.bf16.mxu0 0
        %1164 = vmatmul.mubr.bf16.gmra.mrb[0].mxu0 %v858
        %v1165 = vpop.f32.mrb[0].mxu0
        %v1166 = vadd.f32 0.0, %v1165
        %v1167 = vpop.f32.mrb[0].mxu0
        %v1168 = vadd.f32 0.0, %v1167
        %v1169 = vpop.f32.mrb[0].mxu0
        %v1170 = vadd.f32 0.0, %v1169
        %v1171 = vpop.f32.mrb[0].mxu0
        %v1172 = vadd.f32 0.0, %v1171
        %1173 = vmatprep.mubr.bf16.mxu0 0
        %1174 = vmatmul.mubr.bf16.gmra.mrb[0].mxu0 %v861
        %v1175 = vpop.f32.mrb[0].mxu0
        %v1176 = vadd.f32 0.0, %v1175
        %v1177 = vpop.f32.mrb[0].mxu0
        %v1178 = vadd.f32 0.0, %v1177
        %v1179 = vpop.f32.mrb[0].mxu0
        %v1180 = vadd.f32 0.0, %v1179
        %v1181 = vpop.f32.mrb[0].mxu0
        %v1182 = vadd.f32 0.0, %v1181
        %1183 = vmatprep.mubr.bf16.mxu0 0
        %1184 = vmatmul.mubr.bf16.gmra.mrb[0].mxu0 %v864
        %v1185 = vpop.f32.mrb[0].mxu0
        %v1186 = vadd.f32 0.0, %v1185
        %v1187 = vpop.f32.mrb[0].mxu0
        %v1188 = vadd.f32 0.0, %v1187
        %v1189 = vpop.f32.mrb[0].mxu0
        %v1190 = vadd.f32 0.0, %v1189
        %v1191 = vpop.f32.mrb[0].mxu0
        %v1192 = vadd.f32 0.0, %v1191
        %1193 = vdwg.mxu0
        %1194 = vmatprep.subr.bf16.mxu0 %v743
        %1195 = vmatpush1.bf16.msra.mxu0 %v742
        %1196 = vmatprep.subr.bf16.mxu0 %v750
        %1197 = vmatpush1.bf16.msra.mxu0 %v749
        %1198 = vmatprep.subr.bf16.mxu0 %v757
        %1199 = vmatpush1.bf16.msra.mxu0 %v756
        %1200 = vmatprep.subr.bf16.mxu0 %v764
        %1201 = vmatpush1.bf16.msra.mxu0 %v763
        %1202 = vmatprep.subr.bf16.mxu0 %v771
        %1203 = vmatpush1.bf16.msra.mxu0 %v770
        %1204 = vmatprep.subr.bf16.mxu0 %v778
        %1205 = vmatpush1.bf16.msra.mxu0 %v777
        %1206 = vmatprep.subr.bf16.mxu0 %v883
        %1207 = vmatpush1.bf16.msra.mxu0 %v880
        %1208 = vmatprep.subr.bf16.mxu0 0
        %1209 = vmatpush1.bf16.msra.mxu0 0
        %1210 = vmatprep.subr.bf16.mxu0 0
        %1211 = vmatpush1.bf16.msra.mxu0 0
        %1212 = vmatprep.subr.bf16.mxu0 0
        %1213 = vmatpush1.bf16.msra.mxu0 0
        %1214 = vmatprep.subr.bf16.mxu0 0
        %1215 = vmatpush1.bf16.msra.mxu0 0
        %1216 = vmatprep.subr.bf16.mxu0 0
        %1217 = vmatpush1.bf16.msra.mxu0 0
        %1218 = vmatprep.subr.bf16.mxu0 0
        %1219 = vmatpush1.bf16.msra.mxu0 0
        %1220 = vmatprep.subr.bf16.mxu0 0
        %1221 = vmatpush1.bf16.msra.mxu0 0
        %1222 = vmatprep.subr.bf16.mxu0 0
        %1223 = vmatpush1.bf16.msra.mxu0 0
        %1224 = vmatprep.subr.bf16.mxu0 0
        %1225 = vmatpush1.bf16.msra.mxu0 0
        %1226 = vmatprep.mubr.bf16.mxu0 0
        %1227 = vmatmul.mubr.bf16.gmra.mrb[0].mxu0 %v831
        %v1228 = vpop.f32.mrb[0].mxu0
        %v1229 = vadd.f32 0.0, %v1228
        %v1230 = vpop.f32.mrb[0].mxu0
        %v1231 = vadd.f32 0.0, %v1230
        %v1232 = vpop.f32.mrb[0].mxu0
        %v1233 = vadd.f32 0.0, %v1232
        %v1234 = vpop.f32.mrb[0].mxu0
        %v1235 = vadd.f32 0.0, %v1234
        %1236 = vmatprep.mubr.bf16.mxu0 0
        %1237 = vmatmul.mubr.bf16.gmra.mrb[0].mxu0 %v834
        %v1238 = vpop.f32.mrb[0].mxu0
        %v1239 = vadd.f32 0.0, %v1238
        %v1240 = vpop.f32.mrb[0].mxu0
        %v1241 = vadd.f32 0.0, %v1240
        %v1242 = vpop.f32.mrb[0].mxu0
        %v1243 = vadd.f32 0.0, %v1242
        %v1244 = vpop.f32.mrb[0].mxu0
        %v1245 = vadd.f32 0.0, %v1244
        %1246 = vmatprep.mubr.bf16.mxu0 0
        %1247 = vmatmul.mubr.bf16.gmra.mrb[0].mxu0 %v837
        %v1248 = vpop.f32.mrb[0].mxu0
        %v1249 = vadd.f32 0.0, %v1248
        %v1250 = vpop.f32.mrb[0].mxu0
        %v1251 = vadd.f32 0.0, %v1250
        %v1252 = vpop.f32.mrb[0].mxu0
        %v1253 = vadd.f32 0.0, %v1252
        %v1254 = vpop.f32.mrb[0].mxu0
        %v1255 = vadd.f32 0.0, %v1254
        %1256 = vmatprep.mubr.bf16.mxu0 0
        %1257 = vmatmul.mubr.bf16.gmra.mrb[0].mxu0 %v840
        %v1258 = vpop.f32.mrb[0].mxu0
        %v1259 = vadd.f32 0.0, %v1258
        %v1260 = vpop.f32.mrb[0].mxu0
        %v1261 = vadd.f32 0.0, %v1260
        %v1262 = vpop.f32.mrb[0].mxu0
        %v1263 = vadd.f32 0.0, %v1262
        %v1264 = vpop.f32.mrb[0].mxu0
        %v1265 = vadd.f32 0.0, %v1264
        %1266 = vmatprep.mubr.bf16.mxu0 0
        %1267 = vmatmul.mubr.bf16.gmra.mrb[0].mxu0 %v843
        %v1268 = vpop.f32.mrb[0].mxu0
        %v1269 = vadd.f32 0.0, %v1268
        %v1270 = vpop.f32.mrb[0].mxu0
        %v1271 = vadd.f32 0.0, %v1270
        %v1272 = vpop.f32.mrb[0].mxu0
        %v1273 = vadd.f32 0.0, %v1272
        %v1274 = vpop.f32.mrb[0].mxu0
        %v1275 = vadd.f32 0.0, %v1274
        %1276 = vmatprep.mubr.bf16.mxu0 0
        %1277 = vmatmul.mubr.bf16.gmra.mrb[0].mxu0 %v846
        %v1278 = vpop.f32.mrb[0].mxu0
        %v1279 = vadd.f32 0.0, %v1278
        %v1280 = vpop.f32.mrb[0].mxu0
        %v1281 = vadd.f32 0.0, %v1280
        %v1282 = vpop.f32.mrb[0].mxu0
        %v1283 = vadd.f32 0.0, %v1282
        %v1284 = vpop.f32.mrb[0].mxu0
        %v1285 = vadd.f32 0.0, %v1284
        %1286 = vmatprep.mubr.bf16.mxu0 0
        %1287 = vmatmul.mubr.bf16.gmra.mrb[0].mxu0 %v849
        %v1288 = vpop.f32.mrb[0].mxu0
        %v1289 = vadd.f32 0.0, %v1288
        %v1290 = vpop.f32.mrb[0].mxu0
        %v1291 = vadd.f32 0.0, %v1290
        %v1292 = vpop.f32.mrb[0].mxu0
        %v1293 = vadd.f32 0.0, %v1292
        %v1294 = vpop.f32.mrb[0].mxu0
        %v1295 = vadd.f32 0.0, %v1294
        %1296 = vmatprep.mubr.bf16.mxu0 0
        %1297 = vmatmul.mubr.bf16.gmra.mrb[0].mxu0 %v852
        %v1298 = vpop.f32.mrb[0].mxu0
        %v1299 = vadd.f32 0.0, %v1298
        %v1300 = vpop.f32.mrb[0].mxu0
        %v1301 = vadd.f32 0.0, %v1300
        %v1302 = vpop.f32.mrb[0].mxu0
        %v1303 = vadd.f32 0.0, %v1302
        %v1304 = vpop.f32.mrb[0].mxu0
        %v1305 = vadd.f32 0.0, %v1304
        %1306 = vmatprep.mubr.bf16.mxu0 0
        %1307 = vmatmul.mubr.bf16.gmra.mrb[0].mxu0 %v855
        %v1308 = vpop.f32.mrb[0].mxu0
        %v1309 = vadd.f32 0.0, %v1308
        %v1310 = vpop.f32.mrb[0].mxu0
        %v1311 = vadd.f32 0.0, %v1310
        %v1312 = vpop.f32.mrb[0].mxu0
        %v1313 = vadd.f32 0.0, %v1312
        %v1314 = vpop.f32.mrb[0].mxu0
        %v1315 = vadd.f32 0.0, %v1314
        %1316 = vmatprep.mubr.bf16.mxu0 0
        %1317 = vmatmul.mubr.bf16.gmra.mrb[0].mxu0 %v858
        %v1318 = vpop.f32.mrb[0].mxu0
        %v1319 = vadd.f32 0.0, %v1318
        %v1320 = vpop.f32.mrb[0].mxu0
        %v1321 = vadd.f32 0.0, %v1320
        %v1322 = vpop.f32.mrb[0].mxu0
        %v1323 = vadd.f32 0.0, %v1322
        %v1324 = vpop.f32.mrb[0].mxu0
        %v1325 = vadd.f32 0.0, %v1324
        %1326 = vmatprep.mubr.bf16.mxu0 0
        %1327 = vmatmul.mubr.bf16.gmra.mrb[0].mxu0 %v861
        %v1328 = vpop.f32.mrb[0].mxu0
        %v1329 = vadd.f32 0.0, %v1328
        %v1330 = vpop.f32.mrb[0].mxu0
        %v1331 = vadd.f32 0.0, %v1330
        %v1332 = vpop.f32.mrb[0].mxu0
        %v1333 = vadd.f32 0.0, %v1332
        %v1334 = vpop.f32.mrb[0].mxu0
        %v1335 = vadd.f32 0.0, %v1334
        %1336 = vmatprep.mubr.bf16.mxu0 0
        %1337 = vmatmul.mubr.bf16.gmra.mrb[0].mxu0 %v864
        %v1338 = vpop.f32.mrb[0].mxu0
        %v1339 = vadd.f32 0.0, %v1338
        %v1340 = vpop.f32.mrb[0].mxu0
        %v1341 = vadd.f32 0.0, %v1340
        %v1342 = vpop.f32.mrb[0].mxu0
        %v1343 = vadd.f32 0.0, %v1342
        %v1344 = vpop.f32.mrb[0].mxu0
        %v1345 = vadd.f32 0.0, %v1344
        %1346 = vdwg.mxu0
        %1347 = vmatprep.subr.bf16.mxu0 0
        %1348 = vmatpush1.bf16.msra.mxu0 %v744
        %1349 = vmatprep.subr.bf16.mxu0 0
        %1350 = vmatpush1.bf16.msra.mxu0 %v751
        %1351 = vmatprep.subr.bf16.mxu0 0
        %1352 = vmatpush1.bf16.msra.mxu0 %v758
        %1353 = vmatprep.subr.bf16.mxu0 0
        %1354 = vmatpush1.bf16.msra.mxu0 %v765
        %1355 = vmatprep.subr.bf16.mxu0 0
        %1356 = vmatpush1.bf16.msra.mxu0 %v772
        %1357 = vmatprep.subr.bf16.mxu0 0
        %1358 = vmatpush1.bf16.msra.mxu0 %v779
        %1359 = vmatprep.subr.bf16.mxu0 0
        %1360 = vmatpush1.bf16.msra.mxu0 %v886
        %1361 = vmatprep.subr.bf16.mxu0 0
        %1362 = vmatpush1.bf16.msra.mxu0 0
        %1363 = vmatprep.subr.bf16.mxu0 0
        %1364 = vmatpush1.bf16.msra.mxu0 0
        %1365 = vmatprep.subr.bf16.mxu0 0
        %1366 = vmatpush1.bf16.msra.mxu0 0
        %1367 = vmatprep.subr.bf16.mxu0 0
        %1368 = vmatpush1.bf16.msra.mxu0 0
        %1369 = vmatprep.subr.bf16.mxu0 0
        %1370 = vmatpush1.bf16.msra.mxu0 0
        %1371 = vmatprep.subr.bf16.mxu0 0
        %1372 = vmatpush1.bf16.msra.mxu0 0
        %1373 = vmatprep.subr.bf16.mxu0 0
        %1374 = vmatpush1.bf16.msra.mxu0 0
        %1375 = vmatprep.subr.bf16.mxu0 0
        %1376 = vmatpush1.bf16.msra.mxu0 0
        %1377 = vmatprep.subr.bf16.mxu0 0
        %1378 = vmatpush1.bf16.msra.mxu0 0
        %1379 = vmatprep.mubr.bf16.mxu0 0
        %1380 = vmatmul.mubr.bf16.gmra.mrb[0].mxu0 %v831
        %v1381 = vpop.f32.mrb[0].mxu0
        %v1382 = vadd.f32 0.0, %v1381
        %v1383 = vpop.f32.mrb[0].mxu0
        %v1384 = vpop.f32.mrb[0].mxu0
        %v1385 = vadd.f32 0.0, %v1384
        %v1386 = vpop.f32.mrb[0].mxu0
        %1387 = vmatprep.mubr.bf16.mxu0 0
        %1388 = vmatmul.mubr.bf16.gmra.mrb[0].mxu0 %v834
        %v1389 = vpop.f32.mrb[0].mxu0
        %v1390 = vadd.f32 0.0, %v1389
        %v1391 = vpop.f32.mrb[0].mxu0
        %v1392 = vpop.f32.mrb[0].mxu0
        %v1393 = vadd.f32 0.0, %v1392
        %v1394 = vpop.f32.mrb[0].mxu0
        %1395 = vmatprep.mubr.bf16.mxu0 0
        %1396 = vmatmul.mubr.bf16.gmra.mrb[0].mxu0 %v837
        %v1397 = vpop.f32.mrb[0].mxu0
        %v1398 = vadd.f32 0.0, %v1397
        %v1399 = vpop.f32.mrb[0].mxu0
        %v1400 = vpop.f32.mrb[0].mxu0
        %v1401 = vadd.f32 0.0, %v1400
        %v1402 = vpop.f32.mrb[0].mxu0
        %1403 = vmatprep.mubr.bf16.mxu0 0
        %1404 = vmatmul.mubr.bf16.gmra.mrb[0].mxu0 %v840
        %v1405 = vpop.f32.mrb[0].mxu0
        %v1406 = vadd.f32 0.0, %v1405
        %v1407 = vpop.f32.mrb[0].mxu0
        %v1408 = vpop.f32.mrb[0].mxu0
        %v1409 = vadd.f32 0.0, %v1408
        %v1410 = vpop.f32.mrb[0].mxu0
        %1411 = vmatprep.mubr.bf16.mxu0 0
        %1412 = vmatmul.mubr.bf16.gmra.mrb[0].mxu0 %v843
        %v1413 = vpop.f32.mrb[0].mxu0
        %v1414 = vadd.f32 0.0, %v1413
        %v1415 = vpop.f32.mrb[0].mxu0
        %v1416 = vpop.f32.mrb[0].mxu0
        %v1417 = vadd.f32 0.0, %v1416
        %v1418 = vpop.f32.mrb[0].mxu0
        %1419 = vmatprep.mubr.bf16.mxu0 0
        %1420 = vmatmul.mubr.bf16.gmra.mrb[0].mxu0 %v846
        %v1421 = vpop.f32.mrb[0].mxu0
        %v1422 = vadd.f32 0.0, %v1421
        %v1423 = vpop.f32.mrb[0].mxu0
        %v1424 = vpop.f32.mrb[0].mxu0
        %v1425 = vadd.f32 0.0, %v1424
        %v1426 = vpop.f32.mrb[0].mxu0
        %1427 = vmatprep.mubr.bf16.mxu0 0
        %1428 = vmatmul.mubr.bf16.gmra.mrb[0].mxu0 %v849
        %v1429 = vpop.f32.mrb[0].mxu0
        %v1430 = vadd.f32 0.0, %v1429
        %v1431 = vpop.f32.mrb[0].mxu0
        %v1432 = vpop.f32.mrb[0].mxu0
        %v1433 = vadd.f32 0.0, %v1432
        %v1434 = vpop.f32.mrb[0].mxu0
        %1435 = vmatprep.mubr.bf16.mxu0 0
        %1436 = vmatmul.mubr.bf16.gmra.mrb[0].mxu0 %v852
        %v1437 = vpop.f32.mrb[0].mxu0
        %v1438 = vadd.f32 0.0, %v1437
        %v1439 = vpop.f32.mrb[0].mxu0
        %v1440 = vpop.f32.mrb[0].mxu0
        %v1441 = vadd.f32 0.0, %v1440
        %v1442 = vpop.f32.mrb[0].mxu0
        %1443 = vmatprep.mubr.bf16.mxu0 0
        %1444 = vmatmul.mubr.bf16.gmra.mrb[0].mxu0 %v855
        %v1445 = vpop.f32.mrb[0].mxu0
        %v1446 = vadd.f32 0.0, %v1445
        %v1447 = vpop.f32.mrb[0].mxu0
        %v1448 = vpop.f32.mrb[0].mxu0
        %v1449 = vadd.f32 0.0, %v1448
        %v1450 = vpop.f32.mrb[0].mxu0
        %1451 = vmatprep.mubr.bf16.mxu0 0
        %1452 = vmatmul.mubr.bf16.gmra.mrb[0].mxu0 %v858
        %v1453 = vpop.f32.mrb[0].mxu0
        %v1454 = vadd.f32 0.0, %v1453
        %v1455 = vpop.f32.mrb[0].mxu0
        %v1456 = vpop.f32.mrb[0].mxu0
        %v1457 = vadd.f32 0.0, %v1456
        %v1458 = vpop.f32.mrb[0].mxu0
        %1459 = vmatprep.mubr.bf16.mxu0 0
        %1460 = vmatmul.mubr.bf16.gmra.mrb[0].mxu0 %v861
        %v1461 = vpop.f32.mrb[0].mxu0
        %v1462 = vadd.f32 0.0, %v1461
        %v1463 = vpop.f32.mrb[0].mxu0
        %v1464 = vpop.f32.mrb[0].mxu0
        %v1465 = vadd.f32 0.0, %v1464
        %v1466 = vpop.f32.mrb[0].mxu0
        %1467 = vmatprep.mubr.bf16.mxu0 0
        %1468 = vmatmul.mubr.bf16.gmra.mrb[0].mxu0 %v864
        %v1469 = vpop.f32.mrb[0].mxu0
        %v1470 = vadd.f32 0.0, %v1469
        %v1471 = vpop.f32.mrb[0].mxu0
        %v1472 = vpop.f32.mrb[0].mxu0
        %v1473 = vadd.f32 0.0, %v1472
        %v1474 = vpop.f32.mrb[0].mxu0
        %1475 = vdwg.mxu0
        %v1476 = vrot.slane %v925, 7
        %v1477 = vrot.slane %v929, 7
        %v1478 = vrot.slane %v935, 7
        %v1479 = vrot.slane %v939, 7
        %v1480 = vrot.slane %v945, 7
        %v1481 = vrot.slane %v949, 7
        %v1482 = vrot.slane %v955, 7
        %v1483 = vrot.slane %v959, 7
        %v1484 = vrot.slane %v965, 7
        %v1485 = vrot.slane %v969, 7
        %v1486 = vrot.slane %v975, 7
        %v1487 = vrot.slane %v979, 7
        %v1488 = vrot.slane %v985, 7
        %v1489 = vrot.slane %v989, 7
        %v1490 = vrot.slane %v995, 7
        %v1491 = vrot.slane %v999, 7
        %v1492 = vrot.slane %v1005, 7
        %v1493 = vrot.slane %v1009, 7
        %v1494 = vrot.slane %v1015, 7
        %v1495 = vrot.slane %v1019, 7
        %v1496 = vrot.slane %v1025, 7
        %v1497 = vrot.slane %v1029, 7
        %v1498 = vrot.slane %v1035, 7
        %v1499 = vrot.slane %v1039, 7
        %v1500 = vlaneseq
        %v1501 = vshrl.u32 %v1500, 7
        %vm1502 = vcmp.lt.s32.totalorder %v1501, 1
        %v1503 = vsel %vm1502, %v1498, %v1499
        %v1504 = vsel %vm1502, %v1497, %v1498
        %v1505 = vsel %vm1502, %v1496, %v1497
        %v1506 = vsel %vm1502, %v1495, %v1496
        %v1507 = vsel %vm1502, %v1494, %v1495
        %v1508 = vsel %vm1502, %v1493, %v1494
        %v1509 = vsel %vm1502, %v1492, %v1493
        %v1510 = vsel %vm1502, %v1491, %v1492
        %v1511 = vsel %vm1502, %v1490, %v1491
        %v1512 = vsel %vm1502, %v1489, %v1490
        %v1513 = vsel %vm1502, %v1488, %v1489
        %v1514 = vsel %vm1502, %v1487, %v1488
        %v1515 = vsel %vm1502, %v1486, %v1487
        %v1516 = vsel %vm1502, %v1485, %v1486
        %v1517 = vsel %vm1502, %v1484, %v1485
        %v1518 = vsel %vm1502, %v1483, %v1484
        %v1519 = vsel %vm1502, %v1482, %v1483
        %v1520 = vsel %vm1502, %v1481, %v1482
        %v1521 = vsel %vm1502, %v1480, %v1481
        %v1522 = vsel %vm1502, %v1479, %v1480
        %v1523 = vsel %vm1502, %v1478, %v1479
        %v1524 = vsel %vm1502, %v1477, %v1478
        %v1525 = vsel %vm1502, %v1476, %v1477
        %v1526 = vsel %vm1502, %v1499, %v1476
        %v1527 = vadd.f32 %v923, %v1526
        %v1528 = vadd.f32 %v927, %v1525
        %v1529 = vadd.f32 %v933, %v1524
        %v1530 = vadd.f32 %v937, %v1523
        %v1531 = vadd.f32 %v943, %v1522
        %v1532 = vadd.f32 %v947, %v1521
        %v1533 = vadd.f32 %v953, %v1520
        %v1534 = vadd.f32 %v957, %v1519
        %v1535 = vadd.f32 %v963, %v1518
        %v1536 = vadd.f32 %v967, %v1517
        %v1537 = vadd.f32 %v973, %v1516
        %v1538 = vadd.f32 %v977, %v1515
        %v1539 = vadd.f32 %v983, %v1514
        %v1540 = vadd.f32 %v987, %v1513
        %v1541 = vadd.f32 %v993, %v1512
        %v1542 = vadd.f32 %v997, %v1511
        %v1543 = vadd.f32 %v1003, %v1510
        %v1544 = vadd.f32 %v1007, %v1509
        %v1545 = vadd.f32 %v1013, %v1508
        %v1546 = vadd.f32 %v1017, %v1507
        %v1547 = vadd.f32 %v1023, %v1506
        %v1548 = vadd.f32 %v1027, %v1505
        %v1549 = vadd.f32 %v1033, %v1504
        %v1550 = vadd.f32 %v1037, %v1503
        %v1551 = vrot.slane %v1076, 6
        %v1552 = vrot.slane %v1080, 6
        %v1553 = vrot.slane %v1086, 6
        %v1554 = vrot.slane %v1090, 6
        %v1555 = vrot.slane %v1096, 6
        %v1556 = vrot.slane %v1100, 6
        %v1557 = vrot.slane %v1106, 6
        %v1558 = vrot.slane %v1110, 6
        %v1559 = vrot.slane %v1116, 6
        %v1560 = vrot.slane %v1120, 6
        %v1561 = vrot.slane %v1126, 6
        %v1562 = vrot.slane %v1130, 6
        %v1563 = vrot.slane %v1136, 6
        %v1564 = vrot.slane %v1140, 6
        %v1565 = vrot.slane %v1146, 6
        %v1566 = vrot.slane %v1150, 6
        %v1567 = vrot.slane %v1156, 6
        %v1568 = vrot.slane %v1160, 6
        %v1569 = vrot.slane %v1166, 6
        %v1570 = vrot.slane %v1170, 6
        %v1571 = vrot.slane %v1176, 6
        %v1572 = vrot.slane %v1180, 6
        %v1573 = vrot.slane %v1186, 6
        %v1574 = vrot.slane %v1190, 6
        %vm1575 = vcmp.lt.s32.totalorder %v1501, 2
        %v1576 = vsel %vm1575, %v1573, %v1574
        %v1577 = vsel %vm1575, %v1572, %v1573
        %v1578 = vsel %vm1575, %v1571, %v1572
        %v1579 = vsel %vm1575, %v1570, %v1571
        %v1580 = vsel %vm1575, %v1569, %v1570
        %v1581 = vsel %vm1575, %v1568, %v1569
        %v1582 = vsel %vm1575, %v1567, %v1568
        %v1583 = vsel %vm1575, %v1566, %v1567
        %v1584 = vsel %vm1575, %v1565, %v1566
        %v1585 = vsel %vm1575, %v1564, %v1565
        %v1586 = vsel %vm1575, %v1563, %v1564
        %v1587 = vsel %vm1575, %v1562, %v1563
        %v1588 = vsel %vm1575, %v1561, %v1562
        %v1589 = vsel %vm1575, %v1560, %v1561
        %v1590 = vsel %vm1575, %v1559, %v1560
        %v1591 = vsel %vm1575, %v1558, %v1559
        %v1592 = vsel %vm1575, %v1557, %v1558
        %v1593 = vsel %vm1575, %v1556, %v1557
        %v1594 = vsel %vm1575, %v1555, %v1556
        %v1595 = vsel %vm1575, %v1554, %v1555
        %v1596 = vsel %vm1575, %v1553, %v1554
        %v1597 = vsel %vm1575, %v1552, %v1553
        %v1598 = vsel %vm1575, %v1551, %v1552
        %v1599 = vsel %vm1575, %v1574, %v1551
        %v1600 = vadd.f32 %v1527, %v1599
        %v1601 = vadd.f32 %v1528, %v1598
        %v1602 = vadd.f32 %v1529, %v1597
        %v1603 = vadd.f32 %v1530, %v1596
        %v1604 = vadd.f32 %v1531, %v1595
        %v1605 = vadd.f32 %v1532, %v1594
        %v1606 = vadd.f32 %v1533, %v1593
        %v1607 = vadd.f32 %v1534, %v1592
        %v1608 = vadd.f32 %v1535, %v1591
        %v1609 = vadd.f32 %v1536, %v1590
        %v1610 = vadd.f32 %v1537, %v1589
        %v1611 = vadd.f32 %v1538, %v1588
        %v1612 = vadd.f32 %v1539, %v1587
        %v1613 = vadd.f32 %v1540, %v1586
        %v1614 = vadd.f32 %v1541, %v1585
        %v1615 = vadd.f32 %v1542, %v1584
        %v1616 = vadd.f32 %v1543, %v1583
        %v1617 = vadd.f32 %v1544, %v1582
        %v1618 = vadd.f32 %v1545, %v1581
        %v1619 = vadd.f32 %v1546, %v1580
        %v1620 = vadd.f32 %v1547, %v1579
        %v1621 = vadd.f32 %v1548, %v1578
        %v1622 = vadd.f32 %v1549, %v1577
        %v1623 = vadd.f32 %v1550, %v1576
        %v1624 = vrot.slane %v1078, 5
        %v1625 = vrot.slane %v1082, 5
        %v1626 = vrot.slane %v1088, 5
        %v1627 = vrot.slane %v1092, 5
        %v1628 = vrot.slane %v1098, 5
        %v1629 = vrot.slane %v1102, 5
        %v1630 = vrot.slane %v1108, 5
        %v1631 = vrot.slane %v1112, 5
        %v1632 = vrot.slane %v1118, 5
        %v1633 = vrot.slane %v1122, 5
        %v1634 = vrot.slane %v1128, 5
        %v1635 = vrot.slane %v1132, 5
        %v1636 = vrot.slane %v1138, 5
        %v1637 = vrot.slane %v1142, 5
        %v1638 = vrot.slane %v1148, 5
        %v1639 = vrot.slane %v1152, 5
        %v1640 = vrot.slane %v1158, 5
        %v1641 = vrot.slane %v1162, 5
        %v1642 = vrot.slane %v1168, 5
        %v1643 = vrot.slane %v1172, 5
        %v1644 = vrot.slane %v1178, 5
        %v1645 = vrot.slane %v1182, 5
        %v1646 = vrot.slane %v1188, 5
        %v1647 = vrot.slane %v1192, 5
        %vm1648 = vcmp.lt.s32.totalorder %v1501, 3
        %v1649 = vsel %vm1648, %v1646, %v1647
        %v1650 = vsel %vm1648, %v1645, %v1646
        %v1651 = vsel %vm1648, %v1644, %v1645
        %v1652 = vsel %vm1648, %v1643, %v1644
        %v1653 = vsel %vm1648, %v1642, %v1643
        %v1654 = vsel %vm1648, %v1641, %v1642
        %v1655 = vsel %vm1648, %v1640, %v1641
        %v1656 = vsel %vm1648, %v1639, %v1640
        %v1657 = vsel %vm1648, %v1638, %v1639
        %v1658 = vsel %vm1648, %v1637, %v1638
        %v1659 = vsel %vm1648, %v1636, %v1637
        %v1660 = vsel %vm1648, %v1635, %v1636
        %v1661 = vsel %vm1648, %v1634, %v1635
        %v1662 = vsel %vm1648, %v1633, %v1634
        %v1663 = vsel %vm1648, %v1632, %v1633
        %v1664 = vsel %vm1648, %v1631, %v1632
        %v1665 = vsel %vm1648, %v1630, %v1631
        %v1666 = vsel %vm1648, %v1629, %v1630
        %v1667 = vsel %vm1648, %v1628, %v1629
        %v1668 = vsel %vm1648, %v1627, %v1628
        %v1669 = vsel %vm1648, %v1626, %v1627
        %v1670 = vsel %vm1648, %v1625, %v1626
        %v1671 = vsel %vm1648, %v1624, %v1625
        %v1672 = vsel %vm1648, %v1647, %v1624
        %v1673 = vadd.f32 %v1600, %v1672
        %v1674 = vadd.f32 %v1601, %v1671
        %v1675 = vadd.f32 %v1602, %v1670
        %v1676 = vadd.f32 %v1603, %v1669
        %v1677 = vadd.f32 %v1604, %v1668
        %v1678 = vadd.f32 %v1605, %v1667
        %v1679 = vadd.f32 %v1606, %v1666
        %v1680 = vadd.f32 %v1607, %v1665
        %v1681 = vadd.f32 %v1608, %v1664
        %v1682 = vadd.f32 %v1609, %v1663
        %v1683 = vadd.f32 %v1610, %v1662
        %v1684 = vadd.f32 %v1611, %v1661
        %v1685 = vadd.f32 %v1612, %v1660
        %v1686 = vadd.f32 %v1613, %v1659
        %v1687 = vadd.f32 %v1614, %v1658
        %v1688 = vadd.f32 %v1615, %v1657
        %v1689 = vadd.f32 %v1616, %v1656
        %v1690 = vadd.f32 %v1617, %v1655
        %v1691 = vadd.f32 %v1618, %v1654
        %v1692 = vadd.f32 %v1619, %v1653
        %v1693 = vadd.f32 %v1620, %v1652
        %v1694 = vadd.f32 %v1621, %v1651
        %v1695 = vadd.f32 %v1622, %v1650
        %v1696 = vadd.f32 %v1623, %v1649
        %v1697 = vrot.slane %v1229, 4
        %v1698 = vrot.slane %v1233, 4
        %v1699 = vrot.slane %v1239, 4
        %v1700 = vrot.slane %v1243, 4
        %v1701 = vrot.slane %v1249, 4
        %v1702 = vrot.slane %v1253, 4
        %v1703 = vrot.slane %v1259, 4
        %v1704 = vrot.slane %v1263, 4
        %v1705 = vrot.slane %v1269, 4
        %v1706 = vrot.slane %v1273, 4
        %v1707 = vrot.slane %v1279, 4
        %v1708 = vrot.slane %v1283, 4
        %v1709 = vrot.slane %v1289, 4
        %v1710 = vrot.slane %v1293, 4
        %v1711 = vrot.slane %v1299, 4
        %v1712 = vrot.slane %v1303, 4
        %v1713 = vrot.slane %v1309, 4
        %v1714 = vrot.slane %v1313, 4
        %v1715 = vrot.slane %v1319, 4
        %v1716 = vrot.slane %v1323, 4
        %v1717 = vrot.slane %v1329, 4
        %v1718 = vrot.slane %v1333, 4
        %v1719 = vrot.slane %v1339, 4
        %v1720 = vrot.slane %v1343, 4
        %vm1721 = vcmp.lt.s32.totalorder %v1501, 4
        %v1722 = vsel %vm1721, %v1719, %v1720
        %v1723 = vsel %vm1721, %v1718, %v1719
        %v1724 = vsel %vm1721, %v1717, %v1718
        %v1725 = vsel %vm1721, %v1716, %v1717
        %v1726 = vsel %vm1721, %v1715, %v1716
        %v1727 = vsel %vm1721, %v1714, %v1715
        %v1728 = vsel %vm1721, %v1713, %v1714
        %v1729 = vsel %vm1721, %v1712, %v1713
        %v1730 = vsel %vm1721, %v1711, %v1712
        %v1731 = vsel %vm1721, %v1710, %v1711
        %v1732 = vsel %vm1721, %v1709, %v1710
        %v1733 = vsel %vm1721, %v1708, %v1709
        %v1734 = vsel %vm1721, %v1707, %v1708
        %v1735 = vsel %vm1721, %v1706, %v1707
        %v1736 = vsel %vm1721, %v1705, %v1706
        %v1737 = vsel %vm1721, %v1704, %v1705
        %v1738 = vsel %vm1721, %v1703, %v1704
        %v1739 = vsel %vm1721, %v1702, %v1703
        %v1740 = vsel %vm1721, %v1701, %v1702
        %v1741 = vsel %vm1721, %v1700, %v1701
        %v1742 = vsel %vm1721, %v1699, %v1700
        %v1743 = vsel %vm1721, %v1698, %v1699
        %v1744 = vsel %vm1721, %v1697, %v1698
        %v1745 = vsel %vm1721, %v1720, %v1697
        %v1746 = vadd.f32 %v1673, %v1745
        %v1747 = vadd.f32 %v1674, %v1744
        %v1748 = vadd.f32 %v1675, %v1743
        %v1749 = vadd.f32 %v1676, %v1742
        %v1750 = vadd.f32 %v1677, %v1741
        %v1751 = vadd.f32 %v1678, %v1740
        %v1752 = vadd.f32 %v1679, %v1739
        %v1753 = vadd.f32 %v1680, %v1738
        %v1754 = vadd.f32 %v1681, %v1737
        %v1755 = vadd.f32 %v1682, %v1736
        %v1756 = vadd.f32 %v1683, %v1735
        %v1757 = vadd.f32 %v1684, %v1734
        %v1758 = vadd.f32 %v1685, %v1733
        %v1759 = vadd.f32 %v1686, %v1732
        %v1760 = vadd.f32 %v1687, %v1731
        %v1761 = vadd.f32 %v1688, %v1730
        %v1762 = vadd.f32 %v1689, %v1729
        %v1763 = vadd.f32 %v1690, %v1728
        %v1764 = vadd.f32 %v1691, %v1727
        %v1765 = vadd.f32 %v1692, %v1726
        %v1766 = vadd.f32 %v1693, %v1725
        %v1767 = vadd.f32 %v1694, %v1724
        %v1768 = vadd.f32 %v1695, %v1723
        %v1769 = vadd.f32 %v1696, %v1722
        %v1770 = vrot.slane %v1231, 3
        %v1771 = vrot.slane %v1235, 3
        %v1772 = vrot.slane %v1241, 3
        %v1773 = vrot.slane %v1245, 3
        %v1774 = vrot.slane %v1251, 3
        %v1775 = vrot.slane %v1255, 3
        %v1776 = vrot.slane %v1261, 3
        %v1777 = vrot.slane %v1265, 3
        %v1778 = vrot.slane %v1271, 3
        %v1779 = vrot.slane %v1275, 3
        %v1780 = vrot.slane %v1281, 3
        %v1781 = vrot.slane %v1285, 3
        %v1782 = vrot.slane %v1291, 3
        %v1783 = vrot.slane %v1295, 3
        %v1784 = vrot.slane %v1301, 3
        %v1785 = vrot.slane %v1305, 3
        %v1786 = vrot.slane %v1311, 3
        %v1787 = vrot.slane %v1315, 3
        %v1788 = vrot.slane %v1321, 3
        %v1789 = vrot.slane %v1325, 3
        %v1790 = vrot.slane %v1331, 3
        %v1791 = vrot.slane %v1335, 3
        %v1792 = vrot.slane %v1341, 3
        %v1793 = vrot.slane %v1345, 3
        %vm1794 = vcmp.lt.s32.totalorder %v1501, 5
        %v1795 = vsel %vm1794, %v1792, %v1793
        %v1796 = vsel %vm1794, %v1791, %v1792
        %v1797 = vsel %vm1794, %v1790, %v1791
        %v1798 = vsel %vm1794, %v1789, %v1790
        %v1799 = vsel %vm1794, %v1788, %v1789
        %v1800 = vsel %vm1794, %v1787, %v1788
        %v1801 = vsel %vm1794, %v1786, %v1787
        %v1802 = vsel %vm1794, %v1785, %v1786
        %v1803 = vsel %vm1794, %v1784, %v1785
        %v1804 = vsel %vm1794, %v1783, %v1784
        %v1805 = vsel %vm1794, %v1782, %v1783
        %v1806 = vsel %vm1794, %v1781, %v1782
        %v1807 = vsel %vm1794, %v1780, %v1781
        %v1808 = vsel %vm1794, %v1779, %v1780
        %v1809 = vsel %vm1794, %v1778, %v1779
        %v1810 = vsel %vm1794, %v1777, %v1778
        %v1811 = vsel %vm1794, %v1776, %v1777
        %v1812 = vsel %vm1794, %v1775, %v1776
        %v1813 = vsel %vm1794, %v1774, %v1775
        %v1814 = vsel %vm1794, %v1773, %v1774
        %v1815 = vsel %vm1794, %v1772, %v1773
        %v1816 = vsel %vm1794, %v1771, %v1772
        %v1817 = vsel %vm1794, %v1770, %v1771
        %v1818 = vsel %vm1794, %v1793, %v1770
        %v1819 = vadd.f32 %v1746, %v1818
        %v1820 = vadd.f32 %v1747, %v1817
        %v1821 = vadd.f32 %v1748, %v1816
        %v1822 = vadd.f32 %v1749, %v1815
        %v1823 = vadd.f32 %v1750, %v1814
        %v1824 = vadd.f32 %v1751, %v1813
        %v1825 = vadd.f32 %v1752, %v1812
        %v1826 = vadd.f32 %v1753, %v1811
        %v1827 = vadd.f32 %v1754, %v1810
        %v1828 = vadd.f32 %v1755, %v1809
        %v1829 = vadd.f32 %v1756, %v1808
        %v1830 = vadd.f32 %v1757, %v1807
        %v1831 = vadd.f32 %v1758, %v1806
        %v1832 = vadd.f32 %v1759, %v1805
        %v1833 = vadd.f32 %v1760, %v1804
        %v1834 = vadd.f32 %v1761, %v1803
        %v1835 = vadd.f32 %v1762, %v1802
        %v1836 = vadd.f32 %v1763, %v1801
        %v1837 = vadd.f32 %v1764, %v1800
        %v1838 = vadd.f32 %v1765, %v1799
        %v1839 = vadd.f32 %v1766, %v1798
        %v1840 = vadd.f32 %v1767, %v1797
        %v1841 = vadd.f32 %v1768, %v1796
        %v1842 = vadd.f32 %v1769, %v1795
        %v1843 = vrot.slane %v1382, 2
        %v1844 = vrot.slane %v1385, 2
        %v1845 = vrot.slane %v1390, 2
        %v1846 = vrot.slane %v1393, 2
        %v1847 = vrot.slane %v1398, 2
        %v1848 = vrot.slane %v1401, 2
        %v1849 = vrot.slane %v1406, 2
        %v1850 = vrot.slane %v1409, 2
        %v1851 = vrot.slane %v1414, 2
        %v1852 = vrot.slane %v1417, 2
        %v1853 = vrot.slane %v1422, 2
        %v1854 = vrot.slane %v1425, 2
        %v1855 = vrot.slane %v1430, 2
        %v1856 = vrot.slane %v1433, 2
        %v1857 = vrot.slane %v1438, 2
        %v1858 = vrot.slane %v1441, 2
        %v1859 = vrot.slane %v1446, 2
        %v1860 = vrot.slane %v1449, 2
        %v1861 = vrot.slane %v1454, 2
        %v1862 = vrot.slane %v1457, 2
        %v1863 = vrot.slane %v1462, 2
        %v1864 = vrot.slane %v1465, 2
        %v1865 = vrot.slane %v1470, 2
        %v1866 = vrot.slane %v1473, 2
        %vm1867 = vcmp.lt.s32.totalorder %v1501, 6
        %v1868 = vsel %vm1867, %v1865, %v1866
        %v1869 = vsel %vm1867, %v1864, %v1865
        %v1870 = vsel %vm1867, %v1863, %v1864
        %v1871 = vsel %vm1867, %v1862, %v1863
        %v1872 = vsel %vm1867, %v1861, %v1862
        %v1873 = vsel %vm1867, %v1860, %v1861
        %v1874 = vsel %vm1867, %v1859, %v1860
        %v1875 = vsel %vm1867, %v1858, %v1859
        %v1876 = vsel %vm1867, %v1857, %v1858
        %v1877 = vsel %vm1867, %v1856, %v1857
        %v1878 = vsel %vm1867, %v1855, %v1856
        %v1879 = vsel %vm1867, %v1854, %v1855
        %v1880 = vsel %vm1867, %v1853, %v1854
        %v1881 = vsel %vm1867, %v1852, %v1853
        %v1882 = vsel %vm1867, %v1851, %v1852
        %v1883 = vsel %vm1867, %v1850, %v1851
        %v1884 = vsel %vm1867, %v1849, %v1850
        %v1885 = vsel %vm1867, %v1848, %v1849
        %v1886 = vsel %vm1867, %v1847, %v1848
        %v1887 = vsel %vm1867, %v1846, %v1847
        %v1888 = vsel %vm1867, %v1845, %v1846
        %v1889 = vsel %vm1867, %v1844, %v1845
        %v1890 = vsel %vm1867, %v1843, %v1844
        %v1891 = vsel %vm1867, %v1866, %v1843
        %v1892 = vadd.f32 %v1819, %v1891
        %v1893 = vadd.f32 %v1820, %v1890
        %v1894 = vadd.f32 %v1821, %v1889
        %v1895 = vadd.f32 %v1822, %v1888
        %v1896 = vadd.f32 %v1823, %v1887
        %v1897 = vadd.f32 %v1824, %v1886
        %v1898 = vadd.f32 %v1825, %v1885
        %v1899 = vadd.f32 %v1826, %v1884
        %v1900 = vadd.f32 %v1827, %v1883
        %v1901 = vadd.f32 %v1828, %v1882
        %v1902 = vadd.f32 %v1829, %v1881
        %v1903 = vadd.f32 %v1830, %v1880
        %v1904 = vadd.f32 %v1831, %v1879
        %v1905 = vadd.f32 %v1832, %v1878
        %v1906 = vadd.f32 %v1833, %v1877
        %v1907 = vadd.f32 %v1834, %v1876
        %v1908 = vadd.f32 %v1835, %v1875
        %v1909 = vadd.f32 %v1836, %v1874
        %v1910 = vadd.f32 %v1837, %v1873
        %v1911 = vadd.f32 %v1838, %v1872
        %v1912 = vadd.f32 %v1839, %v1871
        %v1913 = vadd.f32 %v1840, %v1870
        %v1914 = vadd.f32 %v1841, %v1869
        %v1915 = vadd.f32 %v1842, %v1868
        %v1916 = vadd.f32 %v1892, %v504
        %v1917 = vadd.f32 %v1893, %v505
        %v1918 = vadd.f32 %v1894, %v506
        %v1919 = vadd.f32 %v1895, %v504
        %v1920 = vadd.f32 %v1896, %v505
        %v1921 = vadd.f32 %v1897, %v506
        %v1922 = vadd.f32 %v1898, %v504
        %v1923 = vadd.f32 %v1899, %v505
        %v1924 = vadd.f32 %v1900, %v506
        %v1925 = vadd.f32 %v1901, %v504
        %v1926 = vadd.f32 %v1902, %v505
        %v1927 = vadd.f32 %v1903, %v506
        %v1928 = vadd.f32 %v1904, %v504
        %v1929 = vadd.f32 %v1905, %v505
        %v1930 = vadd.f32 %v1906, %v506
        %v1931 = vadd.f32 %v1907, %v504
        %v1932 = vadd.f32 %v1908, %v505
        %v1933 = vadd.f32 %v1909, %v506
        %v1934 = vadd.f32 %v1910, %v504
        %v1935 = vadd.f32 %v1911, %v505
        %v1936 = vadd.f32 %v1912, %v506
        %v1937 = vadd.f32 %v1913, %v504
        %v1938 = vadd.f32 %v1914, %v505
        %v1939 = vadd.f32 %v1915, %v506
        %v1940 = vmax.f32 %v1916, %v1917
        %v1941 = vmax.f32 %v1940, %v1918
        %v1942 = vrot.slane %v1941, 4
        %v1943 = vmax.f32 %v1941, %v1942
        %v1944 = vrot.slane %v1943, 2
        %v1945 = vmax.f32 %v1943, %v1944
        %v1946 = vrot.slane %v1945, 1
        %v1947 = vmax.f32 %v1945, %v1946
        %v1948 = vmax.f32 %v1919, %v1920
        %v1949 = vmax.f32 %v1948, %v1921
        %v1950 = vrot.slane %v1949, 4
        %v1951 = vmax.f32 %v1949, %v1950
        %v1952 = vrot.slane %v1951, 2
        %v1953 = vmax.f32 %v1951, %v1952
        %v1954 = vrot.slane %v1953, 1
        %v1955 = vmax.f32 %v1953, %v1954
        %v1956 = vmax.f32 %v1922, %v1923
        %v1957 = vmax.f32 %v1956, %v1924
        %v1958 = vrot.slane %v1957, 4
        %v1959 = vmax.f32 %v1957, %v1958
        %v1960 = vrot.slane %v1959, 2
        %v1961 = vmax.f32 %v1959, %v1960
        %v1962 = vrot.slane %v1961, 1
        %v1963 = vmax.f32 %v1961, %v1962
        %v1964 = vmax.f32 %v1925, %v1926
        %v1965 = vmax.f32 %v1964, %v1927
        %v1966 = vrot.slane %v1965, 4
        %v1967 = vmax.f32 %v1965, %v1966
        %v1968 = vrot.slane %v1967, 2
        %v1969 = vmax.f32 %v1967, %v1968
        %v1970 = vrot.slane %v1969, 1
        %v1971 = vmax.f32 %v1969, %v1970
        %v1972 = vmax.f32 %v1928, %v1929
        %v1973 = vmax.f32 %v1972, %v1930
        %v1974 = vrot.slane %v1973, 4
        %v1975 = vmax.f32 %v1973, %v1974
        %v1976 = vrot.slane %v1975, 2
        %v1977 = vmax.f32 %v1975, %v1976
        %v1978 = vrot.slane %v1977, 1
        %v1979 = vmax.f32 %v1977, %v1978
        %v1980 = vmax.f32 %v1931, %v1932
        %v1981 = vmax.f32 %v1980, %v1933
        %v1982 = vrot.slane %v1981, 4
        %v1983 = vmax.f32 %v1981, %v1982
        %v1984 = vrot.slane %v1983, 2
        %v1985 = vmax.f32 %v1983, %v1984
        %v1986 = vrot.slane %v1985, 1
        %v1987 = vmax.f32 %v1985, %v1986
        %v1988 = vmax.f32 %v1934, %v1935
        %v1989 = vmax.f32 %v1988, %v1936
        %v1990 = vrot.slane %v1989, 4
        %v1991 = vmax.f32 %v1989, %v1990
        %v1992 = vrot.slane %v1991, 2
        %v1993 = vmax.f32 %v1991, %v1992
        %v1994 = vrot.slane %v1993, 1
        %v1995 = vmax.f32 %v1993, %v1994
        %v1996 = vmax.f32 %v1937, %v1938
        %v1997 = vmax.f32 %v1996, %v1939
        %v1998 = vrot.slane %v1997, 4
        %v1999 = vmax.f32 %v1997, %v1998
        %v2000 = vrot.slane %v1999, 2
        %v2001 = vmax.f32 %v1999, %v2000
        %v2002 = vrot.slane %v2001, 1
        %v2003 = vmax.f32 %v2001, %v2002
        %s2004 = scalar_lea.vmem %s429, 24 [#allocation2]
        %v2005 = vld [vmem:[%s2004] sm:$0xff]
        %v2006 = vld [vmem:[%s2004 + $0x8] sm:$0xff]
        %v2007 = vld [vmem:[%s2004 + $0x10] sm:$0xff]
        %v2008 = vld [vmem:[%s2004 + $0x90] sm:$0xff]
        %v2009 = vld [vmem:[%s2004 + $0x98] sm:$0xff]
        %v2010 = vld [vmem:[%s2004 + $0xa0] sm:$0xff]
        %v2011 = vld [vmem:[%s2004 + $0x120] sm:$0xff]
        %v2012 = vld [vmem:[%s2004 + $0x128] sm:$0xff]
        %v2013 = vld [vmem:[%s2004 + $0x130] sm:$0xff]
        %v2014 = vld [vmem:[%s2004 + $0x1b0] sm:$0xff]
        %v2015 = vld [vmem:[%s2004 + $0x1b8] sm:$0xff]
        %v2016 = vld [vmem:[%s2004 + $0x1c0] sm:$0xff]
        %v2017 = vld [vmem:[%s2004 + $0x240] sm:$0xff]
        %v2018 = vld [vmem:[%s2004 + $0x248] sm:$0xff]
        %v2019 = vld [vmem:[%s2004 + $0x250] sm:$0xff]
        %v2020 = vld [vmem:[%s2004 + $0x2d0] sm:$0xff]
        %v2021 = vld [vmem:[%s2004 + $0x2d8] sm:$0xff]
        %v2022 = vld [vmem:[%s2004 + $0x2e0] sm:$0xff]
        %v2023 = vld [vmem:[%s2004 + $0x360] sm:$0xff]
        %v2024 = vld [vmem:[%s2004 + $0x368] sm:$0xff]
        %v2025 = vld [vmem:[%s2004 + $0x370] sm:$0xff]
        %v2026 = vld [vmem:[%s2004 + $0x3f0] sm:$0xff]
        %v2027 = vld [vmem:[%s2004 + $0x3f8] sm:$0xff]
        %v2028 = vld [vmem:[%s2004 + $0x400] sm:$0xff]
        %v2029 = vpack.c.bf16 %v2006, %v2005
        %v2030 = vpack.c.bf16 %v2008, %v2007
        %v2031 = vpack.c.bf16 %v2010, %v2009
        %v2032 = vpack.c.bf16 %v2012, %v2011
        %v2033 = vpack.c.bf16 %v2014, %v2013
        %v2034 = vpack.c.bf16 %v2016, %v2015
        %v2035 = vpack.c.bf16 %v2018, %v2017
        %v2036 = vpack.c.bf16 %v2020, %v2019
        %v2037 = vpack.c.bf16 %v2022, %v2021
        %v2038 = vpack.c.bf16 %v2024, %v2023
        %v2039 = vpack.c.bf16 %v2026, %v2025
        %v2040 = vpack.c.bf16 %v2028, %v2027
        %s2041 = scalar_lea.vmem [#allocation5], 364
        %v2042 = vld [vmem:[%s2041] sm:$0xff]
        %v2043 = vld [vmem:[%s2041 + $0x8] sm:$0xff]
        %v2044 = vld [vmem:[%s2041 + $0x10] sm:$0xff]
        %v2045 = vld [vmem:[%s2041 + $0x18] sm:$0xf]
        %v2046 = vld [vmem:[%s2041 + $0x1c] sm:$0xff]
        %v2047 = vld [vmem:[%s2041 + $0x24] sm:$0xff]
        %v2048 = vld [vmem:[%s2041 + $0x2c] sm:$0xff]
        %v2049 = vld [vmem:[%s2041 + $0x34] sm:$0xf]
        %v2050 = vld [vmem:[%s2041 + $0x38] sm:$0xff]
        %v2051 = vld [vmem:[%s2041 + $0x40] sm:$0xff]
        %v2052 = vld [vmem:[%s2041 + $0x48] sm:$0xff]
        %v2053 = vld [vmem:[%s2041 + $0x50] sm:$0xf]
        %v2054 = vld [vmem:[%s2041 + $0x54] sm:$0xff]
        %v2055 = vld [vmem:[%s2041 + $0x5c] sm:$0xff]
        %v2056 = vld [vmem:[%s2041 + $0x64] sm:$0xff]
        %v2057 = vld [vmem:[%s2041 + $0x6c] sm:$0xf]
        %v2058 = vld [vmem:[%s2041 + $0x70] sm:$0xff]
        %v2059 = vld [vmem:[%s2041 + $0x78] sm:$0xff]
        %v2060 = vld [vmem:[%s2041 + $0x80] sm:$0xff]
        %v2061 = vld [vmem:[%s2041 + $0x88] sm:$0xf]
        %v2062 = vld [vmem:[%s2041 + $0x8c] sm:$0xff]
        %v2063 = vld [vmem:[%s2041 + $0x94] sm:$0xff]
        %v2064 = vld [vmem:[%s2041 + $0x9c] sm:$0xff]
        %v2065 = vld [vmem:[%s2041 + $0xa4] sm:$0xf]
        %v2066 = vld [vmem:[%s2041 + $0xa8] sm:$0xff]
        %v2067 = vld [vmem:[%s2041 + $0xb0] sm:$0xff]
        %v2068 = vld [vmem:[%s2041 + $0xb8] sm:$0xff]
        %v2069 = vld [vmem:[%s2041 + $0xc0] sm:$0xf]
        %v2070 = vld [vmem:[%s2041 + $0xc4] sm:$0xff]
        %v2071 = vld [vmem:[%s2041 + $0xcc] sm:$0xff]
        %v2072 = vld [vmem:[%s2041 + $0xd4] sm:$0xff]
        %v2073 = vld [vmem:[%s2041 + $0xdc] sm:$0xf]
        %v2074 = vld [vmem:[%s2041 + $0xe0] sm:$0xff]
        %v2075 = vld [vmem:[%s2041 + $0xe8] sm:$0xff]
        %v2076 = vld [vmem:[%s2041 + $0xf0] sm:$0xff]
        %v2077 = vld [vmem:[%s2041 + $0xf8] sm:$0xf]
        %v2078 = vld [vmem:[%s2041 + $0xfc] sm:$0xff]
        %v2079 = vld [vmem:[%s2041 + $0x104] sm:$0xff]
        %v2080 = vld [vmem:[%s2041 + $0x10c] sm:$0xff]
        %v2081 = vld [vmem:[%s2041 + $0x114] sm:$0xf]
        %v2082 = vld [vmem:[%s2041 + $0x118] sm:$0xff]
        %v2083 = vld [vmem:[%s2041 + $0x120] sm:$0xff]
        %v2084 = vld [vmem:[%s2041 + $0x128] sm:$0xff]
        %v2085 = vld [vmem:[%s2041 + $0x130] sm:$0xf]
        %v2086 = vld [vmem:[%s2041 + $0x134] sm:$0xff]
        %v2087 = vld [vmem:[%s2041 + $0x13c] sm:$0xff]
        %v2088 = vld [vmem:[%s2041 + $0x144] sm:$0xff]
        %v2089 = vld [vmem:[%s2041 + $0x14c] sm:$0xf]
        %v2090 = vld [vmem:[%s2041 + $0x150] sm:$0x33]
        %v2091 = vld [vmem:[%s2041 + $0x158] sm:$0x33]
        %v2092 = vld [vmem:[%s2041 + $0x160] sm:$0x33]
        %v2093 = vld [vmem:[%s2041 + $0x168] sm:$0x3]
        %v2146 = vunpack.c.l.b16 %v2042
        %v2147 = vunpack.c.h.b16 %v2042
        %v2148 = vunpack.c.l.b16 %v2043
        %v2149 = vunpack.c.h.b16 %v2043
        %v2150 = vunpack.c.l.b16 %v2044
        %v2151 = vunpack.c.h.b16 %v2044
        %v2152 = vunpack.c.l.b16 %v2045
        %v2153 = vunpack.c.l.b16 %v2046
        %v2154 = vunpack.c.h.b16 %v2046
        %v2155 = vunpack.c.l.b16 %v2047
        %v2156 = vunpack.c.h.b16 %v2047
        %v2157 = vunpack.c.l.b16 %v2048
        %v2158 = vunpack.c.h.b16 %v2048
        %v2159 = vunpack.c.l.b16 %v2049
        %v2160 = vunpack.c.l.b16 %v2050
        %v2161 = vunpack.c.h.b16 %v2050
        %v2162 = vunpack.c.l.b16 %v2051
        %v2163 = vunpack.c.h.b16 %v2051
        %v2164 = vunpack.c.l.b16 %v2052
        %v2165 = vunpack.c.h.b16 %v2052
        %v2166 = vunpack.c.l.b16 %v2053
        %v2167 = vunpack.c.l.b16 %v2054
        %v2168 = vunpack.c.h.b16 %v2054
        %v2169 = vunpack.c.l.b16 %v2055
        %v2170 = vunpack.c.h.b16 %v2055
        %v2171 = vunpack.c.l.b16 %v2056
        %v2172 = vunpack.c.h.b16 %v2056
        %v2173 = vunpack.c.l.b16 %v2057
        %v2174 = vunpack.c.l.b16 %v2058
        %v2175 = vunpack.c.h.b16 %v2058
        %v2176 = vunpack.c.l.b16 %v2059
        %v2177 = vunpack.c.h.b16 %v2059
        %v2178 = vunpack.c.l.b16 %v2060
        %v2179 = vunpack.c.h.b16 %v2060
        %v2180 = vunpack.c.l.b16 %v2061
        %v2181 = vunpack.c.l.b16 %v2062
        %v2182 = vunpack.c.h.b16 %v2062
        %v2183 = vunpack.c.l.b16 %v2063
        %v2184 = vunpack.c.h.b16 %v2063
        %v2185 = vunpack.c.l.b16 %v2064
        %v2186 = vunpack.c.h.b16 %v2064
        %v2187 = vunpack.c.l.b16 %v2065
        %v2188 = vunpack.c.l.b16 %v2066
        %v2189 = vunpack.c.h.b16 %v2066
        %v2190 = vunpack.c.l.b16 %v2067
        %v2191 = vunpack.c.h.b16 %v2067
        %v2192 = vunpack.c.l.b16 %v2068
        %v2193 = vunpack.c.h.b16 %v2068
        %v2194 = vunpack.c.l.b16 %v2069
        %v2195 = vunpack.c.l.b16 %v2070
        %v2196 = vunpack.c.h.b16 %v2070
        %v2197 = vunpack.c.l.b16 %v2071
        %v2198 = vunpack.c.h.b16 %v2071
        %v2199 = vunpack.c.l.b16 %v2072
        %v2200 = vunpack.c.h.b16 %v2072
        %v2201 = vunpack.c.l.b16 %v2073
        %v2202 = vunpack.c.l.b16 %v2074
        %v2203 = vunpack.c.h.b16 %v2074
        %v2204 = vunpack.c.l.b16 %v2075
        %v2205 = vunpack.c.h.b16 %v2075
        %v2206 = vunpack.c.l.b16 %v2076
        %v2207 = vunpack.c.h.b16 %v2076
        %v2208 = vunpack.c.l.b16 %v2077
        %v2209 = vunpack.c.l.b16 %v2078
        %v2210 = vunpack.c.h.b16 %v2078
        %v2211 = vunpack.c.l.b16 %v2079
        %v2212 = vunpack.c.h.b16 %v2079
        %v2213 = vunpack.c.l.b16 %v2080
        %v2214 = vunpack.c.h.b16 %v2080
        %v2215 = vunpack.c.l.b16 %v2081
        %v2216 = vunpack.c.l.b16 %v2082
        %v2217 = vunpack.c.h.b16 %v2082
        %v2218 = vunpack.c.l.b16 %v2083
        %v2219 = vunpack.c.h.b16 %v2083
        %v2220 = vunpack.c.l.b16 %v2084
        %v2221 = vunpack.c.h.b16 %v2084
        %v2222 = vunpack.c.l.b16 %v2085
        %v2223 = vunpack.c.l.b16 %v2086
        %v2224 = vunpack.c.h.b16 %v2086
        %v2225 = vunpack.c.l.b16 %v2087
        %v2226 = vunpack.c.h.b16 %v2087
        %v2227 = vunpack.c.l.b16 %v2088
        %v2228 = vunpack.c.h.b16 %v2088
        %v2229 = vunpack.c.l.b16 %v2089
        %v2230 = vunpack.c.l.b16 %v2090
        %v2231 = vunpack.c.h.b16 %v2090
        %v2232 = vunpack.c.l.b16 %v2091
        %v2233 = vunpack.c.h.b16 %v2091
        %v2234 = vunpack.c.l.b16 %v2092
        %v2235 = vunpack.c.h.b16 %v2092
        %v2236 = vunpack.c.l.b16 %v2093
        %v2237 = vpack.c.b16 %v2153, %v2146
        %v2238 = vpack.c.b16 %v2154, %v2147
        %v2239 = vpack.c.b16 %v2155, %v2148
        %v2240 = vpack.c.b16 %v2156, %v2149
        %v2241 = vpack.c.b16 %v2157, %v2150
        %v2242 = vpack.c.b16 %v2158, %v2151
        %v2243 = vpack.c.b16 %v2159, %v2152
        %v2244 = vpack.c.b16 %v2167, %v2160
        %v2245 = vpack.c.b16 %v2168, %v2161
        %v2246 = vpack.c.b16 %v2169, %v2162
        %v2247 = vpack.c.b16 %v2170, %v2163
        %v2248 = vpack.c.b16 %v2171, %v2164
        %v2249 = vpack.c.b16 %v2172, %v2165
        %v2250 = vpack.c.b16 %v2173, %v2166
        %v2251 = vpack.c.b16 %v2181, %v2174
        %v2252 = vpack.c.b16 %v2182, %v2175
        %v2253 = vpack.c.b16 %v2183, %v2176
        %v2254 = vpack.c.b16 %v2184, %v2177
        %v2255 = vpack.c.b16 %v2185, %v2178
        %v2256 = vpack.c.b16 %v2186, %v2179
        %v2257 = vpack.c.b16 %v2187, %v2180
        %v2258 = vpack.c.b16 %v2195, %v2188
        %v2259 = vpack.c.b16 %v2196, %v2189
        %v2260 = vpack.c.b16 %v2197, %v2190
        %v2261 = vpack.c.b16 %v2198, %v2191
        %v2262 = vpack.c.b16 %v2199, %v2192
        %v2263 = vpack.c.b16 %v2200, %v2193
        %v2264 = vpack.c.b16 %v2201, %v2194
        %v2265 = vpack.c.b16 %v2209, %v2202
        %v2266 = vpack.c.b16 %v2210, %v2203
        %v2267 = vpack.c.b16 %v2211, %v2204
        %v2268 = vpack.c.b16 %v2212, %v2205
        %v2269 = vpack.c.b16 %v2213, %v2206
        %v2270 = vpack.c.b16 %v2214, %v2207
        %v2271 = vpack.c.b16 %v2215, %v2208
        %v2272 = vpack.c.b16 %v2223, %v2216
        %v2273 = vpack.c.b16 %v2224, %v2217
        %v2274 = vpack.c.b16 %v2225, %v2218
        %v2275 = vpack.c.b16 %v2226, %v2219
        %v2276 = vpack.c.b16 %v2227, %v2220
        %v2277 = vpack.c.b16 %v2228, %v2221
        %v2278 = vpack.c.b16 %v2229, %v2222
        %v2279 = vpack.c.b16 %v2230, %v2230
        %v2280 = vpack.c.b16 %v2231, %v2231
        %v2281 = vpack.c.b16 %v2232, %v2232
        %v2282 = vpack.c.b16 %v2233, %v2233
        %v2283 = vpack.c.b16 %v2234, %v2234
        %v2284 = vpack.c.b16 %v2235, %v2235
        %v2285 = vpack.c.b16 %v2236, %v2236
        %v2329 = vsel %vm829, %v2029, 0
        %v2332 = vsel %vm829, %v2030, 0
        %v2335 = vsel %vm829, %v2031, 0
        %v2338 = vsel %vm829, %v2032, 0
        %v2341 = vsel %vm829, %v2033, 0
        %v2344 = vsel %vm829, %v2034, 0
        %v2347 = vsel %vm829, %v2035, 0
        %v2350 = vsel %vm829, %v2036, 0
        %v2353 = vsel %vm829, %v2037, 0
        %v2356 = vsel %vm829, %v2038, 0
        %v2359 = vsel %vm829, %v2039, 0
        %v2362 = vsel %vm829, %v2040, 0
        %v2365 = vsel %vm866, %v2279, 0
        %v2368 = vsel %vm866, %v2280, 0
        %v2371 = vsel %vm866, %v2281, 0
        %v2374 = vsel %vm866, %v2282, 0
        %v2377 = vsel %vm866, %v2283, 0
        %v2380 = vsel %vm866, %v2284, 0
        %v2383 = vsel %vm866, %v2285, 0
        %2385 = vmatprep.subr.bf16.mxu0 %v2238
        %2386 = vmatpush1.bf16.msra.mxu0 %v2237
        %2387 = vmatprep.subr.bf16.mxu0 %v2245
        %2388 = vmatpush1.bf16.msra.mxu0 %v2244
        %2389 = vmatprep.subr.bf16.mxu0 %v2252
        %2390 = vmatpush1.bf16.msra.mxu0 %v2251
        %2391 = vmatprep.subr.bf16.mxu0 %v2259
        %2392 = vmatpush1.bf16.msra.mxu0 %v2258
        %2393 = vmatprep.subr.bf16.mxu0 %v2266
        %2394 = vmatpush1.bf16.msra.mxu0 %v2265
        %2395 = vmatprep.subr.bf16.mxu0 %v2273
        %2396 = vmatpush1.bf16.msra.mxu0 %v2272
        %2397 = vmatprep.subr.bf16.mxu0 %v2368
        %2398 = vmatpush1.bf16.msra.mxu0 %v2365
        %2399 = vmatprep.subr.bf16.mxu0 0
        %2400 = vmatpush1.bf16.msra.mxu0 0
        %2401 = vmatprep.subr.bf16.mxu0 0
        %2402 = vmatpush1.bf16.msra.mxu0 0
        %2403 = vmatprep.subr.bf16.mxu0 0
        %2404 = vmatpush1.bf16.msra.mxu0 0
        %2405 = vmatprep.subr.bf16.mxu0 0
        %2406 = vmatpush1.bf16.msra.mxu0 0
        %2407 = vmatprep.subr.bf16.mxu0 0
        %2408 = vmatpush1.bf16.msra.mxu0 0
        %2409 = vmatprep.subr.bf16.mxu0 0
        %2410 = vmatpush1.bf16.msra.mxu0 0
        %2411 = vmatprep.subr.bf16.mxu0 0
        %2412 = vmatpush1.bf16.msra.mxu0 0
        %2413 = vmatprep.subr.bf16.mxu0 0
        %2414 = vmatpush1.bf16.msra.mxu0 0
        %2415 = vmatprep.subr.bf16.mxu0 0
        %2416 = vmatpush1.bf16.msra.mxu0 0
        %2417 = vmatprep.mubr.bf16.mxu0 0
        %2418 = vmatmul.mubr.bf16.gmra.mrb[0].mxu0 %v2329
        %v2419 = vpop.f32.mrb[0].mxu0
        %v2420 = vadd.f32 0.0, %v2419
        %v2421 = vpop.f32.mrb[0].mxu0
        %v2422 = vadd.f32 0.0, %v2421
        %v2423 = vpop.f32.mrb[0].mxu0
        %v2424 = vadd.f32 0.0, %v2423
        %v2425 = vpop.f32.mrb[0].mxu0
        %v2426 = vadd.f32 0.0, %v2425
        %2427 = vmatprep.mubr.bf16.mxu0 0
        %2428 = vmatmul.mubr.bf16.gmra.mrb[0].mxu0 %v2332
        %v2429 = vpop.f32.mrb[0].mxu0
        %v2430 = vadd.f32 0.0, %v2429
        %v2431 = vpop.f32.mrb[0].mxu0
        %v2432 = vadd.f32 0.0, %v2431
        %v2433 = vpop.f32.mrb[0].mxu0
        %v2434 = vadd.f32 0.0, %v2433
        %v2435 = vpop.f32.mrb[0].mxu0
        %v2436 = vadd.f32 0.0, %v2435
        %2437 = vmatprep.mubr.bf16.mxu0 0
        %2438 = vmatmul.mubr.bf16.gmra.mrb[0].mxu0 %v2335
        %v2439 = vpop.f32.mrb[0].mxu0
        %v2440 = vadd.f32 0.0, %v2439
        %v2441 = vpop.f32.mrb[0].mxu0
        %v2442 = vadd.f32 0.0, %v2441
        %v2443 = vpop.f32.mrb[0].mxu0
        %v2444 = vadd.f32 0.0, %v2443
        %v2445 = vpop.f32.mrb[0].mxu0
        %v2446 = vadd.f32 0.0, %v2445
        %2447 = vmatprep.mubr.bf16.mxu0 0
        %2448 = vmatmul.mubr.bf16.gmra.mrb[0].mxu0 %v2338
        %v2449 = vpop.f32.mrb[0].mxu0
        %v2450 = vadd.f32 0.0, %v2449
        %v2451 = vpop.f32.mrb[0].mxu0
        %v2452 = vadd.f32 0.0, %v2451
        %v2453 = vpop.f32.mrb[0].mxu0
        %v2454 = vadd.f32 0.0, %v2453
        %v2455 = vpop.f32.mrb[0].mxu0
        %v2456 = vadd.f32 0.0, %v2455
        %2457 = vmatprep.mubr.bf16.mxu0 0
        %2458 = vmatmul.mubr.bf16.gmra.mrb[0].mxu0 %v2341
        %v2459 = vpop.f32.mrb[0].mxu0
        %v2460 = vadd.f32 0.0, %v2459
        %v2461 = vpop.f32.mrb[0].mxu0
        %v2462 = vadd.f32 0.0, %v2461
        %v2463 = vpop.f32.mrb[0].mxu0
        %v2464 = vadd.f32 0.0, %v2463
        %v2465 = vpop.f32.mrb[0].mxu0
        %v2466 = vadd.f32 0.0, %v2465
        %2467 = vmatprep.mubr.bf16.mxu0 0
        %2468 = vmatmul.mubr.bf16.gmra.mrb[0].mxu0 %v2344
        %v2469 = vpop.f32.mrb[0].mxu0
        %v2470 = vadd.f32 0.0, %v2469
        %v2471 = vpop.f32.mrb[0].mxu0
        %v2472 = vadd.f32 0.0, %v2471
        %v2473 = vpop.f32.mrb[0].mxu0
        %v2474 = vadd.f32 0.0, %v2473
        %v2475 = vpop.f32.mrb[0].mxu0
        %v2476 = vadd.f32 0.0, %v2475
        %2477 = vmatprep.mubr.bf16.mxu0 0
        %2478 = vmatmul.mubr.bf16.gmra.mrb[0].mxu0 %v2347
        %v2479 = vpop.f32.mrb[0].mxu0
        %v2480 = vadd.f32 0.0, %v2479
        %v2481 = vpop.f32.mrb[0].mxu0
        %v2482 = vadd.f32 0.0, %v2481
        %v2483 = vpop.f32.mrb[0].mxu0
        %v2484 = vadd.f32 0.0, %v2483
        %v2485 = vpop.f32.mrb[0].mxu0
        %v2486 = vadd.f32 0.0, %v2485
        %2487 = vmatprep.mubr.bf16.mxu0 0
        %2488 = vmatmul.mubr.bf16.gmra.mrb[0].mxu0 %v2350
        %v2489 = vpop.f32.mrb[0].mxu0
        %v2490 = vadd.f32 0.0, %v2489
        %v2491 = vpop.f32.mrb[0].mxu0
        %v2492 = vadd.f32 0.0, %v2491
        %v2493 = vpop.f32.mrb[0].mxu0
        %v2494 = vadd.f32 0.0, %v2493
        %v2495 = vpop.f32.mrb[0].mxu0
        %v2496 = vadd.f32 0.0, %v2495
        %2497 = vmatprep.mubr.bf16.mxu0 0
        %2498 = vmatmul.mubr.bf16.gmra.mrb[0].mxu0 %v2353
        %v2499 = vpop.f32.mrb[0].mxu0
        %v2500 = vadd.f32 0.0, %v2499
        %v2501 = vpop.f32.mrb[0].mxu0
        %v2502 = vadd.f32 0.0, %v2501
        %v2503 = vpop.f32.mrb[0].mxu0
        %v2504 = vadd.f32 0.0, %v2503
        %v2505 = vpop.f32.mrb[0].mxu0
        %v2506 = vadd.f32 0.0, %v2505
        %2507 = vmatprep.mubr.bf16.mxu0 0
        %2508 = vmatmul.mubr.bf16.gmra.mrb[0].mxu0 %v2356
        %v2509 = vpop.f32.mrb[0].mxu0
        %v2510 = vadd.f32 0.0, %v2509
        %v2511 = vpop.f32.mrb[0].mxu0
        %v2512 = vadd.f32 0.0, %v2511
        %v2513 = vpop.f32.mrb[0].mxu0
        %v2514 = vadd.f32 0.0, %v2513
        %v2515 = vpop.f32.mrb[0].mxu0
        %v2516 = vadd.f32 0.0, %v2515
        %2517 = vmatprep.mubr.bf16.mxu0 0
        %2518 = vmatmul.mubr.bf16.gmra.mrb[0].mxu0 %v2359
        %v2519 = vpop.f32.mrb[0].mxu0
        %v2520 = vadd.f32 0.0, %v2519
        %v2521 = vpop.f32.mrb[0].mxu0
        %v2522 = vadd.f32 0.0, %v2521
        %v2523 = vpop.f32.mrb[0].mxu0
        %v2524 = vadd.f32 0.0, %v2523
        %v2525 = vpop.f32.mrb[0].mxu0
        %v2526 = vadd.f32 0.0, %v2525
        %2527 = vmatprep.mubr.bf16.mxu0 0
        %2528 = vmatmul.mubr.bf16.gmra.mrb[0].mxu0 %v2362
        %v2529 = vpop.f32.mrb[0].mxu0
        %v2530 = vadd.f32 0.0, %v2529
        %v2531 = vpop.f32.mrb[0].mxu0
        %v2532 = vadd.f32 0.0, %v2531
        %v2533 = vpop.f32.mrb[0].mxu0
        %v2534 = vadd.f32 0.0, %v2533
        %v2535 = vpop.f32.mrb[0].mxu0
        %v2536 = vadd.f32 0.0, %v2535
        %2537 = vdwg.mxu0
        %2538 = vmatprep.subr.bf16.mxu0 %v2240
        %2539 = vmatpush1.bf16.msra.mxu0 %v2239
        %2540 = vmatprep.subr.bf16.mxu0 %v2247
        %2541 = vmatpush1.bf16.msra.mxu0 %v2246
        %2542 = vmatprep.subr.bf16.mxu0 %v2254
        %2543 = vmatpush1.bf16.msra.mxu0 %v2253
        %2544 = vmatprep.subr.bf16.mxu0 %v2261
        %2545 = vmatpush1.bf16.msra.mxu0 %v2260
        %2546 = vmatprep.subr.bf16.mxu0 %v2268
        %2547 = vmatpush1.bf16.msra.mxu0 %v2267
        %2548 = vmatprep.subr.bf16.mxu0 %v2275
        %2549 = vmatpush1.bf16.msra.mxu0 %v2274
        %2550 = vmatprep.subr.bf16.mxu0 %v2374
        %2551 = vmatpush1.bf16.msra.mxu0 %v2371
        %2552 = vmatprep.subr.bf16.mxu0 0
        %2553 = vmatpush1.bf16.msra.mxu0 0
        %2554 = vmatprep.subr.bf16.mxu0 0
        %2555 = vmatpush1.bf16.msra.mxu0 0
        %2556 = vmatprep.subr.bf16.mxu0 0
        %2557 = vmatpush1.bf16.msra.mxu0 0
        %2558 = vmatprep.subr.bf16.mxu0 0
        %2559 = vmatpush1.bf16.msra.mxu0 0
        %2560 = vmatprep.subr.bf16.mxu0 0
        %2561 = vmatpush1.bf16.msra.mxu0 0
        %2562 = vmatprep.subr.bf16.mxu0 0
        %2563 = vmatpush1.bf16.msra.mxu0 0
        %2564 = vmatprep.subr.bf16.mxu0 0
        %2565 = vmatpush1.bf16.msra.mxu0 0
        %2566 = vmatprep.subr.bf16.mxu0 0
        %2567 = vmatpush1.bf16.msra.mxu0 0
        %2568 = vmatprep.subr.bf16.mxu0 0
        %2569 = vmatpush1.bf16.msra.mxu0 0
        %2570 = vmatprep.mubr.bf16.mxu0 0
        %2571 = vmatmul.mubr.bf16.gmra.mrb[0].mxu0 %v2329
        %v2572 = vpop.f32.mrb[0].mxu0
        %v2573 = vadd.f32 0.0, %v2572
        %v2574 = vpop.f32.mrb[0].mxu0
        %v2575 = vadd.f32 0.0, %v2574
        %v2576 = vpop.f32.mrb[0].mxu0
        %v2577 = vadd.f32 0.0, %v2576
        %v2578 = vpop.f32.mrb[0].mxu0
        %v2579 = vadd.f32 0.0, %v2578
        %2580 = vmatprep.mubr.bf16.mxu0 0
        %2581 = vmatmul.mubr.bf16.gmra.mrb[0].mxu0 %v2332
        %v2582 = vpop.f32.mrb[0].mxu0
        %v2583 = vadd.f32 0.0, %v2582
        %v2584 = vpop.f32.mrb[0].mxu0
        %v2585 = vadd.f32 0.0, %v2584
        %v2586 = vpop.f32.mrb[0].mxu0
        %v2587 = vadd.f32 0.0, %v2586
        %v2588 = vpop.f32.mrb[0].mxu0
        %v2589 = vadd.f32 0.0, %v2588
        %2590 = vmatprep.mubr.bf16.mxu0 0
        %2591 = vmatmul.mubr.bf16.gmra.mrb[0].mxu0 %v2335
        %v2592 = vpop.f32.mrb[0].mxu0
        %v2593 = vadd.f32 0.0, %v2592
        %v2594 = vpop.f32.mrb[0].mxu0
        %v2595 = vadd.f32 0.0, %v2594
        %v2596 = vpop.f32.mrb[0].mxu0
        %v2597 = vadd.f32 0.0, %v2596
        %v2598 = vpop.f32.mrb[0].mxu0
        %v2599 = vadd.f32 0.0, %v2598
        %2600 = vmatprep.mubr.bf16.mxu0 0
        %2601 = vmatmul.mubr.bf16.gmra.mrb[0].mxu0 %v2338
        %v2602 = vpop.f32.mrb[0].mxu0
        %v2603 = vadd.f32 0.0, %v2602
        %v2604 = vpop.f32.mrb[0].mxu0
        %v2605 = vadd.f32 0.0, %v2604
        %v2606 = vpop.f32.mrb[0].mxu0
        %v2607 = vadd.f32 0.0, %v2606
        %v2608 = vpop.f32.mrb[0].mxu0
        %v2609 = vadd.f32 0.0, %v2608
        %2610 = vmatprep.mubr.bf16.mxu0 0
        %2611 = vmatmul.mubr.bf16.gmra.mrb[0].mxu0 %v2341
        %v2612 = vpop.f32.mrb[0].mxu0
        %v2613 = vadd.f32 0.0, %v2612
        %v2614 = vpop.f32.mrb[0].mxu0
        %v2615 = vadd.f32 0.0, %v2614
        %v2616 = vpop.f32.mrb[0].mxu0
        %v2617 = vadd.f32 0.0, %v2616
        %v2618 = vpop.f32.mrb[0].mxu0
        %v2619 = vadd.f32 0.0, %v2618
        %2620 = vmatprep.mubr.bf16.mxu0 0
        %2621 = vmatmul.mubr.bf16.gmra.mrb[0].mxu0 %v2344
        %v2622 = vpop.f32.mrb[0].mxu0
        %v2623 = vadd.f32 0.0, %v2622
        %v2624 = vpop.f32.mrb[0].mxu0
        %v2625 = vadd.f32 0.0, %v2624
        %v2626 = vpop.f32.mrb[0].mxu0
        %v2627 = vadd.f32 0.0, %v2626
        %v2628 = vpop.f32.mrb[0].mxu0
        %v2629 = vadd.f32 0.0, %v2628
        %2630 = vmatprep.mubr.bf16.mxu0 0
        %2631 = vmatmul.mubr.bf16.gmra.mrb[0].mxu0 %v2347
        %v2632 = vpop.f32.mrb[0].mxu0
        %v2633 = vadd.f32 0.0, %v2632
        %v2634 = vpop.f32.mrb[0].mxu0
        %v2635 = vadd.f32 0.0, %v2634
        %v2636 = vpop.f32.mrb[0].mxu0
        %v2637 = vadd.f32 0.0, %v2636
        %v2638 = vpop.f32.mrb[0].mxu0
        %v2639 = vadd.f32 0.0, %v2638
        %2640 = vmatprep.mubr.bf16.mxu0 0
        %2641 = vmatmul.mubr.bf16.gmra.mrb[0].mxu0 %v2350
        %v2642 = vpop.f32.mrb[0].mxu0
        %v2643 = vadd.f32 0.0, %v2642
        %v2644 = vpop.f32.mrb[0].mxu0
        %v2645 = vadd.f32 0.0, %v2644
        %v2646 = vpop.f32.mrb[0].mxu0
        %v2647 = vadd.f32 0.0, %v2646
        %v2648 = vpop.f32.mrb[0].mxu0
        %v2649 = vadd.f32 0.0, %v2648
        %2650 = vmatprep.mubr.bf16.mxu0 0
        %2651 = vmatmul.mubr.bf16.gmra.mrb[0].mxu0 %v2353
        %v2652 = vpop.f32.mrb[0].mxu0
        %v2653 = vadd.f32 0.0, %v2652
        %v2654 = vpop.f32.mrb[0].mxu0
        %v2655 = vadd.f32 0.0, %v2654
        %v2656 = vpop.f32.mrb[0].mxu0
        %v2657 = vadd.f32 0.0, %v2656
        %v2658 = vpop.f32.mrb[0].mxu0
        %v2659 = vadd.f32 0.0, %v2658
        %2660 = vmatprep.mubr.bf16.mxu0 0
        %2661 = vmatmul.mubr.bf16.gmra.mrb[0].mxu0 %v2356
        %v2662 = vpop.f32.mrb[0].mxu0
        %v2663 = vadd.f32 0.0, %v2662
        %v2664 = vpop.f32.mrb[0].mxu0
        %v2665 = vadd.f32 0.0, %v2664
        %v2666 = vpop.f32.mrb[0].mxu0
        %v2667 = vadd.f32 0.0, %v2666
        %v2668 = vpop.f32.mrb[0].mxu0
        %v2669 = vadd.f32 0.0, %v2668
        %2670 = vmatprep.mubr.bf16.mxu0 0
        %2671 = vmatmul.mubr.bf16.gmra.mrb[0].mxu0 %v2359
        %v2672 = vpop.f32.mrb[0].mxu0
        %v2673 = vadd.f32 0.0, %v2672
        %v2674 = vpop.f32.mrb[0].mxu0
        %v2675 = vadd.f32 0.0, %v2674
        %v2676 = vpop.f32.mrb[0].mxu0
        %v2677 = vadd.f32 0.0, %v2676
        %v2678 = vpop.f32.mrb[0].mxu0
        %v2679 = vadd.f32 0.0, %v2678
        %2680 = vmatprep.mubr.bf16.mxu0 0
        %2681 = vmatmul.mubr.bf16.gmra.mrb[0].mxu0 %v2362
        %v2682 = vpop.f32.mrb[0].mxu0
        %v2683 = vadd.f32 0.0, %v2682
        %v2684 = vpop.f32.mrb[0].mxu0
        %v2685 = vadd.f32 0.0, %v2684
        %v2686 = vpop.f32.mrb[0].mxu0
        %v2687 = vadd.f32 0.0, %v2686
        %v2688 = vpop.f32.mrb[0].mxu0
        %v2689 = vadd.f32 0.0, %v2688
        %2690 = vdwg.mxu0
        %2691 = vmatprep.subr.bf16.mxu0 %v2242
        %2692 = vmatpush1.bf16.msra.mxu0 %v2241
        %2693 = vmatprep.subr.bf16.mxu0 %v2249
        %2694 = vmatpush1.bf16.msra.mxu0 %v2248
        %2695 = vmatprep.subr.bf16.mxu0 %v2256
        %2696 = vmatpush1.bf16.msra.mxu0 %v2255
        %2697 = vmatprep.subr.bf16.mxu0 %v2263
        %2698 = vmatpush1.bf16.msra.mxu0 %v2262
        %2699 = vmatprep.subr.bf16.mxu0 %v2270
        %2700 = vmatpush1.bf16.msra.mxu0 %v2269
        %2701 = vmatprep.subr.bf16.mxu0 %v2277
        %2702 = vmatpush1.bf16.msra.mxu0 %v2276
        %2703 = vmatprep.subr.bf16.mxu0 %v2380
        %2704 = vmatpush1.bf16.msra.mxu0 %v2377
        %2705 = vmatprep.subr.bf16.mxu0 0
        %2706 = vmatpush1.bf16.msra.mxu0 0
        %2707 = vmatprep.subr.bf16.mxu0 0
        %2708 = vmatpush1.bf16.msra.mxu0 0
        %2709 = vmatprep.subr.bf16.mxu0 0
        %2710 = vmatpush1.bf16.msra.mxu0 0
        %2711 = vmatprep.subr.bf16.mxu0 0
        %2712 = vmatpush1.bf16.msra.mxu0 0
        %2713 = vmatprep.subr.bf16.mxu0 0
        %2714 = vmatpush1.bf16.msra.mxu0 0
        %2715 = vmatprep.subr.bf16.mxu0 0
        %2716 = vmatpush1.bf16.msra.mxu0 0
        %2717 = vmatprep.subr.bf16.mxu0 0
        %2718 = vmatpush1.bf16.msra.mxu0 0
        %2719 = vmatprep.subr.bf16.mxu0 0
        %2720 = vmatpush1.bf16.msra.mxu0 0
        %2721 = vmatprep.subr.bf16.mxu0 0
        %2722 = vmatpush1.bf16.msra.mxu0 0
        %2723 = vmatprep.mubr.bf16.mxu0 0
        %2724 = vmatmul.mubr.bf16.gmra.mrb[0].mxu0 %v2329
        %v2725 = vpop.f32.mrb[0].mxu0
        %v2726 = vadd.f32 0.0, %v2725
        %v2727 = vpop.f32.mrb[0].mxu0
        %v2728 = vadd.f32 0.0, %v2727
        %v2729 = vpop.f32.mrb[0].mxu0
        %v2730 = vadd.f32 0.0, %v2729
        %v2731 = vpop.f32.mrb[0].mxu0
        %v2732 = vadd.f32 0.0, %v2731
        %2733 = vmatprep.mubr.bf16.mxu0 0
        %2734 = vmatmul.mubr.bf16.gmra.mrb[0].mxu0 %v2332
        %v2735 = vpop.f32.mrb[0].mxu0
        %v2736 = vadd.f32 0.0, %v2735
        %v2737 = vpop.f32.mrb[0].mxu0
        %v2738 = vadd.f32 0.0, %v2737
        %v2739 = vpop.f32.mrb[0].mxu0
        %v2740 = vadd.f32 0.0, %v2739
        %v2741 = vpop.f32.mrb[0].mxu0
        %v2742 = vadd.f32 0.0, %v2741
        %2743 = vmatprep.mubr.bf16.mxu0 0
        %2744 = vmatmul.mubr.bf16.gmra.mrb[0].mxu0 %v2335
        %v2745 = vpop.f32.mrb[0].mxu0
        %v2746 = vadd.f32 0.0, %v2745
        %v2747 = vpop.f32.mrb[0].mxu0
        %v2748 = vadd.f32 0.0, %v2747
        %v2749 = vpop.f32.mrb[0].mxu0
        %v2750 = vadd.f32 0.0, %v2749
        %v2751 = vpop.f32.mrb[0].mxu0
        %v2752 = vadd.f32 0.0, %v2751
        %2753 = vmatprep.mubr.bf16.mxu0 0
        %2754 = vmatmul.mubr.bf16.gmra.mrb[0].mxu0 %v2338
        %v2755 = vpop.f32.mrb[0].mxu0
        %v2756 = vadd.f32 0.0, %v2755
        %v2757 = vpop.f32.mrb[0].mxu0
        %v2758 = vadd.f32 0.0, %v2757
        %v2759 = vpop.f32.mrb[0].mxu0
        %v2760 = vadd.f32 0.0, %v2759
        %v2761 = vpop.f32.mrb[0].mxu0
        %v2762 = vadd.f32 0.0, %v2761
        %2763 = vmatprep.mubr.bf16.mxu0 0
        %2764 = vmatmul.mubr.bf16.gmra.mrb[0].mxu0 %v2341
        %v2765 = vpop.f32.mrb[0].mxu0
        %v2766 = vadd.f32 0.0, %v2765
        %v2767 = vpop.f32.mrb[0].mxu0
        %v2768 = vadd.f32 0.0, %v2767
        %v2769 = vpop.f32.mrb[0].mxu0
        %v2770 = vadd.f32 0.0, %v2769
        %v2771 = vpop.f32.mrb[0].mxu0
        %v2772 = vadd.f32 0.0, %v2771
        %2773 = vmatprep.mubr.bf16.mxu0 0
        %2774 = vmatmul.mubr.bf16.gmra.mrb[0].mxu0 %v2344
        %v2775 = vpop.f32.mrb[0].mxu0
        %v2776 = vadd.f32 0.0, %v2775
        %v2777 = vpop.f32.mrb[0].mxu0
        %v2778 = vadd.f32 0.0, %v2777
        %v2779 = vpop.f32.mrb[0].mxu0
        %v2780 = vadd.f32 0.0, %v2779
        %v2781 = vpop.f32.mrb[0].mxu0
        %v2782 = vadd.f32 0.0, %v2781
        %2783 = vmatprep.mubr.bf16.mxu0 0
        %2784 = vmatmul.mubr.bf16.gmra.mrb[0].mxu0 %v2347
        %v2785 = vpop.f32.mrb[0].mxu0
        %v2786 = vadd.f32 0.0, %v2785
        %v2787 = vpop.f32.mrb[0].mxu0
        %v2788 = vadd.f32 0.0, %v2787
        %v2789 = vpop.f32.mrb[0].mxu0
        %v2790 = vadd.f32 0.0, %v2789
        %v2791 = vpop.f32.mrb[0].mxu0
        %v2792 = vadd.f32 0.0, %v2791
        %2793 = vmatprep.mubr.bf16.mxu0 0
        %2794 = vmatmul.mubr.bf16.gmra.mrb[0].mxu0 %v2350
        %v2795 = vpop.f32.mrb[0].mxu0
        %v2796 = vadd.f32 0.0, %v2795
        %v2797 = vpop.f32.mrb[0].mxu0
        %v2798 = vadd.f32 0.0, %v2797
        %v2799 = vpop.f32.mrb[0].mxu0
        %v2800 = vadd.f32 0.0, %v2799
        %v2801 = vpop.f32.mrb[0].mxu0
        %v2802 = vadd.f32 0.0, %v2801
        %2803 = vmatprep.mubr.bf16.mxu0 0
        %2804 = vmatmul.mubr.bf16.gmra.mrb[0].mxu0 %v2353
        %v2805 = vpop.f32.mrb[0].mxu0
        %v2806 = vadd.f32 0.0, %v2805
        %v2807 = vpop.f32.mrb[0].mxu0
        %v2808 = vadd.f32 0.0, %v2807
        %v2809 = vpop.f32.mrb[0].mxu0
        %v2810 = vadd.f32 0.0, %v2809
        %v2811 = vpop.f32.mrb[0].mxu0
        %v2812 = vadd.f32 0.0, %v2811
        %2813 = vmatprep.mubr.bf16.mxu0 0
        %2814 = vmatmul.mubr.bf16.gmra.mrb[0].mxu0 %v2356
        %v2815 = vpop.f32.mrb[0].mxu0
        %v2816 = vadd.f32 0.0, %v2815
        %v2817 = vpop.f32.mrb[0].mxu0
        %v2818 = vadd.f32 0.0, %v2817
        %v2819 = vpop.f32.mrb[0].mxu0
        %v2820 = vadd.f32 0.0, %v2819
        %v2821 = vpop.f32.mrb[0].mxu0
        %v2822 = vadd.f32 0.0, %v2821
        %2823 = vmatprep.mubr.bf16.mxu0 0
        %2824 = vmatmul.mubr.bf16.gmra.mrb[0].mxu0 %v2359
        %v2825 = vpop.f32.mrb[0].mxu0
        %v2826 = vadd.f32 0.0, %v2825
        %v2827 = vpop.f32.mrb[0].mxu0
        %v2828 = vadd.f32 0.0, %v2827
        %v2829 = vpop.f32.mrb[0].mxu0
        %v2830 = vadd.f32 0.0, %v2829
        %v2831 = vpop.f32.mrb[0].mxu0
        %v2832 = vadd.f32 0.0, %v2831
        %2833 = vmatprep.mubr.bf16.mxu0 0
        %2834 = vmatmul.mubr.bf16.gmra.mrb[0].mxu0 %v2362
        %v2835 = vpop.f32.mrb[0].mxu0
        %v2836 = vadd.f32 0.0, %v2835
        %v2837 = vpop.f32.mrb[0].mxu0
        %v2838 = vadd.f32 0.0, %v2837
        %v2839 = vpop.f32.mrb[0].mxu0
        %v2840 = vadd.f32 0.0, %v2839
        %v2841 = vpop.f32.mrb[0].mxu0
        %v2842 = vadd.f32 0.0, %v2841
        %2843 = vdwg.mxu0
        %2844 = vmatprep.subr.bf16.mxu0 0
        %2845 = vmatpush1.bf16.msra.mxu0 %v2243
        %2846 = vmatprep.subr.bf16.mxu0 0
        %2847 = vmatpush1.bf16.msra.mxu0 %v2250
        %2848 = vmatprep.subr.bf16.mxu0 0
        %2849 = vmatpush1.bf16.msra.mxu0 %v2257
        %2850 = vmatprep.subr.bf16.mxu0 0
        %2851 = vmatpush1.bf16.msra.mxu0 %v2264
        %2852 = vmatprep.subr.bf16.mxu0 0
        %2853 = vmatpush1.bf16.msra.mxu0 %v2271
        %2854 = vmatprep.subr.bf16.mxu0 0
        %2855 = vmatpush1.bf16.msra.mxu0 %v2278
        %2856 = vmatprep.subr.bf16.mxu0 0
        %2857 = vmatpush1.bf16.msra.mxu0 %v2383
        %2858 = vmatprep.subr.bf16.mxu0 0
        %2859 = vmatpush1.bf16.msra.mxu0 0
        %2860 = vmatprep.subr.bf16.mxu0 0
        %2861 = vmatpush1.bf16.msra.mxu0 0
        %2862 = vmatprep.subr.bf16.mxu0 0
        %2863 = vmatpush1.bf16.msra.mxu0 0
        %2864 = vmatprep.subr.bf16.mxu0 0
        %2865 = vmatpush1.bf16.msra.mxu0 0
        %2866 = vmatprep.subr.bf16.mxu0 0
        %2867 = vmatpush1.bf16.msra.mxu0 0
        %2868 = vmatprep.subr.bf16.mxu0 0
        %2869 = vmatpush1.bf16.msra.mxu0 0
        %2870 = vmatprep.subr.bf16.mxu0 0
        %2871 = vmatpush1.bf16.msra.mxu0 0
        %2872 = vmatprep.subr.bf16.mxu0 0
        %2873 = vmatpush1.bf16.msra.mxu0 0
        %2874 = vmatprep.subr.bf16.mxu0 0
        %2875 = vmatpush1.bf16.msra.mxu0 0
        %2876 = vmatprep.mubr.bf16.mxu0 0
        %2877 = vmatmul.mubr.bf16.gmra.mrb[0].mxu0 %v2329
        %v2878 = vpop.f32.mrb[0].mxu0
        %v2879 = vadd.f32 0.0, %v2878
        %v2880 = vpop.f32.mrb[0].mxu0
        %v2881 = vpop.f32.mrb[0].mxu0
        %v2882 = vadd.f32 0.0, %v2881
        %v2883 = vpop.f32.mrb[0].mxu0
        %2884 = vmatprep.mubr.bf16.mxu0 0
        %2885 = vmatmul.mubr.bf16.gmra.mrb[0].mxu0 %v2332
        %v2886 = vpop.f32.mrb[0].mxu0
        %v2887 = vadd.f32 0.0, %v2886
        %v2888 = vpop.f32.mrb[0].mxu0
        %v2889 = vpop.f32.mrb[0].mxu0
        %v2890 = vadd.f32 0.0, %v2889
        %v2891 = vpop.f32.mrb[0].mxu0
        %2892 = vmatprep.mubr.bf16.mxu0 0
        %2893 = vmatmul.mubr.bf16.gmra.mrb[0].mxu0 %v2335
        %v2894 = vpop.f32.mrb[0].mxu0
        %v2895 = vadd.f32 0.0, %v2894
        %v2896 = vpop.f32.mrb[0].mxu0
        %v2897 = vpop.f32.mrb[0].mxu0
        %v2898 = vadd.f32 0.0, %v2897
        %v2899 = vpop.f32.mrb[0].mxu0
        %2900 = vmatprep.mubr.bf16.mxu0 0
        %2901 = vmatmul.mubr.bf16.gmra.mrb[0].mxu0 %v2338
        %v2902 = vpop.f32.mrb[0].mxu0
        %v2903 = vadd.f32 0.0, %v2902
        %v2904 = vpop.f32.mrb[0].mxu0
        %v2905 = vpop.f32.mrb[0].mxu0
        %v2906 = vadd.f32 0.0, %v2905
        %v2907 = vpop.f32.mrb[0].mxu0
        %2908 = vmatprep.mubr.bf16.mxu0 0
        %2909 = vmatmul.mubr.bf16.gmra.mrb[0].mxu0 %v2341
        %v2910 = vpop.f32.mrb[0].mxu0
        %v2911 = vadd.f32 0.0, %v2910
        %v2912 = vpop.f32.mrb[0].mxu0
        %v2913 = vpop.f32.mrb[0].mxu0
        %v2914 = vadd.f32 0.0, %v2913
        %v2915 = vpop.f32.mrb[0].mxu0
        %2916 = vmatprep.mubr.bf16.mxu0 0
        %2917 = vmatmul.mubr.bf16.gmra.mrb[0].mxu0 %v2344
        %v2918 = vpop.f32.mrb[0].mxu0
        %v2919 = vadd.f32 0.0, %v2918
        %v2920 = vpop.f32.mrb[0].mxu0
        %v2921 = vpop.f32.mrb[0].mxu0
        %v2922 = vadd.f32 0.0, %v2921
        %v2923 = vpop.f32.mrb[0].mxu0
        %2924 = vmatprep.mubr.bf16.mxu0 0
        %2925 = vmatmul.mubr.bf16.gmra.mrb[0].mxu0 %v2347
        %v2926 = vpop.f32.mrb[0].mxu0
        %v2927 = vadd.f32 0.0, %v2926
        %v2928 = vpop.f32.mrb[0].mxu0
        %v2929 = vpop.f32.mrb[0].mxu0
        %v2930 = vadd.f32 0.0, %v2929
        %v2931 = vpop.f32.mrb[0].mxu0
        %2932 = vmatprep.mubr.bf16.mxu0 0
        %2933 = vmatmul.mubr.bf16.gmra.mrb[0].mxu0 %v2350
        %v2934 = vpop.f32.mrb[0].mxu0
        %v2935 = vadd.f32 0.0, %v2934
        %v2936 = vpop.f32.mrb[0].mxu0
        %v2937 = vpop.f32.mrb[0].mxu0
        %v2938 = vadd.f32 0.0, %v2937
        %v2939 = vpop.f32.mrb[0].mxu0
        %2940 = vmatprep.mubr.bf16.mxu0 0
        %2941 = vmatmul.mubr.bf16.gmra.mrb[0].mxu0 %v2353
        %v2942 = vpop.f32.mrb[0].mxu0
        %v2943 = vadd.f32 0.0, %v2942
        %v2944 = vpop.f32.mrb[0].mxu0
        %v2945 = vpop.f32.mrb[0].mxu0
        %v2946 = vadd.f32 0.0, %v2945
        %v2947 = vpop.f32.mrb[0].mxu0
        %2948 = vmatprep.mubr.bf16.mxu0 0
        %2949 = vmatmul.mubr.bf16.gmra.mrb[0].mxu0 %v2356
        %v2950 = vpop.f32.mrb[0].mxu0
        %v2951 = vadd.f32 0.0, %v2950
        %v2952 = vpop.f32.mrb[0].mxu0
        %v2953 = vpop.f32.mrb[0].mxu0
        %v2954 = vadd.f32 0.0, %v2953
        %v2955 = vpop.f32.mrb[0].mxu0
        %2956 = vmatprep.mubr.bf16.mxu0 0
        %2957 = vmatmul.mubr.bf16.gmra.mrb[0].mxu0 %v2359
        %v2958 = vpop.f32.mrb[0].mxu0
        %v2959 = vadd.f32 0.0, %v2958
        %v2960 = vpop.f32.mrb[0].mxu0
        %v2961 = vpop.f32.mrb[0].mxu0
        %v2962 = vadd.f32 0.0, %v2961
        %v2963 = vpop.f32.mrb[0].mxu0
        %2964 = vmatprep.mubr.bf16.mxu0 0
        %2965 = vmatmul.mubr.bf16.gmra.mrb[0].mxu0 %v2362
        %v2966 = vpop.f32.mrb[0].mxu0
        %v2967 = vadd.f32 0.0, %v2966
        %v2968 = vpop.f32.mrb[0].mxu0
        %v2969 = vpop.f32.mrb[0].mxu0
        %v2970 = vadd.f32 0.0, %v2969
        %v2971 = vpop.f32.mrb[0].mxu0
        %2972 = vdwg.mxu0
        %v2973 = vrot.slane %v2422, 7
        %v2974 = vrot.slane %v2426, 7
        %v2975 = vrot.slane %v2432, 7
        %v2976 = vrot.slane %v2436, 7
        %v2977 = vrot.slane %v2442, 7
        %v2978 = vrot.slane %v2446, 7
        %v2979 = vrot.slane %v2452, 7
        %v2980 = vrot.slane %v2456, 7
        %v2981 = vrot.slane %v2462, 7
        %v2982 = vrot.slane %v2466, 7
        %v2983 = vrot.slane %v2472, 7
        %v2984 = vrot.slane %v2476, 7
        %v2985 = vrot.slane %v2482, 7
        %v2986 = vrot.slane %v2486, 7
        %v2987 = vrot.slane %v2492, 7
        %v2988 = vrot.slane %v2496, 7
        %v2989 = vrot.slane %v2502, 7
        %v2990 = vrot.slane %v2506, 7
        %v2991 = vrot.slane %v2512, 7
        %v2992 = vrot.slane %v2516, 7
        %v2993 = vrot.slane %v2522, 7
        %v2994 = vrot.slane %v2526, 7
        %v2995 = vrot.slane %v2532, 7
        %v2996 = vrot.slane %v2536, 7
        %v2997 = vsel %vm1502, %v2995, %v2996
        %v2998 = vsel %vm1502, %v2994, %v2995
        %v2999 = vsel %vm1502, %v2993, %v2994
        %v3000 = vsel %vm1502, %v2992, %v2993
        %v3001 = vsel %vm1502, %v2991, %v2992
        %v3002 = vsel %vm1502, %v2990, %v2991
        %v3003 = vsel %vm1502, %v2989, %v2990
        %v3004 = vsel %vm1502, %v2988, %v2989
        %v3005 = vsel %vm1502, %v2987, %v2988
        %v3006 = vsel %vm1502, %v2986, %v2987
        %v3007 = vsel %vm1502, %v2985, %v2986
        %v3008 = vsel %vm1502, %v2984, %v2985
        %v3009 = vsel %vm1502, %v2983, %v2984
        %v3010 = vsel %vm1502, %v2982, %v2983
        %v3011 = vsel %vm1502, %v2981, %v2982
        %v3012 = vsel %vm1502, %v2980, %v2981
        %v3013 = vsel %vm1502, %v2979, %v2980
        %v3014 = vsel %vm1502, %v2978, %v2979
        %v3015 = vsel %vm1502, %v2977, %v2978
        %v3016 = vsel %vm1502, %v2976, %v2977
        %v3017 = vsel %vm1502, %v2975, %v2976
        %v3018 = vsel %vm1502, %v2974, %v2975
        %v3019 = vsel %vm1502, %v2973, %v2974
        %v3020 = vsel %vm1502, %v2996, %v2973
        %v3021 = vadd.f32 %v2420, %v3020
        %v3022 = vadd.f32 %v2424, %v3019
        %v3023 = vadd.f32 %v2430, %v3018
        %v3024 = vadd.f32 %v2434, %v3017
        %v3025 = vadd.f32 %v2440, %v3016
        %v3026 = vadd.f32 %v2444, %v3015
        %v3027 = vadd.f32 %v2450, %v3014
        %v3028 = vadd.f32 %v2454, %v3013
        %v3029 = vadd.f32 %v2460, %v3012
        %v3030 = vadd.f32 %v2464, %v3011
        %v3031 = vadd.f32 %v2470, %v3010
        %v3032 = vadd.f32 %v2474, %v3009
        %v3033 = vadd.f32 %v2480, %v3008
        %v3034 = vadd.f32 %v2484, %v3007
        %v3035 = vadd.f32 %v2490, %v3006
        %v3036 = vadd.f32 %v2494, %v3005
        %v3037 = vadd.f32 %v2500, %v3004
        %v3038 = vadd.f32 %v2504, %v3003
        %v3039 = vadd.f32 %v2510, %v3002
        %v3040 = vadd.f32 %v2514, %v3001
        %v3041 = vadd.f32 %v2520, %v3000
        %v3042 = vadd.f32 %v2524, %v2999
        %v3043 = vadd.f32 %v2530, %v2998
        %v3044 = vadd.f32 %v2534, %v2997
        %v3045 = vrot.slane %v2573, 6
        %v3046 = vrot.slane %v2577, 6
        %v3047 = vrot.slane %v2583, 6
        %v3048 = vrot.slane %v2587, 6
        %v3049 = vrot.slane %v2593, 6
        %v3050 = vrot.slane %v2597, 6
        %v3051 = vrot.slane %v2603, 6
        %v3052 = vrot.slane %v2607, 6
        %v3053 = vrot.slane %v2613, 6
        %v3054 = vrot.slane %v2617, 6
        %v3055 = vrot.slane %v2623, 6
        %v3056 = vrot.slane %v2627, 6
        %v3057 = vrot.slane %v2633, 6
        %v3058 = vrot.slane %v2637, 6
        %v3059 = vrot.slane %v2643, 6
        %v3060 = vrot.slane %v2647, 6
        %v3061 = vrot.slane %v2653, 6
        %v3062 = vrot.slane %v2657, 6
        %v3063 = vrot.slane %v2663, 6
        %v3064 = vrot.slane %v2667, 6
        %v3065 = vrot.slane %v2673, 6
        %v3066 = vrot.slane %v2677, 6
        %v3067 = vrot.slane %v2683, 6
        %v3068 = vrot.slane %v2687, 6
        %v3069 = vsel %vm1575, %v3067, %v3068
        %v3070 = vsel %vm1575, %v3066, %v3067
        %v3071 = vsel %vm1575, %v3065, %v3066
        %v3072 = vsel %vm1575, %v3064, %v3065
        %v3073 = vsel %vm1575, %v3063, %v3064
        %v3074 = vsel %vm1575, %v3062, %v3063
        %v3075 = vsel %vm1575, %v3061, %v3062
        %v3076 = vsel %vm1575, %v3060, %v3061
        %v3077 = vsel %vm1575, %v3059, %v3060
        %v3078 = vsel %vm1575, %v3058, %v3059
        %v3079 = vsel %vm1575, %v3057, %v3058
        %v3080 = vsel %vm1575, %v3056, %v3057
        %v3081 = vsel %vm1575, %v3055, %v3056
        %v3082 = vsel %vm1575, %v3054, %v3055
        %v3083 = vsel %vm1575, %v3053, %v3054
        %v3084 = vsel %vm1575, %v3052, %v3053
        %v3085 = vsel %vm1575, %v3051, %v3052
        %v3086 = vsel %vm1575, %v3050, %v3051
        %v3087 = vsel %vm1575, %v3049, %v3050
        %v3088 = vsel %vm1575, %v3048, %v3049
        %v3089 = vsel %vm1575, %v3047, %v3048
        %v3090 = vsel %vm1575, %v3046, %v3047
        %v3091 = vsel %vm1575, %v3045, %v3046
        %v3092 = vsel %vm1575, %v3068, %v3045
        %v3093 = vadd.f32 %v3021, %v3092
        %v3094 = vadd.f32 %v3022, %v3091
        %v3095 = vadd.f32 %v3023, %v3090
        %v3096 = vadd.f32 %v3024, %v3089
        %v3097 = vadd.f32 %v3025, %v3088
        %v3098 = vadd.f32 %v3026, %v3087
        %v3099 = vadd.f32 %v3027, %v3086
        %v3100 = vadd.f32 %v3028, %v3085
        %v3101 = vadd.f32 %v3029, %v3084
        %v3102 = vadd.f32 %v3030, %v3083
        %v3103 = vadd.f32 %v3031, %v3082
        %v3104 = vadd.f32 %v3032, %v3081
        %v3105 = vadd.f32 %v3033, %v3080
        %v3106 = vadd.f32 %v3034, %v3079
        %v3107 = vadd.f32 %v3035, %v3078
        %v3108 = vadd.f32 %v3036, %v3077
        %v3109 = vadd.f32 %v3037, %v3076
        %v3110 = vadd.f32 %v3038, %v3075
        %v3111 = vadd.f32 %v3039, %v3074
        %v3112 = vadd.f32 %v3040, %v3073
        %v3113 = vadd.f32 %v3041, %v3072
        %v3114 = vadd.f32 %v3042, %v3071
        %v3115 = vadd.f32 %v3043, %v3070
        %v3116 = vadd.f32 %v3044, %v3069
        %v3117 = vrot.slane %v2575, 5
        %v3118 = vrot.slane %v2579, 5
        %v3119 = vrot.slane %v2585, 5
        %v3120 = vrot.slane %v2589, 5
        %v3121 = vrot.slane %v2595, 5
        %v3122 = vrot.slane %v2599, 5
        %v3123 = vrot.slane %v2605, 5
        %v3124 = vrot.slane %v2609, 5
        %v3125 = vrot.slane %v2615, 5
        %v3126 = vrot.slane %v2619, 5
        %v3127 = vrot.slane %v2625, 5
        %v3128 = vrot.slane %v2629, 5
        %v3129 = vrot.slane %v2635, 5
        %v3130 = vrot.slane %v2639, 5
        %v3131 = vrot.slane %v2645, 5
        %v3132 = vrot.slane %v2649, 5
        %v3133 = vrot.slane %v2655, 5
        %v3134 = vrot.slane %v2659, 5
        %v3135 = vrot.slane %v2665, 5
        %v3136 = vrot.slane %v2669, 5
        %v3137 = vrot.slane %v2675, 5
        %v3138 = vrot.slane %v2679, 5
        %v3139 = vrot.slane %v2685, 5
        %v3140 = vrot.slane %v2689, 5
        %v3141 = vsel %vm1648, %v3139, %v3140
        %v3142 = vsel %vm1648, %v3138, %v3139
        %v3143 = vsel %vm1648, %v3137, %v3138
        %v3144 = vsel %vm1648, %v3136, %v3137
        %v3145 = vsel %vm1648, %v3135, %v3136
        %v3146 = vsel %vm1648, %v3134, %v3135
        %v3147 = vsel %vm1648, %v3133, %v3134
        %v3148 = vsel %vm1648, %v3132, %v3133
        %v3149 = vsel %vm1648, %v3131, %v3132
        %v3150 = vsel %vm1648, %v3130, %v3131
        %v3151 = vsel %vm1648, %v3129, %v3130
        %v3152 = vsel %vm1648, %v3128, %v3129
        %v3153 = vsel %vm1648, %v3127, %v3128
        %v3154 = vsel %vm1648, %v3126, %v3127
        %v3155 = vsel %vm1648, %v3125, %v3126
        %v3156 = vsel %vm1648, %v3124, %v3125
        %v3157 = vsel %vm1648, %v3123, %v3124
        %v3158 = vsel %vm1648, %v3122, %v3123
        %v3159 = vsel %vm1648, %v3121, %v3122
        %v3160 = vsel %vm1648, %v3120, %v3121
        %v3161 = vsel %vm1648, %v3119, %v3120
        %v3162 = vsel %vm1648, %v3118, %v3119
        %v3163 = vsel %vm1648, %v3117, %v3118
        %v3164 = vsel %vm1648, %v3140, %v3117
        %v3165 = vadd.f32 %v3093, %v3164
        %v3166 = vadd.f32 %v3094, %v3163
        %v3167 = vadd.f32 %v3095, %v3162
        %v3168 = vadd.f32 %v3096, %v3161
        %v3169 = vadd.f32 %v3097, %v3160
        %v3170 = vadd.f32 %v3098, %v3159
        %v3171 = vadd.f32 %v3099, %v3158
        %v3172 = vadd.f32 %v3100, %v3157
        %v3173 = vadd.f32 %v3101, %v3156
        %v3174 = vadd.f32 %v3102, %v3155
        %v3175 = vadd.f32 %v3103, %v3154
        %v3176 = vadd.f32 %v3104, %v3153
        %v3177 = vadd.f32 %v3105, %v3152
        %v3178 = vadd.f32 %v3106, %v3151
        %v3179 = vadd.f32 %v3107, %v3150
        %v3180 = vadd.f32 %v3108, %v3149
        %v3181 = vadd.f32 %v3109, %v3148
        %v3182 = vadd.f32 %v3110, %v3147
        %v3183 = vadd.f32 %v3111, %v3146
        %v3184 = vadd.f32 %v3112, %v3145
        %v3185 = vadd.f32 %v3113, %v3144
        %v3186 = vadd.f32 %v3114, %v3143
        %v3187 = vadd.f32 %v3115, %v3142
        %v3188 = vadd.f32 %v3116, %v3141
        %v3189 = vrot.slane %v2726, 4
        %v3190 = vrot.slane %v2730, 4
        %v3191 = vrot.slane %v2736, 4
        %v3192 = vrot.slane %v2740, 4
        %v3193 = vrot.slane %v2746, 4
        %v3194 = vrot.slane %v2750, 4
        %v3195 = vrot.slane %v2756, 4
        %v3196 = vrot.slane %v2760, 4
        %v3197 = vrot.slane %v2766, 4
        %v3198 = vrot.slane %v2770, 4
        %v3199 = vrot.slane %v2776, 4
        %v3200 = vrot.slane %v2780, 4
        %v3201 = vrot.slane %v2786, 4
        %v3202 = vrot.slane %v2790, 4
        %v3203 = vrot.slane %v2796, 4
        %v3204 = vrot.slane %v2800, 4
        %v3205 = vrot.slane %v2806, 4
        %v3206 = vrot.slane %v2810, 4
        %v3207 = vrot.slane %v2816, 4
        %v3208 = vrot.slane %v2820, 4
        %v3209 = vrot.slane %v2826, 4
        %v3210 = vrot.slane %v2830, 4
        %v3211 = vrot.slane %v2836, 4
        %v3212 = vrot.slane %v2840, 4
        %v3213 = vsel %vm1721, %v3211, %v3212
        %v3214 = vsel %vm1721, %v3210, %v3211
        %v3215 = vsel %vm1721, %v3209, %v3210
        %v3216 = vsel %vm1721, %v3208, %v3209
        %v3217 = vsel %vm1721, %v3207, %v3208
        %v3218 = vsel %vm1721, %v3206, %v3207
        %v3219 = vsel %vm1721, %v3205, %v3206
        %v3220 = vsel %vm1721, %v3204, %v3205
        %v3221 = vsel %vm1721, %v3203, %v3204
        %v3222 = vsel %vm1721, %v3202, %v3203
        %v3223 = vsel %vm1721, %v3201, %v3202
        %v3224 = vsel %vm1721, %v3200, %v3201
        %v3225 = vsel %vm1721, %v3199, %v3200
        %v3226 = vsel %vm1721, %v3198, %v3199
        %v3227 = vsel %vm1721, %v3197, %v3198
        %v3228 = vsel %vm1721, %v3196, %v3197
        %v3229 = vsel %vm1721, %v3195, %v3196
        %v3230 = vsel %vm1721, %v3194, %v3195
        %v3231 = vsel %vm1721, %v3193, %v3194
        %v3232 = vsel %vm1721, %v3192, %v3193
        %v3233 = vsel %vm1721, %v3191, %v3192
        %v3234 = vsel %vm1721, %v3190, %v3191
        %v3235 = vsel %vm1721, %v3189, %v3190
        %v3236 = vsel %vm1721, %v3212, %v3189
        %v3237 = vadd.f32 %v3165, %v3236
        %v3238 = vadd.f32 %v3166, %v3235
        %v3239 = vadd.f32 %v3167, %v3234
        %v3240 = vadd.f32 %v3168, %v3233
        %v3241 = vadd.f32 %v3169, %v3232
        %v3242 = vadd.f32 %v3170, %v3231
        %v3243 = vadd.f32 %v3171, %v3230
        %v3244 = vadd.f32 %v3172, %v3229
        %v3245 = vadd.f32 %v3173, %v3228
        %v3246 = vadd.f32 %v3174, %v3227
        %v3247 = vadd.f32 %v3175, %v3226
        %v3248 = vadd.f32 %v3176, %v3225
        %v3249 = vadd.f32 %v3177, %v3224
        %v3250 = vadd.f32 %v3178, %v3223
        %v3251 = vadd.f32 %v3179, %v3222
        %v3252 = vadd.f32 %v3180, %v3221
        %v3253 = vadd.f32 %v3181, %v3220
        %v3254 = vadd.f32 %v3182, %v3219
        %v3255 = vadd.f32 %v3183, %v3218
        %v3256 = vadd.f32 %v3184, %v3217
        %v3257 = vadd.f32 %v3185, %v3216
        %v3258 = vadd.f32 %v3186, %v3215
        %v3259 = vadd.f32 %v3187, %v3214
        %v3260 = vadd.f32 %v3188, %v3213
        %v3261 = vrot.slane %v2728, 3
        %v3262 = vrot.slane %v2732, 3
        %v3263 = vrot.slane %v2738, 3
        %v3264 = vrot.slane %v2742, 3
        %v3265 = vrot.slane %v2748, 3
        %v3266 = vrot.slane %v2752, 3
        %v3267 = vrot.slane %v2758, 3
        %v3268 = vrot.slane %v2762, 3
        %v3269 = vrot.slane %v2768, 3
        %v3270 = vrot.slane %v2772, 3
        %v3271 = vrot.slane %v2778, 3
        %v3272 = vrot.slane %v2782, 3
        %v3273 = vrot.slane %v2788, 3
        %v3274 = vrot.slane %v2792, 3
        %v3275 = vrot.slane %v2798, 3
        %v3276 = vrot.slane %v2802, 3
        %v3277 = vrot.slane %v2808, 3
        %v3278 = vrot.slane %v2812, 3
        %v3279 = vrot.slane %v2818, 3
        %v3280 = vrot.slane %v2822, 3
        %v3281 = vrot.slane %v2828, 3
        %v3282 = vrot.slane %v2832, 3
        %v3283 = vrot.slane %v2838, 3
        %v3284 = vrot.slane %v2842, 3
        %v3285 = vsel %vm1794, %v3283, %v3284
        %v3286 = vsel %vm1794, %v3282, %v3283
        %v3287 = vsel %vm1794, %v3281, %v3282
        %v3288 = vsel %vm1794, %v3280, %v3281
        %v3289 = vsel %vm1794, %v3279, %v3280
        %v3290 = vsel %vm1794, %v3278, %v3279
        %v3291 = vsel %vm1794, %v3277, %v3278
        %v3292 = vsel %vm1794, %v3276, %v3277
        %v3293 = vsel %vm1794, %v3275, %v3276
        %v3294 = vsel %vm1794, %v3274, %v3275
        %v3295 = vsel %vm1794, %v3273, %v3274
        %v3296 = vsel %vm1794, %v3272, %v3273
        %v3297 = vsel %vm1794, %v3271, %v3272
        %v3298 = vsel %vm1794, %v3270, %v3271
        %v3299 = vsel %vm1794, %v3269, %v3270
        %v3300 = vsel %vm1794, %v3268, %v3269
        %v3301 = vsel %vm1794, %v3267, %v3268
        %v3302 = vsel %vm1794, %v3266, %v3267
        %v3303 = vsel %vm1794, %v3265, %v3266
        %v3304 = vsel %vm1794, %v3264, %v3265
        %v3305 = vsel %vm1794, %v3263, %v3264
        %v3306 = vsel %vm1794, %v3262, %v3263
        %v3307 = vsel %vm1794, %v3261, %v3262
        %v3308 = vsel %vm1794, %v3284, %v3261
        %v3309 = vadd.f32 %v3237, %v3308
        %v3310 = vadd.f32 %v3238, %v3307
        %v3311 = vadd.f32 %v3239, %v3306
        %v3312 = vadd.f32 %v3240, %v3305
        %v3313 = vadd.f32 %v3241, %v3304
        %v3314 = vadd.f32 %v3242, %v3303
        %v3315 = vadd.f32 %v3243, %v3302
        %v3316 = vadd.f32 %v3244, %v3301
        %v3317 = vadd.f32 %v3245, %v3300
        %v3318 = vadd.f32 %v3246, %v3299
        %v3319 = vadd.f32 %v3247, %v3298
        %v3320 = vadd.f32 %v3248, %v3297
        %v3321 = vadd.f32 %v3249, %v3296
        %v3322 = vadd.f32 %v3250, %v3295
        %v3323 = vadd.f32 %v3251, %v3294
        %v3324 = vadd.f32 %v3252, %v3293
        %v3325 = vadd.f32 %v3253, %v3292
        %v3326 = vadd.f32 %v3254, %v3291
        %v3327 = vadd.f32 %v3255, %v3290
        %v3328 = vadd.f32 %v3256, %v3289
        %v3329 = vadd.f32 %v3257, %v3288
        %v3330 = vadd.f32 %v3258, %v3287
        %v3331 = vadd.f32 %v3259, %v3286
        %v3332 = vadd.f32 %v3260, %v3285
        %v3333 = vrot.slane %v2879, 2
        %v3334 = vrot.slane %v2882, 2
        %v3335 = vrot.slane %v2887, 2
        %v3336 = vrot.slane %v2890, 2
        %v3337 = vrot.slane %v2895, 2
        %v3338 = vrot.slane %v2898, 2
        %v3339 = vrot.slane %v2903, 2
        %v3340 = vrot.slane %v2906, 2
        %v3341 = vrot.slane %v2911, 2
        %v3342 = vrot.slane %v2914, 2
        %v3343 = vrot.slane %v2919, 2
        %v3344 = vrot.slane %v2922, 2
        %v3345 = vrot.slane %v2927, 2
        %v3346 = vrot.slane %v2930, 2
        %v3347 = vrot.slane %v2935, 2
        %v3348 = vrot.slane %v2938, 2
        %v3349 = vrot.slane %v2943, 2
        %v3350 = vrot.slane %v2946, 2
        %v3351 = vrot.slane %v2951, 2
        %v3352 = vrot.slane %v2954, 2
        %v3353 = vrot.slane %v2959, 2
        %v3354 = vrot.slane %v2962, 2
        %v3355 = vrot.slane %v2967, 2
        %v3356 = vrot.slane %v2970, 2
        %v3357 = vsel %vm1867, %v3355, %v3356
        %v3358 = vsel %vm1867, %v3354, %v3355
        %v3359 = vsel %vm1867, %v3353, %v3354
        %v3360 = vsel %vm1867, %v3352, %v3353
        %v3361 = vsel %vm1867, %v3351, %v3352
        %v3362 = vsel %vm1867, %v3350, %v3351
        %v3363 = vsel %vm1867, %v3349, %v3350
        %v3364 = vsel %vm1867, %v3348, %v3349
        %v3365 = vsel %vm1867, %v3347, %v3348
        %v3366 = vsel %vm1867, %v3346, %v3347
        %v3367 = vsel %vm1867, %v3345, %v3346
        %v3368 = vsel %vm1867, %v3344, %v3345
        %v3369 = vsel %vm1867, %v3343, %v3344
        %v3370 = vsel %vm1867, %v3342, %v3343
        %v3371 = vsel %vm1867, %v3341, %v3342
        %v3372 = vsel %vm1867, %v3340, %v3341
        %v3373 = vsel %vm1867, %v3339, %v3340
        %v3374 = vsel %vm1867, %v3338, %v3339
        %v3375 = vsel %vm1867, %v3337, %v3338
        %v3376 = vsel %vm1867, %v3336, %v3337
        %v3377 = vsel %vm1867, %v3335, %v3336
        %v3378 = vsel %vm1867, %v3334, %v3335
        %v3379 = vsel %vm1867, %v3333, %v3334
        %v3380 = vsel %vm1867, %v3356, %v3333
        %v3381 = vadd.f32 %v3309, %v3380
        %v3382 = vadd.f32 %v3310, %v3379
        %v3383 = vadd.f32 %v3311, %v3378
        %v3384 = vadd.f32 %v3312, %v3377
        %v3385 = vadd.f32 %v3313, %v3376
        %v3386 = vadd.f32 %v3314, %v3375
        %v3387 = vadd.f32 %v3315, %v3374
        %v3388 = vadd.f32 %v3316, %v3373
        %v3389 = vadd.f32 %v3317, %v3372
        %v3390 = vadd.f32 %v3318, %v3371
        %v3391 = vadd.f32 %v3319, %v3370
        %v3392 = vadd.f32 %v3320, %v3369
        %v3393 = vadd.f32 %v3321, %v3368
        %v3394 = vadd.f32 %v3322, %v3367
        %v3395 = vadd.f32 %v3323, %v3366
        %v3396 = vadd.f32 %v3324, %v3365
        %v3397 = vadd.f32 %v3325, %v3364
        %v3398 = vadd.f32 %v3326, %v3363
        %v3399 = vadd.f32 %v3327, %v3362
        %v3400 = vadd.f32 %v3328, %v3361
        %v3401 = vadd.f32 %v3329, %v3360
        %v3402 = vadd.f32 %v3330, %v3359
        %v3403 = vadd.f32 %v3331, %v3358
        %v3404 = vadd.f32 %v3332, %v3357
        %v3405 = vadd.f32 %v3381, %v504
        %v3406 = vadd.f32 %v3382, %v505
        %v3407 = vadd.f32 %v3383, %v506
        %v3408 = vadd.f32 %v3384, %v504
        %v3409 = vadd.f32 %v3385, %v505
        %v3410 = vadd.f32 %v3386, %v506
        %v3411 = vadd.f32 %v3387, %v504
        %v3412 = vadd.f32 %v3388, %v505
        %v3413 = vadd.f32 %v3389, %v506
        %v3414 = vadd.f32 %v3390, %v504
        %v3415 = vadd.f32 %v3391, %v505
        %v3416 = vadd.f32 %v3392, %v506
        %v3417 = vadd.f32 %v3393, %v504
        %v3418 = vadd.f32 %v3394, %v505
        %v3419 = vadd.f32 %v3395, %v506
        %v3420 = vadd.f32 %v3396, %v504
        %v3421 = vadd.f32 %v3397, %v505
        %v3422 = vadd.f32 %v3398, %v506
        %v3423 = vadd.f32 %v3399, %v504
        %v3424 = vadd.f32 %v3400, %v505
        %v3425 = vadd.f32 %v3401, %v506
        %v3426 = vadd.f32 %v3402, %v504
        %v3427 = vadd.f32 %v3403, %v505
        %v3428 = vadd.f32 %v3404, %v506
        %v3429 = vmax.f32 %v3405, %v3406
        %v3430 = vmax.f32 %v3429, %v3407
        %v3431 = vrot.slane %v3430, 4
        %v3432 = vmax.f32 %v3430, %v3431
        %v3433 = vrot.slane %v3432, 2
        %v3434 = vmax.f32 %v3432, %v3433
        %v3435 = vrot.slane %v3434, 1
        %v3436 = vmax.f32 %v3434, %v3435
        %v3437 = vmax.f32 %v3408, %v3409
        %v3438 = vmax.f32 %v3437, %v3410
        %v3439 = vrot.slane %v3438, 4
        %v3440 = vmax.f32 %v3438, %v3439
        %v3441 = vrot.slane %v3440, 2
        %v3442 = vmax.f32 %v3440, %v3441
        %v3443 = vrot.slane %v3442, 1
        %v3444 = vmax.f32 %v3442, %v3443
        %v3445 = vmax.f32 %v3411, %v3412
        %v3446 = vmax.f32 %v3445, %v3413
        %v3447 = vrot.slane %v3446, 4
        %v3448 = vmax.f32 %v3446, %v3447
        %v3449 = vrot.slane %v3448, 2
        %v3450 = vmax.f32 %v3448, %v3449
        %v3451 = vrot.slane %v3450, 1
        %v3452 = vmax.f32 %v3450, %v3451
        %v3453 = vmax.f32 %v3414, %v3415
        %v3454 = vmax.f32 %v3453, %v3416
        %v3455 = vrot.slane %v3454, 4
        %v3456 = vmax.f32 %v3454, %v3455
        %v3457 = vrot.slane %v3456, 2
        %v3458 = vmax.f32 %v3456, %v3457
        %v3459 = vrot.slane %v3458, 1
        %v3460 = vmax.f32 %v3458, %v3459
        %v3461 = vmax.f32 %v3417, %v3418
        %v3462 = vmax.f32 %v3461, %v3419
        %v3463 = vrot.slane %v3462, 4
        %v3464 = vmax.f32 %v3462, %v3463
        %v3465 = vrot.slane %v3464, 2
        %v3466 = vmax.f32 %v3464, %v3465
        %v3467 = vrot.slane %v3466, 1
        %v3468 = vmax.f32 %v3466, %v3467
        %v3469 = vmax.f32 %v3420, %v3421
        %v3470 = vmax.f32 %v3469, %v3422
        %v3471 = vrot.slane %v3470, 4
        %v3472 = vmax.f32 %v3470, %v3471
        %v3473 = vrot.slane %v3472, 2
        %v3474 = vmax.f32 %v3472, %v3473
        %v3475 = vrot.slane %v3474, 1
        %v3476 = vmax.f32 %v3474, %v3475
        %v3477 = vmax.f32 %v3423, %v3424
        %v3478 = vmax.f32 %v3477, %v3425
        %v3479 = vrot.slane %v3478, 4
        %v3480 = vmax.f32 %v3478, %v3479
        %v3481 = vrot.slane %v3480, 2
        %v3482 = vmax.f32 %v3480, %v3481
        %v3483 = vrot.slane %v3482, 1
        %v3484 = vmax.f32 %v3482, %v3483
        %v3485 = vmax.f32 %v3426, %v3427
        %v3486 = vmax.f32 %v3485, %v3428
        %v3487 = vrot.slane %v3486, 4
        %v3488 = vmax.f32 %v3486, %v3487
        %v3489 = vrot.slane %v3488, 2
        %v3490 = vmax.f32 %v3488, %v3489
        %v3491 = vrot.slane %v3490, 1
        %v3492 = vmax.f32 %v3490, %v3491
        %s3493 = scalar_lea.vmem %s429, 48 [#allocation2]
        %v3494 = vld [vmem:[%s3493] sm:$0xff]
        %v3495 = vld [vmem:[%s3493 + $0x8] sm:$0xff]
        %v3496 = vld [vmem:[%s3493 + $0x10] sm:$0xff]
        %v3497 = vld [vmem:[%s3493 + $0x90] sm:$0xff]
        %v3498 = vld [vmem:[%s3493 + $0x98] sm:$0xff]
        %v3499 = vld [vmem:[%s3493 + $0xa0] sm:$0xff]
        %v3500 = vld [vmem:[%s3493 + $0x120] sm:$0xff]
        %v3501 = vld [vmem:[%s3493 + $0x128] sm:$0xff]
        %v3502 = vld [vmem:[%s3493 + $0x130] sm:$0xff]
        %v3503 = vld [vmem:[%s3493 + $0x1b0] sm:$0xff]
        %v3504 = vld [vmem:[%s3493 + $0x1b8] sm:$0xff]
        %v3505 = vld [vmem:[%s3493 + $0x1c0] sm:$0xff]
        %v3506 = vld [vmem:[%s3493 + $0x240] sm:$0xff]
        %v3507 = vld [vmem:[%s3493 + $0x248] sm:$0xff]
        %v3508 = vld [vmem:[%s3493 + $0x250] sm:$0xff]
        %v3509 = vld [vmem:[%s3493 + $0x2d0] sm:$0xff]
        %v3510 = vld [vmem:[%s3493 + $0x2d8] sm:$0xff]
        %v3511 = vld [vmem:[%s3493 + $0x2e0] sm:$0xff]
        %v3512 = vld [vmem:[%s3493 + $0x360] sm:$0xff]
        %v3513 = vld [vmem:[%s3493 + $0x368] sm:$0xff]
        %v3514 = vld [vmem:[%s3493 + $0x370] sm:$0xff]
        %v3515 = vld [vmem:[%s3493 + $0x3f0] sm:$0xff]
        %v3516 = vld [vmem:[%s3493 + $0x3f8] sm:$0xff]
        %v3517 = vld [vmem:[%s3493 + $0x400] sm:$0xff]
        %v3518 = vpack.c.bf16 %v3495, %v3494
        %v3519 = vpack.c.bf16 %v3497, %v3496
        %v3520 = vpack.c.bf16 %v3499, %v3498
        %v3521 = vpack.c.bf16 %v3501, %v3500
        %v3522 = vpack.c.bf16 %v3503, %v3502
        %v3523 = vpack.c.bf16 %v3505, %v3504
        %v3524 = vpack.c.bf16 %v3507, %v3506
        %v3525 = vpack.c.bf16 %v3509, %v3508
        %v3526 = vpack.c.bf16 %v3511, %v3510
        %v3527 = vpack.c.bf16 %v3513, %v3512
        %v3528 = vpack.c.bf16 %v3515, %v3514
        %v3529 = vpack.c.bf16 %v3517, %v3516
        %s3530 = scalar_lea.vmem [#allocation5], 728
        %v3531 = vld [vmem:[%s3530] sm:$0xff]
        %v3532 = vld [vmem:[%s3530 + $0x8] sm:$0xff]
        %v3533 = vld [vmem:[%s3530 + $0x10] sm:$0xff]
        %v3534 = vld [vmem:[%s3530 + $0x18] sm:$0xf]
        %v3535 = vld [vmem:[%s3530 + $0x1c] sm:$0xff]
        %v3536 = vld [vmem:[%s3530 + $0x24] sm:$0xff]
        %v3537 = vld [vmem:[%s3530 + $0x2c] sm:$0xff]
        %v3538 = vld [vmem:[%s3530 + $0x34] sm:$0xf]
        %v3539 = vld [vmem:[%s3530 + $0x38] sm:$0xff]
        %v3540 = vld [vmem:[%s3530 + $0x40] sm:$0xff]
        %v3541 = vld [vmem:[%s3530 + $0x48] sm:$0xff]
        %v3542 = vld [vmem:[%s3530 + $0x50] sm:$0xf]
        %v3543 = vld [vmem:[%s3530 + $0x54] sm:$0xff]
        %v3544 = vld [vmem:[%s3530 + $0x5c] sm:$0xff]
        %v3545 = vld [vmem:[%s3530 + $0x64] sm:$0xff]
        %v3546 = vld [vmem:[%s3530 + $0x6c] sm:$0xf]
        %v3547 = vld [vmem:[%s3530 + $0x70] sm:$0xff]
        %v3548 = vld [vmem:[%s3530 + $0x78] sm:$0xff]
        %v3549 = vld [vmem:[%s3530 + $0x80] sm:$0xff]
        %v3550 = vld [vmem:[%s3530 + $0x88] sm:$0xf]
        %v3551 = vld [vmem:[%s3530 + $0x8c] sm:$0xff]
        %v3552 = vld [vmem:[%s3530 + $0x94] sm:$0xff]
        %v3553 = vld [vmem:[%s3530 + $0x9c] sm:$0xff]
        %v3554 = vld [vmem:[%s3530 + $0xa4] sm:$0xf]
        %v3555 = vld [vmem:[%s3530 + $0xa8] sm:$0xff]
        %v3556 = vld [vmem:[%s3530 + $0xb0] sm:$0xff]
        %v3557 = vld [vmem:[%s3530 + $0xb8] sm:$0xff]
        %v3558 = vld [vmem:[%s3530 + $0xc0] sm:$0xf]
        %v3559 = vld [vmem:[%s3530 + $0xc4] sm:$0xff]
        %v3560 = vld [vmem:[%s3530 + $0xcc] sm:$0xff]
        %v3561 = vld [vmem:[%s3530 + $0xd4] sm:$0xff]
        %v3562 = vld [vmem:[%s3530 + $0xdc] sm:$0xf]
        %v3563 = vld [vmem:[%s3530 + $0xe0] sm:$0xff]
        %v3564 = vld [vmem:[%s3530 + $0xe8] sm:$0xff]
        %v3565 = vld [vmem:[%s3530 + $0xf0] sm:$0xff]
        %v3566 = vld [vmem:[%s3530 + $0xf8] sm:$0xf]
        %v3567 = vld [vmem:[%s3530 + $0xfc] sm:$0xff]
        %v3568 = vld [vmem:[%s3530 + $0x104] sm:$0xff]
        %v3569 = vld [vmem:[%s3530 + $0x10c] sm:$0xff]
        %v3570 = vld [vmem:[%s3530 + $0x114] sm:$0xf]
        %v3571 = vld [vmem:[%s3530 + $0x118] sm:$0xff]
        %v3572 = vld [vmem:[%s3530 + $0x120] sm:$0xff]
        %v3573 = vld [vmem:[%s3530 + $0x128] sm:$0xff]
        %v3574 = vld [vmem:[%s3530 + $0x130] sm:$0xf]
        %v3575 = vld [vmem:[%s3530 + $0x134] sm:$0xff]
        %v3576 = vld [vmem:[%s3530 + $0x13c] sm:$0xff]
        %v3577 = vld [vmem:[%s3530 + $0x144] sm:$0xff]
        %v3578 = vld [vmem:[%s3530 + $0x14c] sm:$0xf]
        %v3579 = vld [vmem:[%s3530 + $0x150] sm:$0x33]
        %v3580 = vld [vmem:[%s3530 + $0x158] sm:$0x33]
        %v3581 = vld [vmem:[%s3530 + $0x160] sm:$0x33]
        %v3582 = vld [vmem:[%s3530 + $0x168] sm:$0x3]
        %v3635 = vunpack.c.l.b16 %v3531
        %v3636 = vunpack.c.h.b16 %v3531
        %v3637 = vunpack.c.l.b16 %v3532
        %v3638 = vunpack.c.h.b16 %v3532
        %v3639 = vunpack.c.l.b16 %v3533
        %v3640 = vunpack.c.h.b16 %v3533
        %v3641 = vunpack.c.l.b16 %v3534
        %v3642 = vunpack.c.l.b16 %v3535
        %v3643 = vunpack.c.h.b16 %v3535
        %v3644 = vunpack.c.l.b16 %v3536
        %v3645 = vunpack.c.h.b16 %v3536
        %v3646 = vunpack.c.l.b16 %v3537
        %v3647 = vunpack.c.h.b16 %v3537
        %v3648 = vunpack.c.l.b16 %v3538
        %v3649 = vunpack.c.l.b16 %v3539
        %v3650 = vunpack.c.h.b16 %v3539
        %v3651 = vunpack.c.l.b16 %v3540
        %v3652 = vunpack.c.h.b16 %v3540
        %v3653 = vunpack.c.l.b16 %v3541
        %v3654 = vunpack.c.h.b16 %v3541
        %v3655 = vunpack.c.l.b16 %v3542
        %v3656 = vunpack.c.l.b16 %v3543
        %v3657 = vunpack.c.h.b16 %v3543
        %v3658 = vunpack.c.l.b16 %v3544
        %v3659 = vunpack.c.h.b16 %v3544
        %v3660 = vunpack.c.l.b16 %v3545
        %v3661 = vunpack.c.h.b16 %v3545
        %v3662 = vunpack.c.l.b16 %v3546
        %v3663 = vunpack.c.l.b16 %v3547
        %v3664 = vunpack.c.h.b16 %v3547
        %v3665 = vunpack.c.l.b16 %v3548
        %v3666 = vunpack.c.h.b16 %v3548
        %v3667 = vunpack.c.l.b16 %v3549
        %v3668 = vunpack.c.h.b16 %v3549
        %v3669 = vunpack.c.l.b16 %v3550
        %v3670 = vunpack.c.l.b16 %v3551
        %v3671 = vunpack.c.h.b16 %v3551
        %v3672 = vunpack.c.l.b16 %v3552
        %v3673 = vunpack.c.h.b16 %v3552
        %v3674 = vunpack.c.l.b16 %v3553
        %v3675 = vunpack.c.h.b16 %v3553
        %v3676 = vunpack.c.l.b16 %v3554
        %v3677 = vunpack.c.l.b16 %v3555
        %v3678 = vunpack.c.h.b16 %v3555
        %v3679 = vunpack.c.l.b16 %v3556
        %v3680 = vunpack.c.h.b16 %v3556
        %v3681 = vunpack.c.l.b16 %v3557
        %v3682 = vunpack.c.h.b16 %v3557
        %v3683 = vunpack.c.l.b16 %v3558
        %v3684 = vunpack.c.l.b16 %v3559
        %v3685 = vunpack.c.h.b16 %v3559
        %v3686 = vunpack.c.l.b16 %v3560
        %v3687 = vunpack.c.h.b16 %v3560
        %v3688 = vunpack.c.l.b16 %v3561
        %v3689 = vunpack.c.h.b16 %v3561
        %v3690 = vunpack.c.l.b16 %v3562
        %v3691 = vunpack.c.l.b16 %v3563
        %v3692 = vunpack.c.h.b16 %v3563
        %v3693 = vunpack.c.l.b16 %v3564
        %v3694 = vunpack.c.h.b16 %v3564
        %v3695 = vunpack.c.l.b16 %v3565
        %v3696 = vunpack.c.h.b16 %v3565
        %v3697 = vunpack.c.l.b16 %v3566
        %v3698 = vunpack.c.l.b16 %v3567
        %v3699 = vunpack.c.h.b16 %v3567
        %v3700 = vunpack.c.l.b16 %v3568
        %v3701 = vunpack.c.h.b16 %v3568
        %v3702 = vunpack.c.l.b16 %v3569
        %v3703 = vunpack.c.h.b16 %v3569
        %v3704 = vunpack.c.l.b16 %v3570
        %v3705 = vunpack.c.l.b16 %v3571
        %v3706 = vunpack.c.h.b16 %v3571
        %v3707 = vunpack.c.l.b16 %v3572
        %v3708 = vunpack.c.h.b16 %v3572
        %v3709 = vunpack.c.l.b16 %v3573
        %v3710 = vunpack.c.h.b16 %v3573
        %v3711 = vunpack.c.l.b16 %v3574
        %v3712 = vunpack.c.l.b16 %v3575
        %v3713 = vunpack.c.h.b16 %v3575
        %v3714 = vunpack.c.l.b16 %v3576
        %v3715 = vunpack.c.h.b16 %v3576
        %v3716 = vunpack.c.l.b16 %v3577
        %v3717 = vunpack.c.h.b16 %v3577
        %v3718 = vunpack.c.l.b16 %v3578
        %v3719 = vunpack.c.l.b16 %v3579
        %v3720 = vunpack.c.h.b16 %v3579
        %v3721 = vunpack.c.l.b16 %v3580
        %v3722 = vunpack.c.h.b16 %v3580
        %v3723 = vunpack.c.l.b16 %v3581
        %v3724 = vunpack.c.h.b16 %v3581
        %v3725 = vunpack.c.l.b16 %v3582
        %v3726 = vpack.c.b16 %v3642, %v3635
        %v3727 = vpack.c.b16 %v3643, %v3636
        %v3728 = vpack.c.b16 %v3644, %v3637
        %v3729 = vpack.c.b16 %v3645, %v3638
        %v3730 = vpack.c.b16 %v3646, %v3639
        %v3731 = vpack.c.b16 %v3647, %v3640
        %v3732 = vpack.c.b16 %v3648, %v3641
        %v3733 = vpack.c.b16 %v3656, %v3649
        %v3734 = vpack.c.b16 %v3657, %v3650
        %v3735 = vpack.c.b16 %v3658, %v3651
        %v3736 = vpack.c.b16 %v3659, %v3652
        %v3737 = vpack.c.b16 %v3660, %v3653
        %v3738 = vpack.c.b16 %v3661, %v3654
        %v3739 = vpack.c.b16 %v3662, %v3655
        %v3740 = vpack.c.b16 %v3670, %v3663
        %v3741 = vpack.c.b16 %v3671, %v3664
        %v3742 = vpack.c.b16 %v3672, %v3665
        %v3743 = vpack.c.b16 %v3673, %v3666
        %v3744 = vpack.c.b16 %v3674, %v3667
        %v3745 = vpack.c.b16 %v3675, %v3668
        %v3746 = vpack.c.b16 %v3676, %v3669
        %v3747 = vpack.c.b16 %v3684, %v3677
        %v3748 = vpack.c.b16 %v3685, %v3678
        %v3749 = vpack.c.b16 %v3686, %v3679
        %v3750 = vpack.c.b16 %v3687, %v3680
        %v3751 = vpack.c.b16 %v3688, %v3681
        %v3752 = vpack.c.b16 %v3689, %v3682
        %v3753 = vpack.c.b16 %v3690, %v3683
        %v3754 = vpack.c.b16 %v3698, %v3691
        %v3755 = vpack.c.b16 %v3699, %v3692
        %v3756 = vpack.c.b16 %v3700, %v3693
        %v3757 = vpack.c.b16 %v3701, %v3694
        %v3758 = vpack.c.b16 %v3702, %v3695
        %v3759 = vpack.c.b16 %v3703, %v3696
        %v3760 = vpack.c.b16 %v3704, %v3697
        %v3761 = vpack.c.b16 %v3712, %v3705
        %v3762 = vpack.c.b16 %v3713, %v3706
        %v3763 = vpack.c.b16 %v3714, %v3707
        %v3764 = vpack.c.b16 %v3715, %v3708
        %v3765 = vpack.c.b16 %v3716, %v3709
        %v3766 = vpack.c.b16 %v3717, %v3710
        %v3767 = vpack.c.b16 %v3718, %v3711
        %v3768 = vpack.c.b16 %v3719, %v3719
        %v3769 = vpack.c.b16 %v3720, %v3720
        %v3770 = vpack.c.b16 %v3721, %v3721
        %v3771 = vpack.c.b16 %v3722, %v3722
        %v3772 = vpack.c.b16 %v3723, %v3723
        %v3773 = vpack.c.b16 %v3724, %v3724
        %v3774 = vpack.c.b16 %v3725, %v3725
        %v3818 = vsel %vm829, %v3518, 0
        %v3821 = vsel %vm829, %v3519, 0
        %v3824 = vsel %vm829, %v3520, 0
        %v3827 = vsel %vm829, %v3521, 0
        %v3830 = vsel %vm829, %v3522, 0
        %v3833 = vsel %vm829, %v3523, 0
        %v3836 = vsel %vm829, %v3524, 0
        %v3839 = vsel %vm829, %v3525, 0
        %v3842 = vsel %vm829, %v3526, 0
        %v3845 = vsel %vm829, %v3527, 0
        %v3848 = vsel %vm829, %v3528, 0
        %v3851 = vsel %vm829, %v3529, 0
        %v3854 = vsel %vm866, %v3768, 0
        %v3857 = vsel %vm866, %v3769, 0
        %v3860 = vsel %vm866, %v3770, 0
        %v3863 = vsel %vm866, %v3771, 0
        %v3866 = vsel %vm866, %v3772, 0
        %v3869 = vsel %vm866, %v3773, 0
        %v3872 = vsel %vm866, %v3774, 0
        %3874 = vmatprep.subr.bf16.mxu0 %v3727
        %3875 = vmatpush1.bf16.msra.mxu0 %v3726
        %3876 = vmatprep.subr.bf16.mxu0 %v3734
        %3877 = vmatpush1.bf16.msra.mxu0 %v3733
        %3878 = vmatprep.subr.bf16.mxu0 %v3741
        %3879 = vmatpush1.bf16.msra.mxu0 %v3740
        %3880 = vmatprep.subr.bf16.mxu0 %v3748
        %3881 = vmatpush1.bf16.msra.mxu0 %v3747
        %3882 = vmatprep.subr.bf16.mxu0 %v3755
        %3883 = vmatpush1.bf16.msra.mxu0 %v3754
        %3884 = vmatprep.subr.bf16.mxu0 %v3762
        %3885 = vmatpush1.bf16.msra.mxu0 %v3761
        %3886 = vmatprep.subr.bf16.mxu0 %v3857
        %3887 = vmatpush1.bf16.msra.mxu0 %v3854
        %3888 = vmatprep.subr.bf16.mxu0 0
        %3889 = vmatpush1.bf16.msra.mxu0 0
        %3890 = vmatprep.subr.bf16.mxu0 0
        %3891 = vmatpush1.bf16.msra.mxu0 0
        %3892 = vmatprep.subr.bf16.mxu0 0
        %3893 = vmatpush1.bf16.msra.mxu0 0
        %3894 = vmatprep.subr.bf16.mxu0 0
        %3895 = vmatpush1.bf16.msra.mxu0 0
        %3896 = vmatprep.subr.bf16.mxu0 0
        %3897 = vmatpush1.bf16.msra.mxu0 0
        %3898 = vmatprep.subr.bf16.mxu0 0
        %3899 = vmatpush1.bf16.msra.mxu0 0
        %3900 = vmatprep.subr.bf16.mxu0 0
        %3901 = vmatpush1.bf16.msra.mxu0 0
        %3902 = vmatprep.subr.bf16.mxu0 0
        %3903 = vmatpush1.bf16.msra.mxu0 0
        %3904 = vmatprep.subr.bf16.mxu0 0
        %3905 = vmatpush1.bf16.msra.mxu0 0
        %3906 = vmatprep.mubr.bf16.mxu0 0
        %3907 = vmatmul.mubr.bf16.gmra.mrb[0].mxu0 %v3818
        %v3908 = vpop.f32.mrb[0].mxu0
        %v3909 = vadd.f32 0.0, %v3908
        %v3910 = vpop.f32.mrb[0].mxu0
        %v3911 = vadd.f32 0.0, %v3910
        %v3912 = vpop.f32.mrb[0].mxu0
        %v3913 = vadd.f32 0.0, %v3912
        %v3914 = vpop.f32.mrb[0].mxu0
        %v3915 = vadd.f32 0.0, %v3914
        %3916 = vmatprep.mubr.bf16.mxu0 0
        %3917 = vmatmul.mubr.bf16.gmra.mrb[0].mxu0 %v3821
        %v3918 = vpop.f32.mrb[0].mxu0
        %v3919 = vadd.f32 0.0, %v3918
        %v3920 = vpop.f32.mrb[0].mxu0
        %v3921 = vadd.f32 0.0, %v3920
        %v3922 = vpop.f32.mrb[0].mxu0
        %v3923 = vadd.f32 0.0, %v3922
        %v3924 = vpop.f32.mrb[0].mxu0
        %v3925 = vadd.f32 0.0, %v3924
        %3926 = vmatprep.mubr.bf16.mxu0 0
        %3927 = vmatmul.mubr.bf16.gmra.mrb[0].mxu0 %v3824
        %v3928 = vpop.f32.mrb[0].mxu0
        %v3929 = vadd.f32 0.0, %v3928
        %v3930 = vpop.f32.mrb[0].mxu0
        %v3931 = vadd.f32 0.0, %v3930
        %v3932 = vpop.f32.mrb[0].mxu0
        %v3933 = vadd.f32 0.0, %v3932
        %v3934 = vpop.f32.mrb[0].mxu0
        %v3935 = vadd.f32 0.0, %v3934
        %3936 = vmatprep.mubr.bf16.mxu0 0
        %3937 = vmatmul.mubr.bf16.gmra.mrb[0].mxu0 %v3827
        %v3938 = vpop.f32.mrb[0].mxu0
        %v3939 = vadd.f32 0.0, %v3938
        %v3940 = vpop.f32.mrb[0].mxu0
        %v3941 = vadd.f32 0.0, %v3940
        %v3942 = vpop.f32.mrb[0].mxu0
        %v3943 = vadd.f32 0.0, %v3942
        %v3944 = vpop.f32.mrb[0].mxu0
        %v3945 = vadd.f32 0.0, %v3944
        %3946 = vmatprep.mubr.bf16.mxu0 0
        %3947 = vmatmul.mubr.bf16.gmra.mrb[0].mxu0 %v3830
        %v3948 = vpop.f32.mrb[0].mxu0
        %v3949 = vadd.f32 0.0, %v3948
        %v3950 = vpop.f32.mrb[0].mxu0
        %v3951 = vadd.f32 0.0, %v3950
        %v3952 = vpop.f32.mrb[0].mxu0
        %v3953 = vadd.f32 0.0, %v3952
        %v3954 = vpop.f32.mrb[0].mxu0
        %v3955 = vadd.f32 0.0, %v3954
        %3956 = vmatprep.mubr.bf16.mxu0 0
        %3957 = vmatmul.mubr.bf16.gmra.mrb[0].mxu0 %v3833
        %v3958 = vpop.f32.mrb[0].mxu0
        %v3959 = vadd.f32 0.0, %v3958
        %v3960 = vpop.f32.mrb[0].mxu0
        %v3961 = vadd.f32 0.0, %v3960
        %v3962 = vpop.f32.mrb[0].mxu0
        %v3963 = vadd.f32 0.0, %v3962
        %v3964 = vpop.f32.mrb[0].mxu0
        %v3965 = vadd.f32 0.0, %v3964
        %3966 = vmatprep.mubr.bf16.mxu0 0
        %3967 = vmatmul.mubr.bf16.gmra.mrb[0].mxu0 %v3836
        %v3968 = vpop.f32.mrb[0].mxu0
        %v3969 = vadd.f32 0.0, %v3968
        %v3970 = vpop.f32.mrb[0].mxu0
        %v3971 = vadd.f32 0.0, %v3970
        %v3972 = vpop.f32.mrb[0].mxu0
        %v3973 = vadd.f32 0.0, %v3972
        %v3974 = vpop.f32.mrb[0].mxu0
        %v3975 = vadd.f32 0.0, %v3974
        %3976 = vmatprep.mubr.bf16.mxu0 0
        %3977 = vmatmul.mubr.bf16.gmra.mrb[0].mxu0 %v3839
        %v3978 = vpop.f32.mrb[0].mxu0
        %v3979 = vadd.f32 0.0, %v3978
        %v3980 = vpop.f32.mrb[0].mxu0
        %v3981 = vadd.f32 0.0, %v3980
        %v3982 = vpop.f32.mrb[0].mxu0
        %v3983 = vadd.f32 0.0, %v3982
        %v3984 = vpop.f32.mrb[0].mxu0
        %v3985 = vadd.f32 0.0, %v3984
        %3986 = vmatprep.mubr.bf16.mxu0 0
        %3987 = vmatmul.mubr.bf16.gmra.mrb[0].mxu0 %v3842
        %v3988 = vpop.f32.mrb[0].mxu0
        %v3989 = vadd.f32 0.0, %v3988
        %v3990 = vpop.f32.mrb[0].mxu0
        %v3991 = vadd.f32 0.0, %v3990
        %v3992 = vpop.f32.mrb[0].mxu0
        %v3993 = vadd.f32 0.0, %v3992
        %v3994 = vpop.f32.mrb[0].mxu0
        %v3995 = vadd.f32 0.0, %v3994
        %3996 = vmatprep.mubr.bf16.mxu0 0
        %3997 = vmatmul.mubr.bf16.gmra.mrb[0].mxu0 %v3845
        %v3998 = vpop.f32.mrb[0].mxu0
        %v3999 = vadd.f32 0.0, %v3998
        %v4000 = vpop.f32.mrb[0].mxu0
        %v4001 = vadd.f32 0.0, %v4000
        %v4002 = vpop.f32.mrb[0].mxu0
        %v4003 = vadd.f32 0.0, %v4002
        %v4004 = vpop.f32.mrb[0].mxu0
        %v4005 = vadd.f32 0.0, %v4004
        %4006 = vmatprep.mubr.bf16.mxu0 0
        %4007 = vmatmul.mubr.bf16.gmra.mrb[0].mxu0 %v3848
        %v4008 = vpop.f32.mrb[0].mxu0
        %v4009 = vadd.f32 0.0, %v4008
        %v4010 = vpop.f32.mrb[0].mxu0
        %v4011 = vadd.f32 0.0, %v4010
        %v4012 = vpop.f32.mrb[0].mxu0
        %v4013 = vadd.f32 0.0, %v4012
        %v4014 = vpop.f32.mrb[0].mxu0
        %v4015 = vadd.f32 0.0, %v4014
        %4016 = vmatprep.mubr.bf16.mxu0 0
        %4017 = vmatmul.mubr.bf16.gmra.mrb[0].mxu0 %v3851
        %v4018 = vpop.f32.mrb[0].mxu0
        %v4019 = vadd.f32 0.0, %v4018
        %v4020 = vpop.f32.mrb[0].mxu0
        %v4021 = vadd.f32 0.0, %v4020
        %v4022 = vpop.f32.mrb[0].mxu0
        %v4023 = vadd.f32 0.0, %v4022
        %v4024 = vpop.f32.mrb[0].mxu0
        %v4025 = vadd.f32 0.0, %v4024
        %4026 = vdwg.mxu0
        %4027 = vmatprep.subr.bf16.mxu0 %v3729
        %4028 = vmatpush1.bf16.msra.mxu0 %v3728
        %4029 = vmatprep.subr.bf16.mxu0 %v3736
        %4030 = vmatpush1.bf16.msra.mxu0 %v3735
        %4031 = vmatprep.subr.bf16.mxu0 %v3743
        %4032 = vmatpush1.bf16.msra.mxu0 %v3742
        %4033 = vmatprep.subr.bf16.mxu0 %v3750
        %4034 = vmatpush1.bf16.msra.mxu0 %v3749
        %4035 = vmatprep.subr.bf16.mxu0 %v3757
        %4036 = vmatpush1.bf16.msra.mxu0 %v3756
        %4037 = vmatprep.subr.bf16.mxu0 %v3764
        %4038 = vmatpush1.bf16.msra.mxu0 %v3763
        %4039 = vmatprep.subr.bf16.mxu0 %v3863
        %4040 = vmatpush1.bf16.msra.mxu0 %v3860
        %4041 = vmatprep.subr.bf16.mxu0 0
        %4042 = vmatpush1.bf16.msra.mxu0 0
        %4043 = vmatprep.subr.bf16.mxu0 0
        %4044 = vmatpush1.bf16.msra.mxu0 0
        %4045 = vmatprep.subr.bf16.mxu0 0
        %4046 = vmatpush1.bf16.msra.mxu0 0
        %4047 = vmatprep.subr.bf16.mxu0 0
        %4048 = vmatpush1.bf16.msra.mxu0 0
        %4049 = vmatprep.subr.bf16.mxu0 0
        %4050 = vmatpush1.bf16.msra.mxu0 0
        %4051 = vmatprep.subr.bf16.mxu0 0
        %4052 = vmatpush1.bf16.msra.mxu0 0
        %4053 = vmatprep.subr.bf16.mxu0 0
        %4054 = vmatpush1.bf16.msra.mxu0 0
        %4055 = vmatprep.subr.bf16.mxu0 0
        %4056 = vmatpush1.bf16.msra.mxu0 0
        %4057 = vmatprep.subr.bf16.mxu0 0
        %4058 = vmatpush1.bf16.msra.mxu0 0
        %4059 = vmatprep.mubr.bf16.mxu0 0
        %4060 = vmatmul.mubr.bf16.gmra.mrb[0].mxu0 %v3818
        %v4061 = vpop.f32.mrb[0].mxu0
        %v4062 = vadd.f32 0.0, %v4061
        %v4063 = vpop.f32.mrb[0].mxu0
        %v4064 = vadd.f32 0.0, %v4063
        %v4065 = vpop.f32.mrb[0].mxu0
        %v4066 = vadd.f32 0.0, %v4065
        %v4067 = vpop.f32.mrb[0].mxu0
        %v4068 = vadd.f32 0.0, %v4067
        %4069 = vmatprep.mubr.bf16.mxu0 0
        %4070 = vmatmul.mubr.bf16.gmra.mrb[0].mxu0 %v3821
        %v4071 = vpop.f32.mrb[0].mxu0
        %v4072 = vadd.f32 0.0, %v4071
        %v4073 = vpop.f32.mrb[0].mxu0
        %v4074 = vadd.f32 0.0, %v4073
        %v4075 = vpop.f32.mrb[0].mxu0
        %v4076 = vadd.f32 0.0, %v4075
        %v4077 = vpop.f32.mrb[0].mxu0
        %v4078 = vadd.f32 0.0, %v4077
        %4079 = vmatprep.mubr.bf16.mxu0 0
        %4080 = vmatmul.mubr.bf16.gmra.mrb[0].mxu0 %v3824
        %v4081 = vpop.f32.mrb[0].mxu0
        %v4082 = vadd.f32 0.0, %v4081
        %v4083 = vpop.f32.mrb[0].mxu0
        %v4084 = vadd.f32 0.0, %v4083
        %v4085 = vpop.f32.mrb[0].mxu0
        %v4086 = vadd.f32 0.0, %v4085
        %v4087 = vpop.f32.mrb[0].mxu0
        %v4088 = vadd.f32 0.0, %v4087
        %4089 = vmatprep.mubr.bf16.mxu0 0
        %4090 = vmatmul.mubr.bf16.gmra.mrb[0].mxu0 %v3827
        %v4091 = vpop.f32.mrb[0].mxu0
        %v4092 = vadd.f32 0.0, %v4091
        %v4093 = vpop.f32.mrb[0].mxu0
        %v4094 = vadd.f32 0.0, %v4093
        %v4095 = vpop.f32.mrb[0].mxu0
        %v4096 = vadd.f32 0.0, %v4095
        %v4097 = vpop.f32.mrb[0].mxu0
        %v4098 = vadd.f32 0.0, %v4097
        %4099 = vmatprep.mubr.bf16.mxu0 0
        %4100 = vmatmul.mubr.bf16.gmra.mrb[0].mxu0 %v3830
        %v4101 = vpop.f32.mrb[0].mxu0
        %v4102 = vadd.f32 0.0, %v4101
        %v4103 = vpop.f32.mrb[0].mxu0
        %v4104 = vadd.f32 0.0, %v4103
        %v4105 = vpop.f32.mrb[0].mxu0
        %v4106 = vadd.f32 0.0, %v4105
        %v4107 = vpop.f32.mrb[0].mxu0
        %v4108 = vadd.f32 0.0, %v4107
        %4109 = vmatprep.mubr.bf16.mxu0 0
        %4110 = vmatmul.mubr.bf16.gmra.mrb[0].mxu0 %v3833
        %v4111 = vpop.f32.mrb[0].mxu0
        %v4112 = vadd.f32 0.0, %v4111
        %v4113 = vpop.f32.mrb[0].mxu0
        %v4114 = vadd.f32 0.0, %v4113
        %v4115 = vpop.f32.mrb[0].mxu0
        %v4116 = vadd.f32 0.0, %v4115
        %v4117 = vpop.f32.mrb[0].mxu0
        %v4118 = vadd.f32 0.0, %v4117
        %4119 = vmatprep.mubr.bf16.mxu0 0
        %4120 = vmatmul.mubr.bf16.gmra.mrb[0].mxu0 %v3836
        %v4121 = vpop.f32.mrb[0].mxu0
        %v4122 = vadd.f32 0.0, %v4121
        %v4123 = vpop.f32.mrb[0].mxu0
        %v4124 = vadd.f32 0.0, %v4123
        %v4125 = vpop.f32.mrb[0].mxu0
        %v4126 = vadd.f32 0.0, %v4125
        %v4127 = vpop.f32.mrb[0].mxu0
        %v4128 = vadd.f32 0.0, %v4127
        %4129 = vmatprep.mubr.bf16.mxu0 0
        %4130 = vmatmul.mubr.bf16.gmra.mrb[0].mxu0 %v3839
        %v4131 = vpop.f32.mrb[0].mxu0
        %v4132 = vadd.f32 0.0, %v4131
        %v4133 = vpop.f32.mrb[0].mxu0
        %v4134 = vadd.f32 0.0, %v4133
        %v4135 = vpop.f32.mrb[0].mxu0
        %v4136 = vadd.f32 0.0, %v4135
        %v4137 = vpop.f32.mrb[0].mxu0
        %v4138 = vadd.f32 0.0, %v4137
        %4139 = vmatprep.mubr.bf16.mxu0 0
        %4140 = vmatmul.mubr.bf16.gmra.mrb[0].mxu0 %v3842
        %v4141 = vpop.f32.mrb[0].mxu0
        %v4142 = vadd.f32 0.0, %v4141
        %v4143 = vpop.f32.mrb[0].mxu0
        %v4144 = vadd.f32 0.0, %v4143
        %v4145 = vpop.f32.mrb[0].mxu0
        %v4146 = vadd.f32 0.0, %v4145
        %v4147 = vpop.f32.mrb[0].mxu0
        %v4148 = vadd.f32 0.0, %v4147
        %4149 = vmatprep.mubr.bf16.mxu0 0
        %4150 = vmatmul.mubr.bf16.gmra.mrb[0].mxu0 %v3845
        %v4151 = vpop.f32.mrb[0].mxu0
        %v4152 = vadd.f32 0.0, %v4151
        %v4153 = vpop.f32.mrb[0].mxu0
        %v4154 = vadd.f32 0.0, %v4153
        %v4155 = vpop.f32.mrb[0].mxu0
        %v4156 = vadd.f32 0.0, %v4155
        %v4157 = vpop.f32.mrb[0].mxu0
        %v4158 = vadd.f32 0.0, %v4157
        %4159 = vmatprep.mubr.bf16.mxu0 0
        %4160 = vmatmul.mubr.bf16.gmra.mrb[0].mxu0 %v3848
        %v4161 = vpop.f32.mrb[0].mxu0
        %v4162 = vadd.f32 0.0, %v4161
        %v4163 = vpop.f32.mrb[0].mxu0
        %v4164 = vadd.f32 0.0, %v4163
        %v4165 = vpop.f32.mrb[0].mxu0
        %v4166 = vadd.f32 0.0, %v4165
        %v4167 = vpop.f32.mrb[0].mxu0
        %v4168 = vadd.f32 0.0, %v4167
        %4169 = vmatprep.mubr.bf16.mxu0 0
        %4170 = vmatmul.mubr.bf16.gmra.mrb[0].mxu0 %v3851
        %v4171 = vpop.f32.mrb[0].mxu0
        %v4172 = vadd.f32 0.0, %v4171
        %v4173 = vpop.f32.mrb[0].mxu0
        %v4174 = vadd.f32 0.0, %v4173
        %v4175 = vpop.f32.mrb[0].mxu0
        %v4176 = vadd.f32 0.0, %v4175
        %v4177 = vpop.f32.mrb[0].mxu0
        %v4178 = vadd.f32 0.0, %v4177
        %4179 = vdwg.mxu0
        %4180 = vmatprep.subr.bf16.mxu0 %v3731
        %4181 = vmatpush1.bf16.msra.mxu0 %v3730
        %4182 = vmatprep.subr.bf16.mxu0 %v3738
        %4183 = vmatpush1.bf16.msra.mxu0 %v3737
        %4184 = vmatprep.subr.bf16.mxu0 %v3745
        %4185 = vmatpush1.bf16.msra.mxu0 %v3744
        %4186 = vmatprep.subr.bf16.mxu0 %v3752
        %4187 = vmatpush1.bf16.msra.mxu0 %v3751
        %4188 = vmatprep.subr.bf16.mxu0 %v3759
        %4189 = vmatpush1.bf16.msra.mxu0 %v3758
        %4190 = vmatprep.subr.bf16.mxu0 %v3766
        %4191 = vmatpush1.bf16.msra.mxu0 %v3765
        %4192 = vmatprep.subr.bf16.mxu0 %v3869
        %4193 = vmatpush1.bf16.msra.mxu0 %v3866
        %4194 = vmatprep.subr.bf16.mxu0 0
        %4195 = vmatpush1.bf16.msra.mxu0 0
        %4196 = vmatprep.subr.bf16.mxu0 0
        %4197 = vmatpush1.bf16.msra.mxu0 0
        %4198 = vmatprep.subr.bf16.mxu0 0
        %4199 = vmatpush1.bf16.msra.mxu0 0
        %4200 = vmatprep.subr.bf16.mxu0 0
        %4201 = vmatpush1.bf16.msra.mxu0 0
        %4202 = vmatprep.subr.bf16.mxu0 0
        %4203 = vmatpush1.bf16.msra.mxu0 0
        %4204 = vmatprep.subr.bf16.mxu0 0
        %4205 = vmatpush1.bf16.msra.mxu0 0
        %4206 = vmatprep.subr.bf16.mxu0 0
        %4207 = vmatpush1.bf16.msra.mxu0 0
        %4208 = vmatprep.subr.bf16.mxu0 0
        %4209 = vmatpush1.bf16.msra.mxu0 0
        %4210 = vmatprep.subr.bf16.mxu0 0
        %4211 = vmatpush1.bf16.msra.mxu0 0
        %4212 = vmatprep.mubr.bf16.mxu0 0
        %4213 = vmatmul.mubr.bf16.gmra.mrb[0].mxu0 %v3818
        %v4214 = vpop.f32.mrb[0].mxu0
        %v4215 = vadd.f32 0.0, %v4214
        %v4216 = vpop.f32.mrb[0].mxu0
        %v4217 = vadd.f32 0.0, %v4216
        %v4218 = vpop.f32.mrb[0].mxu0
        %v4219 = vadd.f32 0.0, %v4218
        %v4220 = vpop.f32.mrb[0].mxu0
        %v4221 = vadd.f32 0.0, %v4220
        %4222 = vmatprep.mubr.bf16.mxu0 0
        %4223 = vmatmul.mubr.bf16.gmra.mrb[0].mxu0 %v3821
        %v4224 = vpop.f32.mrb[0].mxu0
        %v4225 = vadd.f32 0.0, %v4224
        %v4226 = vpop.f32.mrb[0].mxu0
        %v4227 = vadd.f32 0.0, %v4226
        %v4228 = vpop.f32.mrb[0].mxu0
        %v4229 = vadd.f32 0.0, %v4228
        %v4230 = vpop.f32.mrb[0].mxu0
        %v4231 = vadd.f32 0.0, %v4230
        %4232 = vmatprep.mubr.bf16.mxu0 0
        %4233 = vmatmul.mubr.bf16.gmra.mrb[0].mxu0 %v3824
        %v4234 = vpop.f32.mrb[0].mxu0
        %v4235 = vadd.f32 0.0, %v4234
        %v4236 = vpop.f32.mrb[0].mxu0
        %v4237 = vadd.f32 0.0, %v4236
        %v4238 = vpop.f32.mrb[0].mxu0
        %v4239 = vadd.f32 0.0, %v4238
        %v4240 = vpop.f32.mrb[0].mxu0
        %v4241 = vadd.f32 0.0, %v4240
        %4242 = vmatprep.mubr.bf16.mxu0 0
        %4243 = vmatmul.mubr.bf16.gmra.mrb[0].mxu0 %v3827
        %v4244 = vpop.f32.mrb[0].mxu0
        %v4245 = vadd.f32 0.0, %v4244
        %v4246 = vpop.f32.mrb[0].mxu0
        %v4247 = vadd.f32 0.0, %v4246
        %v4248 = vpop.f32.mrb[0].mxu0
        %v4249 = vadd.f32 0.0, %v4248
        %v4250 = vpop.f32.mrb[0].mxu0
        %v4251 = vadd.f32 0.0, %v4250
        %4252 = vmatprep.mubr.bf16.mxu0 0
        %4253 = vmatmul.mubr.bf16.gmra.mrb[0].mxu0 %v3830
        %v4254 = vpop.f32.mrb[0].mxu0
        %v4255 = vadd.f32 0.0, %v4254
        %v4256 = vpop.f32.mrb[0].mxu0
        %v4257 = vadd.f32 0.0, %v4256
        %v4258 = vpop.f32.mrb[0].mxu0
        %v4259 = vadd.f32 0.0, %v4258
        %v4260 = vpop.f32.mrb[0].mxu0
        %v4261 = vadd.f32 0.0, %v4260
        %4262 = vmatprep.mubr.bf16.mxu0 0
        %4263 = vmatmul.mubr.bf16.gmra.mrb[0].mxu0 %v3833
        %v4264 = vpop.f32.mrb[0].mxu0
        %v4265 = vadd.f32 0.0, %v4264
        %v4266 = vpop.f32.mrb[0].mxu0
        %v4267 = vadd.f32 0.0, %v4266
        %v4268 = vpop.f32.mrb[0].mxu0
        %v4269 = vadd.f32 0.0, %v4268
        %v4270 = vpop.f32.mrb[0].mxu0
        %v4271 = vadd.f32 0.0, %v4270
        %4272 = vmatprep.mubr.bf16.mxu0 0
        %4273 = vmatmul.mubr.bf16.gmra.mrb[0].mxu0 %v3836
        %v4274 = vpop.f32.mrb[0].mxu0
        %v4275 = vadd.f32 0.0, %v4274
        %v4276 = vpop.f32.mrb[0].mxu0
        %v4277 = vadd.f32 0.0, %v4276
        %v4278 = vpop.f32.mrb[0].mxu0
        %v4279 = vadd.f32 0.0, %v4278
        %v4280 = vpop.f32.mrb[0].mxu0
        %v4281 = vadd.f32 0.0, %v4280
        %4282 = vmatprep.mubr.bf16.mxu0 0
        %4283 = vmatmul.mubr.bf16.gmra.mrb[0].mxu0 %v3839
        %v4284 = vpop.f32.mrb[0].mxu0
        %v4285 = vadd.f32 0.0, %v4284
        %v4286 = vpop.f32.mrb[0].mxu0
        %v4287 = vadd.f32 0.0, %v4286
        %v4288 = vpop.f32.mrb[0].mxu0
        %v4289 = vadd.f32 0.0, %v4288
        %v4290 = vpop.f32.mrb[0].mxu0
        %v4291 = vadd.f32 0.0, %v4290
        %4292 = vmatprep.mubr.bf16.mxu0 0
        %4293 = vmatmul.mubr.bf16.gmra.mrb[0].mxu0 %v3842
        %v4294 = vpop.f32.mrb[0].mxu0
        %v4295 = vadd.f32 0.0, %v4294
        %v4296 = vpop.f32.mrb[0].mxu0
        %v4297 = vadd.f32 0.0, %v4296
        %v4298 = vpop.f32.mrb[0].mxu0
        %v4299 = vadd.f32 0.0, %v4298
        %v4300 = vpop.f32.mrb[0].mxu0
        %v4301 = vadd.f32 0.0, %v4300
        %4302 = vmatprep.mubr.bf16.mxu0 0
        %4303 = vmatmul.mubr.bf16.gmra.mrb[0].mxu0 %v3845
        %v4304 = vpop.f32.mrb[0].mxu0
        %v4305 = vadd.f32 0.0, %v4304
        %v4306 = vpop.f32.mrb[0].mxu0
        %v4307 = vadd.f32 0.0, %v4306
        %v4308 = vpop.f32.mrb[0].mxu0
        %v4309 = vadd.f32 0.0, %v4308
        %v4310 = vpop.f32.mrb[0].mxu0
        %v4311 = vadd.f32 0.0, %v4310
        %4312 = vmatprep.mubr.bf16.mxu0 0
        %4313 = vmatmul.mubr.bf16.gmra.mrb[0].mxu0 %v3848
        %v4314 = vpop.f32.mrb[0].mxu0
        %v4315 = vadd.f32 0.0, %v4314
        %v4316 = vpop.f32.mrb[0].mxu0
        %v4317 = vadd.f32 0.0, %v4316
        %v4318 = vpop.f32.mrb[0].mxu0
        %v4319 = vadd.f32 0.0, %v4318
        %v4320 = vpop.f32.mrb[0].mxu0
        %v4321 = vadd.f32 0.0, %v4320
        %4322 = vmatprep.mubr.bf16.mxu0 0
        %4323 = vmatmul.mubr.bf16.gmra.mrb[0].mxu0 %v3851
        %v4324 = vpop.f32.mrb[0].mxu0
        %v4325 = vadd.f32 0.0, %v4324
        %v4326 = vpop.f32.mrb[0].mxu0
        %v4327 = vadd.f32 0.0, %v4326
        %v4328 = vpop.f32.mrb[0].mxu0
        %v4329 = vadd.f32 0.0, %v4328
        %v4330 = vpop.f32.mrb[0].mxu0
        %v4331 = vadd.f32 0.0, %v4330
        %4332 = vdwg.mxu0
        %4333 = vmatprep.subr.bf16.mxu0 0
        %4334 = vmatpush1.bf16.msra.mxu0 %v3732
        %4335 = vmatprep.subr.bf16.mxu0 0
        %4336 = vmatpush1.bf16.msra.mxu0 %v3739
        %4337 = vmatprep.subr.bf16.mxu0 0
        %4338 = vmatpush1.bf16.msra.mxu0 %v3746
        %4339 = vmatprep.subr.bf16.mxu0 0
        %4340 = vmatpush1.bf16.msra.mxu0 %v3753
        %4341 = vmatprep.subr.bf16.mxu0 0
        %4342 = vmatpush1.bf16.msra.mxu0 %v3760
        %4343 = vmatprep.subr.bf16.mxu0 0
        %4344 = vmatpush1.bf16.msra.mxu0 %v3767
        %4345 = vmatprep.subr.bf16.mxu0 0
        %4346 = vmatpush1.bf16.msra.mxu0 %v3872
        %4347 = vmatprep.subr.bf16.mxu0 0
        %4348 = vmatpush1.bf16.msra.mxu0 0
        %4349 = vmatprep.subr.bf16.mxu0 0
        %4350 = vmatpush1.bf16.msra.mxu0 0
        %4351 = vmatprep.subr.bf16.mxu0 0
        %4352 = vmatpush1.bf16.msra.mxu0 0
        %4353 = vmatprep.subr.bf16.mxu0 0
        %4354 = vmatpush1.bf16.msra.mxu0 0
        %4355 = vmatprep.subr.bf16.mxu0 0
        %4356 = vmatpush1.bf16.msra.mxu0 0
        %4357 = vmatprep.subr.bf16.mxu0 0
        %4358 = vmatpush1.bf16.msra.mxu0 0
        %4359 = vmatprep.subr.bf16.mxu0 0
        %4360 = vmatpush1.bf16.msra.mxu0 0
        %4361 = vmatprep.subr.bf16.mxu0 0
        %4362 = vmatpush1.bf16.msra.mxu0 0
        %4363 = vmatprep.subr.bf16.mxu0 0
        %4364 = vmatpush1.bf16.msra.mxu0 0
        %4365 = vmatprep.mubr.bf16.mxu0 0
        %4366 = vmatmul.mubr.bf16.gmra.mrb[0].mxu0 %v3818
        %v4367 = vpop.f32.mrb[0].mxu0
        %v4368 = vadd.f32 0.0, %v4367
        %v4369 = vpop.f32.mrb[0].mxu0
        %v4370 = vpop.f32.mrb[0].mxu0
        %v4371 = vadd.f32 0.0, %v4370
        %v4372 = vpop.f32.mrb[0].mxu0
        %4373 = vmatprep.mubr.bf16.mxu0 0
        %4374 = vmatmul.mubr.bf16.gmra.mrb[0].mxu0 %v3821
        %v4375 = vpop.f32.mrb[0].mxu0
        %v4376 = vadd.f32 0.0, %v4375
        %v4377 = vpop.f32.mrb[0].mxu0
        %v4378 = vpop.f32.mrb[0].mxu0
        %v4379 = vadd.f32 0.0, %v4378
        %v4380 = vpop.f32.mrb[0].mxu0
        %4381 = vmatprep.mubr.bf16.mxu0 0
        %4382 = vmatmul.mubr.bf16.gmra.mrb[0].mxu0 %v3824
        %v4383 = vpop.f32.mrb[0].mxu0
        %v4384 = vadd.f32 0.0, %v4383
        %v4385 = vpop.f32.mrb[0].mxu0
        %v4386 = vpop.f32.mrb[0].mxu0
        %v4387 = vadd.f32 0.0, %v4386
        %v4388 = vpop.f32.mrb[0].mxu0
        %4389 = vmatprep.mubr.bf16.mxu0 0
        %4390 = vmatmul.mubr.bf16.gmra.mrb[0].mxu0 %v3827
        %v4391 = vpop.f32.mrb[0].mxu0
        %v4392 = vadd.f32 0.0, %v4391
        %v4393 = vpop.f32.mrb[0].mxu0
        %v4394 = vpop.f32.mrb[0].mxu0
        %v4395 = vadd.f32 0.0, %v4394
        %v4396 = vpop.f32.mrb[0].mxu0
        %4397 = vmatprep.mubr.bf16.mxu0 0
        %4398 = vmatmul.mubr.bf16.gmra.mrb[0].mxu0 %v3830
        %v4399 = vpop.f32.mrb[0].mxu0
        %v4400 = vadd.f32 0.0, %v4399
        %v4401 = vpop.f32.mrb[0].mxu0
        %v4402 = vpop.f32.mrb[0].mxu0
        %v4403 = vadd.f32 0.0, %v4402
        %v4404 = vpop.f32.mrb[0].mxu0
        %4405 = vmatprep.mubr.bf16.mxu0 0
        %4406 = vmatmul.mubr.bf16.gmra.mrb[0].mxu0 %v3833
        %v4407 = vpop.f32.mrb[0].mxu0
        %v4408 = vadd.f32 0.0, %v4407
        %v4409 = vpop.f32.mrb[0].mxu0
        %v4410 = vpop.f32.mrb[0].mxu0
        %v4411 = vadd.f32 0.0, %v4410
        %v4412 = vpop.f32.mrb[0].mxu0
        %4413 = vmatprep.mubr.bf16.mxu0 0
        %4414 = vmatmul.mubr.bf16.gmra.mrb[0].mxu0 %v3836
        %v4415 = vpop.f32.mrb[0].mxu0
        %v4416 = vadd.f32 0.0, %v4415
        %v4417 = vpop.f32.mrb[0].mxu0
        %v4418 = vpop.f32.mrb[0].mxu0
        %v4419 = vadd.f32 0.0, %v4418
        %v4420 = vpop.f32.mrb[0].mxu0
        %4421 = vmatprep.mubr.bf16.mxu0 0
        %4422 = vmatmul.mubr.bf16.gmra.mrb[0].mxu0 %v3839
        %v4423 = vpop.f32.mrb[0].mxu0
        %v4424 = vadd.f32 0.0, %v4423
        %v4425 = vpop.f32.mrb[0].mxu0
        %v4426 = vpop.f32.mrb[0].mxu0
        %v4427 = vadd.f32 0.0, %v4426
        %v4428 = vpop.f32.mrb[0].mxu0
        %4429 = vmatprep.mubr.bf16.mxu0 0
        %4430 = vmatmul.mubr.bf16.gmra.mrb[0].mxu0 %v3842
        %v4431 = vpop.f32.mrb[0].mxu0
        %v4432 = vadd.f32 0.0, %v4431
        %v4433 = vpop.f32.mrb[0].mxu0
        %v4434 = vpop.f32.mrb[0].mxu0
        %v4435 = vadd.f32 0.0, %v4434
        %v4436 = vpop.f32.mrb[0].mxu0
        %4437 = vmatprep.mubr.bf16.mxu0 0
        %4438 = vmatmul.mubr.bf16.gmra.mrb[0].mxu0 %v3845
        %v4439 = vpop.f32.mrb[0].mxu0
        %v4440 = vadd.f32 0.0, %v4439
        %v4441 = vpop.f32.mrb[0].mxu0
        %v4442 = vpop.f32.mrb[0].mxu0
        %v4443 = vadd.f32 0.0, %v4442
        %v4444 = vpop.f32.mrb[0].mxu0
        %4445 = vmatprep.mubr.bf16.mxu0 0
        %4446 = vmatmul.mubr.bf16.gmra.mrb[0].mxu0 %v3848
        %v4447 = vpop.f32.mrb[0].mxu0
        %v4448 = vadd.f32 0.0, %v4447
        %v4449 = vpop.f32.mrb[0].mxu0
        %v4450 = vpop.f32.mrb[0].mxu0
        %v4451 = vadd.f32 0.0, %v4450
        %v4452 = vpop.f32.mrb[0].mxu0
        %4453 = vmatprep.mubr.bf16.mxu0 0
        %4454 = vmatmul.mubr.bf16.gmra.mrb[0].mxu0 %v3851
        %v4455 = vpop.f32.mrb[0].mxu0
        %v4456 = vadd.f32 0.0, %v4455
        %v4457 = vpop.f32.mrb[0].mxu0
        %v4458 = vpop.f32.mrb[0].mxu0
        %v4459 = vadd.f32 0.0, %v4458
        %v4460 = vpop.f32.mrb[0].mxu0
        %4461 = vdwg.mxu0
        %v4462 = vrot.slane %v3911, 7
        %v4463 = vrot.slane %v3915, 7
        %v4464 = vrot.slane %v3921, 7
        %v4465 = vrot.slane %v3925, 7
        %v4466 = vrot.slane %v3931, 7
        %v4467 = vrot.slane %v3935, 7
        %v4468 = vrot.slane %v3941, 7
        %v4469 = vrot.slane %v3945, 7
        %v4470 = vrot.slane %v3951, 7
        %v4471 = vrot.slane %v3955, 7
        %v4472 = vrot.slane %v3961, 7
        %v4473 = vrot.slane %v3965, 7
        %v4474 = vrot.slane %v3971, 7
        %v4475 = vrot.slane %v3975, 7
        %v4476 = vrot.slane %v3981, 7
        %v4477 = vrot.slane %v3985, 7
        %v4478 = vrot.slane %v3991, 7
        %v4479 = vrot.slane %v3995, 7
        %v4480 = vrot.slane %v4001, 7
        %v4481 = vrot.slane %v4005, 7
        %v4482 = vrot.slane %v4011, 7
        %v4483 = vrot.slane %v4015, 7
        %v4484 = vrot.slane %v4021, 7
        %v4485 = vrot.slane %v4025, 7
        %v4486 = vsel %vm1502, %v4484, %v4485
        %v4487 = vsel %vm1502, %v4483, %v4484
        %v4488 = vsel %vm1502, %v4482, %v4483
        %v4489 = vsel %vm1502, %v4481, %v4482
        %v4490 = vsel %vm1502, %v4480, %v4481
        %v4491 = vsel %vm1502, %v4479, %v4480
        %v4492 = vsel %vm1502, %v4478, %v4479
        %v4493 = vsel %vm1502, %v4477, %v4478
        %v4494 = vsel %vm1502, %v4476, %v4477
        %v4495 = vsel %vm1502, %v4475, %v4476
        %v4496 = vsel %vm1502, %v4474, %v4475
        %v4497 = vsel %vm1502, %v4473, %v4474
        %v4498 = vsel %vm1502, %v4472, %v4473
        %v4499 = vsel %vm1502, %v4471, %v4472
        %v4500 = vsel %vm1502, %v4470, %v4471
        %v4501 = vsel %vm1502, %v4469, %v4470
        %v4502 = vsel %vm1502, %v4468, %v4469
        %v4503 = vsel %vm1502, %v4467, %v4468
        %v4504 = vsel %vm1502, %v4466, %v4467
        %v4505 = vsel %vm1502, %v4465, %v4466
        %v4506 = vsel %vm1502, %v4464, %v4465
        %v4507 = vsel %vm1502, %v4463, %v4464
        %v4508 = vsel %vm1502, %v4462, %v4463
        %v4509 = vsel %vm1502, %v4485, %v4462
        %v4510 = vadd.f32 %v3909, %v4509
        %v4511 = vadd.f32 %v3913, %v4508
        %v4512 = vadd.f32 %v3919, %v4507
        %v4513 = vadd.f32 %v3923, %v4506
        %v4514 = vadd.f32 %v3929, %v4505
        %v4515 = vadd.f32 %v3933, %v4504
        %v4516 = vadd.f32 %v3939, %v4503
        %v4517 = vadd.f32 %v3943, %v4502
        %v4518 = vadd.f32 %v3949, %v4501
        %v4519 = vadd.f32 %v3953, %v4500
        %v4520 = vadd.f32 %v3959, %v4499
        %v4521 = vadd.f32 %v3963, %v4498
        %v4522 = vadd.f32 %v3969, %v4497
        %v4523 = vadd.f32 %v3973, %v4496
        %v4524 = vadd.f32 %v3979, %v4495
        %v4525 = vadd.f32 %v3983, %v4494
        %v4526 = vadd.f32 %v3989, %v4493
        %v4527 = vadd.f32 %v3993, %v4492
        %v4528 = vadd.f32 %v3999, %v4491
        %v4529 = vadd.f32 %v4003, %v4490
        %v4530 = vadd.f32 %v4009, %v4489
        %v4531 = vadd.f32 %v4013, %v4488
        %v4532 = vadd.f32 %v4019, %v4487
        %v4533 = vadd.f32 %v4023, %v4486
        %v4534 = vrot.slane %v4062, 6
        %v4535 = vrot.slane %v4066, 6
        %v4536 = vrot.slane %v4072, 6
        %v4537 = vrot.slane %v4076, 6
        %v4538 = vrot.slane %v4082, 6
        %v4539 = vrot.slane %v4086, 6
        %v4540 = vrot.slane %v4092, 6
        %v4541 = vrot.slane %v4096, 6
        %v4542 = vrot.slane %v4102, 6
        %v4543 = vrot.slane %v4106, 6
        %v4544 = vrot.slane %v4112, 6
        %v4545 = vrot.slane %v4116, 6
        %v4546 = vrot.slane %v4122, 6
        %v4547 = vrot.slane %v4126, 6
        %v4548 = vrot.slane %v4132, 6
        %v4549 = vrot.slane %v4136, 6
        %v4550 = vrot.slane %v4142, 6
        %v4551 = vrot.slane %v4146, 6
        %v4552 = vrot.slane %v4152, 6
        %v4553 = vrot.slane %v4156, 6
        %v4554 = vrot.slane %v4162, 6
        %v4555 = vrot.slane %v4166, 6
        %v4556 = vrot.slane %v4172, 6
        %v4557 = vrot.slane %v4176, 6
        %v4558 = vsel %vm1575, %v4556, %v4557
        %v4559 = vsel %vm1575, %v4555, %v4556
        %v4560 = vsel %vm1575, %v4554, %v4555
        %v4561 = vsel %vm1575, %v4553, %v4554
        %v4562 = vsel %vm1575, %v4552, %v4553
        %v4563 = vsel %vm1575, %v4551, %v4552
        %v4564 = vsel %vm1575, %v4550, %v4551
        %v4565 = vsel %vm1575, %v4549, %v4550
        %v4566 = vsel %vm1575, %v4548, %v4549
        %v4567 = vsel %vm1575, %v4547, %v4548
        %v4568 = vsel %vm1575, %v4546, %v4547
        %v4569 = vsel %vm1575, %v4545, %v4546
        %v4570 = vsel %vm1575, %v4544, %v4545
        %v4571 = vsel %vm1575, %v4543, %v4544
        %v4572 = vsel %vm1575, %v4542, %v4543
        %v4573 = vsel %vm1575, %v4541, %v4542
        %v4574 = vsel %vm1575, %v4540, %v4541
        %v4575 = vsel %vm1575, %v4539, %v4540
        %v4576 = vsel %vm1575, %v4538, %v4539
        %v4577 = vsel %vm1575, %v4537, %v4538
        %v4578 = vsel %vm1575, %v4536, %v4537
        %v4579 = vsel %vm1575, %v4535, %v4536
        %v4580 = vsel %vm1575, %v4534, %v4535
        %v4581 = vsel %vm1575, %v4557, %v4534
        %v4582 = vadd.f32 %v4510, %v4581
        %v4583 = vadd.f32 %v4511, %v4580
        %v4584 = vadd.f32 %v4512, %v4579
        %v4585 = vadd.f32 %v4513, %v4578
        %v4586 = vadd.f32 %v4514, %v4577
        %v4587 = vadd.f32 %v4515, %v4576
        %v4588 = vadd.f32 %v4516, %v4575
        %v4589 = vadd.f32 %v4517, %v4574
        %v4590 = vadd.f32 %v4518, %v4573
        %v4591 = vadd.f32 %v4519, %v4572
        %v4592 = vadd.f32 %v4520, %v4571
        %v4593 = vadd.f32 %v4521, %v4570
        %v4594 = vadd.f32 %v4522, %v4569
        %v4595 = vadd.f32 %v4523, %v4568
        %v4596 = vadd.f32 %v4524, %v4567
        %v4597 = vadd.f32 %v4525, %v4566
        %v4598 = vadd.f32 %v4526, %v4565
        %v4599 = vadd.f32 %v4527, %v4564
        %v4600 = vadd.f32 %v4528, %v4563
        %v4601 = vadd.f32 %v4529, %v4562
        %v4602 = vadd.f32 %v4530, %v4561
        %v4603 = vadd.f32 %v4531, %v4560
        %v4604 = vadd.f32 %v4532, %v4559
        %v4605 = vadd.f32 %v4533, %v4558
        %v4606 = vrot.slane %v4064, 5
        %v4607 = vrot.slane %v4068, 5
        %v4608 = vrot.slane %v4074, 5
        %v4609 = vrot.slane %v4078, 5
        %v4610 = vrot.slane %v4084, 5
        %v4611 = vrot.slane %v4088, 5
        %v4612 = vrot.slane %v4094, 5
        %v4613 = vrot.slane %v4098, 5
        %v4614 = vrot.slane %v4104, 5
        %v4615 = vrot.slane %v4108, 5
        %v4616 = vrot.slane %v4114, 5
        %v4617 = vrot.slane %v4118, 5
        %v4618 = vrot.slane %v4124, 5
        %v4619 = vrot.slane %v4128, 5
        %v4620 = vrot.slane %v4134, 5
        %v4621 = vrot.slane %v4138, 5
        %v4622 = vrot.slane %v4144, 5
        %v4623 = vrot.slane %v4148, 5
        %v4624 = vrot.slane %v4154, 5
        %v4625 = vrot.slane %v4158, 5
        %v4626 = vrot.slane %v4164, 5
        %v4627 = vrot.slane %v4168, 5
        %v4628 = vrot.slane %v4174, 5
        %v4629 = vrot.slane %v4178, 5
        %v4630 = vsel %vm1648, %v4628, %v4629
        %v4631 = vsel %vm1648, %v4627, %v4628
        %v4632 = vsel %vm1648, %v4626, %v4627
        %v4633 = vsel %vm1648, %v4625, %v4626
        %v4634 = vsel %vm1648, %v4624, %v4625
        %v4635 = vsel %vm1648, %v4623, %v4624
        %v4636 = vsel %vm1648, %v4622, %v4623
        %v4637 = vsel %vm1648, %v4621, %v4622
        %v4638 = vsel %vm1648, %v4620, %v4621
        %v4639 = vsel %vm1648, %v4619, %v4620
        %v4640 = vsel %vm1648, %v4618, %v4619
        %v4641 = vsel %vm1648, %v4617, %v4618
        %v4642 = vsel %vm1648, %v4616, %v4617
        %v4643 = vsel %vm1648, %v4615, %v4616
        %v4644 = vsel %vm1648, %v4614, %v4615
        %v4645 = vsel %vm1648, %v4613, %v4614
        %v4646 = vsel %vm1648, %v4612, %v4613
        %v4647 = vsel %vm1648, %v4611, %v4612
        %v4648 = vsel %vm1648, %v4610, %v4611
        %v4649 = vsel %vm1648, %v4609, %v4610
        %v4650 = vsel %vm1648, %v4608, %v4609
        %v4651 = vsel %vm1648, %v4607, %v4608
        %v4652 = vsel %vm1648, %v4606, %v4607
        %v4653 = vsel %vm1648, %v4629, %v4606
        %v4654 = vadd.f32 %v4582, %v4653
        %v4655 = vadd.f32 %v4583, %v4652
        %v4656 = vadd.f32 %v4584, %v4651
        %v4657 = vadd.f32 %v4585, %v4650
        %v4658 = vadd.f32 %v4586, %v4649
        %v4659 = vadd.f32 %v4587, %v4648
        %v4660 = vadd.f32 %v4588, %v4647
        %v4661 = vadd.f32 %v4589, %v4646
        %v4662 = vadd.f32 %v4590, %v4645
        %v4663 = vadd.f32 %v4591, %v4644
        %v4664 = vadd.f32 %v4592, %v4643
        %v4665 = vadd.f32 %v4593, %v4642
        %v4666 = vadd.f32 %v4594, %v4641
        %v4667 = vadd.f32 %v4595, %v4640
        %v4668 = vadd.f32 %v4596, %v4639
        %v4669 = vadd.f32 %v4597, %v4638
        %v4670 = vadd.f32 %v4598, %v4637
        %v4671 = vadd.f32 %v4599, %v4636
        %v4672 = vadd.f32 %v4600, %v4635
        %v4673 = vadd.f32 %v4601, %v4634
        %v4674 = vadd.f32 %v4602, %v4633
        %v4675 = vadd.f32 %v4603, %v4632
        %v4676 = vadd.f32 %v4604, %v4631
        %v4677 = vadd.f32 %v4605, %v4630
        %v4678 = vrot.slane %v4215, 4
        %v4679 = vrot.slane %v4219, 4
        %v4680 = vrot.slane %v4225, 4
        %v4681 = vrot.slane %v4229, 4
        %v4682 = vrot.slane %v4235, 4
        %v4683 = vrot.slane %v4239, 4
        %v4684 = vrot.slane %v4245, 4
        %v4685 = vrot.slane %v4249, 4
        %v4686 = vrot.slane %v4255, 4
        %v4687 = vrot.slane %v4259, 4
        %v4688 = vrot.slane %v4265, 4
        %v4689 = vrot.slane %v4269, 4
        %v4690 = vrot.slane %v4275, 4
        %v4691 = vrot.slane %v4279, 4
        %v4692 = vrot.slane %v4285, 4
        %v4693 = vrot.slane %v4289, 4
        %v4694 = vrot.slane %v4295, 4
        %v4695 = vrot.slane %v4299, 4
        %v4696 = vrot.slane %v4305, 4
        %v4697 = vrot.slane %v4309, 4
        %v4698 = vrot.slane %v4315, 4
        %v4699 = vrot.slane %v4319, 4
        %v4700 = vrot.slane %v4325, 4
        %v4701 = vrot.slane %v4329, 4
        %v4702 = vsel %vm1721, %v4700, %v4701
        %v4703 = vsel %vm1721, %v4699, %v4700
        %v4704 = vsel %vm1721, %v4698, %v4699
        %v4705 = vsel %vm1721, %v4697, %v4698
        %v4706 = vsel %vm1721, %v4696, %v4697
        %v4707 = vsel %vm1721, %v4695, %v4696
        %v4708 = vsel %vm1721, %v4694, %v4695
        %v4709 = vsel %vm1721, %v4693, %v4694
        %v4710 = vsel %vm1721, %v4692, %v4693
        %v4711 = vsel %vm1721, %v4691, %v4692
        %v4712 = vsel %vm1721, %v4690, %v4691
        %v4713 = vsel %vm1721, %v4689, %v4690
        %v4714 = vsel %vm1721, %v4688, %v4689
        %v4715 = vsel %vm1721, %v4687, %v4688
        %v4716 = vsel %vm1721, %v4686, %v4687
        %v4717 = vsel %vm1721, %v4685, %v4686
        %v4718 = vsel %vm1721, %v4684, %v4685
        %v4719 = vsel %vm1721, %v4683, %v4684
        %v4720 = vsel %vm1721, %v4682, %v4683
        %v4721 = vsel %vm1721, %v4681, %v4682
        %v4722 = vsel %vm1721, %v4680, %v4681
        %v4723 = vsel %vm1721, %v4679, %v4680
        %v4724 = vsel %vm1721, %v4678, %v4679
        %v4725 = vsel %vm1721, %v4701, %v4678
        %v4726 = vadd.f32 %v4654, %v4725
        %v4727 = vadd.f32 %v4655, %v4724
        %v4728 = vadd.f32 %v4656, %v4723
        %v4729 = vadd.f32 %v4657, %v4722
        %v4730 = vadd.f32 %v4658, %v4721
        %v4731 = vadd.f32 %v4659, %v4720
        %v4732 = vadd.f32 %v4660, %v4719
        %v4733 = vadd.f32 %v4661, %v4718
        %v4734 = vadd.f32 %v4662, %v4717
        %v4735 = vadd.f32 %v4663, %v4716
        %v4736 = vadd.f32 %v4664, %v4715
        %v4737 = vadd.f32 %v4665, %v4714
        %v4738 = vadd.f32 %v4666, %v4713
        %v4739 = vadd.f32 %v4667, %v4712
        %v4740 = vadd.f32 %v4668, %v4711
        %v4741 = vadd.f32 %v4669, %v4710
        %v4742 = vadd.f32 %v4670, %v4709
        %v4743 = vadd.f32 %v4671, %v4708
        %v4744 = vadd.f32 %v4672, %v4707
        %v4745 = vadd.f32 %v4673, %v4706
        %v4746 = vadd.f32 %v4674, %v4705
        %v4747 = vadd.f32 %v4675, %v4704
        %v4748 = vadd.f32 %v4676, %v4703
        %v4749 = vadd.f32 %v4677, %v4702
        %v4750 = vrot.slane %v4217, 3
        %v4751 = vrot.slane %v4221, 3
        %v4752 = vrot.slane %v4227, 3
        %v4753 = vrot.slane %v4231, 3
        %v4754 = vrot.slane %v4237, 3
        %v4755 = vrot.slane %v4241, 3
        %v4756 = vrot.slane %v4247, 3
        %v4757 = vrot.slane %v4251, 3
        %v4758 = vrot.slane %v4257, 3
        %v4759 = vrot.slane %v4261, 3
        %v4760 = vrot.slane %v4267, 3
        %v4761 = vrot.slane %v4271, 3
        %v4762 = vrot.slane %v4277, 3
        %v4763 = vrot.slane %v4281, 3
        %v4764 = vrot.slane %v4287, 3
        %v4765 = vrot.slane %v4291, 3
        %v4766 = vrot.slane %v4297, 3
        %v4767 = vrot.slane %v4301, 3
        %v4768 = vrot.slane %v4307, 3
        %v4769 = vrot.slane %v4311, 3
        %v4770 = vrot.slane %v4317, 3
        %v4771 = vrot.slane %v4321, 3
        %v4772 = vrot.slane %v4327, 3
        %v4773 = vrot.slane %v4331, 3
        %v4774 = vsel %vm1794, %v4772, %v4773
        %v4775 = vsel %vm1794, %v4771, %v4772
        %v4776 = vsel %vm1794, %v4770, %v4771
        %v4777 = vsel %vm1794, %v4769, %v4770
        %v4778 = vsel %vm1794, %v4768, %v4769
        %v4779 = vsel %vm1794, %v4767, %v4768
        %v4780 = vsel %vm1794, %v4766, %v4767
        %v4781 = vsel %vm1794, %v4765, %v4766
        %v4782 = vsel %vm1794, %v4764, %v4765
        %v4783 = vsel %vm1794, %v4763, %v4764
        %v4784 = vsel %vm1794, %v4762, %v4763
        %v4785 = vsel %vm1794, %v4761, %v4762
        %v4786 = vsel %vm1794, %v4760, %v4761
        %v4787 = vsel %vm1794, %v4759, %v4760
        %v4788 = vsel %vm1794, %v4758, %v4759
        %v4789 = vsel %vm1794, %v4757, %v4758
        %v4790 = vsel %vm1794, %v4756, %v4757
        %v4791 = vsel %vm1794, %v4755, %v4756
        %v4792 = vsel %vm1794, %v4754, %v4755
        %v4793 = vsel %vm1794, %v4753, %v4754
        %v4794 = vsel %vm1794, %v4752, %v4753
        %v4795 = vsel %vm1794, %v4751, %v4752
        %v4796 = vsel %vm1794, %v4750, %v4751
        %v4797 = vsel %vm1794, %v4773, %v4750
        %v4798 = vadd.f32 %v4726, %v4797
        %v4799 = vadd.f32 %v4727, %v4796
        %v4800 = vadd.f32 %v4728, %v4795
        %v4801 = vadd.f32 %v4729, %v4794
        %v4802 = vadd.f32 %v4730, %v4793
        %v4803 = vadd.f32 %v4731, %v4792
        %v4804 = vadd.f32 %v4732, %v4791
        %v4805 = vadd.f32 %v4733, %v4790
        %v4806 = vadd.f32 %v4734, %v4789
        %v4807 = vadd.f32 %v4735, %v4788
        %v4808 = vadd.f32 %v4736, %v4787
        %v4809 = vadd.f32 %v4737, %v4786
        %v4810 = vadd.f32 %v4738, %v4785
        %v4811 = vadd.f32 %v4739, %v4784
        %v4812 = vadd.f32 %v4740, %v4783
        %v4813 = vadd.f32 %v4741, %v4782
        %v4814 = vadd.f32 %v4742, %v4781
        %v4815 = vadd.f32 %v4743, %v4780
        %v4816 = vadd.f32 %v4744, %v4779
        %v4817 = vadd.f32 %v4745, %v4778
        %v4818 = vadd.f32 %v4746, %v4777
        %v4819 = vadd.f32 %v4747, %v4776
        %v4820 = vadd.f32 %v4748, %v4775
        %v4821 = vadd.f32 %v4749, %v4774
        %v4822 = vrot.slane %v4368, 2
        %v4823 = vrot.slane %v4371, 2
        %v4824 = vrot.slane %v4376, 2
        %v4825 = vrot.slane %v4379, 2
        %v4826 = vrot.slane %v4384, 2
        %v4827 = vrot.slane %v4387, 2
        %v4828 = vrot.slane %v4392, 2
        %v4829 = vrot.slane %v4395, 2
        %v4830 = vrot.slane %v4400, 2
        %v4831 = vrot.slane %v4403, 2
        %v4832 = vrot.slane %v4408, 2
        %v4833 = vrot.slane %v4411, 2
        %v4834 = vrot.slane %v4416, 2
        %v4835 = vrot.slane %v4419, 2
        %v4836 = vrot.slane %v4424, 2
        %v4837 = vrot.slane %v4427, 2
        %v4838 = vrot.slane %v4432, 2
        %v4839 = vrot.slane %v4435, 2
        %v4840 = vrot.slane %v4440, 2
        %v4841 = vrot.slane %v4443, 2
        %v4842 = vrot.slane %v4448, 2
        %v4843 = vrot.slane %v4451, 2
        %v4844 = vrot.slane %v4456, 2
        %v4845 = vrot.slane %v4459, 2
        %v4846 = vsel %vm1867, %v4844, %v4845
        %v4847 = vsel %vm1867, %v4843, %v4844
        %v4848 = vsel %vm1867, %v4842, %v4843
        %v4849 = vsel %vm1867, %v4841, %v4842
        %v4850 = vsel %vm1867, %v4840, %v4841
        %v4851 = vsel %vm1867, %v4839, %v4840
        %v4852 = vsel %vm1867, %v4838, %v4839
        %v4853 = vsel %vm1867, %v4837, %v4838
        %v4854 = vsel %vm1867, %v4836, %v4837
        %v4855 = vsel %vm1867, %v4835, %v4836
        %v4856 = vsel %vm1867, %v4834, %v4835
        %v4857 = vsel %vm1867, %v4833, %v4834
        %v4858 = vsel %vm1867, %v4832, %v4833
        %v4859 = vsel %vm1867, %v4831, %v4832
        %v4860 = vsel %vm1867, %v4830, %v4831
        %v4861 = vsel %vm1867, %v4829, %v4830
        %v4862 = vsel %vm1867, %v4828, %v4829
        %v4863 = vsel %vm1867, %v4827, %v4828
        %v4864 = vsel %vm1867, %v4826, %v4827
        %v4865 = vsel %vm1867, %v4825, %v4826
        %v4866 = vsel %vm1867, %v4824, %v4825
        %v4867 = vsel %vm1867, %v4823, %v4824
        %v4868 = vsel %vm1867, %v4822, %v4823
        %v4869 = vsel %vm1867, %v4845, %v4822
        %v4870 = vadd.f32 %v4798, %v4869
        %v4871 = vadd.f32 %v4799, %v4868
        %v4872 = vadd.f32 %v4800, %v4867
        %v4873 = vadd.f32 %v4801, %v4866
        %v4874 = vadd.f32 %v4802, %v4865
        %v4875 = vadd.f32 %v4803, %v4864
        %v4876 = vadd.f32 %v4804, %v4863
        %v4877 = vadd.f32 %v4805, %v4862
        %v4878 = vadd.f32 %v4806, %v4861
        %v4879 = vadd.f32 %v4807, %v4860
        %v4880 = vadd.f32 %v4808, %v4859
        %v4881 = vadd.f32 %v4809, %v4858
        %v4882 = vadd.f32 %v4810, %v4857
        %v4883 = vadd.f32 %v4811, %v4856
        %v4884 = vadd.f32 %v4812, %v4855
        %v4885 = vadd.f32 %v4813, %v4854
        %v4886 = vadd.f32 %v4814, %v4853
        %v4887 = vadd.f32 %v4815, %v4852
        %v4888 = vadd.f32 %v4816, %v4851
        %v4889 = vadd.f32 %v4817, %v4850
        %v4890 = vadd.f32 %v4818, %v4849
        %v4891 = vadd.f32 %v4819, %v4848
        %v4892 = vadd.f32 %v4820, %v4847
        %v4893 = vadd.f32 %v4821, %v4846
        %v4894 = vadd.f32 %v4870, %v504
        %v4895 = vadd.f32 %v4871, %v505
        %v4896 = vadd.f32 %v4872, %v506
        %v4897 = vadd.f32 %v4873, %v504
        %v4898 = vadd.f32 %v4874, %v505
        %v4899 = vadd.f32 %v4875, %v506
        %v4900 = vadd.f32 %v4876, %v504
        %v4901 = vadd.f32 %v4877, %v505
        %v4902 = vadd.f32 %v4878, %v506
        %v4903 = vadd.f32 %v4879, %v504
        %v4904 = vadd.f32 %v4880, %v505
        %v4905 = vadd.f32 %v4881, %v506
        %v4906 = vadd.f32 %v4882, %v504
        %v4907 = vadd.f32 %v4883, %v505
        %v4908 = vadd.f32 %v4884, %v506
        %v4909 = vadd.f32 %v4885, %v504
        %v4910 = vadd.f32 %v4886, %v505
        %v4911 = vadd.f32 %v4887, %v506
        %v4912 = vadd.f32 %v4888, %v504
        %v4913 = vadd.f32 %v4889, %v505
        %v4914 = vadd.f32 %v4890, %v506
        %v4915 = vadd.f32 %v4891, %v504
        %v4916 = vadd.f32 %v4892, %v505
        %v4917 = vadd.f32 %v4893, %v506
        %v4918 = vmax.f32 %v4894, %v4895
        %v4919 = vmax.f32 %v4918, %v4896
        %v4920 = vrot.slane %v4919, 4
        %v4921 = vmax.f32 %v4919, %v4920
        %v4922 = vrot.slane %v4921, 2
        %v4923 = vmax.f32 %v4921, %v4922
        %v4924 = vrot.slane %v4923, 1
        %v4925 = vmax.f32 %v4923, %v4924
        %v4926 = vmax.f32 %v4897, %v4898
        %v4927 = vmax.f32 %v4926, %v4899
        %v4928 = vrot.slane %v4927, 4
        %v4929 = vmax.f32 %v4927, %v4928
        %v4930 = vrot.slane %v4929, 2
        %v4931 = vmax.f32 %v4929, %v4930
        %v4932 = vrot.slane %v4931, 1
        %v4933 = vmax.f32 %v4931, %v4932
        %v4934 = vmax.f32 %v4900, %v4901
        %v4935 = vmax.f32 %v4934, %v4902
        %v4936 = vrot.slane %v4935, 4
        %v4937 = vmax.f32 %v4935, %v4936
        %v4938 = vrot.slane %v4937, 2
        %v4939 = vmax.f32 %v4937, %v4938
        %v4940 = vrot.slane %v4939, 1
        %v4941 = vmax.f32 %v4939, %v4940
        %v4942 = vmax.f32 %v4903, %v4904
        %v4943 = vmax.f32 %v4942, %v4905
        %v4944 = vrot.slane %v4943, 4
        %v4945 = vmax.f32 %v4943, %v4944
        %v4946 = vrot.slane %v4945, 2
        %v4947 = vmax.f32 %v4945, %v4946
        %v4948 = vrot.slane %v4947, 1
        %v4949 = vmax.f32 %v4947, %v4948
        %v4950 = vmax.f32 %v4906, %v4907
        %v4951 = vmax.f32 %v4950, %v4908
        %v4952 = vrot.slane %v4951, 4
        %v4953 = vmax.f32 %v4951, %v4952
        %v4954 = vrot.slane %v4953, 2
        %v4955 = vmax.f32 %v4953, %v4954
        %v4956 = vrot.slane %v4955, 1
        %v4957 = vmax.f32 %v4955, %v4956
        %v4958 = vmax.f32 %v4909, %v4910
        %v4959 = vmax.f32 %v4958, %v4911
        %v4960 = vrot.slane %v4959, 4
        %v4961 = vmax.f32 %v4959, %v4960
        %v4962 = vrot.slane %v4961, 2
        %v4963 = vmax.f32 %v4961, %v4962
        %v4964 = vrot.slane %v4963, 1
        %v4965 = vmax.f32 %v4963, %v4964
        %v4966 = vmax.f32 %v4912, %v4913
        %v4967 = vmax.f32 %v4966, %v4914
        %v4968 = vrot.slane %v4967, 4
        %v4969 = vmax.f32 %v4967, %v4968
        %v4970 = vrot.slane %v4969, 2
        %v4971 = vmax.f32 %v4969, %v4970
        %v4972 = vrot.slane %v4971, 1
        %v4973 = vmax.f32 %v4971, %v4972
        %v4974 = vmax.f32 %v4915, %v4916
        %v4975 = vmax.f32 %v4974, %v4917
        %v4976 = vrot.slane %v4975, 4
        %v4977 = vmax.f32 %v4975, %v4976
        %v4978 = vrot.slane %v4977, 2
        %v4979 = vmax.f32 %v4977, %v4978
        %v4980 = vrot.slane %v4979, 1
        %v4981 = vmax.f32 %v4979, %v4980
        %s4982 = scalar_lea.vmem %s429, 72 [#allocation2]
        %v4983 = vld [vmem:[%s4982] sm:$0xff]
        %v4984 = vld [vmem:[%s4982 + $0x8] sm:$0xff]
        %v4985 = vld [vmem:[%s4982 + $0x10] sm:$0xff]
        %v4986 = vld [vmem:[%s4982 + $0x90] sm:$0xff]
        %v4987 = vld [vmem:[%s4982 + $0x98] sm:$0xff]
        %v4988 = vld [vmem:[%s4982 + $0xa0] sm:$0xff]
        %v4989 = vld [vmem:[%s4982 + $0x120] sm:$0xff]
        %v4990 = vld [vmem:[%s4982 + $0x128] sm:$0xff]
        %v4991 = vld [vmem:[%s4982 + $0x130] sm:$0xff]
        %v4992 = vld [vmem:[%s4982 + $0x1b0] sm:$0xff]
        %v4993 = vld [vmem:[%s4982 + $0x1b8] sm:$0xff]
        %v4994 = vld [vmem:[%s4982 + $0x1c0] sm:$0xff]
        %v4995 = vld [vmem:[%s4982 + $0x240] sm:$0xff]
        %v4996 = vld [vmem:[%s4982 + $0x248] sm:$0xff]
        %v4997 = vld [vmem:[%s4982 + $0x250] sm:$0xff]
        %v4998 = vld [vmem:[%s4982 + $0x2d0] sm:$0xff]
        %v4999 = vld [vmem:[%s4982 + $0x2d8] sm:$0xff]
        %v5000 = vld [vmem:[%s4982 + $0x2e0] sm:$0xff]
        %v5001 = vld [vmem:[%s4982 + $0x360] sm:$0xff]
        %v5002 = vld [vmem:[%s4982 + $0x368] sm:$0xff]
        %v5003 = vld [vmem:[%s4982 + $0x370] sm:$0xff]
        %v5004 = vld [vmem:[%s4982 + $0x3f0] sm:$0xff]
        %v5005 = vld [vmem:[%s4982 + $0x3f8] sm:$0xff]
        %v5006 = vld [vmem:[%s4982 + $0x400] sm:$0xff]
        %v5007 = vpack.c.bf16 %v4984, %v4983
        %v5008 = vpack.c.bf16 %v4986, %v4985
        %v5009 = vpack.c.bf16 %v4988, %v4987
        %v5010 = vpack.c.bf16 %v4990, %v4989
        %v5011 = vpack.c.bf16 %v4992, %v4991
        %v5012 = vpack.c.bf16 %v4994, %v4993
        %v5013 = vpack.c.bf16 %v4996, %v4995
        %v5014 = vpack.c.bf16 %v4998, %v4997
        %v5015 = vpack.c.bf16 %v5000, %v4999
        %v5016 = vpack.c.bf16 %v5002, %v5001
        %v5017 = vpack.c.bf16 %v5004, %v5003
        %v5018 = vpack.c.bf16 %v5006, %v5005
        %s5019 = scalar_lea.vmem [#allocation5], 1092
        %v5020 = vld [vmem:[%s5019] sm:$0xff]
        %v5021 = vld [vmem:[%s5019 + $0x8] sm:$0xff]
        %v5022 = vld [vmem:[%s5019 + $0x10] sm:$0xff]
        %v5023 = vld [vmem:[%s5019 + $0x18] sm:$0xf]
        %v5024 = vld [vmem:[%s5019 + $0x1c] sm:$0xff]
        %v5025 = vld [vmem:[%s5019 + $0x24] sm:$0xff]
        %v5026 = vld [vmem:[%s5019 + $0x2c] sm:$0xff]
        %v5027 = vld [vmem:[%s5019 + $0x34] sm:$0xf]
        %v5028 = vld [vmem:[%s5019 + $0x38] sm:$0xff]
        %v5029 = vld [vmem:[%s5019 + $0x40] sm:$0xff]
        %v5030 = vld [vmem:[%s5019 + $0x48] sm:$0xff]
        %v5031 = vld [vmem:[%s5019 + $0x50] sm:$0xf]
        %v5032 = vld [vmem:[%s5019 + $0x54] sm:$0xff]
        %v5033 = vld [vmem:[%s5019 + $0x5c] sm:$0xff]
        %v5034 = vld [vmem:[%s5019 + $0x64] sm:$0xff]
        %v5035 = vld [vmem:[%s5019 + $0x6c] sm:$0xf]
        %v5036 = vld [vmem:[%s5019 + $0x70] sm:$0xff]
        %v5037 = vld [vmem:[%s5019 + $0x78] sm:$0xff]
        %v5038 = vld [vmem:[%s5019 + $0x80] sm:$0xff]
        %v5039 = vld [vmem:[%s5019 + $0x88] sm:$0xf]
        %v5040 = vld [vmem:[%s5019 + $0x8c] sm:$0xff]
        %v5041 = vld [vmem:[%s5019 + $0x94] sm:$0xff]
        %v5042 = vld [vmem:[%s5019 + $0x9c] sm:$0xff]
        %v5043 = vld [vmem:[%s5019 + $0xa4] sm:$0xf]
        %v5044 = vld [vmem:[%s5019 + $0xa8] sm:$0xff]
        %v5045 = vld [vmem:[%s5019 + $0xb0] sm:$0xff]
        %v5046 = vld [vmem:[%s5019 + $0xb8] sm:$0xff]
        %v5047 = vld [vmem:[%s5019 + $0xc0] sm:$0xf]
        %v5048 = vld [vmem:[%s5019 + $0xc4] sm:$0xff]
        %v5049 = vld [vmem:[%s5019 + $0xcc] sm:$0xff]
        %v5050 = vld [vmem:[%s5019 + $0xd4] sm:$0xff]
        %v5051 = vld [vmem:[%s5019 + $0xdc] sm:$0xf]
        %v5052 = vld [vmem:[%s5019 + $0xe0] sm:$0xff]
        %v5053 = vld [vmem:[%s5019 + $0xe8] sm:$0xff]
        %v5054 = vld [vmem:[%s5019 + $0xf0] sm:$0xff]
        %v5055 = vld [vmem:[%s5019 + $0xf8] sm:$0xf]
        %v5056 = vld [vmem:[%s5019 + $0xfc] sm:$0xff]
        %v5057 = vld [vmem:[%s5019 + $0x104] sm:$0xff]
        %v5058 = vld [vmem:[%s5019 + $0x10c] sm:$0xff]
        %v5059 = vld [vmem:[%s5019 + $0x114] sm:$0xf]
        %v5060 = vld [vmem:[%s5019 + $0x118] sm:$0xff]
        %v5061 = vld [vmem:[%s5019 + $0x120] sm:$0xff]
        %v5062 = vld [vmem:[%s5019 + $0x128] sm:$0xff]
        %v5063 = vld [vmem:[%s5019 + $0x130] sm:$0xf]
        %v5064 = vld [vmem:[%s5019 + $0x134] sm:$0xff]
        %v5065 = vld [vmem:[%s5019 + $0x13c] sm:$0xff]
        %v5066 = vld [vmem:[%s5019 + $0x144] sm:$0xff]
        %v5067 = vld [vmem:[%s5019 + $0x14c] sm:$0xf]
        %v5068 = vld [vmem:[%s5019 + $0x150] sm:$0x33]
        %v5069 = vld [vmem:[%s5019 + $0x158] sm:$0x33]
        %v5070 = vld [vmem:[%s5019 + $0x160] sm:$0x33]
        %v5071 = vld [vmem:[%s5019 + $0x168] sm:$0x3]
        %v5124 = vunpack.c.l.b16 %v5020
        %v5125 = vunpack.c.h.b16 %v5020
        %v5126 = vunpack.c.l.b16 %v5021
        %v5127 = vunpack.c.h.b16 %v5021
        %v5128 = vunpack.c.l.b16 %v5022
        %v5129 = vunpack.c.h.b16 %v5022
        %v5130 = vunpack.c.l.b16 %v5023
        %v5131 = vunpack.c.l.b16 %v5024
        %v5132 = vunpack.c.h.b16 %v5024
        %v5133 = vunpack.c.l.b16 %v5025
        %v5134 = vunpack.c.h.b16 %v5025
        %v5135 = vunpack.c.l.b16 %v5026
        %v5136 = vunpack.c.h.b16 %v5026
        %v5137 = vunpack.c.l.b16 %v5027
        %v5138 = vunpack.c.l.b16 %v5028
        %v5139 = vunpack.c.h.b16 %v5028
        %v5140 = vunpack.c.l.b16 %v5029
        %v5141 = vunpack.c.h.b16 %v5029
        %v5142 = vunpack.c.l.b16 %v5030
        %v5143 = vunpack.c.h.b16 %v5030
        %v5144 = vunpack.c.l.b16 %v5031
        %v5145 = vunpack.c.l.b16 %v5032
        %v5146 = vunpack.c.h.b16 %v5032
        %v5147 = vunpack.c.l.b16 %v5033
        %v5148 = vunpack.c.h.b16 %v5033
        %v5149 = vunpack.c.l.b16 %v5034
        %v5150 = vunpack.c.h.b16 %v5034
        %v5151 = vunpack.c.l.b16 %v5035
        %v5152 = vunpack.c.l.b16 %v5036
        %v5153 = vunpack.c.h.b16 %v5036
        %v5154 = vunpack.c.l.b16 %v5037
        %v5155 = vunpack.c.h.b16 %v5037
        %v5156 = vunpack.c.l.b16 %v5038
        %v5157 = vunpack.c.h.b16 %v5038
        %v5158 = vunpack.c.l.b16 %v5039
        %v5159 = vunpack.c.l.b16 %v5040
        %v5160 = vunpack.c.h.b16 %v5040
        %v5161 = vunpack.c.l.b16 %v5041
        %v5162 = vunpack.c.h.b16 %v5041
        %v5163 = vunpack.c.l.b16 %v5042
        %v5164 = vunpack.c.h.b16 %v5042
        %v5165 = vunpack.c.l.b16 %v5043
        %v5166 = vunpack.c.l.b16 %v5044
        %v5167 = vunpack.c.h.b16 %v5044
        %v5168 = vunpack.c.l.b16 %v5045
        %v5169 = vunpack.c.h.b16 %v5045
        %v5170 = vunpack.c.l.b16 %v5046
        %v5171 = vunpack.c.h.b16 %v5046
        %v5172 = vunpack.c.l.b16 %v5047
        %v5173 = vunpack.c.l.b16 %v5048
        %v5174 = vunpack.c.h.b16 %v5048
        %v5175 = vunpack.c.l.b16 %v5049
        %v5176 = vunpack.c.h.b16 %v5049
        %v5177 = vunpack.c.l.b16 %v5050
        %v5178 = vunpack.c.h.b16 %v5050
        %v5179 = vunpack.c.l.b16 %v5051
        %v5180 = vunpack.c.l.b16 %v5052
        %v5181 = vunpack.c.h.b16 %v5052
        %v5182 = vunpack.c.l.b16 %v5053
        %v5183 = vunpack.c.h.b16 %v5053
        %v5184 = vunpack.c.l.b16 %v5054
        %v5185 = vunpack.c.h.b16 %v5054
        %v5186 = vunpack.c.l.b16 %v5055
        %v5187 = vunpack.c.l.b16 %v5056
        %v5188 = vunpack.c.h.b16 %v5056
        %v5189 = vunpack.c.l.b16 %v5057
        %v5190 = vunpack.c.h.b16 %v5057
        %v5191 = vunpack.c.l.b16 %v5058
        %v5192 = vunpack.c.h.b16 %v5058
        %v5193 = vunpack.c.l.b16 %v5059
        %v5194 = vunpack.c.l.b16 %v5060
        %v5195 = vunpack.c.h.b16 %v5060
        %v5196 = vunpack.c.l.b16 %v5061
        %v5197 = vunpack.c.h.b16 %v5061
        %v5198 = vunpack.c.l.b16 %v5062
        %v5199 = vunpack.c.h.b16 %v5062
        %v5200 = vunpack.c.l.b16 %v5063
        %v5201 = vunpack.c.l.b16 %v5064
        %v5202 = vunpack.c.h.b16 %v5064
        %v5203 = vunpack.c.l.b16 %v5065
        %v5204 = vunpack.c.h.b16 %v5065
        %v5205 = vunpack.c.l.b16 %v5066
        %v5206 = vunpack.c.h.b16 %v5066
        %v5207 = vunpack.c.l.b16 %v5067
        %v5208 = vunpack.c.l.b16 %v5068
        %v5209 = vunpack.c.h.b16 %v5068
        %v5210 = vunpack.c.l.b16 %v5069
        %v5211 = vunpack.c.h.b16 %v5069
        %v5212 = vunpack.c.l.b16 %v5070
        %v5213 = vunpack.c.h.b16 %v5070
        %v5214 = vunpack.c.l.b16 %v5071
        %v5215 = vpack.c.b16 %v5131, %v5124
        %v5216 = vpack.c.b16 %v5132, %v5125
        %v5217 = vpack.c.b16 %v5133, %v5126
        %v5218 = vpack.c.b16 %v5134, %v5127
        %v5219 = vpack.c.b16 %v5135, %v5128
        %v5220 = vpack.c.b16 %v5136, %v5129
        %v5221 = vpack.c.b16 %v5137, %v5130
        %v5222 = vpack.c.b16 %v5145, %v5138
        %v5223 = vpack.c.b16 %v5146, %v5139
        %v5224 = vpack.c.b16 %v5147, %v5140
        %v5225 = vpack.c.b16 %v5148, %v5141
        %v5226 = vpack.c.b16 %v5149, %v5142
        %v5227 = vpack.c.b16 %v5150, %v5143
        %v5228 = vpack.c.b16 %v5151, %v5144
        %v5229 = vpack.c.b16 %v5159, %v5152
        %v5230 = vpack.c.b16 %v5160, %v5153
        %v5231 = vpack.c.b16 %v5161, %v5154
        %v5232 = vpack.c.b16 %v5162, %v5155
        %v5233 = vpack.c.b16 %v5163, %v5156
        %v5234 = vpack.c.b16 %v5164, %v5157
        %v5235 = vpack.c.b16 %v5165, %v5158
        %v5236 = vpack.c.b16 %v5173, %v5166
        %v5237 = vpack.c.b16 %v5174, %v5167
        %v5238 = vpack.c.b16 %v5175, %v5168
        %v5239 = vpack.c.b16 %v5176, %v5169
        %v5240 = vpack.c.b16 %v5177, %v5170
        %v5241 = vpack.c.b16 %v5178, %v5171
        %v5242 = vpack.c.b16 %v5179, %v5172
        %v5243 = vpack.c.b16 %v5187, %v5180
        %v5244 = vpack.c.b16 %v5188, %v5181
        %v5245 = vpack.c.b16 %v5189, %v5182
        %v5246 = vpack.c.b16 %v5190, %v5183
        %v5247 = vpack.c.b16 %v5191, %v5184
        %v5248 = vpack.c.b16 %v5192, %v5185
        %v5249 = vpack.c.b16 %v5193, %v5186
        %v5250 = vpack.c.b16 %v5201, %v5194
        %v5251 = vpack.c.b16 %v5202, %v5195
        %v5252 = vpack.c.b16 %v5203, %v5196
        %v5253 = vpack.c.b16 %v5204, %v5197
        %v5254 = vpack.c.b16 %v5205, %v5198
        %v5255 = vpack.c.b16 %v5206, %v5199
        %v5256 = vpack.c.b16 %v5207, %v5200
        %v5257 = vpack.c.b16 %v5208, %v5208
        %v5258 = vpack.c.b16 %v5209, %v5209
        %v5259 = vpack.c.b16 %v5210, %v5210
        %v5260 = vpack.c.b16 %v5211, %v5211
        %v5261 = vpack.c.b16 %v5212, %v5212
        %v5262 = vpack.c.b16 %v5213, %v5213
        %v5263 = vpack.c.b16 %v5214, %v5214
        %v5307 = vsel %vm829, %v5007, 0
        %v5310 = vsel %vm829, %v5008, 0
        %v5313 = vsel %vm829, %v5009, 0
        %v5316 = vsel %vm829, %v5010, 0
        %v5319 = vsel %vm829, %v5011, 0
        %v5322 = vsel %vm829, %v5012, 0
        %v5325 = vsel %vm829, %v5013, 0
        %v5328 = vsel %vm829, %v5014, 0
        %v5331 = vsel %vm829, %v5015, 0
        %v5334 = vsel %vm829, %v5016, 0
        %v5337 = vsel %vm829, %v5017, 0
        %v5340 = vsel %vm829, %v5018, 0
        %v5343 = vsel %vm866, %v5257, 0
        %v5346 = vsel %vm866, %v5258, 0
        %v5349 = vsel %vm866, %v5259, 0
        %v5352 = vsel %vm866, %v5260, 0
        %v5355 = vsel %vm866, %v5261, 0
        %v5358 = vsel %vm866, %v5262, 0
        %v5361 = vsel %vm866, %v5263, 0
        %5363 = vmatprep.subr.bf16.mxu0 %v5216
        %5364 = vmatpush1.bf16.msra.mxu0 %v5215
        %5365 = vmatprep.subr.bf16.mxu0 %v5223
        %5366 = vmatpush1.bf16.msra.mxu0 %v5222
        %5367 = vmatprep.subr.bf16.mxu0 %v5230
        %5368 = vmatpush1.bf16.msra.mxu0 %v5229
        %5369 = vmatprep.subr.bf16.mxu0 %v5237
        %5370 = vmatpush1.bf16.msra.mxu0 %v5236
        %5371 = vmatprep.subr.bf16.mxu0 %v5244
        %5372 = vmatpush1.bf16.msra.mxu0 %v5243
        %5373 = vmatprep.subr.bf16.mxu0 %v5251
        %5374 = vmatpush1.bf16.msra.mxu0 %v5250
        %5375 = vmatprep.subr.bf16.mxu0 %v5346
        %5376 = vmatpush1.bf16.msra.mxu0 %v5343
        %5377 = vmatprep.subr.bf16.mxu0 0
        %5378 = vmatpush1.bf16.msra.mxu0 0
        %5379 = vmatprep.subr.bf16.mxu0 0
        %5380 = vmatpush1.bf16.msra.mxu0 0
        %5381 = vmatprep.subr.bf16.mxu0 0
        %5382 = vmatpush1.bf16.msra.mxu0 0
        %5383 = vmatprep.subr.bf16.mxu0 0
        %5384 = vmatpush1.bf16.msra.mxu0 0
        %5385 = vmatprep.subr.bf16.mxu0 0
        %5386 = vmatpush1.bf16.msra.mxu0 0
        %5387 = vmatprep.subr.bf16.mxu0 0
        %5388 = vmatpush1.bf16.msra.mxu0 0
        %5389 = vmatprep.subr.bf16.mxu0 0
        %5390 = vmatpush1.bf16.msra.mxu0 0
        %5391 = vmatprep.subr.bf16.mxu0 0
        %5392 = vmatpush1.bf16.msra.mxu0 0
        %5393 = vmatprep.subr.bf16.mxu0 0
        %5394 = vmatpush1.bf16.msra.mxu0 0
        %5395 = vmatprep.mubr.bf16.mxu0 0
        %5396 = vmatmul.mubr.bf16.gmra.mrb[0].mxu0 %v5307
        %v5397 = vpop.f32.mrb[0].mxu0
        %v5398 = vadd.f32 0.0, %v5397
        %v5399 = vpop.f32.mrb[0].mxu0
        %v5400 = vadd.f32 0.0, %v5399
        %v5401 = vpop.f32.mrb[0].mxu0
        %v5402 = vadd.f32 0.0, %v5401
        %v5403 = vpop.f32.mrb[0].mxu0
        %v5404 = vadd.f32 0.0, %v5403
        %5405 = vmatprep.mubr.bf16.mxu0 0
        %5406 = vmatmul.mubr.bf16.gmra.mrb[0].mxu0 %v5310
        %v5407 = vpop.f32.mrb[0].mxu0
        %v5408 = vadd.f32 0.0, %v5407
        %v5409 = vpop.f32.mrb[0].mxu0
        %v5410 = vadd.f32 0.0, %v5409
        %v5411 = vpop.f32.mrb[0].mxu0
        %v5412 = vadd.f32 0.0, %v5411
        %v5413 = vpop.f32.mrb[0].mxu0
        %v5414 = vadd.f32 0.0, %v5413
        %5415 = vmatprep.mubr.bf16.mxu0 0
        %5416 = vmatmul.mubr.bf16.gmra.mrb[0].mxu0 %v5313
        %v5417 = vpop.f32.mrb[0].mxu0
        %v5418 = vadd.f32 0.0, %v5417
        %v5419 = vpop.f32.mrb[0].mxu0
        %v5420 = vadd.f32 0.0, %v5419
        %v5421 = vpop.f32.mrb[0].mxu0
        %v5422 = vadd.f32 0.0, %v5421
        %v5423 = vpop.f32.mrb[0].mxu0
        %v5424 = vadd.f32 0.0, %v5423
        %5425 = vmatprep.mubr.bf16.mxu0 0
        %5426 = vmatmul.mubr.bf16.gmra.mrb[0].mxu0 %v5316
        %v5427 = vpop.f32.mrb[0].mxu0
        %v5428 = vadd.f32 0.0, %v5427
        %v5429 = vpop.f32.mrb[0].mxu0
        %v5430 = vadd.f32 0.0, %v5429
        %v5431 = vpop.f32.mrb[0].mxu0
        %v5432 = vadd.f32 0.0, %v5431
        %v5433 = vpop.f32.mrb[0].mxu0
        %v5434 = vadd.f32 0.0, %v5433
        %5435 = vmatprep.mubr.bf16.mxu0 0
        %5436 = vmatmul.mubr.bf16.gmra.mrb[0].mxu0 %v5319
        %v5437 = vpop.f32.mrb[0].mxu0
        %v5438 = vadd.f32 0.0, %v5437
        %v5439 = vpop.f32.mrb[0].mxu0
        %v5440 = vadd.f32 0.0, %v5439
        %v5441 = vpop.f32.mrb[0].mxu0
        %v5442 = vadd.f32 0.0, %v5441
        %v5443 = vpop.f32.mrb[0].mxu0
        %v5444 = vadd.f32 0.0, %v5443
        %5445 = vmatprep.mubr.bf16.mxu0 0
        %5446 = vmatmul.mubr.bf16.gmra.mrb[0].mxu0 %v5322
        %v5447 = vpop.f32.mrb[0].mxu0
        %v5448 = vadd.f32 0.0, %v5447
        %v5449 = vpop.f32.mrb[0].mxu0
        %v5450 = vadd.f32 0.0, %v5449
        %v5451 = vpop.f32.mrb[0].mxu0
        %v5452 = vadd.f32 0.0, %v5451
        %v5453 = vpop.f32.mrb[0].mxu0
        %v5454 = vadd.f32 0.0, %v5453
        %5455 = vmatprep.mubr.bf16.mxu0 0
        %5456 = vmatmul.mubr.bf16.gmra.mrb[0].mxu0 %v5325
        %v5457 = vpop.f32.mrb[0].mxu0
        %v5458 = vadd.f32 0.0, %v5457
        %v5459 = vpop.f32.mrb[0].mxu0
        %v5460 = vadd.f32 0.0, %v5459
        %v5461 = vpop.f32.mrb[0].mxu0
        %v5462 = vadd.f32 0.0, %v5461
        %v5463 = vpop.f32.mrb[0].mxu0
        %v5464 = vadd.f32 0.0, %v5463
        %5465 = vmatprep.mubr.bf16.mxu0 0
        %5466 = vmatmul.mubr.bf16.gmra.mrb[0].mxu0 %v5328
        %v5467 = vpop.f32.mrb[0].mxu0
        %v5468 = vadd.f32 0.0, %v5467
        %v5469 = vpop.f32.mrb[0].mxu0
        %v5470 = vadd.f32 0.0, %v5469
        %v5471 = vpop.f32.mrb[0].mxu0
        %v5472 = vadd.f32 0.0, %v5471
        %v5473 = vpop.f32.mrb[0].mxu0
        %v5474 = vadd.f32 0.0, %v5473
        %5475 = vmatprep.mubr.bf16.mxu0 0
        %5476 = vmatmul.mubr.bf16.gmra.mrb[0].mxu0 %v5331
        %v5477 = vpop.f32.mrb[0].mxu0
        %v5478 = vadd.f32 0.0, %v5477
        %v5479 = vpop.f32.mrb[0].mxu0
        %v5480 = vadd.f32 0.0, %v5479
        %v5481 = vpop.f32.mrb[0].mxu0
        %v5482 = vadd.f32 0.0, %v5481
        %v5483 = vpop.f32.mrb[0].mxu0
        %v5484 = vadd.f32 0.0, %v5483
        %5485 = vmatprep.mubr.bf16.mxu0 0
        %5486 = vmatmul.mubr.bf16.gmra.mrb[0].mxu0 %v5334
        %v5487 = vpop.f32.mrb[0].mxu0
        %v5488 = vadd.f32 0.0, %v5487
        %v5489 = vpop.f32.mrb[0].mxu0
        %v5490 = vadd.f32 0.0, %v5489
        %v5491 = vpop.f32.mrb[0].mxu0
        %v5492 = vadd.f32 0.0, %v5491
        %v5493 = vpop.f32.mrb[0].mxu0
        %v5494 = vadd.f32 0.0, %v5493
        %5495 = vmatprep.mubr.bf16.mxu0 0
        %5496 = vmatmul.mubr.bf16.gmra.mrb[0].mxu0 %v5337
        %v5497 = vpop.f32.mrb[0].mxu0
        %v5498 = vadd.f32 0.0, %v5497
        %v5499 = vpop.f32.mrb[0].mxu0
        %v5500 = vadd.f32 0.0, %v5499
        %v5501 = vpop.f32.mrb[0].mxu0
        %v5502 = vadd.f32 0.0, %v5501
        %v5503 = vpop.f32.mrb[0].mxu0
        %v5504 = vadd.f32 0.0, %v5503
        %5505 = vmatprep.mubr.bf16.mxu0 0
        %5506 = vmatmul.mubr.bf16.gmra.mrb[0].mxu0 %v5340
        %v5507 = vpop.f32.mrb[0].mxu0
        %v5508 = vadd.f32 0.0, %v5507
        %v5509 = vpop.f32.mrb[0].mxu0
        %v5510 = vadd.f32 0.0, %v5509
        %v5511 = vpop.f32.mrb[0].mxu0
        %v5512 = vadd.f32 0.0, %v5511
        %v5513 = vpop.f32.mrb[0].mxu0
        %v5514 = vadd.f32 0.0, %v5513
        %5515 = vdwg.mxu0
        %5516 = vmatprep.subr.bf16.mxu0 %v5218
        %5517 = vmatpush1.bf16.msra.mxu0 %v5217
        %5518 = vmatprep.subr.bf16.mxu0 %v5225
        %5519 = vmatpush1.bf16.msra.mxu0 %v5224
        %5520 = vmatprep.subr.bf16.mxu0 %v5232
        %5521 = vmatpush1.bf16.msra.mxu0 %v5231
        %5522 = vmatprep.subr.bf16.mxu0 %v5239
        %5523 = vmatpush1.bf16.msra.mxu0 %v5238
        %5524 = vmatprep.subr.bf16.mxu0 %v5246
        %5525 = vmatpush1.bf16.msra.mxu0 %v5245
        %5526 = vmatprep.subr.bf16.mxu0 %v5253
        %5527 = vmatpush1.bf16.msra.mxu0 %v5252
        %5528 = vmatprep.subr.bf16.mxu0 %v5352
        %5529 = vmatpush1.bf16.msra.mxu0 %v5349
        %5530 = vmatprep.subr.bf16.mxu0 0
        %5531 = vmatpush1.bf16.msra.mxu0 0
        %5532 = vmatprep.subr.bf16.mxu0 0
        %5533 = vmatpush1.bf16.msra.mxu0 0
        %5534 = vmatprep.subr.bf16.mxu0 0
        %5535 = vmatpush1.bf16.msra.mxu0 0
        %5536 = vmatprep.subr.bf16.mxu0 0
        %5537 = vmatpush1.bf16.msra.mxu0 0
        %5538 = vmatprep.subr.bf16.mxu0 0
        %5539 = vmatpush1.bf16.msra.mxu0 0
        %5540 = vmatprep.subr.bf16.mxu0 0
        %5541 = vmatpush1.bf16.msra.mxu0 0
        %5542 = vmatprep.subr.bf16.mxu0 0
        %5543 = vmatpush1.bf16.msra.mxu0 0
        %5544 = vmatprep.subr.bf16.mxu0 0
        %5545 = vmatpush1.bf16.msra.mxu0 0
        %5546 = vmatprep.subr.bf16.mxu0 0
        %5547 = vmatpush1.bf16.msra.mxu0 0
        %5548 = vmatprep.mubr.bf16.mxu0 0
        %5549 = vmatmul.mubr.bf16.gmra.mrb[0].mxu0 %v5307
        %v5550 = vpop.f32.mrb[0].mxu0
        %v5551 = vadd.f32 0.0, %v5550
        %v5552 = vpop.f32.mrb[0].mxu0
        %v5553 = vadd.f32 0.0, %v5552
        %v5554 = vpop.f32.mrb[0].mxu0
        %v5555 = vadd.f32 0.0, %v5554
        %v5556 = vpop.f32.mrb[0].mxu0
        %v5557 = vadd.f32 0.0, %v5556
        %5558 = vmatprep.mubr.bf16.mxu0 0
        %5559 = vmatmul.mubr.bf16.gmra.mrb[0].mxu0 %v5310
        %v5560 = vpop.f32.mrb[0].mxu0
        %v5561 = vadd.f32 0.0, %v5560
        %v5562 = vpop.f32.mrb[0].mxu0
        %v5563 = vadd.f32 0.0, %v5562
        %v5564 = vpop.f32.mrb[0].mxu0
        %v5565 = vadd.f32 0.0, %v5564
        %v5566 = vpop.f32.mrb[0].mxu0
        %v5567 = vadd.f32 0.0, %v5566
        %5568 = vmatprep.mubr.bf16.mxu0 0
        %5569 = vmatmul.mubr.bf16.gmra.mrb[0].mxu0 %v5313
        %v5570 = vpop.f32.mrb[0].mxu0
        %v5571 = vadd.f32 0.0, %v5570
        %v5572 = vpop.f32.mrb[0].mxu0
        %v5573 = vadd.f32 0.0, %v5572
        %v5574 = vpop.f32.mrb[0].mxu0
        %v5575 = vadd.f32 0.0, %v5574
        %v5576 = vpop.f32.mrb[0].mxu0
        %v5577 = vadd.f32 0.0, %v5576
        %5578 = vmatprep.mubr.bf16.mxu0 0
        %5579 = vmatmul.mubr.bf16.gmra.mrb[0].mxu0 %v5316
        %v5580 = vpop.f32.mrb[0].mxu0
        %v5581 = vadd.f32 0.0, %v5580
        %v5582 = vpop.f32.mrb[0].mxu0
        %v5583 = vadd.f32 0.0, %v5582
        %v5584 = vpop.f32.mrb[0].mxu0
        %v5585 = vadd.f32 0.0, %v5584
        %v5586 = vpop.f32.mrb[0].mxu0
        %v5587 = vadd.f32 0.0, %v5586
        %5588 = vmatprep.mubr.bf16.mxu0 0
        %5589 = vmatmul.mubr.bf16.gmra.mrb[0].mxu0 %v5319
        %v5590 = vpop.f32.mrb[0].mxu0
        %v5591 = vadd.f32 0.0, %v5590
        %v5592 = vpop.f32.mrb[0].mxu0
        %v5593 = vadd.f32 0.0, %v5592
        %v5594 = vpop.f32.mrb[0].mxu0
        %v5595 = vadd.f32 0.0, %v5594
        %v5596 = vpop.f32.mrb[0].mxu0
        %v5597 = vadd.f32 0.0, %v5596
        %5598 = vmatprep.mubr.bf16.mxu0 0
        %5599 = vmatmul.mubr.bf16.gmra.mrb[0].mxu0 %v5322
        %v5600 = vpop.f32.mrb[0].mxu0
        %v5601 = vadd.f32 0.0, %v5600
        %v5602 = vpop.f32.mrb[0].mxu0
        %v5603 = vadd.f32 0.0, %v5602
        %v5604 = vpop.f32.mrb[0].mxu0
        %v5605 = vadd.f32 0.0, %v5604
        %v5606 = vpop.f32.mrb[0].mxu0
        %v5607 = vadd.f32 0.0, %v5606
        %5608 = vmatprep.mubr.bf16.mxu0 0
        %5609 = vmatmul.mubr.bf16.gmra.mrb[0].mxu0 %v5325
        %v5610 = vpop.f32.mrb[0].mxu0
        %v5611 = vadd.f32 0.0, %v5610
        %v5612 = vpop.f32.mrb[0].mxu0
        %v5613 = vadd.f32 0.0, %v5612
        %v5614 = vpop.f32.mrb[0].mxu0
        %v5615 = vadd.f32 0.0, %v5614
        %v5616 = vpop.f32.mrb[0].mxu0
        %v5617 = vadd.f32 0.0, %v5616
        %5618 = vmatprep.mubr.bf16.mxu0 0
        %5619 = vmatmul.mubr.bf16.gmra.mrb[0].mxu0 %v5328
        %v5620 = vpop.f32.mrb[0].mxu0
        %v5621 = vadd.f32 0.0, %v5620
        %v5622 = vpop.f32.mrb[0].mxu0
        %v5623 = vadd.f32 0.0, %v5622
        %v5624 = vpop.f32.mrb[0].mxu0
        %v5625 = vadd.f32 0.0, %v5624
        %v5626 = vpop.f32.mrb[0].mxu0
        %v5627 = vadd.f32 0.0, %v5626
        %5628 = vmatprep.mubr.bf16.mxu0 0
        %5629 = vmatmul.mubr.bf16.gmra.mrb[0].mxu0 %v5331
        %v5630 = vpop.f32.mrb[0].mxu0
        %v5631 = vadd.f32 0.0, %v5630
        %v5632 = vpop.f32.mrb[0].mxu0
        %v5633 = vadd.f32 0.0, %v5632
        %v5634 = vpop.f32.mrb[0].mxu0
        %v5635 = vadd.f32 0.0, %v5634
        %v5636 = vpop.f32.mrb[0].mxu0
        %v5637 = vadd.f32 0.0, %v5636
        %5638 = vmatprep.mubr.bf16.mxu0 0
        %5639 = vmatmul.mubr.bf16.gmra.mrb[0].mxu0 %v5334
        %v5640 = vpop.f32.mrb[0].mxu0
        %v5641 = vadd.f32 0.0, %v5640
        %v5642 = vpop.f32.mrb[0].mxu0
        %v5643 = vadd.f32 0.0, %v5642
        %v5644 = vpop.f32.mrb[0].mxu0
        %v5645 = vadd.f32 0.0, %v5644
        %v5646 = vpop.f32.mrb[0].mxu0
        %v5647 = vadd.f32 0.0, %v5646
        %5648 = vmatprep.mubr.bf16.mxu0 0
        %5649 = vmatmul.mubr.bf16.gmra.mrb[0].mxu0 %v5337
        %v5650 = vpop.f32.mrb[0].mxu0
        %v5651 = vadd.f32 0.0, %v5650
        %v5652 = vpop.f32.mrb[0].mxu0
        %v5653 = vadd.f32 0.0, %v5652
        %v5654 = vpop.f32.mrb[0].mxu0
        %v5655 = vadd.f32 0.0, %v5654
        %v5656 = vpop.f32.mrb[0].mxu0
        %v5657 = vadd.f32 0.0, %v5656
        %5658 = vmatprep.mubr.bf16.mxu0 0
        %5659 = vmatmul.mubr.bf16.gmra.mrb[0].mxu0 %v5340
        %v5660 = vpop.f32.mrb[0].mxu0
        %v5661 = vadd.f32 0.0, %v5660
        %v5662 = vpop.f32.mrb[0].mxu0
        %v5663 = vadd.f32 0.0, %v5662
        %v5664 = vpop.f32.mrb[0].mxu0
        %v5665 = vadd.f32 0.0, %v5664
        %v5666 = vpop.f32.mrb[0].mxu0
        %v5667 = vadd.f32 0.0, %v5666
        %5668 = vdwg.mxu0
        %5669 = vmatprep.subr.bf16.mxu0 %v5220
        %5670 = vmatpush1.bf16.msra.mxu0 %v5219
        %5671 = vmatprep.subr.bf16.mxu0 %v5227
        %5672 = vmatpush1.bf16.msra.mxu0 %v5226
        %5673 = vmatprep.subr.bf16.mxu0 %v5234
        %5674 = vmatpush1.bf16.msra.mxu0 %v5233
        %5675 = vmatprep.subr.bf16.mxu0 %v5241
        %5676 = vmatpush1.bf16.msra.mxu0 %v5240
        %5677 = vmatprep.subr.bf16.mxu0 %v5248
        %5678 = vmatpush1.bf16.msra.mxu0 %v5247
        %5679 = vmatprep.subr.bf16.mxu0 %v5255
        %5680 = vmatpush1.bf16.msra.mxu0 %v5254
        %5681 = vmatprep.subr.bf16.mxu0 %v5358
        %5682 = vmatpush1.bf16.msra.mxu0 %v5355
        %5683 = vmatprep.subr.bf16.mxu0 0
        %5684 = vmatpush1.bf16.msra.mxu0 0
        %5685 = vmatprep.subr.bf16.mxu0 0
        %5686 = vmatpush1.bf16.msra.mxu0 0
        %5687 = vmatprep.subr.bf16.mxu0 0
        %5688 = vmatpush1.bf16.msra.mxu0 0
        %5689 = vmatprep.subr.bf16.mxu0 0
        %5690 = vmatpush1.bf16.msra.mxu0 0
        %5691 = vmatprep.subr.bf16.mxu0 0
        %5692 = vmatpush1.bf16.msra.mxu0 0
        %5693 = vmatprep.subr.bf16.mxu0 0
        %5694 = vmatpush1.bf16.msra.mxu0 0
        %5695 = vmatprep.subr.bf16.mxu0 0
        %5696 = vmatpush1.bf16.msra.mxu0 0
        %5697 = vmatprep.subr.bf16.mxu0 0
        %5698 = vmatpush1.bf16.msra.mxu0 0
        %5699 = vmatprep.subr.bf16.mxu0 0
        %5700 = vmatpush1.bf16.msra.mxu0 0
        %5701 = vmatprep.mubr.bf16.mxu0 0
        %5702 = vmatmul.mubr.bf16.gmra.mrb[0].mxu0 %v5307
        %v5703 = vpop.f32.mrb[0].mxu0
        %v5704 = vadd.f32 0.0, %v5703
        %v5705 = vpop.f32.mrb[0].mxu0
        %v5706 = vadd.f32 0.0, %v5705
        %v5707 = vpop.f32.mrb[0].mxu0
        %v5708 = vadd.f32 0.0, %v5707
        %v5709 = vpop.f32.mrb[0].mxu0
        %v5710 = vadd.f32 0.0, %v5709
        %5711 = vmatprep.mubr.bf16.mxu0 0
        %5712 = vmatmul.mubr.bf16.gmra.mrb[0].mxu0 %v5310
        %v5713 = vpop.f32.mrb[0].mxu0
        %v5714 = vadd.f32 0.0, %v5713
        %v5715 = vpop.f32.mrb[0].mxu0
        %v5716 = vadd.f32 0.0, %v5715
        %v5717 = vpop.f32.mrb[0].mxu0
        %v5718 = vadd.f32 0.0, %v5717
        %v5719 = vpop.f32.mrb[0].mxu0
        %v5720 = vadd.f32 0.0, %v5719
        %5721 = vmatprep.mubr.bf16.mxu0 0
        %5722 = vmatmul.mubr.bf16.gmra.mrb[0].mxu0 %v5313
        %v5723 = vpop.f32.mrb[0].mxu0
        %v5724 = vadd.f32 0.0, %v5723
        %v5725 = vpop.f32.mrb[0].mxu0
        %v5726 = vadd.f32 0.0, %v5725
        %v5727 = vpop.f32.mrb[0].mxu0
        %v5728 = vadd.f32 0.0, %v5727
        %v5729 = vpop.f32.mrb[0].mxu0
        %v5730 = vadd.f32 0.0, %v5729
        %5731 = vmatprep.mubr.bf16.mxu0 0
        %5732 = vmatmul.mubr.bf16.gmra.mrb[0].mxu0 %v5316
        %v5733 = vpop.f32.mrb[0].mxu0
        %v5734 = vadd.f32 0.0, %v5733
        %v5735 = vpop.f32.mrb[0].mxu0
        %v5736 = vadd.f32 0.0, %v5735
        %v5737 = vpop.f32.mrb[0].mxu0
        %v5738 = vadd.f32 0.0, %v5737
        %v5739 = vpop.f32.mrb[0].mxu0
        %v5740 = vadd.f32 0.0, %v5739
        %5741 = vmatprep.mubr.bf16.mxu0 0
        %5742 = vmatmul.mubr.bf16.gmra.mrb[0].mxu0 %v5319
        %v5743 = vpop.f32.mrb[0].mxu0
        %v5744 = vadd.f32 0.0, %v5743
        %v5745 = vpop.f32.mrb[0].mxu0
        %v5746 = vadd.f32 0.0, %v5745
        %v5747 = vpop.f32.mrb[0].mxu0
        %v5748 = vadd.f32 0.0, %v5747
        %v5749 = vpop.f32.mrb[0].mxu0
        %v5750 = vadd.f32 0.0, %v5749
        %5751 = vmatprep.mubr.bf16.mxu0 0
        %5752 = vmatmul.mubr.bf16.gmra.mrb[0].mxu0 %v5322
        %v5753 = vpop.f32.mrb[0].mxu0
        %v5754 = vadd.f32 0.0, %v5753
        %v5755 = vpop.f32.mrb[0].mxu0
        %v5756 = vadd.f32 0.0, %v5755
        %v5757 = vpop.f32.mrb[0].mxu0
        %v5758 = vadd.f32 0.0, %v5757
        %v5759 = vpop.f32.mrb[0].mxu0
        %v5760 = vadd.f32 0.0, %v5759
        %5761 = vmatprep.mubr.bf16.mxu0 0
        %5762 = vmatmul.mubr.bf16.gmra.mrb[0].mxu0 %v5325
        %v5763 = vpop.f32.mrb[0].mxu0
        %v5764 = vadd.f32 0.0, %v5763
        %v5765 = vpop.f32.mrb[0].mxu0
        %v5766 = vadd.f32 0.0, %v5765
        %v5767 = vpop.f32.mrb[0].mxu0
        %v5768 = vadd.f32 0.0, %v5767
        %v5769 = vpop.f32.mrb[0].mxu0
        %v5770 = vadd.f32 0.0, %v5769
        %5771 = vmatprep.mubr.bf16.mxu0 0
        %5772 = vmatmul.mubr.bf16.gmra.mrb[0].mxu0 %v5328
        %v5773 = vpop.f32.mrb[0].mxu0
        %v5774 = vadd.f32 0.0, %v5773
        %v5775 = vpop.f32.mrb[0].mxu0
        %v5776 = vadd.f32 0.0, %v5775
        %v5777 = vpop.f32.mrb[0].mxu0
        %v5778 = vadd.f32 0.0, %v5777
        %v5779 = vpop.f32.mrb[0].mxu0
        %v5780 = vadd.f32 0.0, %v5779
        %5781 = vmatprep.mubr.bf16.mxu0 0
        %5782 = vmatmul.mubr.bf16.gmra.mrb[0].mxu0 %v5331
        %v5783 = vpop.f32.mrb[0].mxu0
        %v5784 = vadd.f32 0.0, %v5783
        %v5785 = vpop.f32.mrb[0].mxu0
        %v5786 = vadd.f32 0.0, %v5785
        %v5787 = vpop.f32.mrb[0].mxu0
        %v5788 = vadd.f32 0.0, %v5787
        %v5789 = vpop.f32.mrb[0].mxu0
        %v5790 = vadd.f32 0.0, %v5789
        %5791 = vmatprep.mubr.bf16.mxu0 0
        %5792 = vmatmul.mubr.bf16.gmra.mrb[0].mxu0 %v5334
        %v5793 = vpop.f32.mrb[0].mxu0
        %v5794 = vadd.f32 0.0, %v5793
        %v5795 = vpop.f32.mrb[0].mxu0
        %v5796 = vadd.f32 0.0, %v5795
        %v5797 = vpop.f32.mrb[0].mxu0
        %v5798 = vadd.f32 0.0, %v5797
        %v5799 = vpop.f32.mrb[0].mxu0
        %v5800 = vadd.f32 0.0, %v5799
        %5801 = vmatprep.mubr.bf16.mxu0 0
        %5802 = vmatmul.mubr.bf16.gmra.mrb[0].mxu0 %v5337
        %v5803 = vpop.f32.mrb[0].mxu0
        %v5804 = vadd.f32 0.0, %v5803
        %v5805 = vpop.f32.mrb[0].mxu0
        %v5806 = vadd.f32 0.0, %v5805
        %v5807 = vpop.f32.mrb[0].mxu0
        %v5808 = vadd.f32 0.0, %v5807
        %v5809 = vpop.f32.mrb[0].mxu0
        %v5810 = vadd.f32 0.0, %v5809
        %5811 = vmatprep.mubr.bf16.mxu0 0
        %5812 = vmatmul.mubr.bf16.gmra.mrb[0].mxu0 %v5340
        %v5813 = vpop.f32.mrb[0].mxu0
        %v5814 = vadd.f32 0.0, %v5813
        %v5815 = vpop.f32.mrb[0].mxu0
        %v5816 = vadd.f32 0.0, %v5815
        %v5817 = vpop.f32.mrb[0].mxu0
        %v5818 = vadd.f32 0.0, %v5817
        %v5819 = vpop.f32.mrb[0].mxu0
        %v5820 = vadd.f32 0.0, %v5819
        %5821 = vdwg.mxu0
        %5822 = vmatprep.subr.bf16.mxu0 0
        %5823 = vmatpush1.bf16.msra.mxu0 %v5221
        %5824 = vmatprep.subr.bf16.mxu0 0
        %5825 = vmatpush1.bf16.msra.mxu0 %v5228
        %5826 = vmatprep.subr.bf16.mxu0 0
        %5827 = vmatpush1.bf16.msra.mxu0 %v5235
        %5828 = vmatprep.subr.bf16.mxu0 0
        %5829 = vmatpush1.bf16.msra.mxu0 %v5242
        %5830 = vmatprep.subr.bf16.mxu0 0
        %5831 = vmatpush1.bf16.msra.mxu0 %v5249
        %5832 = vmatprep.subr.bf16.mxu0 0
        %5833 = vmatpush1.bf16.msra.mxu0 %v5256
        %5834 = vmatprep.subr.bf16.mxu0 0
        %5835 = vmatpush1.bf16.msra.mxu0 %v5361
        %5836 = vmatprep.subr.bf16.mxu0 0
        %5837 = vmatpush1.bf16.msra.mxu0 0
        %5838 = vmatprep.subr.bf16.mxu0 0
        %5839 = vmatpush1.bf16.msra.mxu0 0
        %5840 = vmatprep.subr.bf16.mxu0 0
        %5841 = vmatpush1.bf16.msra.mxu0 0
        %5842 = vmatprep.subr.bf16.mxu0 0
        %5843 = vmatpush1.bf16.msra.mxu0 0
        %5844 = vmatprep.subr.bf16.mxu0 0
        %5845 = vmatpush1.bf16.msra.mxu0 0
        %5846 = vmatprep.subr.bf16.mxu0 0
        %5847 = vmatpush1.bf16.msra.mxu0 0
        %5848 = vmatprep.subr.bf16.mxu0 0
        %5849 = vmatpush1.bf16.msra.mxu0 0
        %5850 = vmatprep.subr.bf16.mxu0 0
        %5851 = vmatpush1.bf16.msra.mxu0 0
        %5852 = vmatprep.subr.bf16.mxu0 0
        %5853 = vmatpush1.bf16.msra.mxu0 0
        %5854 = vmatprep.mubr.bf16.mxu0 0
        %5855 = vmatmul.mubr.bf16.gmra.mrb[0].mxu0 %v5307
        %v5856 = vpop.f32.mrb[0].mxu0
        %v5857 = vadd.f32 0.0, %v5856
        %v5858 = vpop.f32.mrb[0].mxu0
        %v5859 = vpop.f32.mrb[0].mxu0
        %v5860 = vadd.f32 0.0, %v5859
        %v5861 = vpop.f32.mrb[0].mxu0
        %5862 = vmatprep.mubr.bf16.mxu0 0
        %5863 = vmatmul.mubr.bf16.gmra.mrb[0].mxu0 %v5310
        %v5864 = vpop.f32.mrb[0].mxu0
        %v5865 = vadd.f32 0.0, %v5864
        %v5866 = vpop.f32.mrb[0].mxu0
        %v5867 = vpop.f32.mrb[0].mxu0
        %v5868 = vadd.f32 0.0, %v5867
        %v5869 = vpop.f32.mrb[0].mxu0
        %5870 = vmatprep.mubr.bf16.mxu0 0
        %5871 = vmatmul.mubr.bf16.gmra.mrb[0].mxu0 %v5313
        %v5872 = vpop.f32.mrb[0].mxu0
        %v5873 = vadd.f32 0.0, %v5872
        %v5874 = vpop.f32.mrb[0].mxu0
        %v5875 = vpop.f32.mrb[0].mxu0
        %v5876 = vadd.f32 0.0, %v5875
        %v5877 = vpop.f32.mrb[0].mxu0
        %5878 = vmatprep.mubr.bf16.mxu0 0
        %5879 = vmatmul.mubr.bf16.gmra.mrb[0].mxu0 %v5316
        %v5880 = vpop.f32.mrb[0].mxu0
        %v5881 = vadd.f32 0.0, %v5880
        %v5882 = vpop.f32.mrb[0].mxu0
        %v5883 = vpop.f32.mrb[0].mxu0
        %v5884 = vadd.f32 0.0, %v5883
        %v5885 = vpop.f32.mrb[0].mxu0
        %5886 = vmatprep.mubr.bf16.mxu0 0
        %5887 = vmatmul.mubr.bf16.gmra.mrb[0].mxu0 %v5319
        %v5888 = vpop.f32.mrb[0].mxu0
        %v5889 = vadd.f32 0.0, %v5888
        %v5890 = vpop.f32.mrb[0].mxu0
        %v5891 = vpop.f32.mrb[0].mxu0
        %v5892 = vadd.f32 0.0, %v5891
        %v5893 = vpop.f32.mrb[0].mxu0
        %5894 = vmatprep.mubr.bf16.mxu0 0
        %5895 = vmatmul.mubr.bf16.gmra.mrb[0].mxu0 %v5322
        %v5896 = vpop.f32.mrb[0].mxu0
        %v5897 = vadd.f32 0.0, %v5896
        %v5898 = vpop.f32.mrb[0].mxu0
        %v5899 = vpop.f32.mrb[0].mxu0
        %v5900 = vadd.f32 0.0, %v5899
        %v5901 = vpop.f32.mrb[0].mxu0
        %5902 = vmatprep.mubr.bf16.mxu0 0
        %5903 = vmatmul.mubr.bf16.gmra.mrb[0].mxu0 %v5325
        %v5904 = vpop.f32.mrb[0].mxu0
        %v5905 = vadd.f32 0.0, %v5904
        %v5906 = vpop.f32.mrb[0].mxu0
        %v5907 = vpop.f32.mrb[0].mxu0
        %v5908 = vadd.f32 0.0, %v5907
        %v5909 = vpop.f32.mrb[0].mxu0
        %5910 = vmatprep.mubr.bf16.mxu0 0
        %5911 = vmatmul.mubr.bf16.gmra.mrb[0].mxu0 %v5328
        %v5912 = vpop.f32.mrb[0].mxu0
        %v5913 = vadd.f32 0.0, %v5912
        %v5914 = vpop.f32.mrb[0].mxu0
        %v5915 = vpop.f32.mrb[0].mxu0
        %v5916 = vadd.f32 0.0, %v5915
        %v5917 = vpop.f32.mrb[0].mxu0
        %5918 = vmatprep.mubr.bf16.mxu0 0
        %5919 = vmatmul.mubr.bf16.gmra.mrb[0].mxu0 %v5331
        %v5920 = vpop.f32.mrb[0].mxu0
        %v5921 = vadd.f32 0.0, %v5920
        %v5922 = vpop.f32.mrb[0].mxu0
        %v5923 = vpop.f32.mrb[0].mxu0
        %v5924 = vadd.f32 0.0, %v5923
        %v5925 = vpop.f32.mrb[0].mxu0
        %5926 = vmatprep.mubr.bf16.mxu0 0
        %5927 = vmatmul.mubr.bf16.gmra.mrb[0].mxu0 %v5334
        %v5928 = vpop.f32.mrb[0].mxu0
        %v5929 = vadd.f32 0.0, %v5928
        %v5930 = vpop.f32.mrb[0].mxu0
        %v5931 = vpop.f32.mrb[0].mxu0
        %v5932 = vadd.f32 0.0, %v5931
        %v5933 = vpop.f32.mrb[0].mxu0
        %5934 = vmatprep.mubr.bf16.mxu0 0
        %5935 = vmatmul.mubr.bf16.gmra.mrb[0].mxu0 %v5337
        %v5936 = vpop.f32.mrb[0].mxu0
        %v5937 = vadd.f32 0.0, %v5936
        %v5938 = vpop.f32.mrb[0].mxu0
        %v5939 = vpop.f32.mrb[0].mxu0
        %v5940 = vadd.f32 0.0, %v5939
        %v5941 = vpop.f32.mrb[0].mxu0
        %5942 = vmatprep.mubr.bf16.mxu0 0
        %5943 = vmatmul.mubr.bf16.gmra.mrb[0].mxu0 %v5340
        %v5944 = vpop.f32.mrb[0].mxu0
        %v5945 = vadd.f32 0.0, %v5944
        %v5946 = vpop.f32.mrb[0].mxu0
        %v5947 = vpop.f32.mrb[0].mxu0
        %v5948 = vadd.f32 0.0, %v5947
        %v5949 = vpop.f32.mrb[0].mxu0
        %5950 = vdwg.mxu0
        %v5951 = vrot.slane %v5400, 7
        %v5952 = vrot.slane %v5404, 7
        %v5953 = vrot.slane %v5410, 7
        %v5954 = vrot.slane %v5414, 7
        %v5955 = vrot.slane %v5420, 7
        %v5956 = vrot.slane %v5424, 7
        %v5957 = vrot.slane %v5430, 7
        %v5958 = vrot.slane %v5434, 7
        %v5959 = vrot.slane %v5440, 7
        %v5960 = vrot.slane %v5444, 7
        %v5961 = vrot.slane %v5450, 7
        %v5962 = vrot.slane %v5454, 7
        %v5963 = vrot.slane %v5460, 7
        %v5964 = vrot.slane %v5464, 7
        %v5965 = vrot.slane %v5470, 7
        %v5966 = vrot.slane %v5474, 7
        %v5967 = vrot.slane %v5480, 7
        %v5968 = vrot.slane %v5484, 7
        %v5969 = vrot.slane %v5490, 7
        %v5970 = vrot.slane %v5494, 7
        %v5971 = vrot.slane %v5500, 7
        %v5972 = vrot.slane %v5504, 7
        %v5973 = vrot.slane %v5510, 7
        %v5974 = vrot.slane %v5514, 7
        %v5975 = vsel %vm1502, %v5973, %v5974
        %v5976 = vsel %vm1502, %v5972, %v5973
        %v5977 = vsel %vm1502, %v5971, %v5972
        %v5978 = vsel %vm1502, %v5970, %v5971
        %v5979 = vsel %vm1502, %v5969, %v5970
        %v5980 = vsel %vm1502, %v5968, %v5969
        %v5981 = vsel %vm1502, %v5967, %v5968
        %v5982 = vsel %vm1502, %v5966, %v5967
        %v5983 = vsel %vm1502, %v5965, %v5966
        %v5984 = vsel %vm1502, %v5964, %v5965
        %v5985 = vsel %vm1502, %v5963, %v5964
        %v5986 = vsel %vm1502, %v5962, %v5963
        %v5987 = vsel %vm1502, %v5961, %v5962
        %v5988 = vsel %vm1502, %v5960, %v5961
        %v5989 = vsel %vm1502, %v5959, %v5960
        %v5990 = vsel %vm1502, %v5958, %v5959
        %v5991 = vsel %vm1502, %v5957, %v5958
        %v5992 = vsel %vm1502, %v5956, %v5957
        %v5993 = vsel %vm1502, %v5955, %v5956
        %v5994 = vsel %vm1502, %v5954, %v5955
        %v5995 = vsel %vm1502, %v5953, %v5954
        %v5996 = vsel %vm1502, %v5952, %v5953
        %v5997 = vsel %vm1502, %v5951, %v5952
        %v5998 = vsel %vm1502, %v5974, %v5951
        %v5999 = vadd.f32 %v5398, %v5998
        %v6000 = vadd.f32 %v5402, %v5997
        %v6001 = vadd.f32 %v5408, %v5996
        %v6002 = vadd.f32 %v5412, %v5995
        %v6003 = vadd.f32 %v5418, %v5994
        %v6004 = vadd.f32 %v5422, %v5993
        %v6005 = vadd.f32 %v5428, %v5992
        %v6006 = vadd.f32 %v5432, %v5991
        %v6007 = vadd.f32 %v5438, %v5990
        %v6008 = vadd.f32 %v5442, %v5989
        %v6009 = vadd.f32 %v5448, %v5988
        %v6010 = vadd.f32 %v5452, %v5987
        %v6011 = vadd.f32 %v5458, %v5986
        %v6012 = vadd.f32 %v5462, %v5985
        %v6013 = vadd.f32 %v5468, %v5984
        %v6014 = vadd.f32 %v5472, %v5983
        %v6015 = vadd.f32 %v5478, %v5982
        %v6016 = vadd.f32 %v5482, %v5981
        %v6017 = vadd.f32 %v5488, %v5980
        %v6018 = vadd.f32 %v5492, %v5979
        %v6019 = vadd.f32 %v5498, %v5978
        %v6020 = vadd.f32 %v5502, %v5977
        %v6021 = vadd.f32 %v5508, %v5976
        %v6022 = vadd.f32 %v5512, %v5975
        %v6023 = vrot.slane %v5551, 6
        %v6024 = vrot.slane %v5555, 6
        %v6025 = vrot.slane %v5561, 6
        %v6026 = vrot.slane %v5565, 6
        %v6027 = vrot.slane %v5571, 6
        %v6028 = vrot.slane %v5575, 6
        %v6029 = vrot.slane %v5581, 6
        %v6030 = vrot.slane %v5585, 6
        %v6031 = vrot.slane %v5591, 6
        %v6032 = vrot.slane %v5595, 6
        %v6033 = vrot.slane %v5601, 6
        %v6034 = vrot.slane %v5605, 6
        %v6035 = vrot.slane %v5611, 6
        %v6036 = vrot.slane %v5615, 6
        %v6037 = vrot.slane %v5621, 6
        %v6038 = vrot.slane %v5625, 6
        %v6039 = vrot.slane %v5631, 6
        %v6040 = vrot.slane %v5635, 6
        %v6041 = vrot.slane %v5641, 6
        %v6042 = vrot.slane %v5645, 6
        %v6043 = vrot.slane %v5651, 6
        %v6044 = vrot.slane %v5655, 6
        %v6045 = vrot.slane %v5661, 6
        %v6046 = vrot.slane %v5665, 6
        %v6047 = vsel %vm1575, %v6045, %v6046
        %v6048 = vsel %vm1575, %v6044, %v6045
        %v6049 = vsel %vm1575, %v6043, %v6044
        %v6050 = vsel %vm1575, %v6042, %v6043
        %v6051 = vsel %vm1575, %v6041, %v6042
        %v6052 = vsel %vm1575, %v6040, %v6041
        %v6053 = vsel %vm1575, %v6039, %v6040
        %v6054 = vsel %vm1575, %v6038, %v6039
        %v6055 = vsel %vm1575, %v6037, %v6038
        %v6056 = vsel %vm1575, %v6036, %v6037
        %v6057 = vsel %vm1575, %v6035, %v6036
        %v6058 = vsel %vm1575, %v6034, %v6035
        %v6059 = vsel %vm1575, %v6033, %v6034
        %v6060 = vsel %vm1575, %v6032, %v6033
        %v6061 = vsel %vm1575, %v6031, %v6032
        %v6062 = vsel %vm1575, %v6030, %v6031
        %v6063 = vsel %vm1575, %v6029, %v6030
        %v6064 = vsel %vm1575, %v6028, %v6029
        %v6065 = vsel %vm1575, %v6027, %v6028
        %v6066 = vsel %vm1575, %v6026, %v6027
        %v6067 = vsel %vm1575, %v6025, %v6026
        %v6068 = vsel %vm1575, %v6024, %v6025
        %v6069 = vsel %vm1575, %v6023, %v6024
        %v6070 = vsel %vm1575, %v6046, %v6023
        %v6071 = vadd.f32 %v5999, %v6070
        %v6072 = vadd.f32 %v6000, %v6069
        %v6073 = vadd.f32 %v6001, %v6068
        %v6074 = vadd.f32 %v6002, %v6067
        %v6075 = vadd.f32 %v6003, %v6066
        %v6076 = vadd.f32 %v6004, %v6065
        %v6077 = vadd.f32 %v6005, %v6064
        %v6078 = vadd.f32 %v6006, %v6063
        %v6079 = vadd.f32 %v6007, %v6062
        %v6080 = vadd.f32 %v6008, %v6061
        %v6081 = vadd.f32 %v6009, %v6060
        %v6082 = vadd.f32 %v6010, %v6059
        %v6083 = vadd.f32 %v6011, %v6058
        %v6084 = vadd.f32 %v6012, %v6057
        %v6085 = vadd.f32 %v6013, %v6056
        %v6086 = vadd.f32 %v6014, %v6055
        %v6087 = vadd.f32 %v6015, %v6054
        %v6088 = vadd.f32 %v6016, %v6053
        %v6089 = vadd.f32 %v6017, %v6052
        %v6090 = vadd.f32 %v6018, %v6051
        %v6091 = vadd.f32 %v6019, %v6050
        %v6092 = vadd.f32 %v6020, %v6049
        %v6093 = vadd.f32 %v6021, %v6048
        %v6094 = vadd.f32 %v6022, %v6047
        %v6095 = vrot.slane %v5553, 5
        %v6096 = vrot.slane %v5557, 5
        %v6097 = vrot.slane %v5563, 5
        %v6098 = vrot.slane %v5567, 5
        %v6099 = vrot.slane %v5573, 5
        %v6100 = vrot.slane %v5577, 5
        %v6101 = vrot.slane %v5583, 5
        %v6102 = vrot.slane %v5587, 5
        %v6103 = vrot.slane %v5593, 5
        %v6104 = vrot.slane %v5597, 5
        %v6105 = vrot.slane %v5603, 5
        %v6106 = vrot.slane %v5607, 5
        %v6107 = vrot.slane %v5613, 5
        %v6108 = vrot.slane %v5617, 5
        %v6109 = vrot.slane %v5623, 5
        %v6110 = vrot.slane %v5627, 5
        %v6111 = vrot.slane %v5633, 5
        %v6112 = vrot.slane %v5637, 5
        %v6113 = vrot.slane %v5643, 5
        %v6114 = vrot.slane %v5647, 5
        %v6115 = vrot.slane %v5653, 5
        %v6116 = vrot.slane %v5657, 5
        %v6117 = vrot.slane %v5663, 5
        %v6118 = vrot.slane %v5667, 5
        %v6119 = vsel %vm1648, %v6117, %v6118
        %v6120 = vsel %vm1648, %v6116, %v6117
        %v6121 = vsel %vm1648, %v6115, %v6116
        %v6122 = vsel %vm1648, %v6114, %v6115
        %v6123 = vsel %vm1648, %v6113, %v6114
        %v6124 = vsel %vm1648, %v6112, %v6113
        %v6125 = vsel %vm1648, %v6111, %v6112
        %v6126 = vsel %vm1648, %v6110, %v6111
        %v6127 = vsel %vm1648, %v6109, %v6110
        %v6128 = vsel %vm1648, %v6108, %v6109
        %v6129 = vsel %vm1648, %v6107, %v6108
        %v6130 = vsel %vm1648, %v6106, %v6107
        %v6131 = vsel %vm1648, %v6105, %v6106
        %v6132 = vsel %vm1648, %v6104, %v6105
        %v6133 = vsel %vm1648, %v6103, %v6104
        %v6134 = vsel %vm1648, %v6102, %v6103
        %v6135 = vsel %vm1648, %v6101, %v6102
        %v6136 = vsel %vm1648, %v6100, %v6101
        %v6137 = vsel %vm1648, %v6099, %v6100
        %v6138 = vsel %vm1648, %v6098, %v6099
        %v6139 = vsel %vm1648, %v6097, %v6098
        %v6140 = vsel %vm1648, %v6096, %v6097
        %v6141 = vsel %vm1648, %v6095, %v6096
        %v6142 = vsel %vm1648, %v6118, %v6095
        %v6143 = vadd.f32 %v6071, %v6142
        %v6144 = vadd.f32 %v6072, %v6141
        %v6145 = vadd.f32 %v6073, %v6140
        %v6146 = vadd.f32 %v6074, %v6139
        %v6147 = vadd.f32 %v6075, %v6138
        %v6148 = vadd.f32 %v6076, %v6137
        %v6149 = vadd.f32 %v6077, %v6136
        %v6150 = vadd.f32 %v6078, %v6135
        %v6151 = vadd.f32 %v6079, %v6134
        %v6152 = vadd.f32 %v6080, %v6133
        %v6153 = vadd.f32 %v6081, %v6132
        %v6154 = vadd.f32 %v6082, %v6131
        %v6155 = vadd.f32 %v6083, %v6130
        %v6156 = vadd.f32 %v6084, %v6129
        %v6157 = vadd.f32 %v6085, %v6128
        %v6158 = vadd.f32 %v6086, %v6127
        %v6159 = vadd.f32 %v6087, %v6126
        %v6160 = vadd.f32 %v6088, %v6125
        %v6161 = vadd.f32 %v6089, %v6124
        %v6162 = vadd.f32 %v6090, %v6123
        %v6163 = vadd.f32 %v6091, %v6122
        %v6164 = vadd.f32 %v6092, %v6121
        %v6165 = vadd.f32 %v6093, %v6120
        %v6166 = vadd.f32 %v6094, %v6119
        %v6167 = vrot.slane %v5704, 4
        %v6168 = vrot.slane %v5708, 4
        %v6169 = vrot.slane %v5714, 4
        %v6170 = vrot.slane %v5718, 4
        %v6171 = vrot.slane %v5724, 4
        %v6172 = vrot.slane %v5728, 4
        %v6173 = vrot.slane %v5734, 4
        %v6174 = vrot.slane %v5738, 4
        %v6175 = vrot.slane %v5744, 4
        %v6176 = vrot.slane %v5748, 4
        %v6177 = vrot.slane %v5754, 4
        %v6178 = vrot.slane %v5758, 4
        %v6179 = vrot.slane %v5764, 4
        %v6180 = vrot.slane %v5768, 4
        %v6181 = vrot.slane %v5774, 4
        %v6182 = vrot.slane %v5778, 4
        %v6183 = vrot.slane %v5784, 4
        %v6184 = vrot.slane %v5788, 4
        %v6185 = vrot.slane %v5794, 4
        %v6186 = vrot.slane %v5798, 4
        %v6187 = vrot.slane %v5804, 4
        %v6188 = vrot.slane %v5808, 4
        %v6189 = vrot.slane %v5814, 4
        %v6190 = vrot.slane %v5818, 4
        %v6191 = vsel %vm1721, %v6189, %v6190
        %v6192 = vsel %vm1721, %v6188, %v6189
        %v6193 = vsel %vm1721, %v6187, %v6188
        %v6194 = vsel %vm1721, %v6186, %v6187
        %v6195 = vsel %vm1721, %v6185, %v6186
        %v6196 = vsel %vm1721, %v6184, %v6185
        %v6197 = vsel %vm1721, %v6183, %v6184
        %v6198 = vsel %vm1721, %v6182, %v6183
        %v6199 = vsel %vm1721, %v6181, %v6182
        %v6200 = vsel %vm1721, %v6180, %v6181
        %v6201 = vsel %vm1721, %v6179, %v6180
        %v6202 = vsel %vm1721, %v6178, %v6179
        %v6203 = vsel %vm1721, %v6177, %v6178
        %v6204 = vsel %vm1721, %v6176, %v6177
        %v6205 = vsel %vm1721, %v6175, %v6176
        %v6206 = vsel %vm1721, %v6174, %v6175
        %v6207 = vsel %vm1721, %v6173, %v6174
        %v6208 = vsel %vm1721, %v6172, %v6173
        %v6209 = vsel %vm1721, %v6171, %v6172
        %v6210 = vsel %vm1721, %v6170, %v6171
        %v6211 = vsel %vm1721, %v6169, %v6170
        %v6212 = vsel %vm1721, %v6168, %v6169
        %v6213 = vsel %vm1721, %v6167, %v6168
        %v6214 = vsel %vm1721, %v6190, %v6167
        %v6215 = vadd.f32 %v6143, %v6214
        %v6216 = vadd.f32 %v6144, %v6213
        %v6217 = vadd.f32 %v6145, %v6212
        %v6218 = vadd.f32 %v6146, %v6211
        %v6219 = vadd.f32 %v6147, %v6210
        %v6220 = vadd.f32 %v6148, %v6209
        %v6221 = vadd.f32 %v6149, %v6208
        %v6222 = vadd.f32 %v6150, %v6207
        %v6223 = vadd.f32 %v6151, %v6206
        %v6224 = vadd.f32 %v6152, %v6205
        %v6225 = vadd.f32 %v6153, %v6204
        %v6226 = vadd.f32 %v6154, %v6203
        %v6227 = vadd.f32 %v6155, %v6202
        %v6228 = vadd.f32 %v6156, %v6201
        %v6229 = vadd.f32 %v6157, %v6200
        %v6230 = vadd.f32 %v6158, %v6199
        %v6231 = vadd.f32 %v6159, %v6198
        %v6232 = vadd.f32 %v6160, %v6197
        %v6233 = vadd.f32 %v6161, %v6196
        %v6234 = vadd.f32 %v6162, %v6195
        %v6235 = vadd.f32 %v6163, %v6194
        %v6236 = vadd.f32 %v6164, %v6193
        %v6237 = vadd.f32 %v6165, %v6192
        %v6238 = vadd.f32 %v6166, %v6191
        %v6239 = vrot.slane %v5706, 3
        %v6240 = vrot.slane %v5710, 3
        %v6241 = vrot.slane %v5716, 3
        %v6242 = vrot.slane %v5720, 3
        %v6243 = vrot.slane %v5726, 3
        %v6244 = vrot.slane %v5730, 3
        %v6245 = vrot.slane %v5736, 3
        %v6246 = vrot.slane %v5740, 3
        %v6247 = vrot.slane %v5746, 3
        %v6248 = vrot.slane %v5750, 3
        %v6249 = vrot.slane %v5756, 3
        %v6250 = vrot.slane %v5760, 3
        %v6251 = vrot.slane %v5766, 3
        %v6252 = vrot.slane %v5770, 3
        %v6253 = vrot.slane %v5776, 3
        %v6254 = vrot.slane %v5780, 3
        %v6255 = vrot.slane %v5786, 3
        %v6256 = vrot.slane %v5790, 3
        %v6257 = vrot.slane %v5796, 3
        %v6258 = vrot.slane %v5800, 3
        %v6259 = vrot.slane %v5806, 3
        %v6260 = vrot.slane %v5810, 3
        %v6261 = vrot.slane %v5816, 3
        %v6262 = vrot.slane %v5820, 3
        %v6263 = vsel %vm1794, %v6261, %v6262
        %v6264 = vsel %vm1794, %v6260, %v6261
        %v6265 = vsel %vm1794, %v6259, %v6260
        %v6266 = vsel %vm1794, %v6258, %v6259
        %v6267 = vsel %vm1794, %v6257, %v6258
        %v6268 = vsel %vm1794, %v6256, %v6257
        %v6269 = vsel %vm1794, %v6255, %v6256
        %v6270 = vsel %vm1794, %v6254, %v6255
        %v6271 = vsel %vm1794, %v6253, %v6254
        %v6272 = vsel %vm1794, %v6252, %v6253
        %v6273 = vsel %vm1794, %v6251, %v6252
        %v6274 = vsel %vm1794, %v6250, %v6251
        %v6275 = vsel %vm1794, %v6249, %v6250
        %v6276 = vsel %vm1794, %v6248, %v6249
        %v6277 = vsel %vm1794, %v6247, %v6248
        %v6278 = vsel %vm1794, %v6246, %v6247
        %v6279 = vsel %vm1794, %v6245, %v6246
        %v6280 = vsel %vm1794, %v6244, %v6245
        %v6281 = vsel %vm1794, %v6243, %v6244
        %v6282 = vsel %vm1794, %v6242, %v6243
        %v6283 = vsel %vm1794, %v6241, %v6242
        %v6284 = vsel %vm1794, %v6240, %v6241
        %v6285 = vsel %vm1794, %v6239, %v6240
        %v6286 = vsel %vm1794, %v6262, %v6239
        %v6287 = vadd.f32 %v6215, %v6286
        %v6288 = vadd.f32 %v6216, %v6285
        %v6289 = vadd.f32 %v6217, %v6284
        %v6290 = vadd.f32 %v6218, %v6283
        %v6291 = vadd.f32 %v6219, %v6282
        %v6292 = vadd.f32 %v6220, %v6281
        %v6293 = vadd.f32 %v6221, %v6280
        %v6294 = vadd.f32 %v6222, %v6279
        %v6295 = vadd.f32 %v6223, %v6278
        %v6296 = vadd.f32 %v6224, %v6277
        %v6297 = vadd.f32 %v6225, %v6276
        %v6298 = vadd.f32 %v6226, %v6275
        %v6299 = vadd.f32 %v6227, %v6274
        %v6300 = vadd.f32 %v6228, %v6273
        %v6301 = vadd.f32 %v6229, %v6272
        %v6302 = vadd.f32 %v6230, %v6271
        %v6303 = vadd.f32 %v6231, %v6270
        %v6304 = vadd.f32 %v6232, %v6269
        %v6305 = vadd.f32 %v6233, %v6268
        %v6306 = vadd.f32 %v6234, %v6267
        %v6307 = vadd.f32 %v6235, %v6266
        %v6308 = vadd.f32 %v6236, %v6265
        %v6309 = vadd.f32 %v6237, %v6264
        %v6310 = vadd.f32 %v6238, %v6263
        %v6311 = vrot.slane %v5857, 2
        %v6312 = vrot.slane %v5860, 2
        %v6313 = vrot.slane %v5865, 2
        %v6314 = vrot.slane %v5868, 2
        %v6315 = vrot.slane %v5873, 2
        %v6316 = vrot.slane %v5876, 2
        %v6317 = vrot.slane %v5881, 2
        %v6318 = vrot.slane %v5884, 2
        %v6319 = vrot.slane %v5889, 2
        %v6320 = vrot.slane %v5892, 2
        %v6321 = vrot.slane %v5897, 2
        %v6322 = vrot.slane %v5900, 2
        %v6323 = vrot.slane %v5905, 2
        %v6324 = vrot.slane %v5908, 2
        %v6325 = vrot.slane %v5913, 2
        %v6326 = vrot.slane %v5916, 2
        %v6327 = vrot.slane %v5921, 2
        %v6328 = vrot.slane %v5924, 2
        %v6329 = vrot.slane %v5929, 2
        %v6330 = vrot.slane %v5932, 2
        %v6331 = vrot.slane %v5937, 2
        %v6332 = vrot.slane %v5940, 2
        %v6333 = vrot.slane %v5945, 2
        %v6334 = vrot.slane %v5948, 2
        %v6335 = vsel %vm1867, %v6333, %v6334
        %v6336 = vsel %vm1867, %v6332, %v6333
        %v6337 = vsel %vm1867, %v6331, %v6332
        %v6338 = vsel %vm1867, %v6330, %v6331
        %v6339 = vsel %vm1867, %v6329, %v6330
        %v6340 = vsel %vm1867, %v6328, %v6329
        %v6341 = vsel %vm1867, %v6327, %v6328
        %v6342 = vsel %vm1867, %v6326, %v6327
        %v6343 = vsel %vm1867, %v6325, %v6326
        %v6344 = vsel %vm1867, %v6324, %v6325
        %v6345 = vsel %vm1867, %v6323, %v6324
        %v6346 = vsel %vm1867, %v6322, %v6323
        %v6347 = vsel %vm1867, %v6321, %v6322
        %v6348 = vsel %vm1867, %v6320, %v6321
        %v6349 = vsel %vm1867, %v6319, %v6320
        %v6350 = vsel %vm1867, %v6318, %v6319
        %v6351 = vsel %vm1867, %v6317, %v6318
        %v6352 = vsel %vm1867, %v6316, %v6317
        %v6353 = vsel %vm1867, %v6315, %v6316
        %v6354 = vsel %vm1867, %v6314, %v6315
        %v6355 = vsel %vm1867, %v6313, %v6314
        %v6356 = vsel %vm1867, %v6312, %v6313
        %v6357 = vsel %vm1867, %v6311, %v6312
        %v6358 = vsel %vm1867, %v6334, %v6311
        %v6359 = vadd.f32 %v6287, %v6358
        %v6360 = vadd.f32 %v6288, %v6357
        %v6361 = vadd.f32 %v6289, %v6356
        %v6362 = vadd.f32 %v6290, %v6355
        %v6363 = vadd.f32 %v6291, %v6354
        %v6364 = vadd.f32 %v6292, %v6353
        %v6365 = vadd.f32 %v6293, %v6352
        %v6366 = vadd.f32 %v6294, %v6351
        %v6367 = vadd.f32 %v6295, %v6350
        %v6368 = vadd.f32 %v6296, %v6349
        %v6369 = vadd.f32 %v6297, %v6348
        %v6370 = vadd.f32 %v6298, %v6347
        %v6371 = vadd.f32 %v6299, %v6346
        %v6372 = vadd.f32 %v6300, %v6345
        %v6373 = vadd.f32 %v6301, %v6344
        %v6374 = vadd.f32 %v6302, %v6343
        %v6375 = vadd.f32 %v6303, %v6342
        %v6376 = vadd.f32 %v6304, %v6341
        %v6377 = vadd.f32 %v6305, %v6340
        %v6378 = vadd.f32 %v6306, %v6339
        %v6379 = vadd.f32 %v6307, %v6338
        %v6380 = vadd.f32 %v6308, %v6337
        %v6381 = vadd.f32 %v6309, %v6336
        %v6382 = vadd.f32 %v6310, %v6335
        %v6383 = vadd.f32 %v6359, %v504
        %v6384 = vadd.f32 %v6360, %v505
        %v6385 = vadd.f32 %v6361, %v506
        %v6386 = vadd.f32 %v6362, %v504
        %v6387 = vadd.f32 %v6363, %v505
        %v6388 = vadd.f32 %v6364, %v506
        %v6389 = vadd.f32 %v6365, %v504
        %v6390 = vadd.f32 %v6366, %v505
        %v6391 = vadd.f32 %v6367, %v506
        %v6392 = vadd.f32 %v6368, %v504
        %v6393 = vadd.f32 %v6369, %v505
        %v6394 = vadd.f32 %v6370, %v506
        %v6395 = vadd.f32 %v6371, %v504
        %v6396 = vadd.f32 %v6372, %v505
        %v6397 = vadd.f32 %v6373, %v506
        %v6398 = vadd.f32 %v6374, %v504
        %v6399 = vadd.f32 %v6375, %v505
        %v6400 = vadd.f32 %v6376, %v506
        %v6401 = vadd.f32 %v6377, %v504
        %v6402 = vadd.f32 %v6378, %v505
        %v6403 = vadd.f32 %v6379, %v506
        %v6404 = vadd.f32 %v6380, %v504
        %v6405 = vadd.f32 %v6381, %v505
        %v6406 = vadd.f32 %v6382, %v506
        %v6407 = vmax.f32 %v6383, %v6384
        %v6408 = vmax.f32 %v6407, %v6385
        %v6409 = vrot.slane %v6408, 4
        %v6410 = vmax.f32 %v6408, %v6409
        %v6411 = vrot.slane %v6410, 2
        %v6412 = vmax.f32 %v6410, %v6411
        %v6413 = vrot.slane %v6412, 1
        %v6414 = vmax.f32 %v6412, %v6413
        %v6415 = vmax.f32 %v6386, %v6387
        %v6416 = vmax.f32 %v6415, %v6388
        %v6417 = vrot.slane %v6416, 4
        %v6418 = vmax.f32 %v6416, %v6417
        %v6419 = vrot.slane %v6418, 2
        %v6420 = vmax.f32 %v6418, %v6419
        %v6421 = vrot.slane %v6420, 1
        %v6422 = vmax.f32 %v6420, %v6421
        %v6423 = vmax.f32 %v6389, %v6390
        %v6424 = vmax.f32 %v6423, %v6391
        %v6425 = vrot.slane %v6424, 4
        %v6426 = vmax.f32 %v6424, %v6425
        %v6427 = vrot.slane %v6426, 2
        %v6428 = vmax.f32 %v6426, %v6427
        %v6429 = vrot.slane %v6428, 1
        %v6430 = vmax.f32 %v6428, %v6429
        %v6431 = vmax.f32 %v6392, %v6393
        %v6432 = vmax.f32 %v6431, %v6394
        %v6433 = vrot.slane %v6432, 4
        %v6434 = vmax.f32 %v6432, %v6433
        %v6435 = vrot.slane %v6434, 2
        %v6436 = vmax.f32 %v6434, %v6435
        %v6437 = vrot.slane %v6436, 1
        %v6438 = vmax.f32 %v6436, %v6437
        %v6439 = vmax.f32 %v6395, %v6396
        %v6440 = vmax.f32 %v6439, %v6397
        %v6441 = vrot.slane %v6440, 4
        %v6442 = vmax.f32 %v6440, %v6441
        %v6443 = vrot.slane %v6442, 2
        %v6444 = vmax.f32 %v6442, %v6443
        %v6445 = vrot.slane %v6444, 1
        %v6446 = vmax.f32 %v6444, %v6445
        %v6447 = vmax.f32 %v6398, %v6399
        %v6448 = vmax.f32 %v6447, %v6400
        %v6449 = vrot.slane %v6448, 4
        %v6450 = vmax.f32 %v6448, %v6449
        %v6451 = vrot.slane %v6450, 2
        %v6452 = vmax.f32 %v6450, %v6451
        %v6453 = vrot.slane %v6452, 1
        %v6454 = vmax.f32 %v6452, %v6453
        %v6455 = vmax.f32 %v6401, %v6402
        %v6456 = vmax.f32 %v6455, %v6403
        %v6457 = vrot.slane %v6456, 4
        %v6458 = vmax.f32 %v6456, %v6457
        %v6459 = vrot.slane %v6458, 2
        %v6460 = vmax.f32 %v6458, %v6459
        %v6461 = vrot.slane %v6460, 1
        %v6462 = vmax.f32 %v6460, %v6461
        %v6463 = vmax.f32 %v6404, %v6405
        %v6464 = vmax.f32 %v6463, %v6406
        %v6465 = vrot.slane %v6464, 4
        %v6466 = vmax.f32 %v6464, %v6465
        %v6467 = vrot.slane %v6466, 2
        %v6468 = vmax.f32 %v6466, %v6467
        %v6469 = vrot.slane %v6468, 1
        %v6470 = vmax.f32 %v6468, %v6469
        %s6471 = scalar_lea.vmem %s429, 96 [#allocation2]
        %v6472 = vld [vmem:[%s6471] sm:$0xff]
        %v6473 = vld [vmem:[%s6471 + $0x8] sm:$0xff]
        %v6474 = vld [vmem:[%s6471 + $0x10] sm:$0xff]
        %v6475 = vld [vmem:[%s6471 + $0x90] sm:$0xff]
        %v6476 = vld [vmem:[%s6471 + $0x98] sm:$0xff]
        %v6477 = vld [vmem:[%s6471 + $0xa0] sm:$0xff]
        %v6478 = vld [vmem:[%s6471 + $0x120] sm:$0xff]
        %v6479 = vld [vmem:[%s6471 + $0x128] sm:$0xff]
        %v6480 = vld [vmem:[%s6471 + $0x130] sm:$0xff]
        %v6481 = vld [vmem:[%s6471 + $0x1b0] sm:$0xff]
        %v6482 = vld [vmem:[%s6471 + $0x1b8] sm:$0xff]
        %v6483 = vld [vmem:[%s6471 + $0x1c0] sm:$0xff]
        %v6484 = vld [vmem:[%s6471 + $0x240] sm:$0xff]
        %v6485 = vld [vmem:[%s6471 + $0x248] sm:$0xff]
        %v6486 = vld [vmem:[%s6471 + $0x250] sm:$0xff]
        %v6487 = vld [vmem:[%s6471 + $0x2d0] sm:$0xff]
        %v6488 = vld [vmem:[%s6471 + $0x2d8] sm:$0xff]
        %v6489 = vld [vmem:[%s6471 + $0x2e0] sm:$0xff]
        %v6490 = vld [vmem:[%s6471 + $0x360] sm:$0xff]
        %v6491 = vld [vmem:[%s6471 + $0x368] sm:$0xff]
        %v6492 = vld [vmem:[%s6471 + $0x370] sm:$0xff]
        %v6493 = vld [vmem:[%s6471 + $0x3f0] sm:$0xff]
        %v6494 = vld [vmem:[%s6471 + $0x3f8] sm:$0xff]
        %v6495 = vld [vmem:[%s6471 + $0x400] sm:$0xff]
        %v6496 = vpack.c.bf16 %v6473, %v6472
        %v6497 = vpack.c.bf16 %v6475, %v6474
        %v6498 = vpack.c.bf16 %v6477, %v6476
        %v6499 = vpack.c.bf16 %v6479, %v6478
        %v6500 = vpack.c.bf16 %v6481, %v6480
        %v6501 = vpack.c.bf16 %v6483, %v6482
        %v6502 = vpack.c.bf16 %v6485, %v6484
        %v6503 = vpack.c.bf16 %v6487, %v6486
        %v6504 = vpack.c.bf16 %v6489, %v6488
        %v6505 = vpack.c.bf16 %v6491, %v6490
        %v6506 = vpack.c.bf16 %v6493, %v6492
        %v6507 = vpack.c.bf16 %v6495, %v6494
        %s6508 = scalar_lea.vmem [#allocation5], 1456
        %v6509 = vld [vmem:[%s6508] sm:$0xff]
        %v6510 = vld [vmem:[%s6508 + $0x8] sm:$0xff]
        %v6511 = vld [vmem:[%s6508 + $0x10] sm:$0xff]
        %v6512 = vld [vmem:[%s6508 + $0x18] sm:$0xf]
        %v6513 = vld [vmem:[%s6508 + $0x1c] sm:$0xff]
        %v6514 = vld [vmem:[%s6508 + $0x24] sm:$0xff]
        %v6515 = vld [vmem:[%s6508 + $0x2c] sm:$0xff]
        %v6516 = vld [vmem:[%s6508 + $0x34] sm:$0xf]
        %v6517 = vld [vmem:[%s6508 + $0x38] sm:$0xff]
        %v6518 = vld [vmem:[%s6508 + $0x40] sm:$0xff]
        %v6519 = vld [vmem:[%s6508 + $0x48] sm:$0xff]
        %v6520 = vld [vmem:[%s6508 + $0x50] sm:$0xf]
        %v6521 = vld [vmem:[%s6508 + $0x54] sm:$0xff]
        %v6522 = vld [vmem:[%s6508 + $0x5c] sm:$0xff]
        %v6523 = vld [vmem:[%s6508 + $0x64] sm:$0xff]
        %v6524 = vld [vmem:[%s6508 + $0x6c] sm:$0xf]
        %v6525 = vld [vmem:[%s6508 + $0x70] sm:$0xff]
        %v6526 = vld [vmem:[%s6508 + $0x78] sm:$0xff]
        %v6527 = vld [vmem:[%s6508 + $0x80] sm:$0xff]
        %v6528 = vld [vmem:[%s6508 + $0x88] sm:$0xf]
        %v6529 = vld [vmem:[%s6508 + $0x8c] sm:$0xff]
        %v6530 = vld [vmem:[%s6508 + $0x94] sm:$0xff]
        %v6531 = vld [vmem:[%s6508 + $0x9c] sm:$0xff]
        %v6532 = vld [vmem:[%s6508 + $0xa4] sm:$0xf]
        %v6533 = vld [vmem:[%s6508 + $0xa8] sm:$0xff]
        %v6534 = vld [vmem:[%s6508 + $0xb0] sm:$0xff]
        %v6535 = vld [vmem:[%s6508 + $0xb8] sm:$0xff]
        %v6536 = vld [vmem:[%s6508 + $0xc0] sm:$0xf]
        %v6537 = vld [vmem:[%s6508 + $0xc4] sm:$0xff]
        %v6538 = vld [vmem:[%s6508 + $0xcc] sm:$0xff]
        %v6539 = vld [vmem:[%s6508 + $0xd4] sm:$0xff]
        %v6540 = vld [vmem:[%s6508 + $0xdc] sm:$0xf]
        %v6541 = vld [vmem:[%s6508 + $0xe0] sm:$0xff]
        %v6542 = vld [vmem:[%s6508 + $0xe8] sm:$0xff]
        %v6543 = vld [vmem:[%s6508 + $0xf0] sm:$0xff]
        %v6544 = vld [vmem:[%s6508 + $0xf8] sm:$0xf]
        %v6545 = vld [vmem:[%s6508 + $0xfc] sm:$0xff]
        %v6546 = vld [vmem:[%s6508 + $0x104] sm:$0xff]
        %v6547 = vld [vmem:[%s6508 + $0x10c] sm:$0xff]
        %v6548 = vld [vmem:[%s6508 + $0x114] sm:$0xf]
        %v6549 = vld [vmem:[%s6508 + $0x118] sm:$0xff]
        %v6550 = vld [vmem:[%s6508 + $0x120] sm:$0xff]
        %v6551 = vld [vmem:[%s6508 + $0x128] sm:$0xff]
        %v6552 = vld [vmem:[%s6508 + $0x130] sm:$0xf]
        %v6553 = vld [vmem:[%s6508 + $0x134] sm:$0xff]
        %v6554 = vld [vmem:[%s6508 + $0x13c] sm:$0xff]
        %v6555 = vld [vmem:[%s6508 + $0x144] sm:$0xff]
        %v6556 = vld [vmem:[%s6508 + $0x14c] sm:$0xf]
        %v6557 = vld [vmem:[%s6508 + $0x150] sm:$0x33]
        %v6558 = vld [vmem:[%s6508 + $0x158] sm:$0x33]
        %v6559 = vld [vmem:[%s6508 + $0x160] sm:$0x33]
        %v6560 = vld [vmem:[%s6508 + $0x168] sm:$0x3]
        %v6613 = vunpack.c.l.b16 %v6509
        %v6614 = vunpack.c.h.b16 %v6509
        %v6615 = vunpack.c.l.b16 %v6510
        %v6616 = vunpack.c.h.b16 %v6510
        %v6617 = vunpack.c.l.b16 %v6511
        %v6618 = vunpack.c.h.b16 %v6511
        %v6619 = vunpack.c.l.b16 %v6512
        %v6620 = vunpack.c.l.b16 %v6513
        %v6621 = vunpack.c.h.b16 %v6513
        %v6622 = vunpack.c.l.b16 %v6514
        %v6623 = vunpack.c.h.b16 %v6514
        %v6624 = vunpack.c.l.b16 %v6515
        %v6625 = vunpack.c.h.b16 %v6515
        %v6626 = vunpack.c.l.b16 %v6516
        %v6627 = vunpack.c.l.b16 %v6517
        %v6628 = vunpack.c.h.b16 %v6517
        %v6629 = vunpack.c.l.b16 %v6518
        %v6630 = vunpack.c.h.b16 %v6518
        %v6631 = vunpack.c.l.b16 %v6519
        %v6632 = vunpack.c.h.b16 %v6519
        %v6633 = vunpack.c.l.b16 %v6520
        %v6634 = vunpack.c.l.b16 %v6521
        %v6635 = vunpack.c.h.b16 %v6521
        %v6636 = vunpack.c.l.b16 %v6522
        %v6637 = vunpack.c.h.b16 %v6522
        %v6638 = vunpack.c.l.b16 %v6523
        %v6639 = vunpack.c.h.b16 %v6523
        %v6640 = vunpack.c.l.b16 %v6524
        %v6641 = vunpack.c.l.b16 %v6525
        %v6642 = vunpack.c.h.b16 %v6525
        %v6643 = vunpack.c.l.b16 %v6526
        %v6644 = vunpack.c.h.b16 %v6526
        %v6645 = vunpack.c.l.b16 %v6527
        %v6646 = vunpack.c.h.b16 %v6527
        %v6647 = vunpack.c.l.b16 %v6528
        %v6648 = vunpack.c.l.b16 %v6529
        %v6649 = vunpack.c.h.b16 %v6529
        %v6650 = vunpack.c.l.b16 %v6530
        %v6651 = vunpack.c.h.b16 %v6530
        %v6652 = vunpack.c.l.b16 %v6531
        %v6653 = vunpack.c.h.b16 %v6531
        %v6654 = vunpack.c.l.b16 %v6532
        %v6655 = vunpack.c.l.b16 %v6533
        %v6656 = vunpack.c.h.b16 %v6533
        %v6657 = vunpack.c.l.b16 %v6534
        %v6658 = vunpack.c.h.b16 %v6534
        %v6659 = vunpack.c.l.b16 %v6535
        %v6660 = vunpack.c.h.b16 %v6535
        %v6661 = vunpack.c.l.b16 %v6536
        %v6662 = vunpack.c.l.b16 %v6537
        %v6663 = vunpack.c.h.b16 %v6537
        %v6664 = vunpack.c.l.b16 %v6538
        %v6665 = vunpack.c.h.b16 %v6538
        %v6666 = vunpack.c.l.b16 %v6539
        %v6667 = vunpack.c.h.b16 %v6539
        %v6668 = vunpack.c.l.b16 %v6540
        %v6669 = vunpack.c.l.b16 %v6541
        %v6670 = vunpack.c.h.b16 %v6541
        %v6671 = vunpack.c.l.b16 %v6542
        %v6672 = vunpack.c.h.b16 %v6542
        %v6673 = vunpack.c.l.b16 %v6543
        %v6674 = vunpack.c.h.b16 %v6543
        %v6675 = vunpack.c.l.b16 %v6544
        %v6676 = vunpack.c.l.b16 %v6545
        %v6677 = vunpack.c.h.b16 %v6545
        %v6678 = vunpack.c.l.b16 %v6546
        %v6679 = vunpack.c.h.b16 %v6546
        %v6680 = vunpack.c.l.b16 %v6547
        %v6681 = vunpack.c.h.b16 %v6547
        %v6682 = vunpack.c.l.b16 %v6548
        %v6683 = vunpack.c.l.b16 %v6549
        %v6684 = vunpack.c.h.b16 %v6549
        %v6685 = vunpack.c.l.b16 %v6550
        %v6686 = vunpack.c.h.b16 %v6550
        %v6687 = vunpack.c.l.b16 %v6551
        %v6688 = vunpack.c.h.b16 %v6551
        %v6689 = vunpack.c.l.b16 %v6552
        %v6690 = vunpack.c.l.b16 %v6553
        %v6691 = vunpack.c.h.b16 %v6553
        %v6692 = vunpack.c.l.b16 %v6554
        %v6693 = vunpack.c.h.b16 %v6554
        %v6694 = vunpack.c.l.b16 %v6555
        %v6695 = vunpack.c.h.b16 %v6555
        %v6696 = vunpack.c.l.b16 %v6556
        %v6697 = vunpack.c.l.b16 %v6557
        %v6698 = vunpack.c.h.b16 %v6557
        %v6699 = vunpack.c.l.b16 %v6558
        %v6700 = vunpack.c.h.b16 %v6558
        %v6701 = vunpack.c.l.b16 %v6559
        %v6702 = vunpack.c.h.b16 %v6559
        %v6703 = vunpack.c.l.b16 %v6560
        %v6704 = vpack.c.b16 %v6620, %v6613
        %v6705 = vpack.c.b16 %v6621, %v6614
        %v6706 = vpack.c.b16 %v6622, %v6615
        %v6707 = vpack.c.b16 %v6623, %v6616
        %v6708 = vpack.c.b16 %v6624, %v6617
        %v6709 = vpack.c.b16 %v6625, %v6618
        %v6710 = vpack.c.b16 %v6626, %v6619
        %v6711 = vpack.c.b16 %v6634, %v6627
        %v6712 = vpack.c.b16 %v6635, %v6628
        %v6713 = vpack.c.b16 %v6636, %v6629
        %v6714 = vpack.c.b16 %v6637, %v6630
        %v6715 = vpack.c.b16 %v6638, %v6631
        %v6716 = vpack.c.b16 %v6639, %v6632
        %v6717 = vpack.c.b16 %v6640, %v6633
        %v6718 = vpack.c.b16 %v6648, %v6641
        %v6719 = vpack.c.b16 %v6649, %v6642
        %v6720 = vpack.c.b16 %v6650, %v6643
        %v6721 = vpack.c.b16 %v6651, %v6644
        %v6722 = vpack.c.b16 %v6652, %v6645
        %v6723 = vpack.c.b16 %v6653, %v6646
        %v6724 = vpack.c.b16 %v6654, %v6647
        %v6725 = vpack.c.b16 %v6662, %v6655
        %v6726 = vpack.c.b16 %v6663, %v6656
        %v6727 = vpack.c.b16 %v6664, %v6657
        %v6728 = vpack.c.b16 %v6665, %v6658
        %v6729 = vpack.c.b16 %v6666, %v6659
        %v6730 = vpack.c.b16 %v6667, %v6660
        %v6731 = vpack.c.b16 %v6668, %v6661
        %v6732 = vpack.c.b16 %v6676, %v6669
        %v6733 = vpack.c.b16 %v6677, %v6670
        %v6734 = vpack.c.b16 %v6678, %v6671
        %v6735 = vpack.c.b16 %v6679, %v6672
        %v6736 = vpack.c.b16 %v6680, %v6673
        %v6737 = vpack.c.b16 %v6681, %v6674
        %v6738 = vpack.c.b16 %v6682, %v6675
        %v6739 = vpack.c.b16 %v6690, %v6683
        %v6740 = vpack.c.b16 %v6691, %v6684
        %v6741 = vpack.c.b16 %v6692, %v6685
        %v6742 = vpack.c.b16 %v6693, %v6686
        %v6743 = vpack.c.b16 %v6694, %v6687
        %v6744 = vpack.c.b16 %v6695, %v6688
        %v6745 = vpack.c.b16 %v6696, %v6689
        %v6746 = vpack.c.b16 %v6697, %v6697
        %v6747 = vpack.c.b16 %v6698, %v6698
        %v6748 = vpack.c.b16 %v6699, %v6699
        %v6749 = vpack.c.b16 %v6700, %v6700
        %v6750 = vpack.c.b16 %v6701, %v6701
        %v6751 = vpack.c.b16 %v6702, %v6702
        %v6752 = vpack.c.b16 %v6703, %v6703
        %v6796 = vsel %vm829, %v6496, 0
        %v6799 = vsel %vm829, %v6497, 0
        %v6802 = vsel %vm829, %v6498, 0
        %v6805 = vsel %vm829, %v6499, 0
        %v6808 = vsel %vm829, %v6500, 0
        %v6811 = vsel %vm829, %v6501, 0
        %v6814 = vsel %vm829, %v6502, 0
        %v6817 = vsel %vm829, %v6503, 0
        %v6820 = vsel %vm829, %v6504, 0
        %v6823 = vsel %vm829, %v6505, 0
        %v6826 = vsel %vm829, %v6506, 0
        %v6829 = vsel %vm829, %v6507, 0
        %v6832 = vsel %vm866, %v6746, 0
        %v6835 = vsel %vm866, %v6747, 0
        %v6838 = vsel %vm866, %v6748, 0
        %v6841 = vsel %vm866, %v6749, 0
        %v6844 = vsel %vm866, %v6750, 0
        %v6847 = vsel %vm866, %v6751, 0
        %v6850 = vsel %vm866, %v6752, 0
        %6852 = vmatprep.subr.bf16.mxu0 %v6705
        %6853 = vmatpush1.bf16.msra.mxu0 %v6704
        %6854 = vmatprep.subr.bf16.mxu0 %v6712
        %6855 = vmatpush1.bf16.msra.mxu0 %v6711
        %6856 = vmatprep.subr.bf16.mxu0 %v6719
        %6857 = vmatpush1.bf16.msra.mxu0 %v6718
        %6858 = vmatprep.subr.bf16.mxu0 %v6726
        %6859 = vmatpush1.bf16.msra.mxu0 %v6725
        %6860 = vmatprep.subr.bf16.mxu0 %v6733
        %6861 = vmatpush1.bf16.msra.mxu0 %v6732
        %6862 = vmatprep.subr.bf16.mxu0 %v6740
        %6863 = vmatpush1.bf16.msra.mxu0 %v6739
        %6864 = vmatprep.subr.bf16.mxu0 %v6835
        %6865 = vmatpush1.bf16.msra.mxu0 %v6832
        %6866 = vmatprep.subr.bf16.mxu0 0
        %6867 = vmatpush1.bf16.msra.mxu0 0
        %6868 = vmatprep.subr.bf16.mxu0 0
        %6869 = vmatpush1.bf16.msra.mxu0 0
        %6870 = vmatprep.subr.bf16.mxu0 0
        %6871 = vmatpush1.bf16.msra.mxu0 0
        %6872 = vmatprep.subr.bf16.mxu0 0
        %6873 = vmatpush1.bf16.msra.mxu0 0
        %6874 = vmatprep.subr.bf16.mxu0 0
        %6875 = vmatpush1.bf16.msra.mxu0 0
        %6876 = vmatprep.subr.bf16.mxu0 0
        %6877 = vmatpush1.bf16.msra.mxu0 0
        %6878 = vmatprep.subr.bf16.mxu0 0
        %6879 = vmatpush1.bf16.msra.mxu0 0
        %6880 = vmatprep.subr.bf16.mxu0 0
        %6881 = vmatpush1.bf16.msra.mxu0 0
        %6882 = vmatprep.subr.bf16.mxu0 0
        %6883 = vmatpush1.bf16.msra.mxu0 0
        %6884 = vmatprep.mubr.bf16.mxu0 0
        %6885 = vmatmul.mubr.bf16.gmra.mrb[0].mxu0 %v6796
        %v6886 = vpop.f32.mrb[0].mxu0
        %v6887 = vadd.f32 0.0, %v6886
        %v6888 = vpop.f32.mrb[0].mxu0
        %v6889 = vadd.f32 0.0, %v6888
        %v6890 = vpop.f32.mrb[0].mxu0
        %v6891 = vadd.f32 0.0, %v6890
        %v6892 = vpop.f32.mrb[0].mxu0
        %v6893 = vadd.f32 0.0, %v6892
        %6894 = vmatprep.mubr.bf16.mxu0 0
        %6895 = vmatmul.mubr.bf16.gmra.mrb[0].mxu0 %v6799
        %v6896 = vpop.f32.mrb[0].mxu0
        %v6897 = vadd.f32 0.0, %v6896
        %v6898 = vpop.f32.mrb[0].mxu0
        %v6899 = vadd.f32 0.0, %v6898
        %v6900 = vpop.f32.mrb[0].mxu0
        %v6901 = vadd.f32 0.0, %v6900
        %v6902 = vpop.f32.mrb[0].mxu0
        %v6903 = vadd.f32 0.0, %v6902
        %6904 = vmatprep.mubr.bf16.mxu0 0
        %6905 = vmatmul.mubr.bf16.gmra.mrb[0].mxu0 %v6802
        %v6906 = vpop.f32.mrb[0].mxu0
        %v6907 = vadd.f32 0.0, %v6906
        %v6908 = vpop.f32.mrb[0].mxu0
        %v6909 = vadd.f32 0.0, %v6908
        %v6910 = vpop.f32.mrb[0].mxu0
        %v6911 = vadd.f32 0.0, %v6910
        %v6912 = vpop.f32.mrb[0].mxu0
        %v6913 = vadd.f32 0.0, %v6912
        %6914 = vmatprep.mubr.bf16.mxu0 0
        %6915 = vmatmul.mubr.bf16.gmra.mrb[0].mxu0 %v6805
        %v6916 = vpop.f32.mrb[0].mxu0
        %v6917 = vadd.f32 0.0, %v6916
        %v6918 = vpop.f32.mrb[0].mxu0
        %v6919 = vadd.f32 0.0, %v6918
        %v6920 = vpop.f32.mrb[0].mxu0
        %v6921 = vadd.f32 0.0, %v6920
        %v6922 = vpop.f32.mrb[0].mxu0
        %v6923 = vadd.f32 0.0, %v6922
        %6924 = vmatprep.mubr.bf16.mxu0 0
        %6925 = vmatmul.mubr.bf16.gmra.mrb[0].mxu0 %v6808
        %v6926 = vpop.f32.mrb[0].mxu0
        %v6927 = vadd.f32 0.0, %v6926
        %v6928 = vpop.f32.mrb[0].mxu0
        %v6929 = vadd.f32 0.0, %v6928
        %v6930 = vpop.f32.mrb[0].mxu0
        %v6931 = vadd.f32 0.0, %v6930
        %v6932 = vpop.f32.mrb[0].mxu0
        %v6933 = vadd.f32 0.0, %v6932
        %6934 = vmatprep.mubr.bf16.mxu0 0
        %6935 = vmatmul.mubr.bf16.gmra.mrb[0].mxu0 %v6811
        %v6936 = vpop.f32.mrb[0].mxu0
        %v6937 = vadd.f32 0.0, %v6936
        %v6938 = vpop.f32.mrb[0].mxu0
        %v6939 = vadd.f32 0.0, %v6938
        %v6940 = vpop.f32.mrb[0].mxu0
        %v6941 = vadd.f32 0.0, %v6940
        %v6942 = vpop.f32.mrb[0].mxu0
        %v6943 = vadd.f32 0.0, %v6942
        %6944 = vmatprep.mubr.bf16.mxu0 0
        %6945 = vmatmul.mubr.bf16.gmra.mrb[0].mxu0 %v6814
        %v6946 = vpop.f32.mrb[0].mxu0
        %v6947 = vadd.f32 0.0, %v6946
        %v6948 = vpop.f32.mrb[0].mxu0
        %v6949 = vadd.f32 0.0, %v6948
        %v6950 = vpop.f32.mrb[0].mxu0
        %v6951 = vadd.f32 0.0, %v6950
        %v6952 = vpop.f32.mrb[0].mxu0
        %v6953 = vadd.f32 0.0, %v6952
        %6954 = vmatprep.mubr.bf16.mxu0 0
        %6955 = vmatmul.mubr.bf16.gmra.mrb[0].mxu0 %v6817
        %v6956 = vpop.f32.mrb[0].mxu0
        %v6957 = vadd.f32 0.0, %v6956
        %v6958 = vpop.f32.mrb[0].mxu0
        %v6959 = vadd.f32 0.0, %v6958
        %v6960 = vpop.f32.mrb[0].mxu0
        %v6961 = vadd.f32 0.0, %v6960
        %v6962 = vpop.f32.mrb[0].mxu0
        %v6963 = vadd.f32 0.0, %v6962
        %6964 = vmatprep.mubr.bf16.mxu0 0
        %6965 = vmatmul.mubr.bf16.gmra.mrb[0].mxu0 %v6820
        %v6966 = vpop.f32.mrb[0].mxu0
        %v6967 = vadd.f32 0.0, %v6966
        %v6968 = vpop.f32.mrb[0].mxu0
        %v6969 = vadd.f32 0.0, %v6968
        %v6970 = vpop.f32.mrb[0].mxu0
        %v6971 = vadd.f32 0.0, %v6970
        %v6972 = vpop.f32.mrb[0].mxu0
        %v6973 = vadd.f32 0.0, %v6972
        %6974 = vmatprep.mubr.bf16.mxu0 0
        %6975 = vmatmul.mubr.bf16.gmra.mrb[0].mxu0 %v6823
        %v6976 = vpop.f32.mrb[0].mxu0
        %v6977 = vadd.f32 0.0, %v6976
        %v6978 = vpop.f32.mrb[0].mxu0
        %v6979 = vadd.f32 0.0, %v6978
        %v6980 = vpop.f32.mrb[0].mxu0
        %v6981 = vadd.f32 0.0, %v6980
        %v6982 = vpop.f32.mrb[0].mxu0
        %v6983 = vadd.f32 0.0, %v6982
        %6984 = vmatprep.mubr.bf16.mxu0 0
        %6985 = vmatmul.mubr.bf16.gmra.mrb[0].mxu0 %v6826
        %v6986 = vpop.f32.mrb[0].mxu0
        %v6987 = vadd.f32 0.0, %v6986
        %v6988 = vpop.f32.mrb[0].mxu0
        %v6989 = vadd.f32 0.0, %v6988
        %v6990 = vpop.f32.mrb[0].mxu0
        %v6991 = vadd.f32 0.0, %v6990
        %v6992 = vpop.f32.mrb[0].mxu0
        %v6993 = vadd.f32 0.0, %v6992
        %6994 = vmatprep.mubr.bf16.mxu0 0
        %6995 = vmatmul.mubr.bf16.gmra.mrb[0].mxu0 %v6829
        %v6996 = vpop.f32.mrb[0].mxu0
        %v6997 = vadd.f32 0.0, %v6996
        %v6998 = vpop.f32.mrb[0].mxu0
        %v6999 = vadd.f32 0.0, %v6998
        %v7000 = vpop.f32.mrb[0].mxu0
        %v7001 = vadd.f32 0.0, %v7000
        %v7002 = vpop.f32.mrb[0].mxu0
        %v7003 = vadd.f32 0.0, %v7002
        %7004 = vdwg.mxu0
        %7005 = vmatprep.subr.bf16.mxu0 %v6707
        %7006 = vmatpush1.bf16.msra.mxu0 %v6706
        %7007 = vmatprep.subr.bf16.mxu0 %v6714
        %7008 = vmatpush1.bf16.msra.mxu0 %v6713
        %7009 = vmatprep.subr.bf16.mxu0 %v6721
        %7010 = vmatpush1.bf16.msra.mxu0 %v6720
        %7011 = vmatprep.subr.bf16.mxu0 %v6728
        %7012 = vmatpush1.bf16.msra.mxu0 %v6727
        %7013 = vmatprep.subr.bf16.mxu0 %v6735
        %7014 = vmatpush1.bf16.msra.mxu0 %v6734
        %7015 = vmatprep.subr.bf16.mxu0 %v6742
        %7016 = vmatpush1.bf16.msra.mxu0 %v6741
        %7017 = vmatprep.subr.bf16.mxu0 %v6841
        %7018 = vmatpush1.bf16.msra.mxu0 %v6838
        %7019 = vmatprep.subr.bf16.mxu0 0
        %7020 = vmatpush1.bf16.msra.mxu0 0
        %7021 = vmatprep.subr.bf16.mxu0 0
        %7022 = vmatpush1.bf16.msra.mxu0 0
        %7023 = vmatprep.subr.bf16.mxu0 0
        %7024 = vmatpush1.bf16.msra.mxu0 0
        %7025 = vmatprep.subr.bf16.mxu0 0
        %7026 = vmatpush1.bf16.msra.mxu0 0
        %7027 = vmatprep.subr.bf16.mxu0 0
        %7028 = vmatpush1.bf16.msra.mxu0 0
        %7029 = vmatprep.subr.bf16.mxu0 0
        %7030 = vmatpush1.bf16.msra.mxu0 0
        %7031 = vmatprep.subr.bf16.mxu0 0
        %7032 = vmatpush1.bf16.msra.mxu0 0
        %7033 = vmatprep.subr.bf16.mxu0 0
        %7034 = vmatpush1.bf16.msra.mxu0 0
        %7035 = vmatprep.subr.bf16.mxu0 0
        %7036 = vmatpush1.bf16.msra.mxu0 0
        %7037 = vmatprep.mubr.bf16.mxu0 0
        %7038 = vmatmul.mubr.bf16.gmra.mrb[0].mxu0 %v6796
        %v7039 = vpop.f32.mrb[0].mxu0
        %v7040 = vadd.f32 0.0, %v7039
        %v7041 = vpop.f32.mrb[0].mxu0
        %v7042 = vadd.f32 0.0, %v7041
        %v7043 = vpop.f32.mrb[0].mxu0
        %v7044 = vadd.f32 0.0, %v7043
        %v7045 = vpop.f32.mrb[0].mxu0
        %v7046 = vadd.f32 0.0, %v7045
        %7047 = vmatprep.mubr.bf16.mxu0 0
        %7048 = vmatmul.mubr.bf16.gmra.mrb[0].mxu0 %v6799
        %v7049 = vpop.f32.mrb[0].mxu0
        %v7050 = vadd.f32 0.0, %v7049
        %v7051 = vpop.f32.mrb[0].mxu0
        %v7052 = vadd.f32 0.0, %v7051
        %v7053 = vpop.f32.mrb[0].mxu0
        %v7054 = vadd.f32 0.0, %v7053
        %v7055 = vpop.f32.mrb[0].mxu0
        %v7056 = vadd.f32 0.0, %v7055
        %7057 = vmatprep.mubr.bf16.mxu0 0
        %7058 = vmatmul.mubr.bf16.gmra.mrb[0].mxu0 %v6802
        %v7059 = vpop.f32.mrb[0].mxu0
        %v7060 = vadd.f32 0.0, %v7059
        %v7061 = vpop.f32.mrb[0].mxu0
        %v7062 = vadd.f32 0.0, %v7061
        %v7063 = vpop.f32.mrb[0].mxu0
        %v7064 = vadd.f32 0.0, %v7063
        %v7065 = vpop.f32.mrb[0].mxu0
        %v7066 = vadd.f32 0.0, %v7065
        %7067 = vmatprep.mubr.bf16.mxu0 0
        %7068 = vmatmul.mubr.bf16.gmra.mrb[0].mxu0 %v6805
        %v7069 = vpop.f32.mrb[0].mxu0
        %v7070 = vadd.f32 0.0, %v7069
        %v7071 = vpop.f32.mrb[0].mxu0
        %v7072 = vadd.f32 0.0, %v7071
        %v7073 = vpop.f32.mrb[0].mxu0
        %v7074 = vadd.f32 0.0, %v7073
        %v7075 = vpop.f32.mrb[0].mxu0
        %v7076 = vadd.f32 0.0, %v7075
        %7077 = vmatprep.mubr.bf16.mxu0 0
        %7078 = vmatmul.mubr.bf16.gmra.mrb[0].mxu0 %v6808
        %v7079 = vpop.f32.mrb[0].mxu0
        %v7080 = vadd.f32 0.0, %v7079
        %v7081 = vpop.f32.mrb[0].mxu0
        %v7082 = vadd.f32 0.0, %v7081
        %v7083 = vpop.f32.mrb[0].mxu0
        %v7084 = vadd.f32 0.0, %v7083
        %v7085 = vpop.f32.mrb[0].mxu0
        %v7086 = vadd.f32 0.0, %v7085
        %7087 = vmatprep.mubr.bf16.mxu0 0
        %7088 = vmatmul.mubr.bf16.gmra.mrb[0].mxu0 %v6811
        %v7089 = vpop.f32.mrb[0].mxu0
        %v7090 = vadd.f32 0.0, %v7089
        %v7091 = vpop.f32.mrb[0].mxu0
        %v7092 = vadd.f32 0.0, %v7091
        %v7093 = vpop.f32.mrb[0].mxu0
        %v7094 = vadd.f32 0.0, %v7093
        %v7095 = vpop.f32.mrb[0].mxu0
        %v7096 = vadd.f32 0.0, %v7095
        %7097 = vmatprep.mubr.bf16.mxu0 0
        %7098 = vmatmul.mubr.bf16.gmra.mrb[0].mxu0 %v6814
        %v7099 = vpop.f32.mrb[0].mxu0
        %v7100 = vadd.f32 0.0, %v7099
        %v7101 = vpop.f32.mrb[0].mxu0
        %v7102 = vadd.f32 0.0, %v7101
        %v7103 = vpop.f32.mrb[0].mxu0
        %v7104 = vadd.f32 0.0, %v7103
        %v7105 = vpop.f32.mrb[0].mxu0
        %v7106 = vadd.f32 0.0, %v7105
        %7107 = vmatprep.mubr.bf16.mxu0 0
        %7108 = vmatmul.mubr.bf16.gmra.mrb[0].mxu0 %v6817
        %v7109 = vpop.f32.mrb[0].mxu0
        %v7110 = vadd.f32 0.0, %v7109
        %v7111 = vpop.f32.mrb[0].mxu0
        %v7112 = vadd.f32 0.0, %v7111
        %v7113 = vpop.f32.mrb[0].mxu0
        %v7114 = vadd.f32 0.0, %v7113
        %v7115 = vpop.f32.mrb[0].mxu0
        %v7116 = vadd.f32 0.0, %v7115
        %7117 = vmatprep.mubr.bf16.mxu0 0
        %7118 = vmatmul.mubr.bf16.gmra.mrb[0].mxu0 %v6820
        %v7119 = vpop.f32.mrb[0].mxu0
        %v7120 = vadd.f32 0.0, %v7119
        %v7121 = vpop.f32.mrb[0].mxu0
        %v7122 = vadd.f32 0.0, %v7121
        %v7123 = vpop.f32.mrb[0].mxu0
        %v7124 = vadd.f32 0.0, %v7123
        %v7125 = vpop.f32.mrb[0].mxu0
        %v7126 = vadd.f32 0.0, %v7125
        %7127 = vmatprep.mubr.bf16.mxu0 0
        %7128 = vmatmul.mubr.bf16.gmra.mrb[0].mxu0 %v6823
        %v7129 = vpop.f32.mrb[0].mxu0
        %v7130 = vadd.f32 0.0, %v7129
        %v7131 = vpop.f32.mrb[0].mxu0
        %v7132 = vadd.f32 0.0, %v7131
        %v7133 = vpop.f32.mrb[0].mxu0
        %v7134 = vadd.f32 0.0, %v7133
        %v7135 = vpop.f32.mrb[0].mxu0
        %v7136 = vadd.f32 0.0, %v7135
        %7137 = vmatprep.mubr.bf16.mxu0 0
        %7138 = vmatmul.mubr.bf16.gmra.mrb[0].mxu0 %v6826
        %v7139 = vpop.f32.mrb[0].mxu0
        %v7140 = vadd.f32 0.0, %v7139
        %v7141 = vpop.f32.mrb[0].mxu0
        %v7142 = vadd.f32 0.0, %v7141
        %v7143 = vpop.f32.mrb[0].mxu0
        %v7144 = vadd.f32 0.0, %v7143
        %v7145 = vpop.f32.mrb[0].mxu0
        %v7146 = vadd.f32 0.0, %v7145
        %7147 = vmatprep.mubr.bf16.mxu0 0
        %7148 = vmatmul.mubr.bf16.gmra.mrb[0].mxu0 %v6829
        %v7149 = vpop.f32.mrb[0].mxu0
        %v7150 = vadd.f32 0.0, %v7149
        %v7151 = vpop.f32.mrb[0].mxu0
        %v7152 = vadd.f32 0.0, %v7151
        %v7153 = vpop.f32.mrb[0].mxu0
        %v7154 = vadd.f32 0.0, %v7153
        %v7155 = vpop.f32.mrb[0].mxu0
        %v7156 = vadd.f32 0.0, %v7155
        %7157 = vdwg.mxu0
        %7158 = vmatprep.subr.bf16.mxu0 %v6709
        %7159 = vmatpush1.bf16.msra.mxu0 %v6708
        %7160 = vmatprep.subr.bf16.mxu0 %v6716
        %7161 = vmatpush1.bf16.msra.mxu0 %v6715
        %7162 = vmatprep.subr.bf16.mxu0 %v6723
        %7163 = vmatpush1.bf16.msra.mxu0 %v6722
        %7164 = vmatprep.subr.bf16.mxu0 %v6730
        %7165 = vmatpush1.bf16.msra.mxu0 %v6729
        %7166 = vmatprep.subr.bf16.mxu0 %v6737
        %7167 = vmatpush1.bf16.msra.mxu0 %v6736
        %7168 = vmatprep.subr.bf16.mxu0 %v6744
        %7169 = vmatpush1.bf16.msra.mxu0 %v6743
        %7170 = vmatprep.subr.bf16.mxu0 %v6847
        %7171 = vmatpush1.bf16.msra.mxu0 %v6844
        %7172 = vmatprep.subr.bf16.mxu0 0
        %7173 = vmatpush1.bf16.msra.mxu0 0
        %7174 = vmatprep.subr.bf16.mxu0 0
        %7175 = vmatpush1.bf16.msra.mxu0 0
        %7176 = vmatprep.subr.bf16.mxu0 0
        %7177 = vmatpush1.bf16.msra.mxu0 0
        %7178 = vmatprep.subr.bf16.mxu0 0
        %7179 = vmatpush1.bf16.msra.mxu0 0
        %7180 = vmatprep.subr.bf16.mxu0 0
        %7181 = vmatpush1.bf16.msra.mxu0 0
        %7182 = vmatprep.subr.bf16.mxu0 0
        %7183 = vmatpush1.bf16.msra.mxu0 0
        %7184 = vmatprep.subr.bf16.mxu0 0
        %7185 = vmatpush1.bf16.msra.mxu0 0
        %7186 = vmatprep.subr.bf16.mxu0 0
        %7187 = vmatpush1.bf16.msra.mxu0 0
        %7188 = vmatprep.subr.bf16.mxu0 0
        %7189 = vmatpush1.bf16.msra.mxu0 0
        %7190 = vmatprep.mubr.bf16.mxu0 0
        %7191 = vmatmul.mubr.bf16.gmra.mrb[0].mxu0 %v6796
        %v7192 = vpop.f32.mrb[0].mxu0
        %v7193 = vadd.f32 0.0, %v7192
        %v7194 = vpop.f32.mrb[0].mxu0
        %v7195 = vadd.f32 0.0, %v7194
        %v7196 = vpop.f32.mrb[0].mxu0
        %v7197 = vadd.f32 0.0, %v7196
        %v7198 = vpop.f32.mrb[0].mxu0
        %v7199 = vadd.f32 0.0, %v7198
        %7200 = vmatprep.mubr.bf16.mxu0 0
        %7201 = vmatmul.mubr.bf16.gmra.mrb[0].mxu0 %v6799
        %v7202 = vpop.f32.mrb[0].mxu0
        %v7203 = vadd.f32 0.0, %v7202
        %v7204 = vpop.f32.mrb[0].mxu0
        %v7205 = vadd.f32 0.0, %v7204
        %v7206 = vpop.f32.mrb[0].mxu0
        %v7207 = vadd.f32 0.0, %v7206
        %v7208 = vpop.f32.mrb[0].mxu0
        %v7209 = vadd.f32 0.0, %v7208
        %7210 = vmatprep.mubr.bf16.mxu0 0
        %7211 = vmatmul.mubr.bf16.gmra.mrb[0].mxu0 %v6802
        %v7212 = vpop.f32.mrb[0].mxu0
        %v7213 = vadd.f32 0.0, %v7212
        %v7214 = vpop.f32.mrb[0].mxu0
        %v7215 = vadd.f32 0.0, %v7214
        %v7216 = vpop.f32.mrb[0].mxu0
        %v7217 = vadd.f32 0.0, %v7216
        %v7218 = vpop.f32.mrb[0].mxu0
        %v7219 = vadd.f32 0.0, %v7218
        %7220 = vmatprep.mubr.bf16.mxu0 0
        %7221 = vmatmul.mubr.bf16.gmra.mrb[0].mxu0 %v6805
        %v7222 = vpop.f32.mrb[0].mxu0
        %v7223 = vadd.f32 0.0, %v7222
        %v7224 = vpop.f32.mrb[0].mxu0
        %v7225 = vadd.f32 0.0, %v7224
        %v7226 = vpop.f32.mrb[0].mxu0
        %v7227 = vadd.f32 0.0, %v7226
        %v7228 = vpop.f32.mrb[0].mxu0
        %v7229 = vadd.f32 0.0, %v7228
        %7230 = vmatprep.mubr.bf16.mxu0 0
        %7231 = vmatmul.mubr.bf16.gmra.mrb[0].mxu0 %v6808
        %v7232 = vpop.f32.mrb[0].mxu0
        %v7233 = vadd.f32 0.0, %v7232
        %v7234 = vpop.f32.mrb[0].mxu0
        %v7235 = vadd.f32 0.0, %v7234
        %v7236 = vpop.f32.mrb[0].mxu0
        %v7237 = vadd.f32 0.0, %v7236
        %v7238 = vpop.f32.mrb[0].mxu0
        %v7239 = vadd.f32 0.0, %v7238
        %7240 = vmatprep.mubr.bf16.mxu0 0
        %7241 = vmatmul.mubr.bf16.gmra.mrb[0].mxu0 %v6811
        %v7242 = vpop.f32.mrb[0].mxu0
        %v7243 = vadd.f32 0.0, %v7242
        %v7244 = vpop.f32.mrb[0].mxu0
        %v7245 = vadd.f32 0.0, %v7244
        %v7246 = vpop.f32.mrb[0].mxu0
        %v7247 = vadd.f32 0.0, %v7246
        %v7248 = vpop.f32.mrb[0].mxu0
        %v7249 = vadd.f32 0.0, %v7248
        %7250 = vmatprep.mubr.bf16.mxu0 0
        %7251 = vmatmul.mubr.bf16.gmra.mrb[0].mxu0 %v6814
        %v7252 = vpop.f32.mrb[0].mxu0
        %v7253 = vadd.f32 0.0, %v7252
        %v7254 = vpop.f32.mrb[0].mxu0
        %v7255 = vadd.f32 0.0, %v7254
        %v7256 = vpop.f32.mrb[0].mxu0
        %v7257 = vadd.f32 0.0, %v7256
        %v7258 = vpop.f32.mrb[0].mxu0
        %v7259 = vadd.f32 0.0, %v7258
        %7260 = vmatprep.mubr.bf16.mxu0 0
        %7261 = vmatmul.mubr.bf16.gmra.mrb[0].mxu0 %v6817
        %v7262 = vpop.f32.mrb[0].mxu0
        %v7263 = vadd.f32 0.0, %v7262
        %v7264 = vpop.f32.mrb[0].mxu0
        %v7265 = vadd.f32 0.0, %v7264
        %v7266 = vpop.f32.mrb[0].mxu0
        %v7267 = vadd.f32 0.0, %v7266
        %v7268 = vpop.f32.mrb[0].mxu0
        %v7269 = vadd.f32 0.0, %v7268
        %7270 = vmatprep.mubr.bf16.mxu0 0
        %7271 = vmatmul.mubr.bf16.gmra.mrb[0].mxu0 %v6820
        %v7272 = vpop.f32.mrb[0].mxu0
        %v7273 = vadd.f32 0.0, %v7272
        %v7274 = vpop.f32.mrb[0].mxu0
        %v7275 = vadd.f32 0.0, %v7274
        %v7276 = vpop.f32.mrb[0].mxu0
        %v7277 = vadd.f32 0.0, %v7276
        %v7278 = vpop.f32.mrb[0].mxu0
        %v7279 = vadd.f32 0.0, %v7278
        %7280 = vmatprep.mubr.bf16.mxu0 0
        %7281 = vmatmul.mubr.bf16.gmra.mrb[0].mxu0 %v6823
        %v7282 = vpop.f32.mrb[0].mxu0
        %v7283 = vadd.f32 0.0, %v7282
        %v7284 = vpop.f32.mrb[0].mxu0
        %v7285 = vadd.f32 0.0, %v7284
        %v7286 = vpop.f32.mrb[0].mxu0
        %v7287 = vadd.f32 0.0, %v7286
        %v7288 = vpop.f32.mrb[0].mxu0
        %v7289 = vadd.f32 0.0, %v7288
        %7290 = vmatprep.mubr.bf16.mxu0 0
        %7291 = vmatmul.mubr.bf16.gmra.mrb[0].mxu0 %v6826
        %v7292 = vpop.f32.mrb[0].mxu0
        %v7293 = vadd.f32 0.0, %v7292
        %v7294 = vpop.f32.mrb[0].mxu0
        %v7295 = vadd.f32 0.0, %v7294
        %v7296 = vpop.f32.mrb[0].mxu0
        %v7297 = vadd.f32 0.0, %v7296
        %v7298 = vpop.f32.mrb[0].mxu0
        %v7299 = vadd.f32 0.0, %v7298
        %7300 = vmatprep.mubr.bf16.mxu0 0
        %7301 = vmatmul.mubr.bf16.gmra.mrb[0].mxu0 %v6829
        %v7302 = vpop.f32.mrb[0].mxu0
        %v7303 = vadd.f32 0.0, %v7302
        %v7304 = vpop.f32.mrb[0].mxu0
        %v7305 = vadd.f32 0.0, %v7304
        %v7306 = vpop.f32.mrb[0].mxu0
        %v7307 = vadd.f32 0.0, %v7306
        %v7308 = vpop.f32.mrb[0].mxu0
        %v7309 = vadd.f32 0.0, %v7308
        %7310 = vdwg.mxu0
        %7311 = vmatprep.subr.bf16.mxu0 0
        %7312 = vmatpush1.bf16.msra.mxu0 %v6710
        %7313 = vmatprep.subr.bf16.mxu0 0
        %7314 = vmatpush1.bf16.msra.mxu0 %v6717
        %7315 = vmatprep.subr.bf16.mxu0 0
        %7316 = vmatpush1.bf16.msra.mxu0 %v6724
        %7317 = vmatprep.subr.bf16.mxu0 0
        %7318 = vmatpush1.bf16.msra.mxu0 %v6731
        %7319 = vmatprep.subr.bf16.mxu0 0
        %7320 = vmatpush1.bf16.msra.mxu0 %v6738
        %7321 = vmatprep.subr.bf16.mxu0 0
        %7322 = vmatpush1.bf16.msra.mxu0 %v6745
        %7323 = vmatprep.subr.bf16.mxu0 0
        %7324 = vmatpush1.bf16.msra.mxu0 %v6850
        %7325 = vmatprep.subr.bf16.mxu0 0
        %7326 = vmatpush1.bf16.msra.mxu0 0
        %7327 = vmatprep.subr.bf16.mxu0 0
        %7328 = vmatpush1.bf16.msra.mxu0 0
        %7329 = vmatprep.subr.bf16.mxu0 0
        %7330 = vmatpush1.bf16.msra.mxu0 0
        %7331 = vmatprep.subr.bf16.mxu0 0
        %7332 = vmatpush1.bf16.msra.mxu0 0
        %7333 = vmatprep.subr.bf16.mxu0 0
        %7334 = vmatpush1.bf16.msra.mxu0 0
        %7335 = vmatprep.subr.bf16.mxu0 0
        %7336 = vmatpush1.bf16.msra.mxu0 0
        %7337 = vmatprep.subr.bf16.mxu0 0
        %7338 = vmatpush1.bf16.msra.mxu0 0
        %7339 = vmatprep.subr.bf16.mxu0 0
        %7340 = vmatpush1.bf16.msra.mxu0 0
        %7341 = vmatprep.subr.bf16.mxu0 0
        %7342 = vmatpush1.bf16.msra.mxu0 0
        %7343 = vmatprep.mubr.bf16.mxu0 0
        %7344 = vmatmul.mubr.bf16.gmra.mrb[0].mxu0 %v6796
        %v7345 = vpop.f32.mrb[0].mxu0
        %v7346 = vadd.f32 0.0, %v7345
        %v7347 = vpop.f32.mrb[0].mxu0
        %v7348 = vpop.f32.mrb[0].mxu0
        %v7349 = vadd.f32 0.0, %v7348
        %v7350 = vpop.f32.mrb[0].mxu0
        %7351 = vmatprep.mubr.bf16.mxu0 0
        %7352 = vmatmul.mubr.bf16.gmra.mrb[0].mxu0 %v6799
        %v7353 = vpop.f32.mrb[0].mxu0
        %v7354 = vadd.f32 0.0, %v7353
        %v7355 = vpop.f32.mrb[0].mxu0
        %v7356 = vpop.f32.mrb[0].mxu0
        %v7357 = vadd.f32 0.0, %v7356
        %v7358 = vpop.f32.mrb[0].mxu0
        %7359 = vmatprep.mubr.bf16.mxu0 0
        %7360 = vmatmul.mubr.bf16.gmra.mrb[0].mxu0 %v6802
        %v7361 = vpop.f32.mrb[0].mxu0
        %v7362 = vadd.f32 0.0, %v7361
        %v7363 = vpop.f32.mrb[0].mxu0
        %v7364 = vpop.f32.mrb[0].mxu0
        %v7365 = vadd.f32 0.0, %v7364
        %v7366 = vpop.f32.mrb[0].mxu0
        %7367 = vmatprep.mubr.bf16.mxu0 0
        %7368 = vmatmul.mubr.bf16.gmra.mrb[0].mxu0 %v6805
        %v7369 = vpop.f32.mrb[0].mxu0
        %v7370 = vadd.f32 0.0, %v7369
        %v7371 = vpop.f32.mrb[0].mxu0
        %v7372 = vpop.f32.mrb[0].mxu0
        %v7373 = vadd.f32 0.0, %v7372
        %v7374 = vpop.f32.mrb[0].mxu0
        %7375 = vmatprep.mubr.bf16.mxu0 0
        %7376 = vmatmul.mubr.bf16.gmra.mrb[0].mxu0 %v6808
        %v7377 = vpop.f32.mrb[0].mxu0
        %v7378 = vadd.f32 0.0, %v7377
        %v7379 = vpop.f32.mrb[0].mxu0
        %v7380 = vpop.f32.mrb[0].mxu0
        %v7381 = vadd.f32 0.0, %v7380
        %v7382 = vpop.f32.mrb[0].mxu0
        %7383 = vmatprep.mubr.bf16.mxu0 0
        %7384 = vmatmul.mubr.bf16.gmra.mrb[0].mxu0 %v6811
        %v7385 = vpop.f32.mrb[0].mxu0
        %v7386 = vadd.f32 0.0, %v7385
        %v7387 = vpop.f32.mrb[0].mxu0
        %v7388 = vpop.f32.mrb[0].mxu0
        %v7389 = vadd.f32 0.0, %v7388
        %v7390 = vpop.f32.mrb[0].mxu0
        %7391 = vmatprep.mubr.bf16.mxu0 0
        %7392 = vmatmul.mubr.bf16.gmra.mrb[0].mxu0 %v6814
        %v7393 = vpop.f32.mrb[0].mxu0
        %v7394 = vadd.f32 0.0, %v7393
        %v7395 = vpop.f32.mrb[0].mxu0
        %v7396 = vpop.f32.mrb[0].mxu0
        %v7397 = vadd.f32 0.0, %v7396
        %v7398 = vpop.f32.mrb[0].mxu0
        %7399 = vmatprep.mubr.bf16.mxu0 0
        %7400 = vmatmul.mubr.bf16.gmra.mrb[0].mxu0 %v6817
        %v7401 = vpop.f32.mrb[0].mxu0
        %v7402 = vadd.f32 0.0, %v7401
        %v7403 = vpop.f32.mrb[0].mxu0
        %v7404 = vpop.f32.mrb[0].mxu0
        %v7405 = vadd.f32 0.0, %v7404
        %v7406 = vpop.f32.mrb[0].mxu0
        %7407 = vmatprep.mubr.bf16.mxu0 0
        %7408 = vmatmul.mubr.bf16.gmra.mrb[0].mxu0 %v6820
        %v7409 = vpop.f32.mrb[0].mxu0
        %v7410 = vadd.f32 0.0, %v7409
        %v7411 = vpop.f32.mrb[0].mxu0
        %v7412 = vpop.f32.mrb[0].mxu0
        %v7413 = vadd.f32 0.0, %v7412
        %v7414 = vpop.f32.mrb[0].mxu0
        %7415 = vmatprep.mubr.bf16.mxu0 0
        %7416 = vmatmul.mubr.bf16.gmra.mrb[0].mxu0 %v6823
        %v7417 = vpop.f32.mrb[0].mxu0
        %v7418 = vadd.f32 0.0, %v7417
        %v7419 = vpop.f32.mrb[0].mxu0
        %v7420 = vpop.f32.mrb[0].mxu0
        %v7421 = vadd.f32 0.0, %v7420
        %v7422 = vpop.f32.mrb[0].mxu0
        %7423 = vmatprep.mubr.bf16.mxu0 0
        %7424 = vmatmul.mubr.bf16.gmra.mrb[0].mxu0 %v6826
        %v7425 = vpop.f32.mrb[0].mxu0
        %v7426 = vadd.f32 0.0, %v7425
        %v7427 = vpop.f32.mrb[0].mxu0
        %v7428 = vpop.f32.mrb[0].mxu0
        %v7429 = vadd.f32 0.0, %v7428
        %v7430 = vpop.f32.mrb[0].mxu0
        %7431 = vmatprep.mubr.bf16.mxu0 0
        %7432 = vmatmul.mubr.bf16.gmra.mrb[0].mxu0 %v6829
        %v7433 = vpop.f32.mrb[0].mxu0
        %v7434 = vadd.f32 0.0, %v7433
        %v7435 = vpop.f32.mrb[0].mxu0
        %v7436 = vpop.f32.mrb[0].mxu0
        %v7437 = vadd.f32 0.0, %v7436
        %v7438 = vpop.f32.mrb[0].mxu0
        %7439 = vdwg.mxu0
        %v7440 = vrot.slane %v6889, 7
        %v7441 = vrot.slane %v6893, 7
        %v7442 = vrot.slane %v6899, 7
        %v7443 = vrot.slane %v6903, 7
        %v7444 = vrot.slane %v6909, 7
        %v7445 = vrot.slane %v6913, 7
        %v7446 = vrot.slane %v6919, 7
        %v7447 = vrot.slane %v6923, 7
        %v7448 = vrot.slane %v6929, 7
        %v7449 = vrot.slane %v6933, 7
        %v7450 = vrot.slane %v6939, 7
        %v7451 = vrot.slane %v6943, 7
        %v7452 = vrot.slane %v6949, 7
        %v7453 = vrot.slane %v6953, 7
        %v7454 = vrot.slane %v6959, 7
        %v7455 = vrot.slane %v6963, 7
        %v7456 = vrot.slane %v6969, 7
        %v7457 = vrot.slane %v6973, 7
        %v7458 = vrot.slane %v6979, 7
        %v7459 = vrot.slane %v6983, 7
        %v7460 = vrot.slane %v6989, 7
        %v7461 = vrot.slane %v6993, 7
        %v7462 = vrot.slane %v6999, 7
        %v7463 = vrot.slane %v7003, 7
        %v7464 = vsel %vm1502, %v7462, %v7463
        %v7465 = vsel %vm1502, %v7461, %v7462
        %v7466 = vsel %vm1502, %v7460, %v7461
        %v7467 = vsel %vm1502, %v7459, %v7460
        %v7468 = vsel %vm1502, %v7458, %v7459
        %v7469 = vsel %vm1502, %v7457, %v7458
        %v7470 = vsel %vm1502, %v7456, %v7457
        %v7471 = vsel %vm1502, %v7455, %v7456
        %v7472 = vsel %vm1502, %v7454, %v7455
        %v7473 = vsel %vm1502, %v7453, %v7454
        %v7474 = vsel %vm1502, %v7452, %v7453
        %v7475 = vsel %vm1502, %v7451, %v7452
        %v7476 = vsel %vm1502, %v7450, %v7451
        %v7477 = vsel %vm1502, %v7449, %v7450
        %v7478 = vsel %vm1502, %v7448, %v7449
        %v7479 = vsel %vm1502, %v7447, %v7448
        %v7480 = vsel %vm1502, %v7446, %v7447
        %v7481 = vsel %vm1502, %v7445, %v7446
        %v7482 = vsel %vm1502, %v7444, %v7445
        %v7483 = vsel %vm1502, %v7443, %v7444
        %v7484 = vsel %vm1502, %v7442, %v7443
        %v7485 = vsel %vm1502, %v7441, %v7442
        %v7486 = vsel %vm1502, %v7440, %v7441
        %v7487 = vsel %vm1502, %v7463, %v7440
        %v7488 = vadd.f32 %v6887, %v7487
        %v7489 = vadd.f32 %v6891, %v7486
        %v7490 = vadd.f32 %v6897, %v7485
        %v7491 = vadd.f32 %v6901, %v7484
        %v7492 = vadd.f32 %v6907, %v7483
        %v7493 = vadd.f32 %v6911, %v7482
        %v7494 = vadd.f32 %v6917, %v7481
        %v7495 = vadd.f32 %v6921, %v7480
        %v7496 = vadd.f32 %v6927, %v7479
        %v7497 = vadd.f32 %v6931, %v7478
        %v7498 = vadd.f32 %v6937, %v7477
        %v7499 = vadd.f32 %v6941, %v7476
        %v7500 = vadd.f32 %v6947, %v7475
        %v7501 = vadd.f32 %v6951, %v7474
        %v7502 = vadd.f32 %v6957, %v7473
        %v7503 = vadd.f32 %v6961, %v7472
        %v7504 = vadd.f32 %v6967, %v7471
        %v7505 = vadd.f32 %v6971, %v7470
        %v7506 = vadd.f32 %v6977, %v7469
        %v7507 = vadd.f32 %v6981, %v7468
        %v7508 = vadd.f32 %v6987, %v7467
        %v7509 = vadd.f32 %v6991, %v7466
        %v7510 = vadd.f32 %v6997, %v7465
        %v7511 = vadd.f32 %v7001, %v7464
        %v7512 = vrot.slane %v7040, 6
        %v7513 = vrot.slane %v7044, 6
        %v7514 = vrot.slane %v7050, 6
        %v7515 = vrot.slane %v7054, 6
        %v7516 = vrot.slane %v7060, 6
        %v7517 = vrot.slane %v7064, 6
        %v7518 = vrot.slane %v7070, 6
        %v7519 = vrot.slane %v7074, 6
        %v7520 = vrot.slane %v7080, 6
        %v7521 = vrot.slane %v7084, 6
        %v7522 = vrot.slane %v7090, 6
        %v7523 = vrot.slane %v7094, 6
        %v7524 = vrot.slane %v7100, 6
        %v7525 = vrot.slane %v7104, 6
        %v7526 = vrot.slane %v7110, 6
        %v7527 = vrot.slane %v7114, 6
        %v7528 = vrot.slane %v7120, 6
        %v7529 = vrot.slane %v7124, 6
        %v7530 = vrot.slane %v7130, 6
        %v7531 = vrot.slane %v7134, 6
        %v7532 = vrot.slane %v7140, 6
        %v7533 = vrot.slane %v7144, 6
        %v7534 = vrot.slane %v7150, 6
        %v7535 = vrot.slane %v7154, 6
        %v7536 = vsel %vm1575, %v7534, %v7535
        %v7537 = vsel %vm1575, %v7533, %v7534
        %v7538 = vsel %vm1575, %v7532, %v7533
        %v7539 = vsel %vm1575, %v7531, %v7532
        %v7540 = vsel %vm1575, %v7530, %v7531
        %v7541 = vsel %vm1575, %v7529, %v7530
        %v7542 = vsel %vm1575, %v7528, %v7529
        %v7543 = vsel %vm1575, %v7527, %v7528
        %v7544 = vsel %vm1575, %v7526, %v7527
        %v7545 = vsel %vm1575, %v7525, %v7526
        %v7546 = vsel %vm1575, %v7524, %v7525
        %v7547 = vsel %vm1575, %v7523, %v7524
        %v7548 = vsel %vm1575, %v7522, %v7523
        %v7549 = vsel %vm1575, %v7521, %v7522
        %v7550 = vsel %vm1575, %v7520, %v7521
        %v7551 = vsel %vm1575, %v7519, %v7520
        %v7552 = vsel %vm1575, %v7518, %v7519
        %v7553 = vsel %vm1575, %v7517, %v7518
        %v7554 = vsel %vm1575, %v7516, %v7517
        %v7555 = vsel %vm1575, %v7515, %v7516
        %v7556 = vsel %vm1575, %v7514, %v7515
        %v7557 = vsel %vm1575, %v7513, %v7514
        %v7558 = vsel %vm1575, %v7512, %v7513
        %v7559 = vsel %vm1575, %v7535, %v7512
        %v7560 = vadd.f32 %v7488, %v7559
        %v7561 = vadd.f32 %v7489, %v7558
        %v7562 = vadd.f32 %v7490, %v7557
        %v7563 = vadd.f32 %v7491, %v7556
        %v7564 = vadd.f32 %v7492, %v7555
        %v7565 = vadd.f32 %v7493, %v7554
        %v7566 = vadd.f32 %v7494, %v7553
        %v7567 = vadd.f32 %v7495, %v7552
        %v7568 = vadd.f32 %v7496, %v7551
        %v7569 = vadd.f32 %v7497, %v7550
        %v7570 = vadd.f32 %v7498, %v7549
        %v7571 = vadd.f32 %v7499, %v7548
        %v7572 = vadd.f32 %v7500, %v7547
        %v7573 = vadd.f32 %v7501, %v7546
        %v7574 = vadd.f32 %v7502, %v7545
        %v7575 = vadd.f32 %v7503, %v7544
        %v7576 = vadd.f32 %v7504, %v7543
        %v7577 = vadd.f32 %v7505, %v7542
        %v7578 = vadd.f32 %v7506, %v7541
        %v7579 = vadd.f32 %v7507, %v7540
        %v7580 = vadd.f32 %v7508, %v7539
        %v7581 = vadd.f32 %v7509, %v7538
        %v7582 = vadd.f32 %v7510, %v7537
        %v7583 = vadd.f32 %v7511, %v7536
        %v7584 = vrot.slane %v7042, 5
        %v7585 = vrot.slane %v7046, 5
        %v7586 = vrot.slane %v7052, 5
        %v7587 = vrot.slane %v7056, 5
        %v7588 = vrot.slane %v7062, 5
        %v7589 = vrot.slane %v7066, 5
        %v7590 = vrot.slane %v7072, 5
        %v7591 = vrot.slane %v7076, 5
        %v7592 = vrot.slane %v7082, 5
        %v7593 = vrot.slane %v7086, 5
        %v7594 = vrot.slane %v7092, 5
        %v7595 = vrot.slane %v7096, 5
        %v7596 = vrot.slane %v7102, 5
        %v7597 = vrot.slane %v7106, 5
        %v7598 = vrot.slane %v7112, 5
        %v7599 = vrot.slane %v7116, 5
        %v7600 = vrot.slane %v7122, 5
        %v7601 = vrot.slane %v7126, 5
        %v7602 = vrot.slane %v7132, 5
        %v7603 = vrot.slane %v7136, 5
        %v7604 = vrot.slane %v7142, 5
        %v7605 = vrot.slane %v7146, 5
        %v7606 = vrot.slane %v7152, 5
        %v7607 = vrot.slane %v7156, 5
        %v7608 = vsel %vm1648, %v7606, %v7607
        %v7609 = vsel %vm1648, %v7605, %v7606
        %v7610 = vsel %vm1648, %v7604, %v7605
        %v7611 = vsel %vm1648, %v7603, %v7604
        %v7612 = vsel %vm1648, %v7602, %v7603
        %v7613 = vsel %vm1648, %v7601, %v7602
        %v7614 = vsel %vm1648, %v7600, %v7601
        %v7615 = vsel %vm1648, %v7599, %v7600
        %v7616 = vsel %vm1648, %v7598, %v7599
        %v7617 = vsel %vm1648, %v7597, %v7598
        %v7618 = vsel %vm1648, %v7596, %v7597
        %v7619 = vsel %vm1648, %v7595, %v7596
        %v7620 = vsel %vm1648, %v7594, %v7595
        %v7621 = vsel %vm1648, %v7593, %v7594
        %v7622 = vsel %vm1648, %v7592, %v7593
        %v7623 = vsel %vm1648, %v7591, %v7592
        %v7624 = vsel %vm1648, %v7590, %v7591
        %v7625 = vsel %vm1648, %v7589, %v7590
        %v7626 = vsel %vm1648, %v7588, %v7589
        %v7627 = vsel %vm1648, %v7587, %v7588
        %v7628 = vsel %vm1648, %v7586, %v7587
        %v7629 = vsel %vm1648, %v7585, %v7586
        %v7630 = vsel %vm1648, %v7584, %v7585
        %v7631 = vsel %vm1648, %v7607, %v7584
        %v7632 = vadd.f32 %v7560, %v7631
        %v7633 = vadd.f32 %v7561, %v7630
        %v7634 = vadd.f32 %v7562, %v7629
        %v7635 = vadd.f32 %v7563, %v7628
        %v7636 = vadd.f32 %v7564, %v7627
        %v7637 = vadd.f32 %v7565, %v7626
        %v7638 = vadd.f32 %v7566, %v7625
        %v7639 = vadd.f32 %v7567, %v7624
        %v7640 = vadd.f32 %v7568, %v7623
        %v7641 = vadd.f32 %v7569, %v7622
        %v7642 = vadd.f32 %v7570, %v7621
        %v7643 = vadd.f32 %v7571, %v7620
        %v7644 = vadd.f32 %v7572, %v7619
        %v7645 = vadd.f32 %v7573, %v7618
        %v7646 = vadd.f32 %v7574, %v7617
        %v7647 = vadd.f32 %v7575, %v7616
        %v7648 = vadd.f32 %v7576, %v7615
        %v7649 = vadd.f32 %v7577, %v7614
        %v7650 = vadd.f32 %v7578, %v7613
        %v7651 = vadd.f32 %v7579, %v7612
        %v7652 = vadd.f32 %v7580, %v7611
        %v7653 = vadd.f32 %v7581, %v7610
        %v7654 = vadd.f32 %v7582, %v7609
        %v7655 = vadd.f32 %v7583, %v7608
        %v7656 = vrot.slane %v7193, 4
        %v7657 = vrot.slane %v7197, 4
        %v7658 = vrot.slane %v7203, 4
        %v7659 = vrot.slane %v7207, 4
        %v7660 = vrot.slane %v7213, 4
        %v7661 = vrot.slane %v7217, 4
        %v7662 = vrot.slane %v7223, 4
        %v7663 = vrot.slane %v7227, 4
        %v7664 = vrot.slane %v7233, 4
        %v7665 = vrot.slane %v7237, 4
        %v7666 = vrot.slane %v7243, 4
        %v7667 = vrot.slane %v7247, 4
        %v7668 = vrot.slane %v7253, 4
        %v7669 = vrot.slane %v7257, 4
        %v7670 = vrot.slane %v7263, 4
        %v7671 = vrot.slane %v7267, 4
        %v7672 = vrot.slane %v7273, 4
        %v7673 = vrot.slane %v7277, 4
        %v7674 = vrot.slane %v7283, 4
        %v7675 = vrot.slane %v7287, 4
        %v7676 = vrot.slane %v7293, 4
        %v7677 = vrot.slane %v7297, 4
        %v7678 = vrot.slane %v7303, 4
        %v7679 = vrot.slane %v7307, 4
        %v7680 = vsel %vm1721, %v7678, %v7679
        %v7681 = vsel %vm1721, %v7677, %v7678
        %v7682 = vsel %vm1721, %v7676, %v7677
        %v7683 = vsel %vm1721, %v7675, %v7676
        %v7684 = vsel %vm1721, %v7674, %v7675
        %v7685 = vsel %vm1721, %v7673, %v7674
        %v7686 = vsel %vm1721, %v7672, %v7673
        %v7687 = vsel %vm1721, %v7671, %v7672
        %v7688 = vsel %vm1721, %v7670, %v7671
        %v7689 = vsel %vm1721, %v7669, %v7670
        %v7690 = vsel %vm1721, %v7668, %v7669
        %v7691 = vsel %vm1721, %v7667, %v7668
        %v7692 = vsel %vm1721, %v7666, %v7667
        %v7693 = vsel %vm1721, %v7665, %v7666
        %v7694 = vsel %vm1721, %v7664, %v7665
        %v7695 = vsel %vm1721, %v7663, %v7664
        %v7696 = vsel %vm1721, %v7662, %v7663
        %v7697 = vsel %vm1721, %v7661, %v7662
        %v7698 = vsel %vm1721, %v7660, %v7661
        %v7699 = vsel %vm1721, %v7659, %v7660
        %v7700 = vsel %vm1721, %v7658, %v7659
        %v7701 = vsel %vm1721, %v7657, %v7658
        %v7702 = vsel %vm1721, %v7656, %v7657
        %v7703 = vsel %vm1721, %v7679, %v7656
        %v7704 = vadd.f32 %v7632, %v7703
        %v7705 = vadd.f32 %v7633, %v7702
        %v7706 = vadd.f32 %v7634, %v7701
        %v7707 = vadd.f32 %v7635, %v7700
        %v7708 = vadd.f32 %v7636, %v7699
        %v7709 = vadd.f32 %v7637, %v7698
        %v7710 = vadd.f32 %v7638, %v7697
        %v7711 = vadd.f32 %v7639, %v7696
        %v7712 = vadd.f32 %v7640, %v7695
        %v7713 = vadd.f32 %v7641, %v7694
        %v7714 = vadd.f32 %v7642, %v7693
        %v7715 = vadd.f32 %v7643, %v7692
        %v7716 = vadd.f32 %v7644, %v7691
        %v7717 = vadd.f32 %v7645, %v7690
        %v7718 = vadd.f32 %v7646, %v7689
        %v7719 = vadd.f32 %v7647, %v7688
        %v7720 = vadd.f32 %v7648, %v7687
        %v7721 = vadd.f32 %v7649, %v7686
        %v7722 = vadd.f32 %v7650, %v7685
        %v7723 = vadd.f32 %v7651, %v7684
        %v7724 = vadd.f32 %v7652, %v7683
        %v7725 = vadd.f32 %v7653, %v7682
        %v7726 = vadd.f32 %v7654, %v7681
        %v7727 = vadd.f32 %v7655, %v7680
        %v7728 = vrot.slane %v7195, 3
        %v7729 = vrot.slane %v7199, 3
        %v7730 = vrot.slane %v7205, 3
        %v7731 = vrot.slane %v7209, 3
        %v7732 = vrot.slane %v7215, 3
        %v7733 = vrot.slane %v7219, 3
        %v7734 = vrot.slane %v7225, 3
        %v7735 = vrot.slane %v7229, 3
        %v7736 = vrot.slane %v7235, 3
        %v7737 = vrot.slane %v7239, 3
        %v7738 = vrot.slane %v7245, 3
        %v7739 = vrot.slane %v7249, 3
        %v7740 = vrot.slane %v7255, 3
        %v7741 = vrot.slane %v7259, 3
        %v7742 = vrot.slane %v7265, 3
        %v7743 = vrot.slane %v7269, 3
        %v7744 = vrot.slane %v7275, 3
        %v7745 = vrot.slane %v7279, 3
        %v7746 = vrot.slane %v7285, 3
        %v7747 = vrot.slane %v7289, 3
        %v7748 = vrot.slane %v7295, 3
        %v7749 = vrot.slane %v7299, 3
        %v7750 = vrot.slane %v7305, 3
        %v7751 = vrot.slane %v7309, 3
        %v7752 = vsel %vm1794, %v7750, %v7751
        %v7753 = vsel %vm1794, %v7749, %v7750
        %v7754 = vsel %vm1794, %v7748, %v7749
        %v7755 = vsel %vm1794, %v7747, %v7748
        %v7756 = vsel %vm1794, %v7746, %v7747
        %v7757 = vsel %vm1794, %v7745, %v7746
        %v7758 = vsel %vm1794, %v7744, %v7745
        %v7759 = vsel %vm1794, %v7743, %v7744
        %v7760 = vsel %vm1794, %v7742, %v7743
        %v7761 = vsel %vm1794, %v7741, %v7742
        %v7762 = vsel %vm1794, %v7740, %v7741
        %v7763 = vsel %vm1794, %v7739, %v7740
        %v7764 = vsel %vm1794, %v7738, %v7739
        %v7765 = vsel %vm1794, %v7737, %v7738
        %v7766 = vsel %vm1794, %v7736, %v7737
        %v7767 = vsel %vm1794, %v7735, %v7736
        %v7768 = vsel %vm1794, %v7734, %v7735
        %v7769 = vsel %vm1794, %v7733, %v7734
        %v7770 = vsel %vm1794, %v7732, %v7733
        %v7771 = vsel %vm1794, %v7731, %v7732
        %v7772 = vsel %vm1794, %v7730, %v7731
        %v7773 = vsel %vm1794, %v7729, %v7730
        %v7774 = vsel %vm1794, %v7728, %v7729
        %v7775 = vsel %vm1794, %v7751, %v7728
        %v7776 = vadd.f32 %v7704, %v7775
        %v7777 = vadd.f32 %v7705, %v7774
        %v7778 = vadd.f32 %v7706, %v7773
        %v7779 = vadd.f32 %v7707, %v7772
        %v7780 = vadd.f32 %v7708, %v7771
        %v7781 = vadd.f32 %v7709, %v7770
        %v7782 = vadd.f32 %v7710, %v7769
        %v7783 = vadd.f32 %v7711, %v7768
        %v7784 = vadd.f32 %v7712, %v7767
        %v7785 = vadd.f32 %v7713, %v7766
        %v7786 = vadd.f32 %v7714, %v7765
        %v7787 = vadd.f32 %v7715, %v7764
        %v7788 = vadd.f32 %v7716, %v7763
        %v7789 = vadd.f32 %v7717, %v7762
        %v7790 = vadd.f32 %v7718, %v7761
        %v7791 = vadd.f32 %v7719, %v7760
        %v7792 = vadd.f32 %v7720, %v7759
        %v7793 = vadd.f32 %v7721, %v7758
        %v7794 = vadd.f32 %v7722, %v7757
        %v7795 = vadd.f32 %v7723, %v7756
        %v7796 = vadd.f32 %v7724, %v7755
        %v7797 = vadd.f32 %v7725, %v7754
        %v7798 = vadd.f32 %v7726, %v7753
        %v7799 = vadd.f32 %v7727, %v7752
        %v7800 = vrot.slane %v7346, 2
        %v7801 = vrot.slane %v7349, 2
        %v7802 = vrot.slane %v7354, 2
        %v7803 = vrot.slane %v7357, 2
        %v7804 = vrot.slane %v7362, 2
        %v7805 = vrot.slane %v7365, 2
        %v7806 = vrot.slane %v7370, 2
        %v7807 = vrot.slane %v7373, 2
        %v7808 = vrot.slane %v7378, 2
        %v7809 = vrot.slane %v7381, 2
        %v7810 = vrot.slane %v7386, 2
        %v7811 = vrot.slane %v7389, 2
        %v7812 = vrot.slane %v7394, 2
        %v7813 = vrot.slane %v7397, 2
        %v7814 = vrot.slane %v7402, 2
        %v7815 = vrot.slane %v7405, 2
        %v7816 = vrot.slane %v7410, 2
        %v7817 = vrot.slane %v7413, 2
        %v7818 = vrot.slane %v7418, 2
        %v7819 = vrot.slane %v7421, 2
        %v7820 = vrot.slane %v7426, 2
        %v7821 = vrot.slane %v7429, 2
        %v7822 = vrot.slane %v7434, 2
        %v7823 = vrot.slane %v7437, 2
        %v7824 = vsel %vm1867, %v7822, %v7823
        %v7825 = vsel %vm1867, %v7821, %v7822
        %v7826 = vsel %vm1867, %v7820, %v7821
        %v7827 = vsel %vm1867, %v7819, %v7820
        %v7828 = vsel %vm1867, %v7818, %v7819
        %v7829 = vsel %vm1867, %v7817, %v7818
        %v7830 = vsel %vm1867, %v7816, %v7817
        %v7831 = vsel %vm1867, %v7815, %v7816
        %v7832 = vsel %vm1867, %v7814, %v7815
        %v7833 = vsel %vm1867, %v7813, %v7814
        %v7834 = vsel %vm1867, %v7812, %v7813
        %v7835 = vsel %vm1867, %v7811, %v7812
        %v7836 = vsel %vm1867, %v7810, %v7811
        %v7837 = vsel %vm1867, %v7809, %v7810
        %v7838 = vsel %vm1867, %v7808, %v7809
        %v7839 = vsel %vm1867, %v7807, %v7808
        %v7840 = vsel %vm1867, %v7806, %v7807
        %v7841 = vsel %vm1867, %v7805, %v7806
        %v7842 = vsel %vm1867, %v7804, %v7805
        %v7843 = vsel %vm1867, %v7803, %v7804
        %v7844 = vsel %vm1867, %v7802, %v7803
        %v7845 = vsel %vm1867, %v7801, %v7802
        %v7846 = vsel %vm1867, %v7800, %v7801
        %v7847 = vsel %vm1867, %v7823, %v7800
        %v7848 = vadd.f32 %v7776, %v7847
        %v7849 = vadd.f32 %v7777, %v7846
        %v7850 = vadd.f32 %v7778, %v7845
        %v7851 = vadd.f32 %v7779, %v7844
        %v7852 = vadd.f32 %v7780, %v7843
        %v7853 = vadd.f32 %v7781, %v7842
        %v7854 = vadd.f32 %v7782, %v7841
        %v7855 = vadd.f32 %v7783, %v7840
        %v7856 = vadd.f32 %v7784, %v7839
        %v7857 = vadd.f32 %v7785, %v7838
        %v7858 = vadd.f32 %v7786, %v7837
        %v7859 = vadd.f32 %v7787, %v7836
        %v7860 = vadd.f32 %v7788, %v7835
        %v7861 = vadd.f32 %v7789, %v7834
        %v7862 = vadd.f32 %v7790, %v7833
        %v7863 = vadd.f32 %v7791, %v7832
        %v7864 = vadd.f32 %v7792, %v7831
        %v7865 = vadd.f32 %v7793, %v7830
        %v7866 = vadd.f32 %v7794, %v7829
        %v7867 = vadd.f32 %v7795, %v7828
        %v7868 = vadd.f32 %v7796, %v7827
        %v7869 = vadd.f32 %v7797, %v7826
        %v7870 = vadd.f32 %v7798, %v7825
        %v7871 = vadd.f32 %v7799, %v7824
        %v7872 = vadd.f32 %v7848, %v504
        %v7873 = vadd.f32 %v7849, %v505
        %v7874 = vadd.f32 %v7850, %v506
        %v7875 = vadd.f32 %v7851, %v504
        %v7876 = vadd.f32 %v7852, %v505
        %v7877 = vadd.f32 %v7853, %v506
        %v7878 = vadd.f32 %v7854, %v504
        %v7879 = vadd.f32 %v7855, %v505
        %v7880 = vadd.f32 %v7856, %v506
        %v7881 = vadd.f32 %v7857, %v504
        %v7882 = vadd.f32 %v7858, %v505
        %v7883 = vadd.f32 %v7859, %v506
        %v7884 = vadd.f32 %v7860, %v504
        %v7885 = vadd.f32 %v7861, %v505
        %v7886 = vadd.f32 %v7862, %v506
        %v7887 = vadd.f32 %v7863, %v504
        %v7888 = vadd.f32 %v7864, %v505
        %v7889 = vadd.f32 %v7865, %v506
        %v7890 = vadd.f32 %v7866, %v504
        %v7891 = vadd.f32 %v7867, %v505
        %v7892 = vadd.f32 %v7868, %v506
        %v7893 = vadd.f32 %v7869, %v504
        %v7894 = vadd.f32 %v7870, %v505
        %v7895 = vadd.f32 %v7871, %v506
        %v7896 = vmax.f32 %v7872, %v7873
        %v7897 = vmax.f32 %v7896, %v7874
        %v7898 = vrot.slane %v7897, 4
        %v7899 = vmax.f32 %v7897, %v7898
        %v7900 = vrot.slane %v7899, 2
        %v7901 = vmax.f32 %v7899, %v7900
        %v7902 = vrot.slane %v7901, 1
        %v7903 = vmax.f32 %v7901, %v7902
        %v7904 = vmax.f32 %v7875, %v7876
        %v7905 = vmax.f32 %v7904, %v7877
        %v7906 = vrot.slane %v7905, 4
        %v7907 = vmax.f32 %v7905, %v7906
        %v7908 = vrot.slane %v7907, 2
        %v7909 = vmax.f32 %v7907, %v7908
        %v7910 = vrot.slane %v7909, 1
        %v7911 = vmax.f32 %v7909, %v7910
        %v7912 = vmax.f32 %v7878, %v7879
        %v7913 = vmax.f32 %v7912, %v7880
        %v7914 = vrot.slane %v7913, 4
        %v7915 = vmax.f32 %v7913, %v7914
        %v7916 = vrot.slane %v7915, 2
        %v7917 = vmax.f32 %v7915, %v7916
        %v7918 = vrot.slane %v7917, 1
        %v7919 = vmax.f32 %v7917, %v7918
        %v7920 = vmax.f32 %v7881, %v7882
        %v7921 = vmax.f32 %v7920, %v7883
        %v7922 = vrot.slane %v7921, 4
        %v7923 = vmax.f32 %v7921, %v7922
        %v7924 = vrot.slane %v7923, 2
        %v7925 = vmax.f32 %v7923, %v7924
        %v7926 = vrot.slane %v7925, 1
        %v7927 = vmax.f32 %v7925, %v7926
        %v7928 = vmax.f32 %v7884, %v7885
        %v7929 = vmax.f32 %v7928, %v7886
        %v7930 = vrot.slane %v7929, 4
        %v7931 = vmax.f32 %v7929, %v7930
        %v7932 = vrot.slane %v7931, 2
        %v7933 = vmax.f32 %v7931, %v7932
        %v7934 = vrot.slane %v7933, 1
        %v7935 = vmax.f32 %v7933, %v7934
        %v7936 = vmax.f32 %v7887, %v7888
        %v7937 = vmax.f32 %v7936, %v7889
        %v7938 = vrot.slane %v7937, 4
        %v7939 = vmax.f32 %v7937, %v7938
        %v7940 = vrot.slane %v7939, 2
        %v7941 = vmax.f32 %v7939, %v7940
        %v7942 = vrot.slane %v7941, 1
        %v7943 = vmax.f32 %v7941, %v7942
        %v7944 = vmax.f32 %v7890, %v7891
        %v7945 = vmax.f32 %v7944, %v7892
        %v7946 = vrot.slane %v7945, 4
        %v7947 = vmax.f32 %v7945, %v7946
        %v7948 = vrot.slane %v7947, 2
        %v7949 = vmax.f32 %v7947, %v7948
        %v7950 = vrot.slane %v7949, 1
        %v7951 = vmax.f32 %v7949, %v7950
        %v7952 = vmax.f32 %v7893, %v7894
        %v7953 = vmax.f32 %v7952, %v7895
        %v7954 = vrot.slane %v7953, 4
        %v7955 = vmax.f32 %v7953, %v7954
        %v7956 = vrot.slane %v7955, 2
        %v7957 = vmax.f32 %v7955, %v7956
        %v7958 = vrot.slane %v7957, 1
        %v7959 = vmax.f32 %v7957, %v7958
        %s7960 = scalar_lea.vmem %s429, 120 [#allocation2]
        %v7961 = vld [vmem:[%s7960] sm:$0xff]
        %v7962 = vld [vmem:[%s7960 + $0x8] sm:$0xff]
        %v7963 = vld [vmem:[%s7960 + $0x10] sm:$0xff]
        %v7964 = vld [vmem:[%s7960 + $0x90] sm:$0xff]
        %v7965 = vld [vmem:[%s7960 + $0x98] sm:$0xff]
        %v7966 = vld [vmem:[%s7960 + $0xa0] sm:$0xff]
        %v7967 = vld [vmem:[%s7960 + $0x120] sm:$0xff]
        %v7968 = vld [vmem:[%s7960 + $0x128] sm:$0xff]
        %v7969 = vld [vmem:[%s7960 + $0x130] sm:$0xff]
        %v7970 = vld [vmem:[%s7960 + $0x1b0] sm:$0xff]
        %v7971 = vld [vmem:[%s7960 + $0x1b8] sm:$0xff]
        %v7972 = vld [vmem:[%s7960 + $0x1c0] sm:$0xff]
        %v7973 = vld [vmem:[%s7960 + $0x240] sm:$0xff]
        %v7974 = vld [vmem:[%s7960 + $0x248] sm:$0xff]
        %v7975 = vld [vmem:[%s7960 + $0x250] sm:$0xff]
        %v7976 = vld [vmem:[%s7960 + $0x2d0] sm:$0xff]
        %v7977 = vld [vmem:[%s7960 + $0x2d8] sm:$0xff]
        %v7978 = vld [vmem:[%s7960 + $0x2e0] sm:$0xff]
        %v7979 = vld [vmem:[%s7960 + $0x360] sm:$0xff]
        %v7980 = vld [vmem:[%s7960 + $0x368] sm:$0xff]
        %v7981 = vld [vmem:[%s7960 + $0x370] sm:$0xff]
        %v7982 = vld [vmem:[%s7960 + $0x3f0] sm:$0xff]
        %v7983 = vld [vmem:[%s7960 + $0x3f8] sm:$0xff]
        %v7984 = vld [vmem:[%s7960 + $0x400] sm:$0xff]
        %v7985 = vpack.c.bf16 %v7962, %v7961
        %v7986 = vpack.c.bf16 %v7964, %v7963
        %v7987 = vpack.c.bf16 %v7966, %v7965
        %v7988 = vpack.c.bf16 %v7968, %v7967
        %v7989 = vpack.c.bf16 %v7970, %v7969
        %v7990 = vpack.c.bf16 %v7972, %v7971
        %v7991 = vpack.c.bf16 %v7974, %v7973
        %v7992 = vpack.c.bf16 %v7976, %v7975
        %v7993 = vpack.c.bf16 %v7978, %v7977
        %v7994 = vpack.c.bf16 %v7980, %v7979
        %v7995 = vpack.c.bf16 %v7982, %v7981
        %v7996 = vpack.c.bf16 %v7984, %v7983
        %s7997 = scalar_lea.vmem [#allocation5], 1820
        %v7998 = vld [vmem:[%s7997] sm:$0xff]
        %v7999 = vld [vmem:[%s7997 + $0x8] sm:$0xff]
        %v8000 = vld [vmem:[%s7997 + $0x10] sm:$0xff]
        %v8001 = vld [vmem:[%s7997 + $0x18] sm:$0xf]
        %v8002 = vld [vmem:[%s7997 + $0x1c] sm:$0xff]
        %v8003 = vld [vmem:[%s7997 + $0x24] sm:$0xff]
        %v8004 = vld [vmem:[%s7997 + $0x2c] sm:$0xff]
        %v8005 = vld [vmem:[%s7997 + $0x34] sm:$0xf]
        %v8006 = vld [vmem:[%s7997 + $0x38] sm:$0xff]
        %v8007 = vld [vmem:[%s7997 + $0x40] sm:$0xff]
        %v8008 = vld [vmem:[%s7997 + $0x48] sm:$0xff]
        %v8009 = vld [vmem:[%s7997 + $0x50] sm:$0xf]
        %v8010 = vld [vmem:[%s7997 + $0x54] sm:$0xff]
        %v8011 = vld [vmem:[%s7997 + $0x5c] sm:$0xff]
        %v8012 = vld [vmem:[%s7997 + $0x64] sm:$0xff]
        %v8013 = vld [vmem:[%s7997 + $0x6c] sm:$0xf]
        %v8014 = vld [vmem:[%s7997 + $0x70] sm:$0xff]
        %v8015 = vld [vmem:[%s7997 + $0x78] sm:$0xff]
        %v8016 = vld [vmem:[%s7997 + $0x80] sm:$0xff]
        %v8017 = vld [vmem:[%s7997 + $0x88] sm:$0xf]
        %v8018 = vld [vmem:[%s7997 + $0x8c] sm:$0xff]
        %v8019 = vld [vmem:[%s7997 + $0x94] sm:$0xff]
        %v8020 = vld [vmem:[%s7997 + $0x9c] sm:$0xff]
        %v8021 = vld [vmem:[%s7997 + $0xa4] sm:$0xf]
        %v8022 = vld [vmem:[%s7997 + $0xa8] sm:$0xff]
        %v8023 = vld [vmem:[%s7997 + $0xb0] sm:$0xff]
        %v8024 = vld [vmem:[%s7997 + $0xb8] sm:$0xff]
        %v8025 = vld [vmem:[%s7997 + $0xc0] sm:$0xf]
        %v8026 = vld [vmem:[%s7997 + $0xc4] sm:$0xff]
        %v8027 = vld [vmem:[%s7997 + $0xcc] sm:$0xff]
        %v8028 = vld [vmem:[%s7997 + $0xd4] sm:$0xff]
        %v8029 = vld [vmem:[%s7997 + $0xdc] sm:$0xf]
        %v8030 = vld [vmem:[%s7997 + $0xe0] sm:$0xff]
        %v8031 = vld [vmem:[%s7997 + $0xe8] sm:$0xff]
        %v8032 = vld [vmem:[%s7997 + $0xf0] sm:$0xff]
        %v8033 = vld [vmem:[%s7997 + $0xf8] sm:$0xf]
        %v8034 = vld [vmem:[%s7997 + $0xfc] sm:$0xff]
        %v8035 = vld [vmem:[%s7997 + $0x104] sm:$0xff]
        %v8036 = vld [vmem:[%s7997 + $0x10c] sm:$0xff]
        %v8037 = vld [vmem:[%s7997 + $0x114] sm:$0xf]
        %v8038 = vld [vmem:[%s7997 + $0x118] sm:$0xff]
        %v8039 = vld [vmem:[%s7997 + $0x120] sm:$0xff]
        %v8040 = vld [vmem:[%s7997 + $0x128] sm:$0xff]
        %v8041 = vld [vmem:[%s7997 + $0x130] sm:$0xf]
        %v8042 = vld [vmem:[%s7997 + $0x134] sm:$0xff]
        %v8043 = vld [vmem:[%s7997 + $0x13c] sm:$0xff]
        %v8044 = vld [vmem:[%s7997 + $0x144] sm:$0xff]
        %v8045 = vld [vmem:[%s7997 + $0x14c] sm:$0xf]
        %v8046 = vld [vmem:[%s7997 + $0x150] sm:$0x33]
        %v8047 = vld [vmem:[%s7997 + $0x158] sm:$0x33]
        %v8048 = vld [vmem:[%s7997 + $0x160] sm:$0x33]
        %v8049 = vld [vmem:[%s7997 + $0x168] sm:$0x3]
        %v8102 = vunpack.c.l.b16 %v7998
        %v8103 = vunpack.c.h.b16 %v7998
        %v8104 = vunpack.c.l.b16 %v7999
        %v8105 = vunpack.c.h.b16 %v7999
        %v8106 = vunpack.c.l.b16 %v8000
        %v8107 = vunpack.c.h.b16 %v8000
        %v8108 = vunpack.c.l.b16 %v8001
        %v8109 = vunpack.c.l.b16 %v8002
        %v8110 = vunpack.c.h.b16 %v8002
        %v8111 = vunpack.c.l.b16 %v8003
        %v8112 = vunpack.c.h.b16 %v8003
        %v8113 = vunpack.c.l.b16 %v8004
        %v8114 = vunpack.c.h.b16 %v8004
        %v8115 = vunpack.c.l.b16 %v8005
        %v8116 = vunpack.c.l.b16 %v8006
        %v8117 = vunpack.c.h.b16 %v8006
        %v8118 = vunpack.c.l.b16 %v8007
        %v8119 = vunpack.c.h.b16 %v8007
        %v8120 = vunpack.c.l.b16 %v8008
        %v8121 = vunpack.c.h.b16 %v8008
        %v8122 = vunpack.c.l.b16 %v8009
        %v8123 = vunpack.c.l.b16 %v8010
        %v8124 = vunpack.c.h.b16 %v8010
        %v8125 = vunpack.c.l.b16 %v8011
        %v8126 = vunpack.c.h.b16 %v8011
        %v8127 = vunpack.c.l.b16 %v8012
        %v8128 = vunpack.c.h.b16 %v8012
        %v8129 = vunpack.c.l.b16 %v8013
        %v8130 = vunpack.c.l.b16 %v8014
        %v8131 = vunpack.c.h.b16 %v8014
        %v8132 = vunpack.c.l.b16 %v8015
        %v8133 = vunpack.c.h.b16 %v8015
        %v8134 = vunpack.c.l.b16 %v8016
        %v8135 = vunpack.c.h.b16 %v8016
        %v8136 = vunpack.c.l.b16 %v8017
        %v8137 = vunpack.c.l.b16 %v8018
        %v8138 = vunpack.c.h.b16 %v8018
        %v8139 = vunpack.c.l.b16 %v8019
        %v8140 = vunpack.c.h.b16 %v8019
        %v8141 = vunpack.c.l.b16 %v8020
        %v8142 = vunpack.c.h.b16 %v8020
        %v8143 = vunpack.c.l.b16 %v8021
        %v8144 = vunpack.c.l.b16 %v8022
        %v8145 = vunpack.c.h.b16 %v8022
        %v8146 = vunpack.c.l.b16 %v8023
        %v8147 = vunpack.c.h.b16 %v8023
        %v8148 = vunpack.c.l.b16 %v8024
        %v8149 = vunpack.c.h.b16 %v8024
        %v8150 = vunpack.c.l.b16 %v8025
        %v8151 = vunpack.c.l.b16 %v8026
        %v8152 = vunpack.c.h.b16 %v8026
        %v8153 = vunpack.c.l.b16 %v8027
        %v8154 = vunpack.c.h.b16 %v8027
        %v8155 = vunpack.c.l.b16 %v8028
        %v8156 = vunpack.c.h.b16 %v8028
        %v8157 = vunpack.c.l.b16 %v8029
        %v8158 = vunpack.c.l.b16 %v8030
        %v8159 = vunpack.c.h.b16 %v8030
        %v8160 = vunpack.c.l.b16 %v8031
        %v8161 = vunpack.c.h.b16 %v8031
        %v8162 = vunpack.c.l.b16 %v8032
        %v8163 = vunpack.c.h.b16 %v8032
        %v8164 = vunpack.c.l.b16 %v8033
        %v8165 = vunpack.c.l.b16 %v8034
        %v8166 = vunpack.c.h.b16 %v8034
        %v8167 = vunpack.c.l.b16 %v8035
        %v8168 = vunpack.c.h.b16 %v8035
        %v8169 = vunpack.c.l.b16 %v8036
        %v8170 = vunpack.c.h.b16 %v8036
        %v8171 = vunpack.c.l.b16 %v8037
        %v8172 = vunpack.c.l.b16 %v8038
        %v8173 = vunpack.c.h.b16 %v8038
        %v8174 = vunpack.c.l.b16 %v8039
        %v8175 = vunpack.c.h.b16 %v8039
        %v8176 = vunpack.c.l.b16 %v8040
        %v8177 = vunpack.c.h.b16 %v8040
        %v8178 = vunpack.c.l.b16 %v8041
        %v8179 = vunpack.c.l.b16 %v8042
        %v8180 = vunpack.c.h.b16 %v8042
        %v8181 = vunpack.c.l.b16 %v8043
        %v8182 = vunpack.c.h.b16 %v8043
        %v8183 = vunpack.c.l.b16 %v8044
        %v8184 = vunpack.c.h.b16 %v8044
        %v8185 = vunpack.c.l.b16 %v8045
        %v8186 = vunpack.c.l.b16 %v8046
        %v8187 = vunpack.c.h.b16 %v8046
        %v8188 = vunpack.c.l.b16 %v8047
        %v8189 = vunpack.c.h.b16 %v8047
        %v8190 = vunpack.c.l.b16 %v8048
        %v8191 = vunpack.c.h.b16 %v8048
        %v8192 = vunpack.c.l.b16 %v8049
        %v8193 = vpack.c.b16 %v8109, %v8102
        %v8194 = vpack.c.b16 %v8110, %v8103
        %v8195 = vpack.c.b16 %v8111, %v8104
        %v8196 = vpack.c.b16 %v8112, %v8105
        %v8197 = vpack.c.b16 %v8113, %v8106
        %v8198 = vpack.c.b16 %v8114, %v8107
        %v8199 = vpack.c.b16 %v8115, %v8108
        %v8200 = vpack.c.b16 %v8123, %v8116
        %v8201 = vpack.c.b16 %v8124, %v8117
        %v8202 = vpack.c.b16 %v8125, %v8118
        %v8203 = vpack.c.b16 %v8126, %v8119
        %v8204 = vpack.c.b16 %v8127, %v8120
        %v8205 = vpack.c.b16 %v8128, %v8121
        %v8206 = vpack.c.b16 %v8129, %v8122
        %v8207 = vpack.c.b16 %v8137, %v8130
        %v8208 = vpack.c.b16 %v8138, %v8131
        %v8209 = vpack.c.b16 %v8139, %v8132
        %v8210 = vpack.c.b16 %v8140, %v8133
        %v8211 = vpack.c.b16 %v8141, %v8134
        %v8212 = vpack.c.b16 %v8142, %v8135
        %v8213 = vpack.c.b16 %v8143, %v8136
        %v8214 = vpack.c.b16 %v8151, %v8144
        %v8215 = vpack.c.b16 %v8152, %v8145
        %v8216 = vpack.c.b16 %v8153, %v8146
        %v8217 = vpack.c.b16 %v8154, %v8147
        %v8218 = vpack.c.b16 %v8155, %v8148
        %v8219 = vpack.c.b16 %v8156, %v8149
        %v8220 = vpack.c.b16 %v8157, %v8150
        %v8221 = vpack.c.b16 %v8165, %v8158
        %v8222 = vpack.c.b16 %v8166, %v8159
        %v8223 = vpack.c.b16 %v8167, %v8160
        %v8224 = vpack.c.b16 %v8168, %v8161
        %v8225 = vpack.c.b16 %v8169, %v8162
        %v8226 = vpack.c.b16 %v8170, %v8163
        %v8227 = vpack.c.b16 %v8171, %v8164
        %v8228 = vpack.c.b16 %v8179, %v8172
        %v8229 = vpack.c.b16 %v8180, %v8173
        %v8230 = vpack.c.b16 %v8181, %v8174
        %v8231 = vpack.c.b16 %v8182, %v8175
        %v8232 = vpack.c.b16 %v8183, %v8176
        %v8233 = vpack.c.b16 %v8184, %v8177
        %v8234 = vpack.c.b16 %v8185, %v8178
        %v8235 = vpack.c.b16 %v8186, %v8186
        %v8236 = vpack.c.b16 %v8187, %v8187
        %v8237 = vpack.c.b16 %v8188, %v8188
        %v8238 = vpack.c.b16 %v8189, %v8189
        %v8239 = vpack.c.b16 %v8190, %v8190
        %v8240 = vpack.c.b16 %v8191, %v8191
        %v8241 = vpack.c.b16 %v8192, %v8192
        %v8285 = vsel %vm829, %v7985, 0
        %v8288 = vsel %vm829, %v7986, 0
        %v8291 = vsel %vm829, %v7987, 0
        %v8294 = vsel %vm829, %v7988, 0
        %v8297 = vsel %vm829, %v7989, 0
        %v8300 = vsel %vm829, %v7990, 0
        %v8303 = vsel %vm829, %v7991, 0
        %v8306 = vsel %vm829, %v7992, 0
        %v8309 = vsel %vm829, %v7993, 0
        %v8312 = vsel %vm829, %v7994, 0
        %v8315 = vsel %vm829, %v7995, 0
        %v8318 = vsel %vm829, %v7996, 0
        %v8321 = vsel %vm866, %v8235, 0
        %v8324 = vsel %vm866, %v8236, 0
        %v8327 = vsel %vm866, %v8237, 0
        %v8330 = vsel %vm866, %v8238, 0
        %v8333 = vsel %vm866, %v8239, 0
        %v8336 = vsel %vm866, %v8240, 0
        %v8339 = vsel %vm866, %v8241, 0
        %8341 = vmatprep.subr.bf16.mxu0 %v8194
        %8342 = vmatpush1.bf16.msra.mxu0 %v8193
        %8343 = vmatprep.subr.bf16.mxu0 %v8201
        %8344 = vmatpush1.bf16.msra.mxu0 %v8200
        %8345 = vmatprep.subr.bf16.mxu0 %v8208
        %8346 = vmatpush1.bf16.msra.mxu0 %v8207
        %8347 = vmatprep.subr.bf16.mxu0 %v8215
        %8348 = vmatpush1.bf16.msra.mxu0 %v8214
        %8349 = vmatprep.subr.bf16.mxu0 %v8222
        %8350 = vmatpush1.bf16.msra.mxu0 %v8221
        %8351 = vmatprep.subr.bf16.mxu0 %v8229
        %8352 = vmatpush1.bf16.msra.mxu0 %v8228
        %8353 = vmatprep.subr.bf16.mxu0 %v8324
        %8354 = vmatpush1.bf16.msra.mxu0 %v8321
        %8355 = vmatprep.subr.bf16.mxu0 0
        %8356 = vmatpush1.bf16.msra.mxu0 0
        %8357 = vmatprep.subr.bf16.mxu0 0
        %8358 = vmatpush1.bf16.msra.mxu0 0
        %8359 = vmatprep.subr.bf16.mxu0 0
        %8360 = vmatpush1.bf16.msra.mxu0 0
        %8361 = vmatprep.subr.bf16.mxu0 0
        %8362 = vmatpush1.bf16.msra.mxu0 0
        %8363 = vmatprep.subr.bf16.mxu0 0
        %8364 = vmatpush1.bf16.msra.mxu0 0
        %8365 = vmatprep.subr.bf16.mxu0 0
        %8366 = vmatpush1.bf16.msra.mxu0 0
        %8367 = vmatprep.subr.bf16.mxu0 0
        %8368 = vmatpush1.bf16.msra.mxu0 0
        %8369 = vmatprep.subr.bf16.mxu0 0
        %8370 = vmatpush1.bf16.msra.mxu0 0
        %8371 = vmatprep.subr.bf16.mxu0 0
        %8372 = vmatpush1.bf16.msra.mxu0 0
        %8373 = vmatprep.mubr.bf16.mxu0 0
        %8374 = vmatmul.mubr.bf16.gmra.mrb[0].mxu0 %v8285
        %v8375 = vpop.f32.mrb[0].mxu0
        %v8376 = vadd.f32 0.0, %v8375
        %v8377 = vpop.f32.mrb[0].mxu0
        %v8378 = vadd.f32 0.0, %v8377
        %v8379 = vpop.f32.mrb[0].mxu0
        %v8380 = vadd.f32 0.0, %v8379
        %v8381 = vpop.f32.mrb[0].mxu0
        %v8382 = vadd.f32 0.0, %v8381
        %8383 = vmatprep.mubr.bf16.mxu0 0
        %8384 = vmatmul.mubr.bf16.gmra.mrb[0].mxu0 %v8288
        %v8385 = vpop.f32.mrb[0].mxu0
        %v8386 = vadd.f32 0.0, %v8385
        %v8387 = vpop.f32.mrb[0].mxu0
        %v8388 = vadd.f32 0.0, %v8387
        %v8389 = vpop.f32.mrb[0].mxu0
        %v8390 = vadd.f32 0.0, %v8389
        %v8391 = vpop.f32.mrb[0].mxu0
        %v8392 = vadd.f32 0.0, %v8391
        %8393 = vmatprep.mubr.bf16.mxu0 0
        %8394 = vmatmul.mubr.bf16.gmra.mrb[0].mxu0 %v8291
        %v8395 = vpop.f32.mrb[0].mxu0
        %v8396 = vadd.f32 0.0, %v8395
        %v8397 = vpop.f32.mrb[0].mxu0
        %v8398 = vadd.f32 0.0, %v8397
        %v8399 = vpop.f32.mrb[0].mxu0
        %v8400 = vadd.f32 0.0, %v8399
        %v8401 = vpop.f32.mrb[0].mxu0
        %v8402 = vadd.f32 0.0, %v8401
        %8403 = vmatprep.mubr.bf16.mxu0 0
        %8404 = vmatmul.mubr.bf16.gmra.mrb[0].mxu0 %v8294
        %v8405 = vpop.f32.mrb[0].mxu0
        %v8406 = vadd.f32 0.0, %v8405
        %v8407 = vpop.f32.mrb[0].mxu0
        %v8408 = vadd.f32 0.0, %v8407
        %v8409 = vpop.f32.mrb[0].mxu0
        %v8410 = vadd.f32 0.0, %v8409
        %v8411 = vpop.f32.mrb[0].mxu0
        %v8412 = vadd.f32 0.0, %v8411
        %8413 = vmatprep.mubr.bf16.mxu0 0
        %8414 = vmatmul.mubr.bf16.gmra.mrb[0].mxu0 %v8297
        %v8415 = vpop.f32.mrb[0].mxu0
        %v8416 = vadd.f32 0.0, %v8415
        %v8417 = vpop.f32.mrb[0].mxu0
        %v8418 = vadd.f32 0.0, %v8417
        %v8419 = vpop.f32.mrb[0].mxu0
        %v8420 = vadd.f32 0.0, %v8419
        %v8421 = vpop.f32.mrb[0].mxu0
        %v8422 = vadd.f32 0.0, %v8421
        %8423 = vmatprep.mubr.bf16.mxu0 0
        %8424 = vmatmul.mubr.bf16.gmra.mrb[0].mxu0 %v8300
        %v8425 = vpop.f32.mrb[0].mxu0
        %v8426 = vadd.f32 0.0, %v8425
        %v8427 = vpop.f32.mrb[0].mxu0
        %v8428 = vadd.f32 0.0, %v8427
        %v8429 = vpop.f32.mrb[0].mxu0
        %v8430 = vadd.f32 0.0, %v8429
        %v8431 = vpop.f32.mrb[0].mxu0
        %v8432 = vadd.f32 0.0, %v8431
        %8433 = vmatprep.mubr.bf16.mxu0 0
        %8434 = vmatmul.mubr.bf16.gmra.mrb[0].mxu0 %v8303
        %v8435 = vpop.f32.mrb[0].mxu0
        %v8436 = vadd.f32 0.0, %v8435
        %v8437 = vpop.f32.mrb[0].mxu0
        %v8438 = vadd.f32 0.0, %v8437
        %v8439 = vpop.f32.mrb[0].mxu0
        %v8440 = vadd.f32 0.0, %v8439
        %v8441 = vpop.f32.mrb[0].mxu0
        %v8442 = vadd.f32 0.0, %v8441
        %8443 = vmatprep.mubr.bf16.mxu0 0
        %8444 = vmatmul.mubr.bf16.gmra.mrb[0].mxu0 %v8306
        %v8445 = vpop.f32.mrb[0].mxu0
        %v8446 = vadd.f32 0.0, %v8445
        %v8447 = vpop.f32.mrb[0].mxu0
        %v8448 = vadd.f32 0.0, %v8447
        %v8449 = vpop.f32.mrb[0].mxu0
        %v8450 = vadd.f32 0.0, %v8449
        %v8451 = vpop.f32.mrb[0].mxu0
        %v8452 = vadd.f32 0.0, %v8451
        %8453 = vmatprep.mubr.bf16.mxu0 0
        %8454 = vmatmul.mubr.bf16.gmra.mrb[0].mxu0 %v8309
        %v8455 = vpop.f32.mrb[0].mxu0
        %v8456 = vadd.f32 0.0, %v8455
        %v8457 = vpop.f32.mrb[0].mxu0
        %v8458 = vadd.f32 0.0, %v8457
        %v8459 = vpop.f32.mrb[0].mxu0
        %v8460 = vadd.f32 0.0, %v8459
        %v8461 = vpop.f32.mrb[0].mxu0
        %v8462 = vadd.f32 0.0, %v8461
        %8463 = vmatprep.mubr.bf16.mxu0 0
        %8464 = vmatmul.mubr.bf16.gmra.mrb[0].mxu0 %v8312
        %v8465 = vpop.f32.mrb[0].mxu0
        %v8466 = vadd.f32 0.0, %v8465
        %v8467 = vpop.f32.mrb[0].mxu0
        %v8468 = vadd.f32 0.0, %v8467
        %v8469 = vpop.f32.mrb[0].mxu0
        %v8470 = vadd.f32 0.0, %v8469
        %v8471 = vpop.f32.mrb[0].mxu0
        %v8472 = vadd.f32 0.0, %v8471
        %8473 = vmatprep.mubr.bf16.mxu0 0
        %8474 = vmatmul.mubr.bf16.gmra.mrb[0].mxu0 %v8315
        %v8475 = vpop.f32.mrb[0].mxu0
        %v8476 = vadd.f32 0.0, %v8475
        %v8477 = vpop.f32.mrb[0].mxu0
        %v8478 = vadd.f32 0.0, %v8477
        %v8479 = vpop.f32.mrb[0].mxu0
        %v8480 = vadd.f32 0.0, %v8479
        %v8481 = vpop.f32.mrb[0].mxu0
        %v8482 = vadd.f32 0.0, %v8481
        %8483 = vmatprep.mubr.bf16.mxu0 0
        %8484 = vmatmul.mubr.bf16.gmra.mrb[0].mxu0 %v8318
        %v8485 = vpop.f32.mrb[0].mxu0
        %v8486 = vadd.f32 0.0, %v8485
        %v8487 = vpop.f32.mrb[0].mxu0
        %v8488 = vadd.f32 0.0, %v8487
        %v8489 = vpop.f32.mrb[0].mxu0
        %v8490 = vadd.f32 0.0, %v8489
        %v8491 = vpop.f32.mrb[0].mxu0
        %v8492 = vadd.f32 0.0, %v8491
        %8493 = vdwg.mxu0
        %8494 = vmatprep.subr.bf16.mxu0 %v8196
        %8495 = vmatpush1.bf16.msra.mxu0 %v8195
        %8496 = vmatprep.subr.bf16.mxu0 %v8203
        %8497 = vmatpush1.bf16.msra.mxu0 %v8202
        %8498 = vmatprep.subr.bf16.mxu0 %v8210
        %8499 = vmatpush1.bf16.msra.mxu0 %v8209
        %8500 = vmatprep.subr.bf16.mxu0 %v8217
        %8501 = vmatpush1.bf16.msra.mxu0 %v8216
        %8502 = vmatprep.subr.bf16.mxu0 %v8224
        %8503 = vmatpush1.bf16.msra.mxu0 %v8223
        %8504 = vmatprep.subr.bf16.mxu0 %v8231
        %8505 = vmatpush1.bf16.msra.mxu0 %v8230
        %8506 = vmatprep.subr.bf16.mxu0 %v8330
        %8507 = vmatpush1.bf16.msra.mxu0 %v8327
        %8508 = vmatprep.subr.bf16.mxu0 0
        %8509 = vmatpush1.bf16.msra.mxu0 0
        %8510 = vmatprep.subr.bf16.mxu0 0
        %8511 = vmatpush1.bf16.msra.mxu0 0
        %8512 = vmatprep.subr.bf16.mxu0 0
        %8513 = vmatpush1.bf16.msra.mxu0 0
        %8514 = vmatprep.subr.bf16.mxu0 0
        %8515 = vmatpush1.bf16.msra.mxu0 0
        %8516 = vmatprep.subr.bf16.mxu0 0
        %8517 = vmatpush1.bf16.msra.mxu0 0
        %8518 = vmatprep.subr.bf16.mxu0 0
        %8519 = vmatpush1.bf16.msra.mxu0 0
        %8520 = vmatprep.subr.bf16.mxu0 0
        %8521 = vmatpush1.bf16.msra.mxu0 0
        %8522 = vmatprep.subr.bf16.mxu0 0
        %8523 = vmatpush1.bf16.msra.mxu0 0
        %8524 = vmatprep.subr.bf16.mxu0 0
        %8525 = vmatpush1.bf16.msra.mxu0 0
        %8526 = vmatprep.mubr.bf16.mxu0 0
        %8527 = vmatmul.mubr.bf16.gmra.mrb[0].mxu0 %v8285
        %v8528 = vpop.f32.mrb[0].mxu0
        %v8529 = vadd.f32 0.0, %v8528
        %v8530 = vpop.f32.mrb[0].mxu0
        %v8531 = vadd.f32 0.0, %v8530
        %v8532 = vpop.f32.mrb[0].mxu0
        %v8533 = vadd.f32 0.0, %v8532
        %v8534 = vpop.f32.mrb[0].mxu0
        %v8535 = vadd.f32 0.0, %v8534
        %8536 = vmatprep.mubr.bf16.mxu0 0
        %8537 = vmatmul.mubr.bf16.gmra.mrb[0].mxu0 %v8288
        %v8538 = vpop.f32.mrb[0].mxu0
        %v8539 = vadd.f32 0.0, %v8538
        %v8540 = vpop.f32.mrb[0].mxu0
        %v8541 = vadd.f32 0.0, %v8540
        %v8542 = vpop.f32.mrb[0].mxu0
        %v8543 = vadd.f32 0.0, %v8542
        %v8544 = vpop.f32.mrb[0].mxu0
        %v8545 = vadd.f32 0.0, %v8544
        %8546 = vmatprep.mubr.bf16.mxu0 0
        %8547 = vmatmul.mubr.bf16.gmra.mrb[0].mxu0 %v8291
        %v8548 = vpop.f32.mrb[0].mxu0
        %v8549 = vadd.f32 0.0, %v8548
        %v8550 = vpop.f32.mrb[0].mxu0
        %v8551 = vadd.f32 0.0, %v8550
        %v8552 = vpop.f32.mrb[0].mxu0
        %v8553 = vadd.f32 0.0, %v8552
        %v8554 = vpop.f32.mrb[0].mxu0
        %v8555 = vadd.f32 0.0, %v8554
        %8556 = vmatprep.mubr.bf16.mxu0 0
        %8557 = vmatmul.mubr.bf16.gmra.mrb[0].mxu0 %v8294
        %v8558 = vpop.f32.mrb[0].mxu0
        %v8559 = vadd.f32 0.0, %v8558
        %v8560 = vpop.f32.mrb[0].mxu0
        %v8561 = vadd.f32 0.0, %v8560
        %v8562 = vpop.f32.mrb[0].mxu0
        %v8563 = vadd.f32 0.0, %v8562
        %v8564 = vpop.f32.mrb[0].mxu0
        %v8565 = vadd.f32 0.0, %v8564
        %8566 = vmatprep.mubr.bf16.mxu0 0
        %8567 = vmatmul.mubr.bf16.gmra.mrb[0].mxu0 %v8297
        %v8568 = vpop.f32.mrb[0].mxu0
        %v8569 = vadd.f32 0.0, %v8568
        %v8570 = vpop.f32.mrb[0].mxu0
        %v8571 = vadd.f32 0.0, %v8570
        %v8572 = vpop.f32.mrb[0].mxu0
        %v8573 = vadd.f32 0.0, %v8572
        %v8574 = vpop.f32.mrb[0].mxu0
        %v8575 = vadd.f32 0.0, %v8574
        %8576 = vmatprep.mubr.bf16.mxu0 0
        %8577 = vmatmul.mubr.bf16.gmra.mrb[0].mxu0 %v8300
        %v8578 = vpop.f32.mrb[0].mxu0
        %v8579 = vadd.f32 0.0, %v8578
        %v8580 = vpop.f32.mrb[0].mxu0
        %v8581 = vadd.f32 0.0, %v8580
        %v8582 = vpop.f32.mrb[0].mxu0
        %v8583 = vadd.f32 0.0, %v8582
        %v8584 = vpop.f32.mrb[0].mxu0
        %v8585 = vadd.f32 0.0, %v8584
        %8586 = vmatprep.mubr.bf16.mxu0 0
        %8587 = vmatmul.mubr.bf16.gmra.mrb[0].mxu0 %v8303
        %v8588 = vpop.f32.mrb[0].mxu0
        %v8589 = vadd.f32 0.0, %v8588
        %v8590 = vpop.f32.mrb[0].mxu0
        %v8591 = vadd.f32 0.0, %v8590
        %v8592 = vpop.f32.mrb[0].mxu0
        %v8593 = vadd.f32 0.0, %v8592
        %v8594 = vpop.f32.mrb[0].mxu0
        %v8595 = vadd.f32 0.0, %v8594
        %8596 = vmatprep.mubr.bf16.mxu0 0
        %8597 = vmatmul.mubr.bf16.gmra.mrb[0].mxu0 %v8306
        %v8598 = vpop.f32.mrb[0].mxu0
        %v8599 = vadd.f32 0.0, %v8598
        %v8600 = vpop.f32.mrb[0].mxu0
        %v8601 = vadd.f32 0.0, %v8600
        %v8602 = vpop.f32.mrb[0].mxu0
        %v8603 = vadd.f32 0.0, %v8602
        %v8604 = vpop.f32.mrb[0].mxu0
        %v8605 = vadd.f32 0.0, %v8604
        %8606 = vmatprep.mubr.bf16.mxu0 0
        %8607 = vmatmul.mubr.bf16.gmra.mrb[0].mxu0 %v8309
        %v8608 = vpop.f32.mrb[0].mxu0
        %v8609 = vadd.f32 0.0, %v8608
        %v8610 = vpop.f32.mrb[0].mxu0
        %v8611 = vadd.f32 0.0, %v8610
        %v8612 = vpop.f32.mrb[0].mxu0
        %v8613 = vadd.f32 0.0, %v8612
        %v8614 = vpop.f32.mrb[0].mxu0
        %v8615 = vadd.f32 0.0, %v8614
        %8616 = vmatprep.mubr.bf16.mxu0 0
        %8617 = vmatmul.mubr.bf16.gmra.mrb[0].mxu0 %v8312
        %v8618 = vpop.f32.mrb[0].mxu0
        %v8619 = vadd.f32 0.0, %v8618
        %v8620 = vpop.f32.mrb[0].mxu0
        %v8621 = vadd.f32 0.0, %v8620
        %v8622 = vpop.f32.mrb[0].mxu0
        %v8623 = vadd.f32 0.0, %v8622
        %v8624 = vpop.f32.mrb[0].mxu0
        %v8625 = vadd.f32 0.0, %v8624
        %8626 = vmatprep.mubr.bf16.mxu0 0
        %8627 = vmatmul.mubr.bf16.gmra.mrb[0].mxu0 %v8315
        %v8628 = vpop.f32.mrb[0].mxu0
        %v8629 = vadd.f32 0.0, %v8628
        %v8630 = vpop.f32.mrb[0].mxu0
        %v8631 = vadd.f32 0.0, %v8630
        %v8632 = vpop.f32.mrb[0].mxu0
        %v8633 = vadd.f32 0.0, %v8632
        %v8634 = vpop.f32.mrb[0].mxu0
        %v8635 = vadd.f32 0.0, %v8634
        %8636 = vmatprep.mubr.bf16.mxu0 0
        %8637 = vmatmul.mubr.bf16.gmra.mrb[0].mxu0 %v8318
        %v8638 = vpop.f32.mrb[0].mxu0
        %v8639 = vadd.f32 0.0, %v8638
        %v8640 = vpop.f32.mrb[0].mxu0
        %v8641 = vadd.f32 0.0, %v8640
        %v8642 = vpop.f32.mrb[0].mxu0
        %v8643 = vadd.f32 0.0, %v8642
        %v8644 = vpop.f32.mrb[0].mxu0
        %v8645 = vadd.f32 0.0, %v8644
        %8646 = vdwg.mxu0
        %8647 = vmatprep.subr.bf16.mxu0 %v8198
        %8648 = vmatpush1.bf16.msra.mxu0 %v8197
        %8649 = vmatprep.subr.bf16.mxu0 %v8205
        %8650 = vmatpush1.bf16.msra.mxu0 %v8204
        %8651 = vmatprep.subr.bf16.mxu0 %v8212
        %8652 = vmatpush1.bf16.msra.mxu0 %v8211
        %8653 = vmatprep.subr.bf16.mxu0 %v8219
        %8654 = vmatpush1.bf16.msra.mxu0 %v8218
        %8655 = vmatprep.subr.bf16.mxu0 %v8226
        %8656 = vmatpush1.bf16.msra.mxu0 %v8225
        %8657 = vmatprep.subr.bf16.mxu0 %v8233
        %8658 = vmatpush1.bf16.msra.mxu0 %v8232
        %8659 = vmatprep.subr.bf16.mxu0 %v8336
        %8660 = vmatpush1.bf16.msra.mxu0 %v8333
        %8661 = vmatprep.subr.bf16.mxu0 0
        %8662 = vmatpush1.bf16.msra.mxu0 0
        %8663 = vmatprep.subr.bf16.mxu0 0
        %8664 = vmatpush1.bf16.msra.mxu0 0
        %8665 = vmatprep.subr.bf16.mxu0 0
        %8666 = vmatpush1.bf16.msra.mxu0 0
        %8667 = vmatprep.subr.bf16.mxu0 0
        %8668 = vmatpush1.bf16.msra.mxu0 0
        %8669 = vmatprep.subr.bf16.mxu0 0
        %8670 = vmatpush1.bf16.msra.mxu0 0
        %8671 = vmatprep.subr.bf16.mxu0 0
        %8672 = vmatpush1.bf16.msra.mxu0 0
        %8673 = vmatprep.subr.bf16.mxu0 0
        %8674 = vmatpush1.bf16.msra.mxu0 0
        %8675 = vmatprep.subr.bf16.mxu0 0
        %8676 = vmatpush1.bf16.msra.mxu0 0
        %8677 = vmatprep.subr.bf16.mxu0 0
        %8678 = vmatpush1.bf16.msra.mxu0 0
        %8679 = vmatprep.mubr.bf16.mxu0 0
        %8680 = vmatmul.mubr.bf16.gmra.mrb[0].mxu0 %v8285
        %v8681 = vpop.f32.mrb[0].mxu0
        %v8682 = vadd.f32 0.0, %v8681
        %v8683 = vpop.f32.mrb[0].mxu0
        %v8684 = vadd.f32 0.0, %v8683
        %v8685 = vpop.f32.mrb[0].mxu0
        %v8686 = vadd.f32 0.0, %v8685
        %v8687 = vpop.f32.mrb[0].mxu0
        %v8688 = vadd.f32 0.0, %v8687
        %8689 = vmatprep.mubr.bf16.mxu0 0
        %8690 = vmatmul.mubr.bf16.gmra.mrb[0].mxu0 %v8288
        %v8691 = vpop.f32.mrb[0].mxu0
        %v8692 = vadd.f32 0.0, %v8691
        %v8693 = vpop.f32.mrb[0].mxu0
        %v8694 = vadd.f32 0.0, %v8693
        %v8695 = vpop.f32.mrb[0].mxu0
        %v8696 = vadd.f32 0.0, %v8695
        %v8697 = vpop.f32.mrb[0].mxu0
        %v8698 = vadd.f32 0.0, %v8697
        %8699 = vmatprep.mubr.bf16.mxu0 0
        %8700 = vmatmul.mubr.bf16.gmra.mrb[0].mxu0 %v8291
        %v8701 = vpop.f32.mrb[0].mxu0
        %v8702 = vadd.f32 0.0, %v8701
        %v8703 = vpop.f32.mrb[0].mxu0
        %v8704 = vadd.f32 0.0, %v8703
        %v8705 = vpop.f32.mrb[0].mxu0
        %v8706 = vadd.f32 0.0, %v8705
        %v8707 = vpop.f32.mrb[0].mxu0
        %v8708 = vadd.f32 0.0, %v8707
        %8709 = vmatprep.mubr.bf16.mxu0 0
        %8710 = vmatmul.mubr.bf16.gmra.mrb[0].mxu0 %v8294
        %v8711 = vpop.f32.mrb[0].mxu0
        %v8712 = vadd.f32 0.0, %v8711
        %v8713 = vpop.f32.mrb[0].mxu0
        %v8714 = vadd.f32 0.0, %v8713
        %v8715 = vpop.f32.mrb[0].mxu0
        %v8716 = vadd.f32 0.0, %v8715
        %v8717 = vpop.f32.mrb[0].mxu0
        %v8718 = vadd.f32 0.0, %v8717
        %8719 = vmatprep.mubr.bf16.mxu0 0
        %8720 = vmatmul.mubr.bf16.gmra.mrb[0].mxu0 %v8297
        %v8721 = vpop.f32.mrb[0].mxu0
        %v8722 = vadd.f32 0.0, %v8721
        %v8723 = vpop.f32.mrb[0].mxu0
        %v8724 = vadd.f32 0.0, %v8723
        %v8725 = vpop.f32.mrb[0].mxu0
        %v8726 = vadd.f32 0.0, %v8725
        %v8727 = vpop.f32.mrb[0].mxu0
        %v8728 = vadd.f32 0.0, %v8727
        %8729 = vmatprep.mubr.bf16.mxu0 0
        %8730 = vmatmul.mubr.bf16.gmra.mrb[0].mxu0 %v8300
        %v8731 = vpop.f32.mrb[0].mxu0
        %v8732 = vadd.f32 0.0, %v8731
        %v8733 = vpop.f32.mrb[0].mxu0
        %v8734 = vadd.f32 0.0, %v8733
        %v8735 = vpop.f32.mrb[0].mxu0
        %v8736 = vadd.f32 0.0, %v8735
        %v8737 = vpop.f32.mrb[0].mxu0
        %v8738 = vadd.f32 0.0, %v8737
        %8739 = vmatprep.mubr.bf16.mxu0 0
        %8740 = vmatmul.mubr.bf16.gmra.mrb[0].mxu0 %v8303
        %v8741 = vpop.f32.mrb[0].mxu0
        %v8742 = vadd.f32 0.0, %v8741
        %v8743 = vpop.f32.mrb[0].mxu0
        %v8744 = vadd.f32 0.0, %v8743
        %v8745 = vpop.f32.mrb[0].mxu0
        %v8746 = vadd.f32 0.0, %v8745
        %v8747 = vpop.f32.mrb[0].mxu0
        %v8748 = vadd.f32 0.0, %v8747
        %8749 = vmatprep.mubr.bf16.mxu0 0
        %8750 = vmatmul.mubr.bf16.gmra.mrb[0].mxu0 %v8306
        %v8751 = vpop.f32.mrb[0].mxu0
        %v8752 = vadd.f32 0.0, %v8751
        %v8753 = vpop.f32.mrb[0].mxu0
        %v8754 = vadd.f32 0.0, %v8753
        %v8755 = vpop.f32.mrb[0].mxu0
        %v8756 = vadd.f32 0.0, %v8755
        %v8757 = vpop.f32.mrb[0].mxu0
        %v8758 = vadd.f32 0.0, %v8757
        %8759 = vmatprep.mubr.bf16.mxu0 0
        %8760 = vmatmul.mubr.bf16.gmra.mrb[0].mxu0 %v8309
        %v8761 = vpop.f32.mrb[0].mxu0
        %v8762 = vadd.f32 0.0, %v8761
        %v8763 = vpop.f32.mrb[0].mxu0
        %v8764 = vadd.f32 0.0, %v8763
        %v8765 = vpop.f32.mrb[0].mxu0
        %v8766 = vadd.f32 0.0, %v8765
        %v8767 = vpop.f32.mrb[0].mxu0
        %v8768 = vadd.f32 0.0, %v8767
        %8769 = vmatprep.mubr.bf16.mxu0 0
        %8770 = vmatmul.mubr.bf16.gmra.mrb[0].mxu0 %v8312
        %v8771 = vpop.f32.mrb[0].mxu0
        %v8772 = vadd.f32 0.0, %v8771
        %v8773 = vpop.f32.mrb[0].mxu0
        %v8774 = vadd.f32 0.0, %v8773
        %v8775 = vpop.f32.mrb[0].mxu0
        %v8776 = vadd.f32 0.0, %v8775
        %v8777 = vpop.f32.mrb[0].mxu0
        %v8778 = vadd.f32 0.0, %v8777
        %8779 = vmatprep.mubr.bf16.mxu0 0
        %8780 = vmatmul.mubr.bf16.gmra.mrb[0].mxu0 %v8315
        %v8781 = vpop.f32.mrb[0].mxu0
        %v8782 = vadd.f32 0.0, %v8781
        %v8783 = vpop.f32.mrb[0].mxu0
        %v8784 = vadd.f32 0.0, %v8783
        %v8785 = vpop.f32.mrb[0].mxu0
        %v8786 = vadd.f32 0.0, %v8785
        %v8787 = vpop.f32.mrb[0].mxu0
        %v8788 = vadd.f32 0.0, %v8787
        %8789 = vmatprep.mubr.bf16.mxu0 0
        %8790 = vmatmul.mubr.bf16.gmra.mrb[0].mxu0 %v8318
        %v8791 = vpop.f32.mrb[0].mxu0
        %v8792 = vadd.f32 0.0, %v8791
        %v8793 = vpop.f32.mrb[0].mxu0
        %v8794 = vadd.f32 0.0, %v8793
        %v8795 = vpop.f32.mrb[0].mxu0
        %v8796 = vadd.f32 0.0, %v8795
        %v8797 = vpop.f32.mrb[0].mxu0
        %v8798 = vadd.f32 0.0, %v8797
        %8799 = vdwg.mxu0
        %8800 = vmatprep.subr.bf16.mxu0 0
        %8801 = vmatpush1.bf16.msra.mxu0 %v8199
        %8802 = vmatprep.subr.bf16.mxu0 0
        %8803 = vmatpush1.bf16.msra.mxu0 %v8206
        %8804 = vmatprep.subr.bf16.mxu0 0
        %8805 = vmatpush1.bf16.msra.mxu0 %v8213
        %8806 = vmatprep.subr.bf16.mxu0 0
        %8807 = vmatpush1.bf16.msra.mxu0 %v8220
        %8808 = vmatprep.subr.bf16.mxu0 0
        %8809 = vmatpush1.bf16.msra.mxu0 %v8227
        %8810 = vmatprep.subr.bf16.mxu0 0
        %8811 = vmatpush1.bf16.msra.mxu0 %v8234
        %8812 = vmatprep.subr.bf16.mxu0 0
        %8813 = vmatpush1.bf16.msra.mxu0 %v8339
        %8814 = vmatprep.subr.bf16.mxu0 0
        %8815 = vmatpush1.bf16.msra.mxu0 0
        %8816 = vmatprep.subr.bf16.mxu0 0
        %8817 = vmatpush1.bf16.msra.mxu0 0
        %8818 = vmatprep.subr.bf16.mxu0 0
        %8819 = vmatpush1.bf16.msra.mxu0 0
        %8820 = vmatprep.subr.bf16.mxu0 0
        %8821 = vmatpush1.bf16.msra.mxu0 0
        %8822 = vmatprep.subr.bf16.mxu0 0
        %8823 = vmatpush1.bf16.msra.mxu0 0
        %8824 = vmatprep.subr.bf16.mxu0 0
        %8825 = vmatpush1.bf16.msra.mxu0 0
        %8826 = vmatprep.subr.bf16.mxu0 0
        %8827 = vmatpush1.bf16.msra.mxu0 0
        %8828 = vmatprep.subr.bf16.mxu0 0
        %8829 = vmatpush1.bf16.msra.mxu0 0
        %8830 = vmatprep.subr.bf16.mxu0 0
        %8831 = vmatpush1.bf16.msra.mxu0 0
        %8832 = vmatprep.mubr.bf16.mxu0 0
        %8833 = vmatmul.mubr.bf16.gmra.mrb[0].mxu0 %v8285
        %v8834 = vpop.f32.mrb[0].mxu0
        %v8835 = vadd.f32 0.0, %v8834
        %v8836 = vpop.f32.mrb[0].mxu0
        %v8837 = vpop.f32.mrb[0].mxu0
        %v8838 = vadd.f32 0.0, %v8837
        %v8839 = vpop.f32.mrb[0].mxu0
        %8840 = vmatprep.mubr.bf16.mxu0 0
        %8841 = vmatmul.mubr.bf16.gmra.mrb[0].mxu0 %v8288
        %v8842 = vpop.f32.mrb[0].mxu0
        %v8843 = vadd.f32 0.0, %v8842
        %v8844 = vpop.f32.mrb[0].mxu0
        %v8845 = vpop.f32.mrb[0].mxu0
        %v8846 = vadd.f32 0.0, %v8845
        %v8847 = vpop.f32.mrb[0].mxu0
        %8848 = vmatprep.mubr.bf16.mxu0 0
        %8849 = vmatmul.mubr.bf16.gmra.mrb[0].mxu0 %v8291
        %v8850 = vpop.f32.mrb[0].mxu0
        %v8851 = vadd.f32 0.0, %v8850
        %v8852 = vpop.f32.mrb[0].mxu0
        %v8853 = vpop.f32.mrb[0].mxu0
        %v8854 = vadd.f32 0.0, %v8853
        %v8855 = vpop.f32.mrb[0].mxu0
        %8856 = vmatprep.mubr.bf16.mxu0 0
        %8857 = vmatmul.mubr.bf16.gmra.mrb[0].mxu0 %v8294
        %v8858 = vpop.f32.mrb[0].mxu0
        %v8859 = vadd.f32 0.0, %v8858
        %v8860 = vpop.f32.mrb[0].mxu0
        %v8861 = vpop.f32.mrb[0].mxu0
        %v8862 = vadd.f32 0.0, %v8861
        %v8863 = vpop.f32.mrb[0].mxu0
        %8864 = vmatprep.mubr.bf16.mxu0 0
        %8865 = vmatmul.mubr.bf16.gmra.mrb[0].mxu0 %v8297
        %v8866 = vpop.f32.mrb[0].mxu0
        %v8867 = vadd.f32 0.0, %v8866
        %v8868 = vpop.f32.mrb[0].mxu0
        %v8869 = vpop.f32.mrb[0].mxu0
        %v8870 = vadd.f32 0.0, %v8869
        %v8871 = vpop.f32.mrb[0].mxu0
        %8872 = vmatprep.mubr.bf16.mxu0 0
        %8873 = vmatmul.mubr.bf16.gmra.mrb[0].mxu0 %v8300
        %v8874 = vpop.f32.mrb[0].mxu0
        %v8875 = vadd.f32 0.0, %v8874
        %v8876 = vpop.f32.mrb[0].mxu0
        %v8877 = vpop.f32.mrb[0].mxu0
        %v8878 = vadd.f32 0.0, %v8877
        %v8879 = vpop.f32.mrb[0].mxu0
        %8880 = vmatprep.mubr.bf16.mxu0 0
        %8881 = vmatmul.mubr.bf16.gmra.mrb[0].mxu0 %v8303
        %v8882 = vpop.f32.mrb[0].mxu0
        %v8883 = vadd.f32 0.0, %v8882
        %v8884 = vpop.f32.mrb[0].mxu0
        %v8885 = vpop.f32.mrb[0].mxu0
        %v8886 = vadd.f32 0.0, %v8885
        %v8887 = vpop.f32.mrb[0].mxu0
        %8888 = vmatprep.mubr.bf16.mxu0 0
        %8889 = vmatmul.mubr.bf16.gmra.mrb[0].mxu0 %v8306
        %v8890 = vpop.f32.mrb[0].mxu0
        %v8891 = vadd.f32 0.0, %v8890
        %v8892 = vpop.f32.mrb[0].mxu0
        %v8893 = vpop.f32.mrb[0].mxu0
        %v8894 = vadd.f32 0.0, %v8893
        %v8895 = vpop.f32.mrb[0].mxu0
        %8896 = vmatprep.mubr.bf16.mxu0 0
        %8897 = vmatmul.mubr.bf16.gmra.mrb[0].mxu0 %v8309
        %v8898 = vpop.f32.mrb[0].mxu0
        %v8899 = vadd.f32 0.0, %v8898
        %v8900 = vpop.f32.mrb[0].mxu0
        %v8901 = vpop.f32.mrb[0].mxu0
        %v8902 = vadd.f32 0.0, %v8901
        %v8903 = vpop.f32.mrb[0].mxu0
        %8904 = vmatprep.mubr.bf16.mxu0 0
        %8905 = vmatmul.mubr.bf16.gmra.mrb[0].mxu0 %v8312
        %v8906 = vpop.f32.mrb[0].mxu0
        %v8907 = vadd.f32 0.0, %v8906
        %v8908 = vpop.f32.mrb[0].mxu0
        %v8909 = vpop.f32.mrb[0].mxu0
        %v8910 = vadd.f32 0.0, %v8909
        %v8911 = vpop.f32.mrb[0].mxu0
        %8912 = vmatprep.mubr.bf16.mxu0 0
        %8913 = vmatmul.mubr.bf16.gmra.mrb[0].mxu0 %v8315
        %v8914 = vpop.f32.mrb[0].mxu0
        %v8915 = vadd.f32 0.0, %v8914
        %v8916 = vpop.f32.mrb[0].mxu0
        %v8917 = vpop.f32.mrb[0].mxu0
        %v8918 = vadd.f32 0.0, %v8917
        %v8919 = vpop.f32.mrb[0].mxu0
        %8920 = vmatprep.mubr.bf16.mxu0 0
        %8921 = vmatmul.mubr.bf16.gmra.mrb[0].mxu0 %v8318
        %v8922 = vpop.f32.mrb[0].mxu0
        %v8923 = vadd.f32 0.0, %v8922
        %v8924 = vpop.f32.mrb[0].mxu0
        %v8925 = vpop.f32.mrb[0].mxu0
        %v8926 = vadd.f32 0.0, %v8925
        %v8927 = vpop.f32.mrb[0].mxu0
        %8928 = vdwg.mxu0
        %v8929 = vrot.slane %v8378, 7
        %v8930 = vrot.slane %v8382, 7
        %v8931 = vrot.slane %v8388, 7
        %v8932 = vrot.slane %v8392, 7
        %v8933 = vrot.slane %v8398, 7
        %v8934 = vrot.slane %v8402, 7
        %v8935 = vrot.slane %v8408, 7
        %v8936 = vrot.slane %v8412, 7
        %v8937 = vrot.slane %v8418, 7
        %v8938 = vrot.slane %v8422, 7
        %v8939 = vrot.slane %v8428, 7
        %v8940 = vrot.slane %v8432, 7
        %v8941 = vrot.slane %v8438, 7
        %v8942 = vrot.slane %v8442, 7
        %v8943 = vrot.slane %v8448, 7
        %v8944 = vrot.slane %v8452, 7
        %v8945 = vrot.slane %v8458, 7
        %v8946 = vrot.slane %v8462, 7
        %v8947 = vrot.slane %v8468, 7
        %v8948 = vrot.slane %v8472, 7
        %v8949 = vrot.slane %v8478, 7
        %v8950 = vrot.slane %v8482, 7
        %v8951 = vrot.slane %v8488, 7
        %v8952 = vrot.slane %v8492, 7
        %v8953 = vsel %vm1502, %v8951, %v8952
        %v8954 = vsel %vm1502, %v8950, %v8951
        %v8955 = vsel %vm1502, %v8949, %v8950
        %v8956 = vsel %vm1502, %v8948, %v8949
        %v8957 = vsel %vm1502, %v8947, %v8948
        %v8958 = vsel %vm1502, %v8946, %v8947
        %v8959 = vsel %vm1502, %v8945, %v8946
        %v8960 = vsel %vm1502, %v8944, %v8945
        %v8961 = vsel %vm1502, %v8943, %v8944
        %v8962 = vsel %vm1502, %v8942, %v8943
        %v8963 = vsel %vm1502, %v8941, %v8942
        %v8964 = vsel %vm1502, %v8940, %v8941
        %v8965 = vsel %vm1502, %v8939, %v8940
        %v8966 = vsel %vm1502, %v8938, %v8939
        %v8967 = vsel %vm1502, %v8937, %v8938
        %v8968 = vsel %vm1502, %v8936, %v8937
        %v8969 = vsel %vm1502, %v8935, %v8936
        %v8970 = vsel %vm1502, %v8934, %v8935
        %v8971 = vsel %vm1502, %v8933, %v8934
        %v8972 = vsel %vm1502, %v8932, %v8933
        %v8973 = vsel %vm1502, %v8931, %v8932
        %v8974 = vsel %vm1502, %v8930, %v8931
        %v8975 = vsel %vm1502, %v8929, %v8930
        %v8976 = vsel %vm1502, %v8952, %v8929
        %v8977 = vadd.f32 %v8376, %v8976
        %v8978 = vadd.f32 %v8380, %v8975
        %v8979 = vadd.f32 %v8386, %v8974
        %v8980 = vadd.f32 %v8390, %v8973
        %v8981 = vadd.f32 %v8396, %v8972
        %v8982 = vadd.f32 %v8400, %v8971
        %v8983 = vadd.f32 %v8406, %v8970
        %v8984 = vadd.f32 %v8410, %v8969
        %v8985 = vadd.f32 %v8416, %v8968
        %v8986 = vadd.f32 %v8420, %v8967
        %v8987 = vadd.f32 %v8426, %v8966
        %v8988 = vadd.f32 %v8430, %v8965
        %v8989 = vadd.f32 %v8436, %v8964
        %v8990 = vadd.f32 %v8440, %v8963
        %v8991 = vadd.f32 %v8446, %v8962
        %v8992 = vadd.f32 %v8450, %v8961
        %v8993 = vadd.f32 %v8456, %v8960
        %v8994 = vadd.f32 %v8460, %v8959
        %v8995 = vadd.f32 %v8466, %v8958
        %v8996 = vadd.f32 %v8470, %v8957
        %v8997 = vadd.f32 %v8476, %v8956
        %v8998 = vadd.f32 %v8480, %v8955
        %v8999 = vadd.f32 %v8486, %v8954
        %v9000 = vadd.f32 %v8490, %v8953
        %v9001 = vrot.slane %v8529, 6
        %v9002 = vrot.slane %v8533, 6
        %v9003 = vrot.slane %v8539, 6
        %v9004 = vrot.slane %v8543, 6
        %v9005 = vrot.slane %v8549, 6
        %v9006 = vrot.slane %v8553, 6
        %v9007 = vrot.slane %v8559, 6
        %v9008 = vrot.slane %v8563, 6
        %v9009 = vrot.slane %v8569, 6
        %v9010 = vrot.slane %v8573, 6
        %v9011 = vrot.slane %v8579, 6
        %v9012 = vrot.slane %v8583, 6
        %v9013 = vrot.slane %v8589, 6
        %v9014 = vrot.slane %v8593, 6
        %v9015 = vrot.slane %v8599, 6
        %v9016 = vrot.slane %v8603, 6
        %v9017 = vrot.slane %v8609, 6
        %v9018 = vrot.slane %v8613, 6
        %v9019 = vrot.slane %v8619, 6
        %v9020 = vrot.slane %v8623, 6
        %v9021 = vrot.slane %v8629, 6
        %v9022 = vrot.slane %v8633, 6
        %v9023 = vrot.slane %v8639, 6
        %v9024 = vrot.slane %v8643, 6
        %v9025 = vsel %vm1575, %v9023, %v9024
        %v9026 = vsel %vm1575, %v9022, %v9023
        %v9027 = vsel %vm1575, %v9021, %v9022
        %v9028 = vsel %vm1575, %v9020, %v9021
        %v9029 = vsel %vm1575, %v9019, %v9020
        %v9030 = vsel %vm1575, %v9018, %v9019
        %v9031 = vsel %vm1575, %v9017, %v9018
        %v9032 = vsel %vm1575, %v9016, %v9017
        %v9033 = vsel %vm1575, %v9015, %v9016
        %v9034 = vsel %vm1575, %v9014, %v9015
        %v9035 = vsel %vm1575, %v9013, %v9014
        %v9036 = vsel %vm1575, %v9012, %v9013
        %v9037 = vsel %vm1575, %v9011, %v9012
        %v9038 = vsel %vm1575, %v9010, %v9011
        %v9039 = vsel %vm1575, %v9009, %v9010
        %v9040 = vsel %vm1575, %v9008, %v9009
        %v9041 = vsel %vm1575, %v9007, %v9008
        %v9042 = vsel %vm1575, %v9006, %v9007
        %v9043 = vsel %vm1575, %v9005, %v9006
        %v9044 = vsel %vm1575, %v9004, %v9005
        %v9045 = vsel %vm1575, %v9003, %v9004
        %v9046 = vsel %vm1575, %v9002, %v9003
        %v9047 = vsel %vm1575, %v9001, %v9002
        %v9048 = vsel %vm1575, %v9024, %v9001
        %v9049 = vadd.f32 %v8977, %v9048
        %v9050 = vadd.f32 %v8978, %v9047
        %v9051 = vadd.f32 %v8979, %v9046
        %v9052 = vadd.f32 %v8980, %v9045
        %v9053 = vadd.f32 %v8981, %v9044
        %v9054 = vadd.f32 %v8982, %v9043
        %v9055 = vadd.f32 %v8983, %v9042
        %v9056 = vadd.f32 %v8984, %v9041
        %v9057 = vadd.f32 %v8985, %v9040
        %v9058 = vadd.f32 %v8986, %v9039
        %v9059 = vadd.f32 %v8987, %v9038
        %v9060 = vadd.f32 %v8988, %v9037
        %v9061 = vadd.f32 %v8989, %v9036
        %v9062 = vadd.f32 %v8990, %v9035
        %v9063 = vadd.f32 %v8991, %v9034
        %v9064 = vadd.f32 %v8992, %v9033
        %v9065 = vadd.f32 %v8993, %v9032
        %v9066 = vadd.f32 %v8994, %v9031
        %v9067 = vadd.f32 %v8995, %v9030
        %v9068 = vadd.f32 %v8996, %v9029
        %v9069 = vadd.f32 %v8997, %v9028
        %v9070 = vadd.f32 %v8998, %v9027
        %v9071 = vadd.f32 %v8999, %v9026
        %v9072 = vadd.f32 %v9000, %v9025
        %v9073 = vrot.slane %v8531, 5
        %v9074 = vrot.slane %v8535, 5
        %v9075 = vrot.slane %v8541, 5
        %v9076 = vrot.slane %v8545, 5
        %v9077 = vrot.slane %v8551, 5
        %v9078 = vrot.slane %v8555, 5
        %v9079 = vrot.slane %v8561, 5
        %v9080 = vrot.slane %v8565, 5
        %v9081 = vrot.slane %v8571, 5
        %v9082 = vrot.slane %v8575, 5
        %v9083 = vrot.slane %v8581, 5
        %v9084 = vrot.slane %v8585, 5
        %v9085 = vrot.slane %v8591, 5
        %v9086 = vrot.slane %v8595, 5
        %v9087 = vrot.slane %v8601, 5
        %v9088 = vrot.slane %v8605, 5
        %v9089 = vrot.slane %v8611, 5
        %v9090 = vrot.slane %v8615, 5
        %v9091 = vrot.slane %v8621, 5
        %v9092 = vrot.slane %v8625, 5
        %v9093 = vrot.slane %v8631, 5
        %v9094 = vrot.slane %v8635, 5
        %v9095 = vrot.slane %v8641, 5
        %v9096 = vrot.slane %v8645, 5
        %v9097 = vsel %vm1648, %v9095, %v9096
        %v9098 = vsel %vm1648, %v9094, %v9095
        %v9099 = vsel %vm1648, %v9093, %v9094
        %v9100 = vsel %vm1648, %v9092, %v9093
        %v9101 = vsel %vm1648, %v9091, %v9092
        %v9102 = vsel %vm1648, %v9090, %v9091
        %v9103 = vsel %vm1648, %v9089, %v9090
        %v9104 = vsel %vm1648, %v9088, %v9089
        %v9105 = vsel %vm1648, %v9087, %v9088
        %v9106 = vsel %vm1648, %v9086, %v9087
        %v9107 = vsel %vm1648, %v9085, %v9086
        %v9108 = vsel %vm1648, %v9084, %v9085
        %v9109 = vsel %vm1648, %v9083, %v9084
        %v9110 = vsel %vm1648, %v9082, %v9083
        %v9111 = vsel %vm1648, %v9081, %v9082
        %v9112 = vsel %vm1648, %v9080, %v9081
        %v9113 = vsel %vm1648, %v9079, %v9080
        %v9114 = vsel %vm1648, %v9078, %v9079
        %v9115 = vsel %vm1648, %v9077, %v9078
        %v9116 = vsel %vm1648, %v9076, %v9077
        %v9117 = vsel %vm1648, %v9075, %v9076
        %v9118 = vsel %vm1648, %v9074, %v9075
        %v9119 = vsel %vm1648, %v9073, %v9074
        %v9120 = vsel %vm1648, %v9096, %v9073
        %v9121 = vadd.f32 %v9049, %v9120
        %v9122 = vadd.f32 %v9050, %v9119
        %v9123 = vadd.f32 %v9051, %v9118
        %v9124 = vadd.f32 %v9052, %v9117
        %v9125 = vadd.f32 %v9053, %v9116
        %v9126 = vadd.f32 %v9054, %v9115
        %v9127 = vadd.f32 %v9055, %v9114
        %v9128 = vadd.f32 %v9056, %v9113
        %v9129 = vadd.f32 %v9057, %v9112
        %v9130 = vadd.f32 %v9058, %v9111
        %v9131 = vadd.f32 %v9059, %v9110
        %v9132 = vadd.f32 %v9060, %v9109
        %v9133 = vadd.f32 %v9061, %v9108
        %v9134 = vadd.f32 %v9062, %v9107
        %v9135 = vadd.f32 %v9063, %v9106
        %v9136 = vadd.f32 %v9064, %v9105
        %v9137 = vadd.f32 %v9065, %v9104
        %v9138 = vadd.f32 %v9066, %v9103
        %v9139 = vadd.f32 %v9067, %v9102
        %v9140 = vadd.f32 %v9068, %v9101
        %v9141 = vadd.f32 %v9069, %v9100
        %v9142 = vadd.f32 %v9070, %v9099
        %v9143 = vadd.f32 %v9071, %v9098
        %v9144 = vadd.f32 %v9072, %v9097
        %v9145 = vrot.slane %v8682, 4
        %v9146 = vrot.slane %v8686, 4
        %v9147 = vrot.slane %v8692, 4
        %v9148 = vrot.slane %v8696, 4
        %v9149 = vrot.slane %v8702, 4
        %v9150 = vrot.slane %v8706, 4
        %v9151 = vrot.slane %v8712, 4
        %v9152 = vrot.slane %v8716, 4
        %v9153 = vrot.slane %v8722, 4
        %v9154 = vrot.slane %v8726, 4
        %v9155 = vrot.slane %v8732, 4
        %v9156 = vrot.slane %v8736, 4
        %v9157 = vrot.slane %v8742, 4
        %v9158 = vrot.slane %v8746, 4
        %v9159 = vrot.slane %v8752, 4
        %v9160 = vrot.slane %v8756, 4
        %v9161 = vrot.slane %v8762, 4
        %v9162 = vrot.slane %v8766, 4
        %v9163 = vrot.slane %v8772, 4
        %v9164 = vrot.slane %v8776, 4
        %v9165 = vrot.slane %v8782, 4
        %v9166 = vrot.slane %v8786, 4
        %v9167 = vrot.slane %v8792, 4
        %v9168 = vrot.slane %v8796, 4
        %v9169 = vsel %vm1721, %v9167, %v9168
        %v9170 = vsel %vm1721, %v9166, %v9167
        %v9171 = vsel %vm1721, %v9165, %v9166
        %v9172 = vsel %vm1721, %v9164, %v9165
        %v9173 = vsel %vm1721, %v9163, %v9164
        %v9174 = vsel %vm1721, %v9162, %v9163
        %v9175 = vsel %vm1721, %v9161, %v9162
        %v9176 = vsel %vm1721, %v9160, %v9161
        %v9177 = vsel %vm1721, %v9159, %v9160
        %v9178 = vsel %vm1721, %v9158, %v9159
        %v9179 = vsel %vm1721, %v9157, %v9158
        %v9180 = vsel %vm1721, %v9156, %v9157
        %v9181 = vsel %vm1721, %v9155, %v9156
        %v9182 = vsel %vm1721, %v9154, %v9155
        %v9183 = vsel %vm1721, %v9153, %v9154
        %v9184 = vsel %vm1721, %v9152, %v9153
        %v9185 = vsel %vm1721, %v9151, %v9152
        %v9186 = vsel %vm1721, %v9150, %v9151
        %v9187 = vsel %vm1721, %v9149, %v9150
        %v9188 = vsel %vm1721, %v9148, %v9149
        %v9189 = vsel %vm1721, %v9147, %v9148
        %v9190 = vsel %vm1721, %v9146, %v9147
        %v9191 = vsel %vm1721, %v9145, %v9146
        %v9192 = vsel %vm1721, %v9168, %v9145
        %v9193 = vadd.f32 %v9121, %v9192
        %v9194 = vadd.f32 %v9122, %v9191
        %v9195 = vadd.f32 %v9123, %v9190
        %v9196 = vadd.f32 %v9124, %v9189
        %v9197 = vadd.f32 %v9125, %v9188
        %v9198 = vadd.f32 %v9126, %v9187
        %v9199 = vadd.f32 %v9127, %v9186
        %v9200 = vadd.f32 %v9128, %v9185
        %v9201 = vadd.f32 %v9129, %v9184
        %v9202 = vadd.f32 %v9130, %v9183
        %v9203 = vadd.f32 %v9131, %v9182
        %v9204 = vadd.f32 %v9132, %v9181
        %v9205 = vadd.f32 %v9133, %v9180
        %v9206 = vadd.f32 %v9134, %v9179
        %v9207 = vadd.f32 %v9135, %v9178
        %v9208 = vadd.f32 %v9136, %v9177
        %v9209 = vadd.f32 %v9137, %v9176
        %v9210 = vadd.f32 %v9138, %v9175
        %v9211 = vadd.f32 %v9139, %v9174
        %v9212 = vadd.f32 %v9140, %v9173
        %v9213 = vadd.f32 %v9141, %v9172
        %v9214 = vadd.f32 %v9142, %v9171
        %v9215 = vadd.f32 %v9143, %v9170
        %v9216 = vadd.f32 %v9144, %v9169
        %v9217 = vrot.slane %v8684, 3
        %v9218 = vrot.slane %v8688, 3
        %v9219 = vrot.slane %v8694, 3
        %v9220 = vrot.slane %v8698, 3
        %v9221 = vrot.slane %v8704, 3
        %v9222 = vrot.slane %v8708, 3
        %v9223 = vrot.slane %v8714, 3
        %v9224 = vrot.slane %v8718, 3
        %v9225 = vrot.slane %v8724, 3
        %v9226 = vrot.slane %v8728, 3
        %v9227 = vrot.slane %v8734, 3
        %v9228 = vrot.slane %v8738, 3
        %v9229 = vrot.slane %v8744, 3
        %v9230 = vrot.slane %v8748, 3
        %v9231 = vrot.slane %v8754, 3
        %v9232 = vrot.slane %v8758, 3
        %v9233 = vrot.slane %v8764, 3
        %v9234 = vrot.slane %v8768, 3
        %v9235 = vrot.slane %v8774, 3
        %v9236 = vrot.slane %v8778, 3
        %v9237 = vrot.slane %v8784, 3
        %v9238 = vrot.slane %v8788, 3
        %v9239 = vrot.slane %v8794, 3
        %v9240 = vrot.slane %v8798, 3
        %v9241 = vsel %vm1794, %v9239, %v9240
        %v9242 = vsel %vm1794, %v9238, %v9239
        %v9243 = vsel %vm1794, %v9237, %v9238
        %v9244 = vsel %vm1794, %v9236, %v9237
        %v9245 = vsel %vm1794, %v9235, %v9236
        %v9246 = vsel %vm1794, %v9234, %v9235
        %v9247 = vsel %vm1794, %v9233, %v9234
        %v9248 = vsel %vm1794, %v9232, %v9233
        %v9249 = vsel %vm1794, %v9231, %v9232
        %v9250 = vsel %vm1794, %v9230, %v9231
        %v9251 = vsel %vm1794, %v9229, %v9230
        %v9252 = vsel %vm1794, %v9228, %v9229
        %v9253 = vsel %vm1794, %v9227, %v9228
        %v9254 = vsel %vm1794, %v9226, %v9227
        %v9255 = vsel %vm1794, %v9225, %v9226
        %v9256 = vsel %vm1794, %v9224, %v9225
        %v9257 = vsel %vm1794, %v9223, %v9224
        %v9258 = vsel %vm1794, %v9222, %v9223
        %v9259 = vsel %vm1794, %v9221, %v9222
        %v9260 = vsel %vm1794, %v9220, %v9221
        %v9261 = vsel %vm1794, %v9219, %v9220
        %v9262 = vsel %vm1794, %v9218, %v9219
        %v9263 = vsel %vm1794, %v9217, %v9218
        %v9264 = vsel %vm1794, %v9240, %v9217
        %v9265 = vadd.f32 %v9193, %v9264
        %v9266 = vadd.f32 %v9194, %v9263
        %v9267 = vadd.f32 %v9195, %v9262
        %v9268 = vadd.f32 %v9196, %v9261
        %v9269 = vadd.f32 %v9197, %v9260
        %v9270 = vadd.f32 %v9198, %v9259
        %v9271 = vadd.f32 %v9199, %v9258
        %v9272 = vadd.f32 %v9200, %v9257
        %v9273 = vadd.f32 %v9201, %v9256
        %v9274 = vadd.f32 %v9202, %v9255
        %v9275 = vadd.f32 %v9203, %v9254
        %v9276 = vadd.f32 %v9204, %v9253
        %v9277 = vadd.f32 %v9205, %v9252
        %v9278 = vadd.f32 %v9206, %v9251
        %v9279 = vadd.f32 %v9207, %v9250
        %v9280 = vadd.f32 %v9208, %v9249
        %v9281 = vadd.f32 %v9209, %v9248
        %v9282 = vadd.f32 %v9210, %v9247
        %v9283 = vadd.f32 %v9211, %v9246
        %v9284 = vadd.f32 %v9212, %v9245
        %v9285 = vadd.f32 %v9213, %v9244
        %v9286 = vadd.f32 %v9214, %v9243
        %v9287 = vadd.f32 %v9215, %v9242
        %v9288 = vadd.f32 %v9216, %v9241
        %v9289 = vrot.slane %v8835, 2
        %v9290 = vrot.slane %v8838, 2
        %v9291 = vrot.slane %v8843, 2
        %v9292 = vrot.slane %v8846, 2
        %v9293 = vrot.slane %v8851, 2
        %v9294 = vrot.slane %v8854, 2
        %v9295 = vrot.slane %v8859, 2
        %v9296 = vrot.slane %v8862, 2
        %v9297 = vrot.slane %v8867, 2
        %v9298 = vrot.slane %v8870, 2
        %v9299 = vrot.slane %v8875, 2
        %v9300 = vrot.slane %v8878, 2
        %v9301 = vrot.slane %v8883, 2
        %v9302 = vrot.slane %v8886, 2
        %v9303 = vrot.slane %v8891, 2
        %v9304 = vrot.slane %v8894, 2
        %v9305 = vrot.slane %v8899, 2
        %v9306 = vrot.slane %v8902, 2
        %v9307 = vrot.slane %v8907, 2
        %v9308 = vrot.slane %v8910, 2
        %v9309 = vrot.slane %v8915, 2
        %v9310 = vrot.slane %v8918, 2
        %v9311 = vrot.slane %v8923, 2
        %v9312 = vrot.slane %v8926, 2
        %v9313 = vsel %vm1867, %v9311, %v9312
        %v9314 = vsel %vm1867, %v9310, %v9311
        %v9315 = vsel %vm1867, %v9309, %v9310
        %v9316 = vsel %vm1867, %v9308, %v9309
        %v9317 = vsel %vm1867, %v9307, %v9308
        %v9318 = vsel %vm1867, %v9306, %v9307
        %v9319 = vsel %vm1867, %v9305, %v9306
        %v9320 = vsel %vm1867, %v9304, %v9305
        %v9321 = vsel %vm1867, %v9303, %v9304
        %v9322 = vsel %vm1867, %v9302, %v9303
        %v9323 = vsel %vm1867, %v9301, %v9302
        %v9324 = vsel %vm1867, %v9300, %v9301
        %v9325 = vsel %vm1867, %v9299, %v9300
        %v9326 = vsel %vm1867, %v9298, %v9299
        %v9327 = vsel %vm1867, %v9297, %v9298
        %v9328 = vsel %vm1867, %v9296, %v9297
        %v9329 = vsel %vm1867, %v9295, %v9296
        %v9330 = vsel %vm1867, %v9294, %v9295
        %v9331 = vsel %vm1867, %v9293, %v9294
        %v9332 = vsel %vm1867, %v9292, %v9293
        %v9333 = vsel %vm1867, %v9291, %v9292
        %v9334 = vsel %vm1867, %v9290, %v9291
        %v9335 = vsel %vm1867, %v9289, %v9290
        %v9336 = vsel %vm1867, %v9312, %v9289
        %v9337 = vadd.f32 %v9265, %v9336
        %v9338 = vadd.f32 %v9266, %v9335
        %v9339 = vadd.f32 %v9267, %v9334
        %v9340 = vadd.f32 %v9268, %v9333
        %v9341 = vadd.f32 %v9269, %v9332
        %v9342 = vadd.f32 %v9270, %v9331
        %v9343 = vadd.f32 %v9271, %v9330
        %v9344 = vadd.f32 %v9272, %v9329
        %v9345 = vadd.f32 %v9273, %v9328
        %v9346 = vadd.f32 %v9274, %v9327
        %v9347 = vadd.f32 %v9275, %v9326
        %v9348 = vadd.f32 %v9276, %v9325
        %v9349 = vadd.f32 %v9277, %v9324
        %v9350 = vadd.f32 %v9278, %v9323
        %v9351 = vadd.f32 %v9279, %v9322
        %v9352 = vadd.f32 %v9280, %v9321
        %v9353 = vadd.f32 %v9281, %v9320
        %v9354 = vadd.f32 %v9282, %v9319
        %v9355 = vadd.f32 %v9283, %v9318
        %v9356 = vadd.f32 %v9284, %v9317
        %v9357 = vadd.f32 %v9285, %v9316
        %v9358 = vadd.f32 %v9286, %v9315
        %v9359 = vadd.f32 %v9287, %v9314
        %v9360 = vadd.f32 %v9288, %v9313
        %v9361 = vadd.f32 %v9337, %v504
        %v9362 = vadd.f32 %v9338, %v505
        %v9363 = vadd.f32 %v9339, %v506
        %v9364 = vadd.f32 %v9340, %v504
        %v9365 = vadd.f32 %v9341, %v505
        %v9366 = vadd.f32 %v9342, %v506
        %v9367 = vadd.f32 %v9343, %v504
        %v9368 = vadd.f32 %v9344, %v505
        %v9369 = vadd.f32 %v9345, %v506
        %v9370 = vadd.f32 %v9346, %v504
        %v9371 = vadd.f32 %v9347, %v505
        %v9372 = vadd.f32 %v9348, %v506
        %v9373 = vadd.f32 %v9349, %v504
        %v9374 = vadd.f32 %v9350, %v505
        %v9375 = vadd.f32 %v9351, %v506
        %v9376 = vadd.f32 %v9352, %v504
        %v9377 = vadd.f32 %v9353, %v505
        %v9378 = vadd.f32 %v9354, %v506
        %v9379 = vadd.f32 %v9355, %v504
        %v9380 = vadd.f32 %v9356, %v505
        %v9381 = vadd.f32 %v9357, %v506
        %v9382 = vadd.f32 %v9358, %v504
        %v9383 = vadd.f32 %v9359, %v505
        %v9384 = vadd.f32 %v9360, %v506
        %v9385 = vmax.f32 %v9361, %v9362
        %v9386 = vmax.f32 %v9385, %v9363
        %v9387 = vrot.slane %v9386, 4
        %v9388 = vmax.f32 %v9386, %v9387
        %v9389 = vrot.slane %v9388, 2
        %v9390 = vmax.f32 %v9388, %v9389
        %v9391 = vrot.slane %v9390, 1
        %v9392 = vmax.f32 %v9390, %v9391
        %v9393 = vmax.f32 %v9364, %v9365
        %v9394 = vmax.f32 %v9393, %v9366
        %v9395 = vrot.slane %v9394, 4
        %v9396 = vmax.f32 %v9394, %v9395
        %v9397 = vrot.slane %v9396, 2
        %v9398 = vmax.f32 %v9396, %v9397
        %v9399 = vrot.slane %v9398, 1
        %v9400 = vmax.f32 %v9398, %v9399
        %v9401 = vmax.f32 %v9367, %v9368
        %v9402 = vmax.f32 %v9401, %v9369
        %v9403 = vrot.slane %v9402, 4
        %v9404 = vmax.f32 %v9402, %v9403
        %v9405 = vrot.slane %v9404, 2
        %v9406 = vmax.f32 %v9404, %v9405
        %v9407 = vrot.slane %v9406, 1
        %v9408 = vmax.f32 %v9406, %v9407
        %v9409 = vmax.f32 %v9370, %v9371
        %v9410 = vmax.f32 %v9409, %v9372
        %v9411 = vrot.slane %v9410, 4
        %v9412 = vmax.f32 %v9410, %v9411
        %v9413 = vrot.slane %v9412, 2
        %v9414 = vmax.f32 %v9412, %v9413
        %v9415 = vrot.slane %v9414, 1
        %v9416 = vmax.f32 %v9414, %v9415
        %v9417 = vmax.f32 %v9373, %v9374
        %v9418 = vmax.f32 %v9417, %v9375
        %v9419 = vrot.slane %v9418, 4
        %v9420 = vmax.f32 %v9418, %v9419
        %v9421 = vrot.slane %v9420, 2
        %v9422 = vmax.f32 %v9420, %v9421
        %v9423 = vrot.slane %v9422, 1
        %v9424 = vmax.f32 %v9422, %v9423
        %v9425 = vmax.f32 %v9376, %v9377
        %v9426 = vmax.f32 %v9425, %v9378
        %v9427 = vrot.slane %v9426, 4
        %v9428 = vmax.f32 %v9426, %v9427
        %v9429 = vrot.slane %v9428, 2
        %v9430 = vmax.f32 %v9428, %v9429
        %v9431 = vrot.slane %v9430, 1
        %v9432 = vmax.f32 %v9430, %v9431
        %v9433 = vmax.f32 %v9379, %v9380
        %v9434 = vmax.f32 %v9433, %v9381
        %v9435 = vrot.slane %v9434, 4
        %v9436 = vmax.f32 %v9434, %v9435
        %v9437 = vrot.slane %v9436, 2
        %v9438 = vmax.f32 %v9436, %v9437
        %v9439 = vrot.slane %v9438, 1
        %v9440 = vmax.f32 %v9438, %v9439
        %v9441 = vmax.f32 %v9382, %v9383
        %v9442 = vmax.f32 %v9441, %v9384
        %v9443 = vrot.slane %v9442, 4
        %v9444 = vmax.f32 %v9442, %v9443
        %v9445 = vrot.slane %v9444, 2
        %v9446 = vmax.f32 %v9444, %v9445
        %v9447 = vrot.slane %v9446, 1
        %v9448 = vmax.f32 %v9446, %v9447
        %vm9457 = vcmask 1041409
        %v9458 = vsel %vm9457, %v1955, %v1947
        %vm9459 = vcmask 1042434
        %v9460 = vsel %vm9459, %v1963, %v9458
        %vm9461 = vcmask 1043459
        %v9462 = vsel %vm9461, %v1971, %v9460
        %vm9463 = vcmask 1044484
        %v9464 = vsel %vm9463, %v1979, %v9462
        %vm9465 = vcmask 1045509
        %v9466 = vsel %vm9465, %v1987, %v9464
        %vm9467 = vcmask 1046534
        %v9468 = vsel %vm9467, %v1995, %v9466
        %vm9469 = vcmask 1047559
        %v9470 = vsel %vm9469, %v2003, %v9468
        %v9480 = vsel %vm9457, %v3444, %v3436
        %v9481 = vsel %vm9459, %v3452, %v9480
        %v9482 = vsel %vm9461, %v3460, %v9481
        %v9483 = vsel %vm9463, %v3468, %v9482
        %v9484 = vsel %vm9465, %v3476, %v9483
        %v9485 = vsel %vm9467, %v3484, %v9484
        %v9486 = vsel %vm9469, %v3492, %v9485
        %v9496 = vsel %vm9457, %v4933, %v4925
        %v9497 = vsel %vm9459, %v4941, %v9496
        %v9498 = vsel %vm9461, %v4949, %v9497
        %v9499 = vsel %vm9463, %v4957, %v9498
        %v9500 = vsel %vm9465, %v4965, %v9499
        %v9501 = vsel %vm9467, %v4973, %v9500
        %v9502 = vsel %vm9469, %v4981, %v9501
        %v9512 = vsel %vm9457, %v6422, %v6414
        %v9513 = vsel %vm9459, %v6430, %v9512
        %v9514 = vsel %vm9461, %v6438, %v9513
        %v9515 = vsel %vm9463, %v6446, %v9514
        %v9516 = vsel %vm9465, %v6454, %v9515
        %v9517 = vsel %vm9467, %v6462, %v9516
        %v9518 = vsel %vm9469, %v6470, %v9517
        %v9528 = vsel %vm9457, %v7911, %v7903
        %v9529 = vsel %vm9459, %v7919, %v9528
        %v9530 = vsel %vm9461, %v7927, %v9529
        %v9531 = vsel %vm9463, %v7935, %v9530
        %v9532 = vsel %vm9465, %v7943, %v9531
        %v9533 = vsel %vm9467, %v7951, %v9532
        %v9534 = vsel %vm9469, %v7959, %v9533
        %v9544 = vsel %vm9457, %v9400, %v9392
        %v9545 = vsel %vm9459, %v9408, %v9544
        %v9546 = vsel %vm9461, %v9416, %v9545
        %v9547 = vsel %vm9463, %v9424, %v9546
        %v9548 = vsel %vm9465, %v9432, %v9547
        %v9549 = vsel %vm9467, %v9440, %v9548
        %v9550 = vsel %vm9469, %v9448, %v9549
        %v9552 = vld [vmem:[#allocation7] sm:$0x3f]
        %v9554 = vlaneseq
        %v9555 = vshrl.u32 %v9554, 7
        %v9556 = vsub.s32 0, %v9555
        %v9557 = vrot.slane %v9552, %v9556
        %v9558 = vlaneseq
        %v9559 = vshrl.u32 %v9558, 7
        %v9560 = vsub.s32 1, %v9559
        %v9561 = vrot.slane %v9552, %v9560
        %v9562 = vlaneseq
        %v9563 = vshrl.u32 %v9562, 7
        %v9564 = vsub.s32 2, %v9563
        %v9565 = vrot.slane %v9552, %v9564
        %v9566 = vlaneseq
        %v9567 = vshrl.u32 %v9566, 7
        %v9568 = vsub.s32 3, %v9567
        %v9569 = vrot.slane %v9552, %v9568
        %v9570 = vlaneseq
        %v9571 = vshrl.u32 %v9570, 7
        %v9572 = vsub.s32 4, %v9571
        %v9573 = vrot.slane %v9552, %v9572
        %v9574 = vlaneseq
        %v9575 = vshrl.u32 %v9574, 7
        %v9576 = vsub.s32 5, %v9575
        %v9577 = vrot.slane %v9552, %v9576
        %v9584 = vadd.f32 %v9470, %v9557
        %v9585 = vadd.f32 %v9486, %v9561
        %v9586 = vadd.f32 %v9502, %v9565
        %v9587 = vadd.f32 %v9518, %v9569
        %v9588 = vadd.f32 %v9534, %v9573
        %v9589 = vadd.f32 %v9550, %v9577
        %v9590 = vmax.f32 %v9584, 0.0
        %v9591 = vmax.f32 %v9585, 0.0
        %v9592 = vmax.f32 %v9586, 0.0
        %v9593 = vmax.f32 %v9587, 0.0
        %v9594 = vmax.f32 %v9588, 0.0
        %v9595 = vmax.f32 %v9589, 0.0
        %v9596 = vpack.c.bf16 %v9590, %v9590
        %v9597 = vpack.c.bf16 %v9591, %v9591
        %v9598 = vpack.c.bf16 %v9592, %v9592
        %v9599 = vpack.c.bf16 %v9593, %v9593
        %v9600 = vpack.c.bf16 %v9594, %v9594
        %v9601 = vpack.c.bf16 %v9595, %v9595
        %v9602 = vld [vmem:[#allocation10] sm:$0xf]
        %v9603 = vld [vmem:[#allocation10 + $0x4] sm:$0xf]
        %v9604 = vld [vmem:[#allocation10 + $0x8] sm:$0xf]
        %v9605 = vld [vmem:[#allocation10 + $0xc] sm:$0xf]
        %v9606 = vld [vmem:[#allocation10 + $0x10] sm:$0xf]
        %v9607 = vld [vmem:[#allocation10 + $0x14] sm:$0xf]
        %v9608 = vld [vmem:[#allocation10 + $0x18] sm:$0xf]
        %v9609 = vld [vmem:[#allocation10 + $0x1c] sm:$0xf]
        %v9610 = vld [vmem:[#allocation10 + $0x20] sm:$0xf]
        %v9611 = vld [vmem:[#allocation10 + $0x24] sm:$0xf]
        %v9612 = vld [vmem:[#allocation10 + $0x28] sm:$0xf]
        %v9613 = vld [vmem:[#allocation10 + $0x2c] sm:$0xf]
        %v9614 = vld [vmem:[#allocation10 + $0x30] sm:$0xf]
        %v9615 = vld [vmem:[#allocation10 + $0x34] sm:$0xf]
        %v9616 = vld [vmem:[#allocation10 + $0x38] sm:$0xf]
        %v9617 = vld [vmem:[#allocation10 + $0x3c] sm:$0xf]
        %v9618 = vld [vmem:[#allocation10 + $0x40] sm:$0xf]
        %v9619 = vld [vmem:[#allocation10 + $0x44] sm:$0xf]
        %v9620 = vld [vmem:[#allocation10 + $0x48] sm:$0xf]
        %v9621 = vld [vmem:[#allocation10 + $0x4c] sm:$0xf]
        %v9622 = vld [vmem:[#allocation10 + $0x50] sm:$0xf]
        %v9623 = vld [vmem:[#allocation10 + $0x54] sm:$0xf]
        %v9624 = vld [vmem:[#allocation10 + $0x58] sm:$0xf]
        %v9625 = vld [vmem:[#allocation10 + $0x5c] sm:$0xf]
        %v9626 = vld [vmem:[#allocation10 + $0x60] sm:$0xf]
        %v9627 = vld [vmem:[#allocation10 + $0x64] sm:$0xf]
        %v9628 = vld [vmem:[#allocation10 + $0x68] sm:$0xf]
        %v9629 = vld [vmem:[#allocation10 + $0x6c] sm:$0xf]
        %v9630 = vld [vmem:[#allocation10 + $0x70] sm:$0xf]
        %v9631 = vld [vmem:[#allocation10 + $0x74] sm:$0xf]
        %v9632 = vld [vmem:[#allocation10 + $0x78] sm:$0xf]
        %v9633 = vld [vmem:[#allocation10 + $0x7c] sm:$0xf]
        %v9634 = vld [vmem:[#allocation10 + $0x80] sm:$0xf]
        %v9635 = vld [vmem:[#allocation10 + $0x84] sm:$0xf]
        %v9636 = vld [vmem:[#allocation10 + $0x88] sm:$0xf]
        %v9637 = vld [vmem:[#allocation10 + $0x8c] sm:$0xf]
        %v9638 = vld [vmem:[#allocation10 + $0x90] sm:$0xf]
        %v9639 = vld [vmem:[#allocation10 + $0x94] sm:$0xf]
        %v9640 = vld [vmem:[#allocation10 + $0x98] sm:$0xf]
        %v9641 = vld [vmem:[#allocation10 + $0x9c] sm:$0xf]
        %v9642 = vld [vmem:[#allocation10 + $0xa0] sm:$0xf]
        %v9643 = vld [vmem:[#allocation10 + $0xa4] sm:$0xf]
        %v9644 = vld [vmem:[#allocation10 + $0xa8] sm:$0xf]
        %v9645 = vld [vmem:[#allocation10 + $0xac] sm:$0xf]
        %v9646 = vld [vmem:[#allocation10 + $0xb0] sm:$0xf]
        %v9647 = vld [vmem:[#allocation10 + $0xb4] sm:$0xf]
        %v9648 = vld [vmem:[#allocation10 + $0xb8] sm:$0xf]
        %v9649 = vld [vmem:[#allocation10 + $0xbc] sm:$0xf]
        %v9650 = vld [vmem:[#allocation10 + $0xc0] sm:$0xf]
        %v9651 = vld [vmem:[#allocation10 + $0xc4] sm:$0xf]
        %v9652 = vld [vmem:[#allocation10 + $0xc8] sm:$0xf]
        %v9653 = vld [vmem:[#allocation10 + $0xcc] sm:$0xf]
        %v9654 = vld [vmem:[#allocation10 + $0xd0] sm:$0xf]
        %v9655 = vld [vmem:[#allocation10 + $0xd4] sm:$0xf]
        %v9656 = vld [vmem:[#allocation10 + $0xd8] sm:$0xf]
        %v9657 = vld [vmem:[#allocation10 + $0xdc] sm:$0xf]
        %v9658 = vld [vmem:[#allocation10 + $0xe0] sm:$0xf]
        %v9659 = vld [vmem:[#allocation10 + $0xe4] sm:$0xf]
        %v9660 = vld [vmem:[#allocation10 + $0xe8] sm:$0xf]
        %v9661 = vld [vmem:[#allocation10 + $0xec] sm:$0xf]
        %v9662 = vld [vmem:[#allocation10 + $0xf0] sm:$0xf]
        %v9663 = vld [vmem:[#allocation10 + $0xf4] sm:$0xf]
        %v9664 = vld [vmem:[#allocation10 + $0xf8] sm:$0xf]
        %v9665 = vld [vmem:[#allocation10 + $0xfc] sm:$0xf]
        %v9666 = vld [vmem:[#allocation10 + $0x100] sm:$0xf]
        %v9667 = vld [vmem:[#allocation10 + $0x104] sm:$0xf]
        %v9668 = vld [vmem:[#allocation10 + $0x108] sm:$0xf]
        %v9669 = vld [vmem:[#allocation10 + $0x10c] sm:$0xf]
        %v9670 = vld [vmem:[#allocation10 + $0x110] sm:$0xf]
        %v9671 = vld [vmem:[#allocation10 + $0x114] sm:$0xf]
        %v9672 = vld [vmem:[#allocation10 + $0x118] sm:$0xf]
        %v9673 = vld [vmem:[#allocation10 + $0x11c] sm:$0xf]
        %v9674 = vld [vmem:[#allocation10 + $0x120] sm:$0xf]
        %v9675 = vld [vmem:[#allocation10 + $0x124] sm:$0xf]
        %v9676 = vld [vmem:[#allocation10 + $0x128] sm:$0xf]
        %v9677 = vld [vmem:[#allocation10 + $0x12c] sm:$0xf]
        %v9678 = vld [vmem:[#allocation10 + $0x130] sm:$0xf]
        %v9679 = vld [vmem:[#allocation10 + $0x134] sm:$0xf]
        %v9680 = vld [vmem:[#allocation10 + $0x138] sm:$0xf]
        %v9681 = vld [vmem:[#allocation10 + $0x13c] sm:$0xf]
        %v9682 = vld [vmem:[#allocation10 + $0x140] sm:$0xf]
        %v9683 = vld [vmem:[#allocation10 + $0x144] sm:$0xf]
        %v9684 = vld [vmem:[#allocation10 + $0x148] sm:$0xf]
        %v9685 = vld [vmem:[#allocation10 + $0x14c] sm:$0xf]
        %v9686 = vld [vmem:[#allocation10 + $0x150] sm:$0xf]
        %v9687 = vld [vmem:[#allocation10 + $0x154] sm:$0xf]
        %v9688 = vld [vmem:[#allocation10 + $0x158] sm:$0xf]
        %v9689 = vld [vmem:[#allocation10 + $0x15c] sm:$0xf]
        %v9690 = vld [vmem:[#allocation10 + $0x160] sm:$0xf]
        %v9691 = vld [vmem:[#allocation10 + $0x164] sm:$0xf]
        %v9692 = vld [vmem:[#allocation10 + $0x168] sm:$0xf]
        %v9693 = vld [vmem:[#allocation10 + $0x16c] sm:$0xf]
        %v9694 = vld [vmem:[#allocation10 + $0x170] sm:$0xf]
        %v9695 = vld [vmem:[#allocation10 + $0x174] sm:$0xf]
        %v9696 = vld [vmem:[#allocation10 + $0x178] sm:$0xf]
        %v9697 = vld [vmem:[#allocation10 + $0x17c] sm:$0xf]
        %v9698 = vld [vmem:[#allocation11] sm:$0x1]
        %v9700 = vlaneseq
        %v9701 = vshrl.u32 %v9700, 7
        %v9702 = vsub.s32 0, %v9701
        %v9703 = vrot.slane %v9698, %v9702
        %v9801 = vunpack.c.l.b16 %v9602
        %v9802 = vunpack.c.l.b16 %v9603
        %v9803 = vunpack.c.l.b16 %v9604
        %v9804 = vunpack.c.l.b16 %v9605
        %v9805 = vunpack.c.l.b16 %v9606
        %v9806 = vunpack.c.l.b16 %v9607
        %v9807 = vunpack.c.l.b16 %v9608
        %v9808 = vunpack.c.l.b16 %v9609
        %v9809 = vunpack.c.l.b16 %v9610
        %v9810 = vunpack.c.l.b16 %v9611
        %v9811 = vunpack.c.l.b16 %v9612
        %v9812 = vunpack.c.l.b16 %v9613
        %v9813 = vunpack.c.l.b16 %v9614
        %v9814 = vunpack.c.l.b16 %v9615
        %v9815 = vunpack.c.l.b16 %v9616
        %v9816 = vunpack.c.l.b16 %v9617
        %v9817 = vunpack.c.l.b16 %v9618
        %v9818 = vunpack.c.l.b16 %v9619
        %v9819 = vunpack.c.l.b16 %v9620
        %v9820 = vunpack.c.l.b16 %v9621
        %v9821 = vunpack.c.l.b16 %v9622
        %v9822 = vunpack.c.l.b16 %v9623
        %v9823 = vunpack.c.l.b16 %v9624
        %v9824 = vunpack.c.l.b16 %v9625
        %v9825 = vunpack.c.l.b16 %v9626
        %v9826 = vunpack.c.l.b16 %v9627
        %v9827 = vunpack.c.l.b16 %v9628
        %v9828 = vunpack.c.l.b16 %v9629
        %v9829 = vunpack.c.l.b16 %v9630
        %v9830 = vunpack.c.l.b16 %v9631
        %v9831 = vunpack.c.l.b16 %v9632
        %v9832 = vunpack.c.l.b16 %v9633
        %v9833 = vunpack.c.l.b16 %v9634
        %v9834 = vunpack.c.l.b16 %v9635
        %v9835 = vunpack.c.l.b16 %v9636
        %v9836 = vunpack.c.l.b16 %v9637
        %v9837 = vunpack.c.l.b16 %v9638
        %v9838 = vunpack.c.l.b16 %v9639
        %v9839 = vunpack.c.l.b16 %v9640
        %v9840 = vunpack.c.l.b16 %v9641
        %v9841 = vunpack.c.l.b16 %v9642
        %v9842 = vunpack.c.l.b16 %v9643
        %v9843 = vunpack.c.l.b16 %v9644
        %v9844 = vunpack.c.l.b16 %v9645
        %v9845 = vunpack.c.l.b16 %v9646
        %v9846 = vunpack.c.l.b16 %v9647
        %v9847 = vunpack.c.l.b16 %v9648
        %v9848 = vunpack.c.l.b16 %v9649
        %v9849 = vunpack.c.l.b16 %v9650
        %v9850 = vunpack.c.l.b16 %v9651
        %v9851 = vunpack.c.l.b16 %v9652
        %v9852 = vunpack.c.l.b16 %v9653
        %v9853 = vunpack.c.l.b16 %v9654
        %v9854 = vunpack.c.l.b16 %v9655
        %v9855 = vunpack.c.l.b16 %v9656
        %v9856 = vunpack.c.l.b16 %v9657
        %v9857 = vunpack.c.l.b16 %v9658
        %v9858 = vunpack.c.l.b16 %v9659
        %v9859 = vunpack.c.l.b16 %v9660
        %v9860 = vunpack.c.l.b16 %v9661
        %v9861 = vunpack.c.l.b16 %v9662
        %v9862 = vunpack.c.l.b16 %v9663
        %v9863 = vunpack.c.l.b16 %v9664
        %v9864 = vunpack.c.l.b16 %v9665
        %v9865 = vunpack.c.l.b16 %v9666
        %v9866 = vunpack.c.l.b16 %v9667
        %v9867 = vunpack.c.l.b16 %v9668
        %v9868 = vunpack.c.l.b16 %v9669
        %v9869 = vunpack.c.l.b16 %v9670
        %v9870 = vunpack.c.l.b16 %v9671
        %v9871 = vunpack.c.l.b16 %v9672
        %v9872 = vunpack.c.l.b16 %v9673
        %v9873 = vunpack.c.l.b16 %v9674
        %v9874 = vunpack.c.l.b16 %v9675
        %v9875 = vunpack.c.l.b16 %v9676
        %v9876 = vunpack.c.l.b16 %v9677
        %v9877 = vunpack.c.l.b16 %v9678
        %v9878 = vunpack.c.l.b16 %v9679
        %v9879 = vunpack.c.l.b16 %v9680
        %v9880 = vunpack.c.l.b16 %v9681
        %v9881 = vunpack.c.l.b16 %v9682
        %v9882 = vunpack.c.l.b16 %v9683
        %v9883 = vunpack.c.l.b16 %v9684
        %v9884 = vunpack.c.l.b16 %v9685
        %v9885 = vunpack.c.l.b16 %v9686
        %v9886 = vunpack.c.l.b16 %v9687
        %v9887 = vunpack.c.l.b16 %v9688
        %v9888 = vunpack.c.l.b16 %v9689
        %v9889 = vunpack.c.l.b16 %v9690
        %v9890 = vunpack.c.l.b16 %v9691
        %v9891 = vunpack.c.l.b16 %v9692
        %v9892 = vunpack.c.l.b16 %v9693
        %v9893 = vunpack.c.l.b16 %v9694
        %v9894 = vunpack.c.l.b16 %v9695
        %v9895 = vunpack.c.l.b16 %v9696
        %v9896 = vunpack.c.l.b16 %v9697
        %v9897 = vpack.c.b16 %v9802, %v9801
        %v9898 = vpack.c.b16 %v9804, %v9803
        %v9899 = vpack.c.b16 %v9806, %v9805
        %v9900 = vpack.c.b16 %v9808, %v9807
        %v9901 = vpack.c.b16 %v9810, %v9809
        %v9902 = vpack.c.b16 %v9812, %v9811
        %v9903 = vpack.c.b16 %v9814, %v9813
        %v9904 = vpack.c.b16 %v9816, %v9815
        %v9905 = vpack.c.b16 %v9818, %v9817
        %v9906 = vpack.c.b16 %v9820, %v9819
        %v9907 = vpack.c.b16 %v9822, %v9821
        %v9908 = vpack.c.b16 %v9824, %v9823
        %v9909 = vpack.c.b16 %v9826, %v9825
        %v9910 = vpack.c.b16 %v9828, %v9827
        %v9911 = vpack.c.b16 %v9830, %v9829
        %v9912 = vpack.c.b16 %v9832, %v9831
        %v9913 = vpack.c.b16 %v9834, %v9833
        %v9914 = vpack.c.b16 %v9836, %v9835
        %v9915 = vpack.c.b16 %v9838, %v9837
        %v9916 = vpack.c.b16 %v9840, %v9839
        %v9917 = vpack.c.b16 %v9842, %v9841
        %v9918 = vpack.c.b16 %v9844, %v9843
        %v9919 = vpack.c.b16 %v9846, %v9845
        %v9920 = vpack.c.b16 %v9848, %v9847
        %v9921 = vpack.c.b16 %v9850, %v9849
        %v9922 = vpack.c.b16 %v9852, %v9851
        %v9923 = vpack.c.b16 %v9854, %v9853
        %v9924 = vpack.c.b16 %v9856, %v9855
        %v9925 = vpack.c.b16 %v9858, %v9857
        %v9926 = vpack.c.b16 %v9860, %v9859
        %v9927 = vpack.c.b16 %v9862, %v9861
        %v9928 = vpack.c.b16 %v9864, %v9863
        %v9929 = vpack.c.b16 %v9866, %v9865
        %v9930 = vpack.c.b16 %v9868, %v9867
        %v9931 = vpack.c.b16 %v9870, %v9869
        %v9932 = vpack.c.b16 %v9872, %v9871
        %v9933 = vpack.c.b16 %v9874, %v9873
        %v9934 = vpack.c.b16 %v9876, %v9875
        %v9935 = vpack.c.b16 %v9878, %v9877
        %v9936 = vpack.c.b16 %v9880, %v9879
        %v9937 = vpack.c.b16 %v9882, %v9881
        %v9938 = vpack.c.b16 %v9884, %v9883
        %v9939 = vpack.c.b16 %v9886, %v9885
        %v9940 = vpack.c.b16 %v9888, %v9887
        %v9941 = vpack.c.b16 %v9890, %v9889
        %v9942 = vpack.c.b16 %v9892, %v9891
        %v9943 = vpack.c.b16 %v9894, %v9893
        %v9944 = vpack.c.b16 %v9896, %v9895
        %9993 = vmatprep.subr.bf16.mxu0 0
        %9994 = vmatpush1.bf16.msra.mxu0 %v9897
        %9995 = vmatprep.subr.bf16.mxu0 0
        %9996 = vmatpush1.bf16.msra.mxu0 %v9898
        %9997 = vmatprep.subr.bf16.mxu0 0
        %9998 = vmatpush1.bf16.msra.mxu0 %v9899
        %9999 = vmatprep.subr.bf16.mxu0 0
        %10000 = vmatpush1.bf16.msra.mxu0 %v9900
        %10001 = vmatprep.subr.bf16.mxu0 0
        %10002 = vmatpush1.bf16.msra.mxu0 %v9901
        %10003 = vmatprep.subr.bf16.mxu0 0
        %10004 = vmatpush1.bf16.msra.mxu0 %v9902
        %10005 = vmatprep.subr.bf16.mxu0 0
        %10006 = vmatpush1.bf16.msra.mxu0 %v9903
        %10007 = vmatprep.subr.bf16.mxu0 0
        %10008 = vmatpush1.bf16.msra.mxu0 %v9904
        %10009 = vmatprep.subr.bf16.mxu0 0
        %10010 = vmatpush1.bf16.msra.mxu0 %v9905
        %10011 = vmatprep.subr.bf16.mxu0 0
        %10012 = vmatpush1.bf16.msra.mxu0 %v9906
        %10013 = vmatprep.subr.bf16.mxu0 0
        %10014 = vmatpush1.bf16.msra.mxu0 %v9907
        %10015 = vmatprep.subr.bf16.mxu0 0
        %10016 = vmatpush1.bf16.msra.mxu0 %v9908
        %10017 = vmatprep.subr.bf16.mxu0 0
        %10018 = vmatpush1.bf16.msra.mxu0 %v9909
        %10019 = vmatprep.subr.bf16.mxu0 0
        %10020 = vmatpush1.bf16.msra.mxu0 %v9910
        %10021 = vmatprep.subr.bf16.mxu0 0
        %10022 = vmatpush1.bf16.msra.mxu0 %v9911
        %10023 = vmatprep.subr.bf16.mxu0 0
        %10024 = vmatpush1.bf16.msra.mxu0 %v9912
        %10025 = vmatprep.mubr.bf16.mxu0 %v9597
        %10026 = vmatmul.mubr.bf16.gmra.mrb[0].mxu0 %v9596
        %v10027 = vpop.f32.mrb[0].mxu0
        %v10028 = vadd.f32 %v9703, %v10027
        %v10029 = vpop.f32.mrb[0].mxu0
        %v10030 = vpop.f32.mrb[0].mxu0
        %v10031 = vpop.f32.mrb[0].mxu0
        %10032 = vdwg.mxu0
        %10033 = vmatprep.subr.bf16.mxu0 0
        %10034 = vmatpush1.bf16.msra.mxu0 %v9913
        %10035 = vmatprep.subr.bf16.mxu0 0
        %10036 = vmatpush1.bf16.msra.mxu0 %v9914
        %10037 = vmatprep.subr.bf16.mxu0 0
        %10038 = vmatpush1.bf16.msra.mxu0 %v9915
        %10039 = vmatprep.subr.bf16.mxu0 0
        %10040 = vmatpush1.bf16.msra.mxu0 %v9916
        %10041 = vmatprep.subr.bf16.mxu0 0
        %10042 = vmatpush1.bf16.msra.mxu0 %v9917
        %10043 = vmatprep.subr.bf16.mxu0 0
        %10044 = vmatpush1.bf16.msra.mxu0 %v9918
        %10045 = vmatprep.subr.bf16.mxu0 0
        %10046 = vmatpush1.bf16.msra.mxu0 %v9919
        %10047 = vmatprep.subr.bf16.mxu0 0
        %10048 = vmatpush1.bf16.msra.mxu0 %v9920
        %10049 = vmatprep.subr.bf16.mxu0 0
        %10050 = vmatpush1.bf16.msra.mxu0 %v9921
        %10051 = vmatprep.subr.bf16.mxu0 0
        %10052 = vmatpush1.bf16.msra.mxu0 %v9922
        %10053 = vmatprep.subr.bf16.mxu0 0
        %10054 = vmatpush1.bf16.msra.mxu0 %v9923
        %10055 = vmatprep.subr.bf16.mxu0 0
        %10056 = vmatpush1.bf16.msra.mxu0 %v9924
        %10057 = vmatprep.subr.bf16.mxu0 0
        %10058 = vmatpush1.bf16.msra.mxu0 %v9925
        %10059 = vmatprep.subr.bf16.mxu0 0
        %10060 = vmatpush1.bf16.msra.mxu0 %v9926
        %10061 = vmatprep.subr.bf16.mxu0 0
        %10062 = vmatpush1.bf16.msra.mxu0 %v9927
        %10063 = vmatprep.subr.bf16.mxu0 0
        %10064 = vmatpush1.bf16.msra.mxu0 %v9928
        %10065 = vmatprep.mubr.bf16.mxu0 %v9599
        %10066 = vmatmul.mubr.bf16.gmra.mrb[0].mxu0 %v9598
        %v10067 = vpop.f32.mrb[0].mxu0
        %v10068 = vadd.f32 %v10028, %v10067
        %v10069 = vpop.f32.mrb[0].mxu0
        %v10070 = vpop.f32.mrb[0].mxu0
        %v10071 = vpop.f32.mrb[0].mxu0
        %10072 = vdwg.mxu0
        %10073 = vmatprep.subr.bf16.mxu0 0
        %10074 = vmatpush1.bf16.msra.mxu0 %v9929
        %10075 = vmatprep.subr.bf16.mxu0 0
        %10076 = vmatpush1.bf16.msra.mxu0 %v9930
        %10077 = vmatprep.subr.bf16.mxu0 0
        %10078 = vmatpush1.bf16.msra.mxu0 %v9931
        %10079 = vmatprep.subr.bf16.mxu0 0
        %10080 = vmatpush1.bf16.msra.mxu0 %v9932
        %10081 = vmatprep.subr.bf16.mxu0 0
        %10082 = vmatpush1.bf16.msra.mxu0 %v9933
        %10083 = vmatprep.subr.bf16.mxu0 0
        %10084 = vmatpush1.bf16.msra.mxu0 %v9934
        %10085 = vmatprep.subr.bf16.mxu0 0
        %10086 = vmatpush1.bf16.msra.mxu0 %v9935
        %10087 = vmatprep.subr.bf16.mxu0 0
        %10088 = vmatpush1.bf16.msra.mxu0 %v9936
        %10089 = vmatprep.subr.bf16.mxu0 0
        %10090 = vmatpush1.bf16.msra.mxu0 %v9937
        %10091 = vmatprep.subr.bf16.mxu0 0
        %10092 = vmatpush1.bf16.msra.mxu0 %v9938
        %10093 = vmatprep.subr.bf16.mxu0 0
        %10094 = vmatpush1.bf16.msra.mxu0 %v9939
        %10095 = vmatprep.subr.bf16.mxu0 0
        %10096 = vmatpush1.bf16.msra.mxu0 %v9940
        %10097 = vmatprep.subr.bf16.mxu0 0
        %10098 = vmatpush1.bf16.msra.mxu0 %v9941
        %10099 = vmatprep.subr.bf16.mxu0 0
        %10100 = vmatpush1.bf16.msra.mxu0 %v9942
        %10101 = vmatprep.subr.bf16.mxu0 0
        %10102 = vmatpush1.bf16.msra.mxu0 %v9943
        %10103 = vmatprep.subr.bf16.mxu0 0
        %10104 = vmatpush1.bf16.msra.mxu0 %v9944
        %10105 = vmatprep.mubr.bf16.mxu0 %v9601
        %10106 = vmatmul.mubr.bf16.gmra.mrb[0].mxu0 %v9600
        %v10107 = vpop.f32.mrb[0].mxu0
        %v10108 = vadd.f32 %v10068, %v10107
        %v10109 = vpop.f32.mrb[0].mxu0
        %v10110 = vpop.f32.mrb[0].mxu0
        %v10111 = vpop.f32.mrb[0].mxu0
        %10112 = vdwg.mxu0
        %v10113 = vmax.f32 %v10108, 0.0
        %v10114 = vpack.c.bf16 %v10113, %v10113
        %v10115 = vld [vmem:[#allocation13] sm:$0xf]
        %v10116 = vld [vmem:[#allocation13 + $0x4] sm:$0xf]
        %v10117 = vld [vmem:[#allocation13 + $0x8] sm:$0xf]
        %v10118 = vld [vmem:[#allocation13 + $0xc] sm:$0xf]
        %v10119 = vld [vmem:[#allocation13 + $0x10] sm:$0xf]
        %v10120 = vld [vmem:[#allocation13 + $0x14] sm:$0xf]
        %v10121 = vld [vmem:[#allocation13 + $0x18] sm:$0xf]
        %v10122 = vld [vmem:[#allocation13 + $0x1c] sm:$0xf]
        %v10123 = vld [vmem:[#allocation13 + $0x20] sm:$0xf]
        %v10124 = vld [vmem:[#allocation13 + $0x24] sm:$0xf]
        %v10125 = vld [vmem:[#allocation13 + $0x28] sm:$0xf]
        %v10126 = vld [vmem:[#allocation13 + $0x2c] sm:$0xf]
        %v10127 = vld [vmem:[#allocation13 + $0x30] sm:$0xf]
        %v10128 = vld [vmem:[#allocation13 + $0x34] sm:$0xf]
        %v10129 = vld [vmem:[#allocation13 + $0x38] sm:$0xf]
        %v10130 = vld [vmem:[#allocation13 + $0x3c] sm:$0xf]
        %v10131 = vld [vmem:[#allocation14] sm:$0x1]
        %v10133 = vlaneseq
        %v10134 = vshrl.u32 %v10133, 7
        %v10135 = vsub.s32 0, %v10134
        %v10136 = vrot.slane %v10131, %v10135
        %v10154 = vunpack.c.l.b16 %v10115
        %v10155 = vunpack.c.l.b16 %v10116
        %v10156 = vunpack.c.l.b16 %v10117
        %v10157 = vunpack.c.l.b16 %v10118
        %v10158 = vunpack.c.l.b16 %v10119
        %v10159 = vunpack.c.l.b16 %v10120
        %v10160 = vunpack.c.l.b16 %v10121
        %v10161 = vunpack.c.l.b16 %v10122
        %v10162 = vunpack.c.l.b16 %v10123
        %v10163 = vunpack.c.l.b16 %v10124
        %v10164 = vunpack.c.l.b16 %v10125
        %v10165 = vunpack.c.l.b16 %v10126
        %v10166 = vunpack.c.l.b16 %v10127
        %v10167 = vunpack.c.l.b16 %v10128
        %v10168 = vunpack.c.l.b16 %v10129
        %v10169 = vunpack.c.l.b16 %v10130
        %v10170 = vpack.c.b16 %v10155, %v10154
        %v10171 = vpack.c.b16 %v10157, %v10156
        %v10172 = vpack.c.b16 %v10159, %v10158
        %v10173 = vpack.c.b16 %v10161, %v10160
        %v10174 = vpack.c.b16 %v10163, %v10162
        %v10175 = vpack.c.b16 %v10165, %v10164
        %v10176 = vpack.c.b16 %v10167, %v10166
        %v10177 = vpack.c.b16 %v10169, %v10168
        %10186 = vmatprep.subr.bf16.mxu0 0
        %10187 = vmatpush1.bf16.msra.mxu0 %v10170
        %10188 = vmatprep.subr.bf16.mxu0 0
        %10189 = vmatpush1.bf16.msra.mxu0 %v10171
        %10190 = vmatprep.subr.bf16.mxu0 0
        %10191 = vmatpush1.bf16.msra.mxu0 %v10172
        %10192 = vmatprep.subr.bf16.mxu0 0
        %10193 = vmatpush1.bf16.msra.mxu0 %v10173
        %10194 = vmatprep.subr.bf16.mxu0 0
        %10195 = vmatpush1.bf16.msra.mxu0 %v10174
        %10196 = vmatprep.subr.bf16.mxu0 0
        %10197 = vmatpush1.bf16.msra.mxu0 %v10175
        %10198 = vmatprep.subr.bf16.mxu0 0
        %10199 = vmatpush1.bf16.msra.mxu0 %v10176
        %10200 = vmatprep.subr.bf16.mxu0 0
        %10201 = vmatpush1.bf16.msra.mxu0 %v10177
        %10202 = vmatprep.subr.bf16.mxu0 0
        %10203 = vmatpush1.bf16.msra.mxu0 0
        %10204 = vmatprep.subr.bf16.mxu0 0
        %10205 = vmatpush1.bf16.msra.mxu0 0
        %10206 = vmatprep.subr.bf16.mxu0 0
        %10207 = vmatpush1.bf16.msra.mxu0 0
        %10208 = vmatprep.subr.bf16.mxu0 0
        %10209 = vmatpush1.bf16.msra.mxu0 0
        %10210 = vmatprep.subr.bf16.mxu0 0
        %10211 = vmatpush1.bf16.msra.mxu0 0
        %10212 = vmatprep.subr.bf16.mxu0 0
        %10213 = vmatpush1.bf16.msra.mxu0 0
        %10214 = vmatprep.subr.bf16.mxu0 0
        %10215 = vmatpush1.bf16.msra.mxu0 0
        %10216 = vmatprep.subr.bf16.mxu0 0
        %10217 = vmatpush1.bf16.msra.mxu0 0
        %10218 = vmatprep.mubr.bf16.mxu0 0
        %10219 = vmatmul.mubr.bf16.gmra.mrb[0].mxu0 %v10114
        %v10220 = vpop.f32.mrb[0].mxu0
        %v10221 = vadd.f32 %v10136, %v10220
        %v10222 = vpop.f32.mrb[0].mxu0
        %v10223 = vpop.f32.mrb[0].mxu0
        %v10224 = vpop.f32.mrb[0].mxu0
        %10225 = vdwg.mxu0
        %v10226 = vmax.f32 %v10221, 0.0
        %v10227 = vpack.c.bf16 %v10226, %v10226
        %v10228 = vld [vmem:[#allocation16] sm:$0xf]
        %v10229 = vld [vmem:[#allocation16 + $0x4] sm:$0xf]
        %v10230 = vld [vmem:[#allocation16 + $0x8] sm:$0xf]
        %v10231 = vld [vmem:[#allocation16 + $0xc] sm:$0xf]
        %v10232 = vld [vmem:[#allocation16 + $0x10] sm:$0xf]
        %v10233 = vld [vmem:[#allocation16 + $0x14] sm:$0xf]
        %v10234 = vld [vmem:[#allocation16 + $0x18] sm:$0xf]
        %v10235 = vld [vmem:[#allocation16 + $0x1c] sm:$0xf]
        %v10236 = vld [vmem:[#allocation16 + $0x20] sm:$0xf]
        %v10237 = vld [vmem:[#allocation16 + $0x24] sm:$0xf]
        %v10238 = vld [vmem:[#allocation16 + $0x28] sm:$0xf]
        %v10239 = vld [vmem:[#allocation16 + $0x2c] sm:$0xf]
        %v10240 = vld [vmem:[#allocation16 + $0x30] sm:$0xf]
        %v10241 = vld [vmem:[#allocation16 + $0x34] sm:$0xf]
        %v10242 = vld [vmem:[#allocation16 + $0x38] sm:$0xf]
        %v10243 = vld [vmem:[#allocation16 + $0x3c] sm:$0xf]
        %v10244 = vld [vmem:[#allocation17] sm:$0x1]
        %v10246 = vlaneseq
        %v10247 = vshrl.u32 %v10246, 7
        %v10248 = vsub.s32 0, %v10247
        %v10249 = vrot.slane %v10244, %v10248
        %v10267 = vunpack.c.l.b16 %v10228
        %v10268 = vunpack.c.l.b16 %v10229
        %v10269 = vunpack.c.l.b16 %v10230
        %v10270 = vunpack.c.l.b16 %v10231
        %v10271 = vunpack.c.l.b16 %v10232
        %v10272 = vunpack.c.l.b16 %v10233
        %v10273 = vunpack.c.l.b16 %v10234
        %v10274 = vunpack.c.l.b16 %v10235
        %v10275 = vunpack.c.l.b16 %v10236
        %v10276 = vunpack.c.l.b16 %v10237
        %v10277 = vunpack.c.l.b16 %v10238
        %v10278 = vunpack.c.l.b16 %v10239
        %v10279 = vunpack.c.l.b16 %v10240
        %v10280 = vunpack.c.l.b16 %v10241
        %v10281 = vunpack.c.l.b16 %v10242
        %v10282 = vunpack.c.l.b16 %v10243
        %v10283 = vpack.c.b16 %v10268, %v10267
        %v10284 = vpack.c.b16 %v10270, %v10269
        %v10285 = vpack.c.b16 %v10272, %v10271
        %v10286 = vpack.c.b16 %v10274, %v10273
        %v10287 = vpack.c.b16 %v10276, %v10275
        %v10288 = vpack.c.b16 %v10278, %v10277
        %v10289 = vpack.c.b16 %v10280, %v10279
        %v10290 = vpack.c.b16 %v10282, %v10281
        %10299 = vmatprep.subr.bf16.mxu0 0
        %10300 = vmatpush1.bf16.msra.mxu0 %v10283
        %10301 = vmatprep.subr.bf16.mxu0 0
        %10302 = vmatpush1.bf16.msra.mxu0 %v10284
        %10303 = vmatprep.subr.bf16.mxu0 0
        %10304 = vmatpush1.bf16.msra.mxu0 %v10285
        %10305 = vmatprep.subr.bf16.mxu0 0
        %10306 = vmatpush1.bf16.msra.mxu0 %v10286
        %10307 = vmatprep.subr.bf16.mxu0 0
        %10308 = vmatpush1.bf16.msra.mxu0 %v10287
        %10309 = vmatprep.subr.bf16.mxu0 0
        %10310 = vmatpush1.bf16.msra.mxu0 %v10288
        %10311 = vmatprep.subr.bf16.mxu0 0
        %10312 = vmatpush1.bf16.msra.mxu0 %v10289
        %10313 = vmatprep.subr.bf16.mxu0 0
        %10314 = vmatpush1.bf16.msra.mxu0 %v10290
        %10315 = vmatprep.subr.bf16.mxu0 0
        %10316 = vmatpush1.bf16.msra.mxu0 0
        %10317 = vmatprep.subr.bf16.mxu0 0
        %10318 = vmatpush1.bf16.msra.mxu0 0
        %10319 = vmatprep.subr.bf16.mxu0 0
        %10320 = vmatpush1.bf16.msra.mxu0 0
        %10321 = vmatprep.subr.bf16.mxu0 0
        %10322 = vmatpush1.bf16.msra.mxu0 0
        %10323 = vmatprep.subr.bf16.mxu0 0
        %10324 = vmatpush1.bf16.msra.mxu0 0
        %10325 = vmatprep.subr.bf16.mxu0 0
        %10326 = vmatpush1.bf16.msra.mxu0 0
        %10327 = vmatprep.subr.bf16.mxu0 0
        %10328 = vmatpush1.bf16.msra.mxu0 0
        %10329 = vmatprep.subr.bf16.mxu0 0
        %10330 = vmatpush1.bf16.msra.mxu0 0
        %10331 = vmatprep.mubr.bf16.mxu0 0
        %10332 = vmatmul.mubr.bf16.gmra.mrb[0].mxu0 %v10227
        %v10333 = vpop.f32.mrb[0].mxu0
        %v10334 = vadd.f32 %v10249, %v10333
        %v10335 = vpop.f32.mrb[0].mxu0
        %v10336 = vpop.f32.mrb[0].mxu0
        %v10337 = vpop.f32.mrb[0].mxu0
        %10338 = vdwg.mxu0
        %10339 = vst [vmem:[%s501] sm:$0xff] %v10334
        %s10340 = sand.u32 %s255, 1
        %s10341 = scalar_lea.sflag [#allocation4], %s10340
        %s10342 = sand.u32 %s255, 1
        %s10343 = smul.addr %s10342, 8
        %s10344 = scalar_lea.vmem [#allocation19], %s10343
        // Predicated region
        $region101: #{wcnn_forward.1} parent=59 // pred_check
          %p10345 = pneg %p265
        $region102: #{wcnn_forward.1} parent=59 // pred_check_branch
          %10347 = sbr.rel (%p10345) target = $region104
        $region103: #{wcnn_forward.1} parent=59 // pred_region
          %s10349 = ssub.s32 128, 128
          %10350 = vsyncadd %s10341, %s10349
          %s10351 = smul.addr %s32, 128
          %s10352 = scalar_lea.hbm %s10, %s10351
          %s10354 = sshll.u32 %s10344, 4
          %s10355 = int_to_ptr.vmem [resolvable:$true] %s10354
          %10357 = dma.vmem_to_hbm [thread:$0]  %s10355, 128, %s10352, %s10341
        $region104: #{wcnn_forward.1} parent=59 // pred_fallthru
          _
      $region60: #{wcnn_forward.1} parent=5 // pred_fallthru
        _
      %p10358 = scmp.le.s32.totalorder 2, %s27
      // Predicated region
      $region105: #{wcnn_forward.1} parent=5 // pred_check
        %p10359 = pneg %p10358
      $region106: #{wcnn_forward.1} parent=5 // pred_check_branch
        %10361 = sbr.rel (%p10359) target = $region108
      $region107: #{wcnn_forward.1} parent=5 // pred_region
        %s10362 = ssub.s32 %s27, 2
        // Predicated region
        $region109: #{wcnn_forward.1} parent=107 // pred_check
          %p10363 = pneg %p271
        $region110: #{wcnn_forward.1} parent=107 // pred_check_branch
          %10365 = sbr.rel (%p10363) target = $region112
        $region111: #{wcnn_forward.1} parent=107 // pred_region
          %s10366 = sand.u32 %s256, 1
          %s10367 = scalar_lea.sflag [#allocation4], %s10366
          %s10368 = sand.u32 %s256, 1
          %s10369 = smul.addr %s10368, 8
          %s10370 = scalar_lea.vmem [#allocation19], %s10369
          %10371 = dma.done %s10367, 128
        $region112: #{wcnn_forward.1} parent=107 // pred_fallthru
          _
      $region108: #{wcnn_forward.1} parent=5 // pred_fallthru
        _
    $region6: #{wcnn_forward.1} parent=1 // loop_footer
      %s31 = sadd.s32 1, %s27
    $region7: #{wcnn_forward.1} parent=1 // loop_footer_branch
      %26 = sbr.rel target = $region3
    $region8: #{wcnn_forward.1} parent=1 // loop_exit
      _
    %10372 = vsyncpa [#allocation3], 1
    %s10373 = scalar_lea.sflag [#allocation3], 1
    %10374 = vsyncpa %s10373, 1
    %10375 = vsyncpa [#allocation6], 1
    %10376 = vsyncpa [#allocation9], 1
    %10377 = vsyncpa [#allocation12], 1
    %10378 = vsyncpa [#allocation15], 1
    %10379 = vsyncpa [#allocation18], 1
    %10380 = vsyncpa [#allocation4], 1
    %s10381 = scalar_lea.sflag [#allocation4], 1
    %10382 = vsyncpa %s10381, 1

</llo_original>
